<compile_context>
chip_gen: v7x
topology: tpu7x:2x2x1
jax: 0.10.0
libtpu: 0.0.40
codegen_flags: <defaults>
</compile_context>

<pallas_src>
import jax
import jax.numpy as jnp
import numpy as np
from jax import lax
from jax.experimental import pallas as pl
from jax.experimental.pallas import tpu as pltpu

KERNEL_STYLE = [(1, 3, 3), (1, 1, 3), (1, 3, 1), (3, 3, 1)]
BN_EPS = 1e-5


# ---------------------------------------------------------------------------
# pltpu.roll direction probe (one tiny kernel, run once at import).  Makes the
# lane-shift direction robust to the roll convention and falls back to a
# slice+concat rotation if roll does not lower for this shape.
# ---------------------------------------------------------------------------
def _detect_roll_mode():
    def probe(x_ref, o_ref):
        o_ref[...] = pltpu.roll(x_ref[...], shift=1, axis=1)

    try:
        x = jnp.broadcast_to(jnp.arange(512, dtype=jnp.float32), (2, 512))
        y = np.asarray(pl.pallas_call(
            probe, out_shape=jax.ShapeDtypeStruct((2, 512), jnp.float32))(x))
        xn = np.asarray(x)
        if np.array_equal(y, np.roll(xn, 1, axis=1)):
            return "jnp"        # pltpu.roll(x, k)[p] == x[(p - k) % n]
        if np.array_equal(y, np.roll(xn, -1, axis=1)):
            return "neg"        # pltpu.roll(x, k)[p] == x[(p + k) % n]
    except Exception:
        pass
    return "concat"             # static slice + concat fallback


_ROLL_MODE = _detect_roll_mode()


# ---------------------------------------------------------------------------
# In-kernel helpers
# ---------------------------------------------------------------------------
def _shift_lanes(v, s, n):
    """out[:, p] = v[:, (p + s) % n]   (s is a static Python int, s % n != 0)."""
    if _ROLL_MODE == "concat":
        k = s % n
        return jnp.concatenate([v[:, k:], v[:, :k]], axis=1)
    shift = (-s) % n if _ROLL_MODE == "jnp" else s % n
    return pltpu.roll(v, shift=shift, axis=1)


def _fused_conv(act, w_ref, plan, mask_ref, ones_row):
    """Conv3d + BN + ReLU on a flat (cin, D*H*W) slab as ONE bf16 MXU matmul.

    plan[t] = (lane_offset, mask_row | None).  The RHS stacks the lane-shifted
    + masked activation for every tap plus a ones row (folded BN bias column).
    """
    n = act.shape[-1]
    parts = []
    for s, m in plan:
        if m is None:                          # centre tap: no shift, no mask
            parts.append(act)
        else:
            v = _shift_lanes(act, s, n) if s % n else act
            parts.append(v * mask_ref[m:m + 1, :])
    parts.append(ones_row)
    rhs = jnp.concatenate(parts, axis=0).astype(jnp.bfloat16)
    out = jnp.dot(w_ref[...], rhs, preferred_element_type=jnp.float32)
    return jnp.maximum(out, 0.0)


# ---------------------------------------------------------------------------
# Wrapper-side static planning / parameter preprocessing (jit/constant-folded)
# ---------------------------------------------------------------------------
def _enumerate_taps(ks):
    KD, KH, KW = ks
    return [(kd, kh, kw) for kd in range(KD) for kh in range(KH)
            for kw in range(KW)]


def _tap_masks(ks, pad, D, H, W):
    """(n_taps, D*H*W) 0/1 masks implementing zero padding in D, H and W."""
    pd, ph, pw = pad
    idx = jnp.arange(D * H * W, dtype=jnp.int32)
    d, h, w = idx // (H * W), (idx // W) % H, idx % W
    rows = []
    for kd, kh, kw in _enumerate_taps(ks):
        dd, hh, ww = d + (kd - pd), h + (kh - ph), w + (kw - pw)
        rows.append(((dd >= 0) & (dd < D) & (hh >= 0) & (hh < H)
                     & (ww >= 0) & (ww < W)).astype(jnp.float32))
    return jnp.stack(rows, axis=0)


def _conv_plan(ks, pad, mask_start, D, H, W):
    """Static per-tap (lane_offset, mask_row) plan (mask_row None for centre)."""
    pd, ph, pw = pad
    HW = H * W
    plan = []
    for j, (kd, kh, kw) in enumerate(_enumerate_taps(ks)):
        s = (kd - pd) * HW + (kh - ph) * W + (kw - pw)
        centre = (kd == pd) and (kh == ph) and (kw == pw)
        plan.append((s, None if centre else mask_start + j))
    return plan


def _fuse_weight(p):
    """(cout, n_taps*cin + 1) bf16: conv taps * BN scale, plus BN-bias column."""
    w = p['w'].astype(jnp.float32)
    cout, cin, KD, KH, KW = w.shape
    scale = (p['gamma'] / jnp.sqrt(1.0 + BN_EPS)).astype(jnp.float32)
    w = w * scale[:, None, None, None, None]
    wm = jnp.transpose(w, (0, 2, 3, 4, 1)).reshape(cout, KD * KH * KW * cin)
    wm = jnp.concatenate([wm, p['beta'].astype(jnp.float32)[:, None]], axis=1)
    return wm.astype(jnp.bfloat16)


def _const_spec(arr):
    idx = (0,) * arr.ndim
    return pl.BlockSpec(arr.shape, lambda n, _idx=idx: _idx)


# ---------------------------------------------------------------------------
# ResGNet.forward (divisible-channel path) — one fused pallas_call
# ---------------------------------------------------------------------------
def resgnet_forward(params, x):
    N, C, D, H, W = x.shape
    raw_in, raw_out = params['cfg']['raw_in'], params['cfg']['raw_out']
    assert C == raw_in
    cin = raw_in // 4
    DHW = D * H * W
    assert DHW % 128 == 0, "D*H*W must be a multiple of 128 (lane axis)"

    x2 = x.reshape(N, C, DHW)                  # free layout fold; lanes = D*H*W

    # -- static planning: unique-kernel-shape mask blocks + per-conv plans ----
    mask_blocks, mask_list, n_rows = {}, [], [0]

    def mask_start(ks, pad):
        if ks == (1, 1, 1):
            return 0                           # single centre tap, no mask used
        key = (ks, pad)
        if key not in mask_blocks:
            mask_blocks[key] = n_rows[0]
            mask_list.append(_tap_masks(ks, pad, D, H, W))
            n_rows[0] += ks[0] * ks[1] * ks[2]
        return mask_blocks[key]

    conv_ws, conv_plans = [], []

    def add_conv(p):
        ks = tuple(int(k) for k in p['w'].shape[2:])
        pad = tuple(p['pad'])
        conv_ws.append(_fuse_weight(p))
        conv_plans.append(_conv_plan(ks, pad, mask_start(ks, pad), D, H, W))

    has_res = []
    for i in range(4):
        for p in params['blocks'][i]:
            add_conv(p)
        r = params['residuals'][i]
        has_res.append(r is not None)
        if r is not None:
            add_conv(r)
    add_conv(params['scale'])
    has_skip = params['skip'] is not None
    if has_skip:
        add_conv(params['skip'])

    masks = (jnp.concatenate(mask_list, axis=0) if mask_list
             else jnp.ones((1, DHW), jnp.float32))
    n_w = len(conv_ws)

    # -- the fused kernel: whole ResGNet forward for one batch element -------
    def kernel(*refs):
        x_ref, mask_ref = refs[0], refs[1]
        w_refs, o_ref = refs[2:2 + n_w], refs[2 + n_w]
        xv = x_ref[...]                                    # (C, DHW) f32
        ones_row = jnp.ones((1, DHW), jnp.float32)         # hoisted bias row

        def conv(idx, act):
            return _fused_conv(act, w_refs[idx], conv_plans[idx],
                               mask_ref, ones_row)

        k = 0
        branch_outs = []
        for i in range(4):
            s = xv[i * cin:(i + 1) * cin, :]               # branch channel slab
            h = s
            for _ in range(3):                             # blocks[i]: 3 convs
                h = conv(k, h)
                k += 1
            if has_res[i]:                                 # 1x1x1 residual conv
                r = conv(k, s)
                k += 1
            else:                                          # Identity residual
                r = s
            branch_outs.append(h + r if i % 2 == 0 else h * r)
        y = jnp.concatenate(branch_outs, axis=0)           # channel concat
        out = conv(k, y)                                   # `scale` conv
        k += 1
        if has_skip:
            res = conv(k, xv)                              # 1x1x1 skip conv
        else:
            res = xv
        o_ref[...] = out + res

    in_specs = [pl.BlockSpec((None, C, DHW), lambda n: (n, 0, 0)),
                _const_spec(masks)]
    args = [x2, masks]
    for wm in conv_ws:
        in_specs.append(_const_spec(wm))
        args.append(wm)

    out2 = pl.pallas_call(
        kernel,
        out_shape=jax.ShapeDtypeStruct((N, raw_out, DHW), jnp.float32),
        grid_spec=pltpu.PrefetchScalarGridSpec(
            num_scalar_prefetch=0, grid=(N,),
            in_specs=in_specs,
            out_specs=pl.BlockSpec((None, raw_out, DHW), lambda n: (n, 0, 0))),
        compiler_params=pltpu.CompilerParams(
            dimension_semantics=("parallel",)),
    )(*args)
    return out2.reshape(N, raw_out, D, H, W)


# ---------------------------------------------------------------------------
# Parameter init (deterministic, synthetic) — mirrors ResGNet.__init__ shapes.
# ---------------------------------------------------------------------------
def _conv_params(key, cin, cout, ks):
    kw_, kg, kb = jax.random.split(key, 3)
    fan_in = cin * ks[0] * ks[1] * ks[2]
    w = jax.random.normal(kw_, (cout, cin) + tuple(ks), jnp.float32) / jnp.sqrt(fan_in)
    gamma = 1.0 + 0.1 * jax.random.normal(kg, (cout,), jnp.float32)
    beta = 0.05 * jax.random.normal(kb, (cout,), jnp.float32)
    return {'w': w, 'gamma': gamma, 'beta': beta,
            'pad': tuple(k // 2 for k in ks)}


def init_params(key, in_channel, out_channel):
    assert in_channel % 4 == 0 and out_channel % 4 == 0
    cin, cout = in_channel // 4, out_channel // 4
    keys = iter(jax.random.split(key, 20))
    blocks, residuals = [], []
    for i in range(4):
        cor = 3 - i
        blocks.append([
            _conv_params(next(keys), cin, cin, KERNEL_STYLE[i]),
            _conv_params(next(keys), cin, cin, KERNEL_STYLE[cor]),
            _conv_params(next(keys), cin, cout, (3, 3, 3)),
        ])
        residuals.append(None if cin == cout
                         else _conv_params(next(keys), cin, cout, (1, 1, 1)))
    scale = _conv_params(next(keys), cout * 4, out_channel, (1, 3, 3))
    skip = (None if in_channel == out_channel
            else _conv_params(next(keys), in_channel, out_channel, (1, 1, 1)))
    return {'blocks': blocks, 'residuals': residuals, 'scale': scale,
            'skip': skip, 'cfg': {'raw_in': in_channel, 'raw_out': out_channel}}


# ---------------------------------------------------------------------------
# Pure-JAX reference for verification
# ---------------------------------------------------------------------------
def _conv_bn_relu_ref(x, p):
    pd, ph, pw = p['pad']
    y = lax.conv_general_dilated(
        x, p['w'], (1, 1, 1), [(pd, pd), (ph, ph), (pw, pw)],
        dimension_numbers=('NCDHW', 'OIDHW', 'NCDHW'),
        precision=lax.Precision.HIGHEST)
    scale = p['gamma'] / jnp.sqrt(1.0 + BN_EPS)
    y = y * scale[None, :, None, None, None] + p['beta'][None, :, None, None, None]
    return jnp.maximum(y, 0.0)


def resgnet_forward_ref(params, x):
    cin = params['cfg']['raw_in'] // 4
    res = x if params['skip'] is None else _conv_bn_relu_ref(x, params['skip'])
    outs = []
    for i in range(4):
        s = x[:, i * cin:(i + 1) * cin]
        b0, b1, b2 = params['blocks'][i]
        h = _conv_bn_relu_ref(_conv_bn_relu_ref(_conv_bn_relu_ref(s, b0), b1), b2)
        r = s if params['residuals'][i] is None \
            else _conv_bn_relu_ref(s, params['residuals'][i])
        outs.append(h * r if i % 2 else h + r)
    y = jnp.concatenate(outs, axis=1)
    return _conv_bn_relu_ref(y, params['scale']) + res


if __name__ == "__main__":
    key = jax.random.PRNGKey(0)
    kx, kp, kx2, kp2 = jax.random.split(key, 4)
    # Tolerance: bf16 MXU operands (f32 accumulate) vs an all-f32 HIGHEST ref.
    TOL = 3e-2

    # Config 1: in == out (Identity residuals, no skip conv).  D*H*W = 512 lanes.
    N, C, D, H, W = 2, 8, 4, 8, 16
    x = jax.random.normal(kx, (N, C, D, H, W), jnp.float32)
    params = init_params(kp, in_channel=C, out_channel=C)
    fwd = jax.jit(lambda inp: resgnet_forward(params, inp))
    out = jax.block_until_ready(fwd(x))
    assert out.shape == (N, C, D, H, W)
    ref = resgnet_forward_ref(params, x)
    assert jnp.allclose(out, ref, atol=TOL, rtol=TOL), \
        float(jnp.max(jnp.abs(out - ref)))

    # Config 2: out != in -> exercises the 1x1x1 branch residuals + skip conv.
    C_OUT = 16
    x2 = jax.random.normal(kx2, (N, C, D, H, W), jnp.float32)
    params2 = init_params(kp2, in_channel=C, out_channel=C_OUT)
    fwd2 = jax.jit(lambda inp: resgnet_forward(params2, inp))
    out2 = jax.block_until_ready(fwd2(x2))
    assert out2.shape == (N, C_OUT, D, H, W)
    ref2 = resgnet_forward_ref(params2, x2)
    assert jnp.allclose(out2, ref2, atol=TOL, rtol=TOL), \
        float(jnp.max(jnp.abs(out2 - ref2)))

    print("KERNEL_OK")
</pallas_src>

<mosaic_0001>
module attributes {stable_mosaic.version = 11 : i64} {
  func.func @probe(%arg0: memref<2x512xf32, #tpu.memory_space<vmem>>, %arg1: memref<2x512xf32, #tpu.memory_space<vmem>>) attributes {dimension_semantics = [], scalar_prefetch = 0 : i64, scratch_operands = 0 : i64, tpu.core_type = #tpu.core_type<tc>} {
    %c0 = arith.constant 0 : index
    %c0_0 = arith.constant 0 : index
    %0 = vector.load %arg0[%c0, %c0_0] : memref<2x512xf32, #tpu.memory_space<vmem>>, vector<2x512xf32>
    %c1_i32 = arith.constant 1 : i32
    %1 = tpu.dynamic_rotate %0 by %c1_i32 dim 1 : vector<2x512xf32>, i32 -> vector<2x512xf32>
    %c0_1 = arith.constant 0 : index
    %c0_2 = arith.constant 0 : index
    %2 = vector.load %arg1[%c0_1, %c0_2] : memref<2x512xf32, #tpu.memory_space<vmem>>, vector<2x512xf32>
    tpu.vector_store %arg1[%c0_1, %c0_2], %1 {strides = array<i32>} : memref<2x512xf32, #tpu.memory_space<vmem>>, vector<2x512xf32>,
    return
  }
}

module attributes {stable_mosaic.version = 11 : i64} {
  func.func @kernel(%arg0: i32, %arg1: memref<1x8x512xf32, #tpu.memory_space<vmem>>, %arg2: memref<51x512xf32, #tpu.memory_space<vmem>>, %arg3: memref<2x19xbf16, #tpu.memory_space<vmem>>, %arg4: memref<2x19xbf16, #tpu.memory_space<vmem>>, %arg5: memref<2x55xbf16, #tpu.memory_space<vmem>>, %arg6: memref<2x7xbf16, #tpu.memory_space<vmem>>, %arg7: memref<2x7xbf16, #tpu.memory_space<vmem>>, %arg8: memref<2x55xbf16, #tpu.memory_space<vmem>>, %arg9: memref<2x7xbf16, #tpu.memory_space<vmem>>, %arg10: memref<2x7xbf16, #tpu.memory_space<vmem>>, %arg11: memref<2x55xbf16, #tpu.memory_space<vmem>>, %arg12: memref<2x19xbf16, #tpu.memory_space<vmem>>, %arg13: memref<2x19xbf16, #tpu.memory_space<vmem>>, %arg14: memref<2x55xbf16, #tpu.memory_space<vmem>>, %arg15: memref<8x73xbf16, #tpu.memory_space<vmem>>, %arg16: memref<1x8x512xf32, #tpu.memory_space<vmem>>) attributes {dimension_semantics = [#tpu.dimension_semantics<parallel>], iteration_bounds = array<i64: 2>, scalar_prefetch = 0 : i64, scratch_operands = 0 : i64, tpu.core_type = #tpu.core_type<tc>, window_params = [{transform_indices = @transform_0, window_bounds = array<i64: 1, 8, 512>}, {pipeline_mode = #tpu.pipeline_mode<synchronous>, transform_indices = @transform_1, window_bounds = array<i64: 51, 512>}, {pipeline_mode = #tpu.pipeline_mode<synchronous>, transform_indices = @transform_2, window_bounds = array<i64: 2, 19>}, {pipeline_mode = #tpu.pipeline_mode<synchronous>, transform_indices = @transform_3, window_bounds = array<i64: 2, 19>}, {pipeline_mode = #tpu.pipeline_mode<synchronous>, transform_indices = @transform_4, window_bounds = array<i64: 2, 55>}, {pipeline_mode = #tpu.pipeline_mode<synchronous>, transform_indices = @transform_5, window_bounds = array<i64: 2, 7>}, {pipeline_mode = #tpu.pipeline_mode<synchronous>, transform_indices = @transform_6, window_bounds = array<i64: 2, 7>}, {pipeline_mode = #tpu.pipeline_mode<synchronous>, transform_indices = @transform_7, window_bounds = array<i64: 2, 55>}, {pipeline_mode = #tpu.pipeline_mode<synchronous>, transform_indices = @transform_8, window_bounds = array<i64: 2, 7>}, {pipeline_mode = #tpu.pipeline_mode<synchronous>, transform_indices = @transform_9, window_bounds = array<i64: 2, 7>}, {pipeline_mode = #tpu.pipeline_mode<synchronous>, transform_indices = @transform_10, window_bounds = array<i64: 2, 55>}, {pipeline_mode = #tpu.pipeline_mode<synchronous>, transform_indices = @transform_11, window_bounds = array<i64: 2, 19>}, {pipeline_mode = #tpu.pipeline_mode<synchronous>, transform_indices = @transform_12, window_bounds = array<i64: 2, 19>}, {pipeline_mode = #tpu.pipeline_mode<synchronous>, transform_indices = @transform_13, window_bounds = array<i64: 2, 55>}, {pipeline_mode = #tpu.pipeline_mode<synchronous>, transform_indices = @transform_14, window_bounds = array<i64: 8, 73>}, {transform_indices = @transform_15, window_bounds = array<i64: 1, 8, 512>}]} {
    %c0 = arith.constant 0 : index
    %c0_0 = arith.constant 0 : index
    %c0_1 = arith.constant 0 : index
    %0 = vector.load %arg1[%c0, %c0_0, %c0_1] : memref<1x8x512xf32, #tpu.memory_space<vmem>>, vector<1x8x512xf32>
    %1 = vector.shape_cast %0 : vector<1x8x512xf32> to vector<8x512xf32>
    %cst = arith.constant 1.000000e+00 : f32
    %2 = vector.broadcast %cst : f32 to vector<1x512xf32>
    %3 = vector.extract_strided_slice %1 {offsets = [0, 0], sizes = [2, 512], strides = [1, 1]} : vector<8x512xf32> to vector<2x512xf32>
    %4 = vector.extract_strided_slice %3 {offsets = [0, 495], sizes = [2, 17], strides = [1, 1]} : vector<2x512xf32> to vector<2x17xf32>
    %5 = vector.extract_strided_slice %3 {offsets = [0, 0], sizes = [2, 495], strides = [1, 1]} : vector<2x512xf32> to vector<2x495xf32>
    %6 = tpu.concatenate %4, %5 in 1 : vector<2x17xf32>, vector<2x495xf32> -> vector<2x512xf32>
    %c0_2 = arith.constant 0 : index
    %c0_3 = arith.constant 0 : index
    %7 = vector.load %arg2[%c0_2, %c0_3] : memref<51x512xf32, #tpu.memory_space<vmem>>, vector<1x512xf32>
    %8 = vector.broadcast %7 : vector<1x512xf32> to vector<2x512xf32>
    %9 = arith.mulf %6, %8 : vector<2x512xf32>
    %10 = vector.extract_strided_slice %3 {offsets = [0, 496], sizes = [2, 16], strides = [1, 1]} : vector<2x512xf32> to vector<2x16xf32>
    %11 = vector.extract_strided_slice %3 {offsets = [0, 0], sizes = [2, 496], strides = [1, 1]} : vector<2x512xf32> to vector<2x496xf32>
    %12 = tpu.concatenate %10, %11 in 1 : vector<2x16xf32>, vector<2x496xf32> -> vector<2x512xf32>
    %c1 = arith.constant 1 : index
    %c0_4 = arith.constant 0 : index
    %13 = vector.load %arg2[%c1, %c0_4] : memref<51x512xf32, #tpu.memory_space<vmem>>, vector<1x512xf32>
    %14 = vector.broadcast %13 : vector<1x512xf32> to vector<2x512xf32>
    %15 = arith.mulf %12, %14 : vector<2x512xf32>
    %16 = vector.extract_strided_slice %3 {offsets = [0, 497], sizes = [2, 15], strides = [1, 1]} : vector<2x512xf32> to vector<2x15xf32>
    %17 = vector.extract_strided_slice %3 {offsets = [0, 0], sizes = [2, 497], strides = [1, 1]} : vector<2x512xf32> to vector<2x497xf32>
    %18 = tpu.concatenate %16, %17 in 1 : vector<2x15xf32>, vector<2x497xf32> -> vector<2x512xf32>
    %c2 = arith.constant 2 : index
    %c0_5 = arith.constant 0 : index
    %19 = vector.load %arg2[%c2, %c0_5] : memref<51x512xf32, #tpu.memory_space<vmem>>, vector<1x512xf32>
    %20 = vector.broadcast %19 : vector<1x512xf32> to vector<2x512xf32>
    %21 = arith.mulf %18, %20 : vector<2x512xf32>
    %22 = vector.extract_strided_slice %3 {offsets = [0, 511], sizes = [2, 1], strides = [1, 1]} : vector<2x512xf32> to vector<2x1xf32>
    %23 = vector.extract_strided_slice %3 {offsets = [0, 0], sizes = [2, 511], strides = [1, 1]} : vector<2x512xf32> to vector<2x511xf32>
    %24 = tpu.concatenate %22, %23 in 1 : vector<2x1xf32>, vector<2x511xf32> -> vector<2x512xf32>
    %c3 = arith.constant 3 : index
    %c0_6 = arith.constant 0 : index
    %25 = vector.load %arg2[%c3, %c0_6] : memref<51x512xf32, #tpu.memory_space<vmem>>, vector<1x512xf32>
    %26 = vector.broadcast %25 : vector<1x512xf32> to vector<2x512xf32>
    %27 = arith.mulf %24, %26 : vector<2x512xf32>
    %28 = vector.extract_strided_slice %3 {offsets = [0, 1], sizes = [2, 511], strides = [1, 1]} : vector<2x512xf32> to vector<2x511xf32>
    %29 = vector.extract_strided_slice %3 {offsets = [0, 0], sizes = [2, 1], strides = [1, 1]} : vector<2x512xf32> to vector<2x1xf32>
    %30 = tpu.concatenate %28, %29 in 1 : vector<2x511xf32>, vector<2x1xf32> -> vector<2x512xf32>
    %c5 = arith.constant 5 : index
    %c0_7 = arith.constant 0 : index
    %31 = vector.load %arg2[%c5, %c0_7] : memref<51x512xf32, #tpu.memory_space<vmem>>, vector<1x512xf32>
    %32 = vector.broadcast %31 : vector<1x512xf32> to vector<2x512xf32>
    %33 = arith.mulf %30, %32 : vector<2x512xf32>
    %34 = vector.extract_strided_slice %3 {offsets = [0, 15], sizes = [2, 497], strides = [1, 1]} : vector<2x512xf32> to vector<2x497xf32>
    %35 = vector.extract_strided_slice %3 {offsets = [0, 0], sizes = [2, 15], strides = [1, 1]} : vector<2x512xf32> to vector<2x15xf32>
    %36 = tpu.concatenate %34, %35 in 1 : vector<2x497xf32>, vector<2x15xf32> -> vector<2x512xf32>
    %c6 = arith.constant 6 : index
    %c0_8 = arith.constant 0 : index
    %37 = vector.load %arg2[%c6, %c0_8] : memref<51x512xf32, #tpu.memory_space<vmem>>, vector<1x512xf32>
    %38 = vector.broadcast %37 : vector<1x512xf32> to vector<2x512xf32>
    %39 = arith.mulf %36, %38 : vector<2x512xf32>
    %40 = vector.extract_strided_slice %3 {offsets = [0, 16], sizes = [2, 496], strides = [1, 1]} : vector<2x512xf32> to vector<2x496xf32>
    %41 = vector.extract_strided_slice %3 {offsets = [0, 0], sizes = [2, 16], strides = [1, 1]} : vector<2x512xf32> to vector<2x16xf32>
    %42 = tpu.concatenate %40, %41 in 1 : vector<2x496xf32>, vector<2x16xf32> -> vector<2x512xf32>
    %c7 = arith.constant 7 : index
    %c0_9 = arith.constant 0 : index
    %43 = vector.load %arg2[%c7, %c0_9] : memref<51x512xf32, #tpu.memory_space<vmem>>, vector<1x512xf32>
    %44 = vector.broadcast %43 : vector<1x512xf32> to vector<2x512xf32>
    %45 = arith.mulf %42, %44 : vector<2x512xf32>
    %46 = vector.extract_strided_slice %3 {offsets = [0, 17], sizes = [2, 495], strides = [1, 1]} : vector<2x512xf32> to vector<2x495xf32>
    %47 = vector.extract_strided_slice %3 {offsets = [0, 0], sizes = [2, 17], strides = [1, 1]} : vector<2x512xf32> to vector<2x17xf32>
    %48 = tpu.concatenate %46, %47 in 1 : vector<2x495xf32>, vector<2x17xf32> -> vector<2x512xf32>
    %c8 = arith.constant 8 : index
    %c0_10 = arith.constant 0 : index
    %49 = vector.load %arg2[%c8, %c0_10] : memref<51x512xf32, #tpu.memory_space<vmem>>, vector<1x512xf32>
    %50 = vector.broadcast %49 : vector<1x512xf32> to vector<2x512xf32>
    %51 = arith.mulf %48, %50 : vector<2x512xf32>
    %52 = tpu.concatenate %9, %15, %21, %27, %3, %33, %39, %45, %51, %2 in 0 : vector<2x512xf32>, vector<2x512xf32>, vector<2x512xf32>, vector<2x512xf32>, vector<2x512xf32>, vector<2x512xf32>, vector<2x512xf32>, vector<2x512xf32>, vector<2x512xf32>, vector<1x512xf32> -> vector<19x512xf32>
    %53 = arith.truncf %52 : vector<19x512xf32> to vector<19x512xbf16>
    %c0_11 = arith.constant 0 : index
    %c0_12 = arith.constant 0 : index
    %54 = vector.load %arg3[%c0_11, %c0_12] : memref<2x19xbf16, #tpu.memory_space<vmem>>, vector<2x19xbf16>
    %cst_13 = arith.constant dense<0.000000e+00> : vector<2x512xf32>
    %55 = tpu.matmul %54, %53, %cst_13 {dimension_numbers = #tpu.dot_dimension_numbers<[1], [0], [0], [1], [0, 0, 1, 1], [], []>} : vector<2x19xbf16>, vector<19x512xbf16>, vector<2x512xf32> -> vector<2x512xf32>
    %cst_14 = arith.constant 0.000000e+00 : f32
    %56 = vector.broadcast %cst_14 : f32 to vector<2x512xf32>
    %57 = arith.maximumf %55, %56 : vector<2x512xf32>
    %58 = vector.extract_strided_slice %57 {offsets = [0, 368], sizes = [2, 144], strides = [1, 1]} : vector<2x512xf32> to vector<2x144xf32>
    %59 = vector.extract_strided_slice %57 {offsets = [0, 0], sizes = [2, 368], strides = [1, 1]} : vector<2x512xf32> to vector<2x368xf32>
    %60 = tpu.concatenate %58, %59 in 1 : vector<2x144xf32>, vector<2x368xf32> -> vector<2x512xf32>
    %c9 = arith.constant 9 : index
    %c0_15 = arith.constant 0 : index
    %61 = vector.load %arg2[%c9, %c0_15] : memref<51x512xf32, #tpu.memory_space<vmem>>, vector<1x512xf32>
    %62 = vector.broadcast %61 : vector<1x512xf32> to vector<2x512xf32>
    %63 = arith.mulf %60, %62 : vector<2x512xf32>
    %64 = vector.extract_strided_slice %57 {offsets = [0, 384], sizes = [2, 128], strides = [1, 1]} : vector<2x512xf32> to vector<2x128xf32>
    %65 = vector.extract_strided_slice %57 {offsets = [0, 0], sizes = [2, 384], strides = [1, 1]} : vector<2x512xf32> to vector<2x384xf32>
    %66 = tpu.concatenate %64, %65 in 1 : vector<2x128xf32>, vector<2x384xf32> -> vector<2x512xf32>
    %c10 = arith.constant 10 : index
    %c0_16 = arith.constant 0 : index
    %67 = vector.load %arg2[%c10, %c0_16] : memref<51x512xf32, #tpu.memory_space<vmem>>, vector<1x512xf32>
    %68 = vector.broadcast %67 : vector<1x512xf32> to vector<2x512xf32>
    %69 = arith.mulf %66, %68 : vector<2x512xf32>
    %70 = vector.extract_strided_slice %57 {offsets = [0, 400], sizes = [2, 112], strides = [1, 1]} : vector<2x512xf32> to vector<2x112xf32>
    %71 = vector.extract_strided_slice %57 {offsets = [0, 0], sizes = [2, 400], strides = [1, 1]} : vector<2x512xf32> to vector<2x400xf32>
    %72 = tpu.concatenate %70, %71 in 1 : vector<2x112xf32>, vector<2x400xf32> -> vector<2x512xf32>
    %c11 = arith.constant 11 : index
    %c0_17 = arith.constant 0 : index
    %73 = vector.load %arg2[%c11, %c0_17] : memref<51x512xf32, #tpu.memory_space<vmem>>, vector<1x512xf32>
    %74 = vector.broadcast %73 : vector<1x512xf32> to vector<2x512xf32>
    %75 = arith.mulf %72, %74 : vector<2x512xf32>
    %76 = vector.extract_strided_slice %57 {offsets = [0, 496], sizes = [2, 16], strides = [1, 1]} : vector<2x512xf32> to vector<2x16xf32>
    %77 = vector.extract_strided_slice %57 {offsets = [0, 0], sizes = [2, 496], strides = [1, 1]} : vector<2x512xf32> to vector<2x496xf32>
    %78 = tpu.concatenate %76, %77 in 1 : vector<2x16xf32>, vector<2x496xf32> -> vector<2x512xf32>
    %c12 = arith.constant 12 : index
    %c0_18 = arith.constant 0 : index
    %79 = vector.load %arg2[%c12, %c0_18] : memref<51x512xf32, #tpu.memory_space<vmem>>, vector<1x512xf32>
    %80 = vector.broadcast %79 : vector<1x512xf32> to vector<2x512xf32>
    %81 = arith.mulf %78, %80 : vector<2x512xf32>
    %82 = vector.extract_strided_slice %57 {offsets = [0, 16], sizes = [2, 496], strides = [1, 1]} : vector<2x512xf32> to vector<2x496xf32>
    %83 = vector.extract_strided_slice %57 {offsets = [0, 0], sizes = [2, 16], strides = [1, 1]} : vector<2x512xf32> to vector<2x16xf32>
    %84 = tpu.concatenate %82, %83 in 1 : vector<2x496xf32>, vector<2x16xf32> -> vector<2x512xf32>
    %c14 = arith.constant 14 : index
    %c0_19 = arith.constant 0 : index
    %85 = vector.load %arg2[%c14, %c0_19] : memref<51x512xf32, #tpu.memory_space<vmem>>, vector<1x512xf32>
    %86 = vector.broadcast %85 : vector<1x512xf32> to vector<2x512xf32>
    %87 = arith.mulf %84, %86 : vector<2x512xf32>
    %88 = vector.extract_strided_slice %57 {offsets = [0, 112], sizes = [2, 400], strides = [1, 1]} : vector<2x512xf32> to vector<2x400xf32>
    %89 = vector.extract_strided_slice %57 {offsets = [0, 0], sizes = [2, 112], strides = [1, 1]} : vector<2x512xf32> to vector<2x112xf32>
    %90 = tpu.concatenate %88, %89 in 1 : vector<2x400xf32>, vector<2x112xf32> -> vector<2x512xf32>
    %c15 = arith.constant 15 : index
    %c0_20 = arith.constant 0 : index
    %91 = vector.load %arg2[%c15, %c0_20] : memref<51x512xf32, #tpu.memory_space<vmem>>, vector<1x512xf32>
    %92 = vector.broadcast %91 : vector<1x512xf32> to vector<2x512xf32>
    %93 = arith.mulf %90, %92 : vector<2x512xf32>
    %94 = vector.extract_strided_slice %57 {offsets = [0, 128], sizes = [2, 384], strides = [1, 1]} : vector<2x512xf32> to vector<2x384xf32>
    %95 = vector.extract_strided_slice %57 {offsets = [0, 0], sizes = [2, 128], strides = [1, 1]} : vector<2x512xf32> to vector<2x128xf32>
    %96 = tpu.concatenate %94, %95 in 1 : vector<2x384xf32>, vector<2x128xf32> -> vector<2x512xf32>
    %c16 = arith.constant 16 : index
    %c0_21 = arith.constant 0 : index
    %97 = vector.load %arg2[%c16, %c0_21] : memref<51x512xf32, #tpu.memory_space<vmem>>, vector<1x512xf32>
    %98 = vector.broadcast %97 : vector<1x512xf32> to vector<2x512xf32>
    %99 = arith.mulf %96, %98 : vector<2x512xf32>
    %100 = vector.extract_strided_slice %57 {offsets = [0, 144], sizes = [2, 368], strides = [1, 1]} : vector<2x512xf32> to vector<2x368xf32>
    %101 = vector.extract_strided_slice %57 {offsets = [0, 0], sizes = [2, 144], strides = [1, 1]} : vector<2x512xf32> to vector<2x144xf32>
    %102 = tpu.concatenate %100, %101 in 1 : vector<2x368xf32>, vector<2x144xf32> -> vector<2x512xf32>
    %c17 = arith.constant 17 : index
    %c0_22 = arith.constant 0 : index
    %103 = vector.load %arg2[%c17, %c0_22] : memref<51x512xf32, #tpu.memory_space<vmem>>, vector<1x512xf32>
    %104 = vector.broadcast %103 : vector<1x512xf32> to vector<2x512xf32>
    %105 = arith.mulf %102, %104 : vector<2x512xf32>
    %106 = tpu.concatenate %63, %69, %75, %81, %57, %87, %93, %99, %105, %2 in 0 : vector<2x512xf32>, vector<2x512xf32>, vector<2x512xf32>, vector<2x512xf32>, vector<2x512xf32>, vector<2x512xf32>, vector<2x512xf32>, vector<2x512xf32>, vector<2x512xf32>, vector<1x512xf32> -> vector<19x512xf32>
    %107 = arith.truncf %106 : vector<19x512xf32> to vector<19x512xbf16>
    %c0_23 = arith.constant 0 : index
    %c0_24 = arith.constant 0 : index
    %108 = vector.load %arg4[%c0_23, %c0_24] : memref<2x19xbf16, #tpu.memory_space<vmem>>, vector<2x19xbf16>
    %cst_25 = arith.constant dense<0.000000e+00> : vector<2x512xf32>
    %109 = tpu.matmul %108, %107, %cst_25 {dimension_numbers = #tpu.dot_dimension_numbers<[1], [0], [0], [1], [0, 0, 1, 1], [], []>} : vector<2x19xbf16>, vector<19x512xbf16>, vector<2x512xf32> -> vector<2x512xf32>
    %cst_26 = arith.constant 0.000000e+00 : f32
    %110 = vector.broadcast %cst_26 : f32 to vector<2x512xf32>
    %111 = arith.maximumf %109, %110 : vector<2x512xf32>
    %112 = vector.extract_strided_slice %111 {offsets = [0, 367], sizes = [2, 145], strides = [1, 1]} : vector<2x512xf32> to vector<2x145xf32>
    %113 = vector.extract_strided_slice %111 {offsets = [0, 0], sizes = [2, 367], strides = [1, 1]} : vector<2x512xf32> to vector<2x367xf32>
    %114 = tpu.concatenate %112, %113 in 1 : vector<2x145xf32>, vector<2x367xf32> -> vector<2x512xf32>
    %c18 = arith.constant 18 : index
    %c0_27 = arith.constant 0 : index
    %115 = vector.load %arg2[%c18, %c0_27] : memref<51x512xf32, #tpu.memory_space<vmem>>, vector<1x512xf32>
    %116 = vector.broadcast %115 : vector<1x512xf32> to vector<2x512xf32>
    %117 = arith.mulf %114, %116 : vector<2x512xf32>
    %118 = vector.extract_strided_slice %111 {offsets = [0, 368], sizes = [2, 144], strides = [1, 1]} : vector<2x512xf32> to vector<2x144xf32>
    %119 = vector.extract_strided_slice %111 {offsets = [0, 0], sizes = [2, 368], strides = [1, 1]} : vector<2x512xf32> to vector<2x368xf32>
    %120 = tpu.concatenate %118, %119 in 1 : vector<2x144xf32>, vector<2x368xf32> -> vector<2x512xf32>
    %c19 = arith.constant 19 : index
    %c0_28 = arith.constant 0 : index
    %121 = vector.load %arg2[%c19, %c0_28] : memref<51x512xf32, #tpu.memory_space<vmem>>, vector<1x512xf32>
    %122 = vector.broadcast %121 : vector<1x512xf32> to vector<2x512xf32>
    %123 = arith.mulf %120, %122 : vector<2x512xf32>
    %124 = vector.extract_strided_slice %111 {offsets = [0, 369], sizes = [2, 143], strides = [1, 1]} : vector<2x512xf32> to vector<2x143xf32>
    %125 = vector.extract_strided_slice %111 {offsets = [0, 0], sizes = [2, 369], strides = [1, 1]} : vector<2x512xf32> to vector<2x369xf32>
    %126 = tpu.concatenate %124, %125 in 1 : vector<2x143xf32>, vector<2x369xf32> -> vector<2x512xf32>
    %c20 = arith.constant 20 : index
    %c0_29 = arith.constant 0 : index
    %127 = vector.load %arg2[%c20, %c0_29] : memref<51x512xf32, #tpu.memory_space<vmem>>, vector<1x512xf32>
    %128 = vector.broadcast %127 : vector<1x512xf32> to vector<2x512xf32>
    %129 = arith.mulf %126, %128 : vector<2x512xf32>
    %130 = vector.extract_strided_slice %111 {offsets = [0, 383], sizes = [2, 129], strides = [1, 1]} : vector<2x512xf32> to vector<2x129xf32>
    %131 = vector.extract_strided_slice %111 {offsets = [0, 0], sizes = [2, 383], strides = [1, 1]} : vector<2x512xf32> to vector<2x383xf32>
    %132 = tpu.concatenate %130, %131 in 1 : vector<2x129xf32>, vector<2x383xf32> -> vector<2x512xf32>
    %c21 = arith.constant 21 : index
    %c0_30 = arith.constant 0 : index
    %133 = vector.load %arg2[%c21, %c0_30] : memref<51x512xf32, #tpu.memory_space<vmem>>, vector<1x512xf32>
    %134 = vector.broadcast %133 : vector<1x512xf32> to vector<2x512xf32>
    %135 = arith.mulf %132, %134 : vector<2x512xf32>
    %136 = vector.extract_strided_slice %111 {offsets = [0, 384], sizes = [2, 128], strides = [1, 1]} : vector<2x512xf32> to vector<2x128xf32>
    %137 = vector.extract_strided_slice %111 {offsets = [0, 0], sizes = [2, 384], strides = [1, 1]} : vector<2x512xf32> to vector<2x384xf32>
    %138 = tpu.concatenate %136, %137 in 1 : vector<2x128xf32>, vector<2x384xf32> -> vector<2x512xf32>
    %c22 = arith.constant 22 : index
    %c0_31 = arith.constant 0 : index
    %139 = vector.load %arg2[%c22, %c0_31] : memref<51x512xf32, #tpu.memory_space<vmem>>, vector<1x512xf32>
    %140 = vector.broadcast %139 : vector<1x512xf32> to vector<2x512xf32>
    %141 = arith.mulf %138, %140 : vector<2x512xf32>
    %142 = vector.extract_strided_slice %111 {offsets = [0, 385], sizes = [2, 127], strides = [1, 1]} : vector<2x512xf32> to vector<2x127xf32>
    %143 = vector.extract_strided_slice %111 {offsets = [0, 0], sizes = [2, 385], strides = [1, 1]} : vector<2x512xf32> to vector<2x385xf32>
    %144 = tpu.concatenate %142, %143 in 1 : vector<2x127xf32>, vector<2x385xf32> -> vector<2x512xf32>
    %c23 = arith.constant 23 : index
    %c0_32 = arith.constant 0 : index
    %145 = vector.load %arg2[%c23, %c0_32] : memref<51x512xf32, #tpu.memory_space<vmem>>, vector<1x512xf32>
    %146 = vector.broadcast %145 : vector<1x512xf32> to vector<2x512xf32>
    %147 = arith.mulf %144, %146 : vector<2x512xf32>
    %148 = vector.extract_strided_slice %111 {offsets = [0, 399], sizes = [2, 113], strides = [1, 1]} : vector<2x512xf32> to vector<2x113xf32>
    %149 = vector.extract_strided_slice %111 {offsets = [0, 0], sizes = [2, 399], strides = [1, 1]} : vector<2x512xf32> to vector<2x399xf32>
    %150 = tpu.concatenate %148, %149 in 1 : vector<2x113xf32>, vector<2x399xf32> -> vector<2x512xf32>
    %c24 = arith.constant 24 : index
    %c0_33 = arith.constant 0 : index
    %151 = vector.load %arg2[%c24, %c0_33] : memref<51x512xf32, #tpu.memory_space<vmem>>, vector<1x512xf32>
    %152 = vector.broadcast %151 : vector<1x512xf32> to vector<2x512xf32>
    %153 = arith.mulf %150, %152 : vector<2x512xf32>
    %154 = vector.extract_strided_slice %111 {offsets = [0, 400], sizes = [2, 112], strides = [1, 1]} : vector<2x512xf32> to vector<2x112xf32>
    %155 = vector.extract_strided_slice %111 {offsets = [0, 0], sizes = [2, 400], strides = [1, 1]} : vector<2x512xf32> to vector<2x400xf32>
    %156 = tpu.concatenate %154, %155 in 1 : vector<2x112xf32>, vector<2x400xf32> -> vector<2x512xf32>
    %c25 = arith.constant 25 : index
    %c0_34 = arith.constant 0 : index
    %157 = vector.load %arg2[%c25, %c0_34] : memref<51x512xf32, #tpu.memory_space<vmem>>, vector<1x512xf32>
    %158 = vector.broadcast %157 : vector<1x512xf32> to vector<2x512xf32>
    %159 = arith.mulf %156, %158 : vector<2x512xf32>
    %160 = vector.extract_strided_slice %111 {offsets = [0, 401], sizes = [2, 111], strides = [1, 1]} : vector<2x512xf32> to vector<2x111xf32>
    %161 = vector.extract_strided_slice %111 {offsets = [0, 0], sizes = [2, 401], strides = [1, 1]} : vector<2x512xf32> to vector<2x401xf32>
    %162 = tpu.concatenate %160, %161 in 1 : vector<2x111xf32>, vector<2x401xf32> -> vector<2x512xf32>
    %c26 = arith.constant 26 : index
    %c0_35 = arith.constant 0 : index
    %163 = vector.load %arg2[%c26, %c0_35] : memref<51x512xf32, #tpu.memory_space<vmem>>, vector<1x512xf32>
    %164 = vector.broadcast %163 : vector<1x512xf32> to vector<2x512xf32>
    %165 = arith.mulf %162, %164 : vector<2x512xf32>
    %166 = vector.extract_strided_slice %111 {offsets = [0, 495], sizes = [2, 17], strides = [1, 1]} : vector<2x512xf32> to vector<2x17xf32>
    %167 = vector.extract_strided_slice %111 {offsets = [0, 0], sizes = [2, 495], strides = [1, 1]} : vector<2x512xf32> to vector<2x495xf32>
    %168 = tpu.concatenate %166, %167 in 1 : vector<2x17xf32>, vector<2x495xf32> -> vector<2x512xf32>
    %c27 = arith.constant 27 : index
    %c0_36 = arith.constant 0 : index
    %169 = vector.load %arg2[%c27, %c0_36] : memref<51x512xf32, #tpu.memory_space<vmem>>, vector<1x512xf32>
    %170 = vector.broadcast %169 : vector<1x512xf32> to vector<2x512xf32>
    %171 = arith.mulf %168, %170 : vector<2x512xf32>
    %172 = vector.extract_strided_slice %111 {offsets = [0, 496], sizes = [2, 16], strides = [1, 1]} : vector<2x512xf32> to vector<2x16xf32>
    %173 = vector.extract_strided_slice %111 {offsets = [0, 0], sizes = [2, 496], strides = [1, 1]} : vector<2x512xf32> to vector<2x496xf32>
    %174 = tpu.concatenate %172, %173 in 1 : vector<2x16xf32>, vector<2x496xf32> -> vector<2x512xf32>
    %c28 = arith.constant 28 : index
    %c0_37 = arith.constant 0 : index
    %175 = vector.load %arg2[%c28, %c0_37] : memref<51x512xf32, #tpu.memory_space<vmem>>, vector<1x512xf32>
    %176 = vector.broadcast %175 : vector<1x512xf32> to vector<2x512xf32>
    %177 = arith.mulf %174, %176 : vector<2x512xf32>
    %178 = vector.extract_strided_slice %111 {offsets = [0, 497], sizes = [2, 15], strides = [1, 1]} : vector<2x512xf32> to vector<2x15xf32>
    %179 = vector.extract_strided_slice %111 {offsets = [0, 0], sizes = [2, 497], strides = [1, 1]} : vector<2x512xf32> to vector<2x497xf32>
    %180 = tpu.concatenate %178, %179 in 1 : vector<2x15xf32>, vector<2x497xf32> -> vector<2x512xf32>
    %c29 = arith.constant 29 : index
    %c0_38 = arith.constant 0 : index
    %181 = vector.load %arg2[%c29, %c0_38] : memref<51x512xf32, #tpu.memory_space<vmem>>, vector<1x512xf32>
    %182 = vector.broadcast %181 : vector<1x512xf32> to vector<2x512xf32>
    %183 = arith.mulf %180, %182 : vector<2x512xf32>
    %184 = vector.extract_strided_slice %111 {offsets = [0, 511], sizes = [2, 1], strides = [1, 1]} : vector<2x512xf32> to vector<2x1xf32>
    %185 = vector.extract_strided_slice %111 {offsets = [0, 0], sizes = [2, 511], strides = [1, 1]} : vector<2x512xf32> to vector<2x511xf32>
    %186 = tpu.concatenate %184, %185 in 1 : vector<2x1xf32>, vector<2x511xf32> -> vector<2x512xf32>
    %c30 = arith.constant 30 : index
    %c0_39 = arith.constant 0 : index
    %187 = vector.load %arg2[%c30, %c0_39] : memref<51x512xf32, #tpu.memory_space<vmem>>, vector<1x512xf32>
    %188 = vector.broadcast %187 : vector<1x512xf32> to vector<2x512xf32>
    %189 = arith.mulf %186, %188 : vector<2x512xf32>
    %190 = vector.extract_strided_slice %111 {offsets = [0, 1], sizes = [2, 511], strides = [1, 1]} : vector<2x512xf32> to vector<2x511xf32>
    %191 = vector.extract_strided_slice %111 {offsets = [0, 0], sizes = [2, 1], strides = [1, 1]} : vector<2x512xf32> to vector<2x1xf32>
    %192 = tpu.concatenate %190, %191 in 1 : vector<2x511xf32>, vector<2x1xf32> -> vector<2x512xf32>
    %c32 = arith.constant 32 : index
    %c0_40 = arith.constant 0 : index
    %193 = vector.load %arg2[%c32, %c0_40] : memref<51x512xf32, #tpu.memory_space<vmem>>, vector<1x512xf32>
    %194 = vector.broadcast %193 : vector<1x512xf32> to vector<2x512xf32>
    %195 = arith.mulf %192, %194 : vector<2x512xf32>
    %196 = vector.extract_strided_slice %111 {offsets = [0, 15], sizes = [2, 497], strides = [1, 1]} : vector<2x512xf32> to vector<2x497xf32>
    %197 = vector.extract_strided_slice %111 {offsets = [0, 0], sizes = [2, 15], strides = [1, 1]} : vector<2x512xf32> to vector<2x15xf32>
    %198 = tpu.concatenate %196, %197 in 1 : vector<2x497xf32>, vector<2x15xf32> -> vector<2x512xf32>
    %c33 = arith.constant 33 : index
    %c0_41 = arith.constant 0 : index
    %199 = vector.load %arg2[%c33, %c0_41] : memref<51x512xf32, #tpu.memory_space<vmem>>, vector<1x512xf32>
    %200 = vector.broadcast %199 : vector<1x512xf32> to vector<2x512xf32>
    %201 = arith.mulf %198, %200 : vector<2x512xf32>
    %202 = vector.extract_strided_slice %111 {offsets = [0, 16], sizes = [2, 496], strides = [1, 1]} : vector<2x512xf32> to vector<2x496xf32>
    %203 = vector.extract_strided_slice %111 {offsets = [0, 0], sizes = [2, 16], strides = [1, 1]} : vector<2x512xf32> to vector<2x16xf32>
    %204 = tpu.concatenate %202, %203 in 1 : vector<2x496xf32>, vector<2x16xf32> -> vector<2x512xf32>
    %c34 = arith.constant 34 : index
    %c0_42 = arith.constant 0 : index
    %205 = vector.load %arg2[%c34, %c0_42] : memref<51x512xf32, #tpu.memory_space<vmem>>, vector<1x512xf32>
    %206 = vector.broadcast %205 : vector<1x512xf32> to vector<2x512xf32>
    %207 = arith.mulf %204, %206 : vector<2x512xf32>
    %208 = vector.extract_strided_slice %111 {offsets = [0, 17], sizes = [2, 495], strides = [1, 1]} : vector<2x512xf32> to vector<2x495xf32>
    %209 = vector.extract_strided_slice %111 {offsets = [0, 0], sizes = [2, 17], strides = [1, 1]} : vector<2x512xf32> to vector<2x17xf32>
    %210 = tpu.concatenate %208, %209 in 1 : vector<2x495xf32>, vector<2x17xf32> -> vector<2x512xf32>
    %c35 = arith.constant 35 : index
    %c0_43 = arith.constant 0 : index
    %211 = vector.load %arg2[%c35, %c0_43] : memref<51x512xf32, #tpu.memory_space<vmem>>, vector<1x512xf32>
    %212 = vector.broadcast %211 : vector<1x512xf32> to vector<2x512xf32>
    %213 = arith.mulf %210, %212 : vector<2x512xf32>
    %214 = vector.extract_strided_slice %111 {offsets = [0, 111], sizes = [2, 401], strides = [1, 1]} : vector<2x512xf32> to vector<2x401xf32>
    %215 = vector.extract_strided_slice %111 {offsets = [0, 0], sizes = [2, 111], strides = [1, 1]} : vector<2x512xf32> to vector<2x111xf32>
    %216 = tpu.concatenate %214, %215 in 1 : vector<2x401xf32>, vector<2x111xf32> -> vector<2x512xf32>
    %c36 = arith.constant 36 : index
    %c0_44 = arith.constant 0 : index
    %217 = vector.load %arg2[%c36, %c0_44] : memref<51x512xf32, #tpu.memory_space<vmem>>, vector<1x512xf32>
    %218 = vector.broadcast %217 : vector<1x512xf32> to vector<2x512xf32>
    %219 = arith.mulf %216, %218 : vector<2x512xf32>
    %220 = vector.extract_strided_slice %111 {offsets = [0, 112], sizes = [2, 400], strides = [1, 1]} : vector<2x512xf32> to vector<2x400xf32>
    %221 = vector.extract_strided_slice %111 {offsets = [0, 0], sizes = [2, 112], strides = [1, 1]} : vector<2x512xf32> to vector<2x112xf32>
    %222 = tpu.concatenate %220, %221 in 1 : vector<2x400xf32>, vector<2x112xf32> -> vector<2x512xf32>
    %c37 = arith.constant 37 : index
    %c0_45 = arith.constant 0 : index
    %223 = vector.load %arg2[%c37, %c0_45] : memref<51x512xf32, #tpu.memory_space<vmem>>, vector<1x512xf32>
    %224 = vector.broadcast %223 : vector<1x512xf32> to vector<2x512xf32>
    %225 = arith.mulf %222, %224 : vector<2x512xf32>
    %226 = vector.extract_strided_slice %111 {offsets = [0, 113], sizes = [2, 399], strides = [1, 1]} : vector<2x512xf32> to vector<2x399xf32>
    %227 = vector.extract_strided_slice %111 {offsets = [0, 0], sizes = [2, 113], strides = [1, 1]} : vector<2x512xf32> to vector<2x113xf32>
    %228 = tpu.concatenate %226, %227 in 1 : vector<2x399xf32>, vector<2x113xf32> -> vector<2x512xf32>
    %c38 = arith.constant 38 : index
    %c0_46 = arith.constant 0 : index
    %229 = vector.load %arg2[%c38, %c0_46] : memref<51x512xf32, #tpu.memory_space<vmem>>, vector<1x512xf32>
    %230 = vector.broadcast %229 : vector<1x512xf32> to vector<2x512xf32>
    %231 = arith.mulf %228, %230 : vector<2x512xf32>
    %232 = vector.extract_strided_slice %111 {offsets = [0, 127], sizes = [2, 385], strides = [1, 1]} : vector<2x512xf32> to vector<2x385xf32>
    %233 = vector.extract_strided_slice %111 {offsets = [0, 0], sizes = [2, 127], strides = [1, 1]} : vector<2x512xf32> to vector<2x127xf32>
    %234 = tpu.concatenate %232, %233 in 1 : vector<2x385xf32>, vector<2x127xf32> -> vector<2x512xf32>
    %c39 = arith.constant 39 : index
    %c0_47 = arith.constant 0 : index
    %235 = vector.load %arg2[%c39, %c0_47] : memref<51x512xf32, #tpu.memory_space<vmem>>, vector<1x512xf32>
    %236 = vector.broadcast %235 : vector<1x512xf32> to vector<2x512xf32>
    %237 = arith.mulf %234, %236 : vector<2x512xf32>
    %238 = vector.extract_strided_slice %111 {offsets = [0, 128], sizes = [2, 384], strides = [1, 1]} : vector<2x512xf32> to vector<2x384xf32>
    %239 = vector.extract_strided_slice %111 {offsets = [0, 0], sizes = [2, 128], strides = [1, 1]} : vector<2x512xf32> to vector<2x128xf32>
    %240 = tpu.concatenate %238, %239 in 1 : vector<2x384xf32>, vector<2x128xf32> -> vector<2x512xf32>
    %c40 = arith.constant 40 : index
    %c0_48 = arith.constant 0 : index
    %241 = vector.load %arg2[%c40, %c0_48] : memref<51x512xf32, #tpu.memory_space<vmem>>, vector<1x512xf32>
    %242 = vector.broadcast %241 : vector<1x512xf32> to vector<2x512xf32>
    %243 = arith.mulf %240, %242 : vector<2x512xf32>
    %244 = vector.extract_strided_slice %111 {offsets = [0, 129], sizes = [2, 383], strides = [1, 1]} : vector<2x512xf32> to vector<2x383xf32>
    %245 = vector.extract_strided_slice %111 {offsets = [0, 0], sizes = [2, 129], strides = [1, 1]} : vector<2x512xf32> to vector<2x129xf32>
    %246 = tpu.concatenate %244, %245 in 1 : vector<2x383xf32>, vector<2x129xf32> -> vector<2x512xf32>
    %c41 = arith.constant 41 : index
    %c0_49 = arith.constant 0 : index
    %247 = vector.load %arg2[%c41, %c0_49] : memref<51x512xf32, #tpu.memory_space<vmem>>, vector<1x512xf32>
    %248 = vector.broadcast %247 : vector<1x512xf32> to vector<2x512xf32>
    %249 = arith.mulf %246, %248 : vector<2x512xf32>
    %250 = vector.extract_strided_slice %111 {offsets = [0, 143], sizes = [2, 369], strides = [1, 1]} : vector<2x512xf32> to vector<2x369xf32>
    %251 = vector.extract_strided_slice %111 {offsets = [0, 0], sizes = [2, 143], strides = [1, 1]} : vector<2x512xf32> to vector<2x143xf32>
    %252 = tpu.concatenate %250, %251 in 1 : vector<2x369xf32>, vector<2x143xf32> -> vector<2x512xf32>
    %c42 = arith.constant 42 : index
    %c0_50 = arith.constant 0 : index
    %253 = vector.load %arg2[%c42, %c0_50] : memref<51x512xf32, #tpu.memory_space<vmem>>, vector<1x512xf32>
    %254 = vector.broadcast %253 : vector<1x512xf32> to vector<2x512xf32>
    %255 = arith.mulf %252, %254 : vector<2x512xf32>
    %256 = vector.extract_strided_slice %111 {offsets = [0, 144], sizes = [2, 368], strides = [1, 1]} : vector<2x512xf32> to vector<2x368xf32>
    %257 = vector.extract_strided_slice %111 {offsets = [0, 0], sizes = [2, 144], strides = [1, 1]} : vector<2x512xf32> to vector<2x144xf32>
    %258 = tpu.concatenate %256, %257 in 1 : vector<2x368xf32>, vector<2x144xf32> -> vector<2x512xf32>
    %c43 = arith.constant 43 : index
    %c0_51 = arith.constant 0 : index
    %259 = vector.load %arg2[%c43, %c0_51] : memref<51x512xf32, #tpu.memory_space<vmem>>, vector<1x512xf32>
    %260 = vector.broadcast %259 : vector<1x512xf32> to vector<2x512xf32>
    %261 = arith.mulf %258, %260 : vector<2x512xf32>
    %262 = vector.extract_strided_slice %111 {offsets = [0, 145], sizes = [2, 367], strides = [1, 1]} : vector<2x512xf32> to vector<2x367xf32>
    %263 = vector.extract_strided_slice %111 {offsets = [0, 0], sizes = [2, 145], strides = [1, 1]} : vector<2x512xf32> to vector<2x145xf32>
    %264 = tpu.concatenate %262, %263 in 1 : vector<2x367xf32>, vector<2x145xf32> -> vector<2x512xf32>
    %c44 = arith.constant 44 : index
    %c0_52 = arith.constant 0 : index
    %265 = vector.load %arg2[%c44, %c0_52] : memref<51x512xf32, #tpu.memory_space<vmem>>, vector<1x512xf32>
    %266 = vector.broadcast %265 : vector<1x512xf32> to vector<2x512xf32>
    %267 = arith.mulf %264, %266 : vector<2x512xf32>
    %268 = tpu.concatenate %117, %123, %129, %135, %141, %147, %153, %159, %165, %171, %177, %183, %189, %111, %195, %201 in 0 : vector<2x512xf32>, vector<2x512xf32>, vector<2x512xf32>, vector<2x512xf32>, vector<2x512xf32>, vector<2x512xf32>, vector<2x512xf32>, vector<2x512xf32>, vector<2x512xf32>, vector<2x512xf32>, vector<2x512xf32>, vector<2x512xf32>, vector<2x512xf32>, vector<2x512xf32>, vector<2x512xf32>, vector<2x512xf32> -> vector<32x512xf32>
    %269 = tpu.concatenate %207, %213, %219, %225, %231, %237, %243, %249, %255, %261, %267, %2 in 0 : vector<2x512xf32>, vector<2x512xf32>, vector<2x512xf32>, vector<2x512xf32>, vector<2x512xf32>, vector<2x512xf32>, vector<2x512xf32>, vector<2x512xf32>, vector<2x512xf32>, vector<2x512xf32>, vector<2x512xf32>, vector<1x512xf32> -> vector<23x512xf32>
    %270 = tpu.concatenate %268, %269 in 0 : vector<32x512xf32>, vector<23x512xf32> -> vector<55x512xf32>
    %271 = arith.truncf %270 : vector<55x512xf32> to vector<55x512xbf16>
    %c0_53 = arith.constant 0 : index
    %c0_54 = arith.constant 0 : index
    %272 = vector.load %arg5[%c0_53, %c0_54] : memref<2x55xbf16, #tpu.memory_space<vmem>>, vector<2x55xbf16>
    %cst_55 = arith.constant dense<0.000000e+00> : vector<2x512xf32>
    %273 = tpu.matmul %272, %271, %cst_55 {dimension_numbers = #tpu.dot_dimension_numbers<[1], [0], [0], [1], [0, 0, 1, 1], [], []>} : vector<2x55xbf16>, vector<55x512xbf16>, vector<2x512xf32> -> vector<2x512xf32>
    %cst_56 = arith.constant 0.000000e+00 : f32
    %274 = vector.broadcast %cst_56 : f32 to vector<2x512xf32>
    %275 = arith.maximumf %273, %274 : vector<2x512xf32>
    %276 = arith.addf %275, %3 : vector<2x512xf32>
    %277 = vector.extract_strided_slice %1 {offsets = [2, 0], sizes = [2, 512], strides = [1, 1]} : vector<8x512xf32> to vector<2x512xf32>
    %278 = vector.extract_strided_slice %277 {offsets = [0, 511], sizes = [2, 1], strides = [1, 1]} : vector<2x512xf32> to vector<2x1xf32>
    %279 = vector.extract_strided_slice %277 {offsets = [0, 0], sizes = [2, 511], strides = [1, 1]} : vector<2x512xf32> to vector<2x511xf32>
    %280 = tpu.concatenate %278, %279 in 1 : vector<2x1xf32>, vector<2x511xf32> -> vector<2x512xf32>
    %c45 = arith.constant 45 : index
    %c0_57 = arith.constant 0 : index
    %281 = vector.load %arg2[%c45, %c0_57] : memref<51x512xf32, #tpu.memory_space<vmem>>, vector<1x512xf32>
    %282 = vector.broadcast %281 : vector<1x512xf32> to vector<2x512xf32>
    %283 = arith.mulf %280, %282 : vector<2x512xf32>
    %284 = vector.extract_strided_slice %277 {offsets = [0, 1], sizes = [2, 511], strides = [1, 1]} : vector<2x512xf32> to vector<2x511xf32>
    %285 = vector.extract_strided_slice %277 {offsets = [0, 0], sizes = [2, 1], strides = [1, 1]} : vector<2x512xf32> to vector<2x1xf32>
    %286 = tpu.concatenate %284, %285 in 1 : vector<2x511xf32>, vector<2x1xf32> -> vector<2x512xf32>
    %c47 = arith.constant 47 : index
    %c0_58 = arith.constant 0 : index
    %287 = vector.load %arg2[%c47, %c0_58] : memref<51x512xf32, #tpu.memory_space<vmem>>, vector<1x512xf32>
    %288 = vector.broadcast %287 : vector<1x512xf32> to vector<2x512xf32>
    %289 = arith.mulf %286, %288 : vector<2x512xf32>
    %290 = tpu.concatenate %283, %277, %289, %2 in 0 : vector<2x512xf32>, vector<2x512xf32>, vector<2x512xf32>, vector<1x512xf32> -> vector<7x512xf32>
    %291 = arith.truncf %290 : vector<7x512xf32> to vector<7x512xbf16>
    %c0_59 = arith.constant 0 : index
    %c0_60 = arith.constant 0 : index
    %292 = vector.load %arg6[%c0_59, %c0_60] : memref<2x7xbf16, #tpu.memory_space<vmem>>, vector<2x7xbf16>
    %cst_61 = arith.constant dense<0.000000e+00> : vector<2x512xf32>
    %293 = tpu.matmul %292, %291, %cst_61 {dimension_numbers = #tpu.dot_dimension_numbers<[1], [0], [0], [1], [0, 0, 1, 1], [], []>} : vector<2x7xbf16>, vector<7x512xbf16>, vector<2x512xf32> -> vector<2x512xf32>
    %cst_62 = arith.constant 0.000000e+00 : f32
    %294 = vector.broadcast %cst_62 : f32 to vector<2x512xf32>
    %295 = arith.maximumf %293, %294 : vector<2x512xf32>
    %296 = vector.extract_strided_slice %295 {offsets = [0, 496], sizes = [2, 16], strides = [1, 1]} : vector<2x512xf32> to vector<2x16xf32>
    %297 = vector.extract_strided_slice %295 {offsets = [0, 0], sizes = [2, 496], strides = [1, 1]} : vector<2x512xf32> to vector<2x496xf32>
    %298 = tpu.concatenate %296, %297 in 1 : vector<2x16xf32>, vector<2x496xf32> -> vector<2x512xf32>
    %c48 = arith.constant 48 : index
    %c0_63 = arith.constant 0 : index
    %299 = vector.load %arg2[%c48, %c0_63] : memref<51x512xf32, #tpu.memory_space<vmem>>, vector<1x512xf32>
    %300 = vector.broadcast %299 : vector<1x512xf32> to vector<2x512xf32>
    %301 = arith.mulf %298, %300 : vector<2x512xf32>
    %302 = vector.extract_strided_slice %295 {offsets = [0, 16], sizes = [2, 496], strides = [1, 1]} : vector<2x512xf32> to vector<2x496xf32>
    %303 = vector.extract_strided_slice %295 {offsets = [0, 0], sizes = [2, 16], strides = [1, 1]} : vector<2x512xf32> to vector<2x16xf32>
    %304 = tpu.concatenate %302, %303 in 1 : vector<2x496xf32>, vector<2x16xf32> -> vector<2x512xf32>
    %c50 = arith.constant 50 : index
    %c0_64 = arith.constant 0 : index
    %305 = vector.load %arg2[%c50, %c0_64] : memref<51x512xf32, #tpu.memory_space<vmem>>, vector<1x512xf32>
    %306 = vector.broadcast %305 : vector<1x512xf32> to vector<2x512xf32>
    %307 = arith.mulf %304, %306 : vector<2x512xf32>
    %308 = tpu.concatenate %301, %295, %307, %2 in 0 : vector<2x512xf32>, vector<2x512xf32>, vector<2x512xf32>, vector<1x512xf32> -> vector<7x512xf32>
    %309 = arith.truncf %308 : vector<7x512xf32> to vector<7x512xbf16>
    %c0_65 = arith.constant 0 : index
    %c0_66 = arith.constant 0 : index
    %310 = vector.load %arg7[%c0_65, %c0_66] : memref<2x7xbf16, #tpu.memory_space<vmem>>, vector<2x7xbf16>
    %cst_67 = arith.constant dense<0.000000e+00> : vector<2x512xf32>
    %311 = tpu.matmul %310, %309, %cst_67 {dimension_numbers = #tpu.dot_dimension_numbers<[1], [0], [0], [1], [0, 0, 1, 1], [], []>} : vector<2x7xbf16>, vector<7x512xbf16>, vector<2x512xf32> -> vector<2x512xf32>
    %cst_68 = arith.constant 0.000000e+00 : f32
    %312 = vector.broadcast %cst_68 : f32 to vector<2x512xf32>
    %313 = arith.maximumf %311, %312 : vector<2x512xf32>
    %314 = vector.extract_strided_slice %313 {offsets = [0, 367], sizes = [2, 145], strides = [1, 1]} : vector<2x512xf32> to vector<2x145xf32>
    %315 = vector.extract_strided_slice %313 {offsets = [0, 0], sizes = [2, 367], strides = [1, 1]} : vector<2x512xf32> to vector<2x367xf32>
    %316 = tpu.concatenate %314, %315 in 1 : vector<2x145xf32>, vector<2x367xf32> -> vector<2x512xf32>
    %c18_69 = arith.constant 18 : index
    %c0_70 = arith.constant 0 : index
    %317 = vector.load %arg2[%c18_69, %c0_70] : memref<51x512xf32, #tpu.memory_space<vmem>>, vector<1x512xf32>
    %318 = vector.broadcast %317 : vector<1x512xf32> to vector<2x512xf32>
    %319 = arith.mulf %316, %318 : vector<2x512xf32>
    %320 = vector.extract_strided_slice %313 {offsets = [0, 368], sizes = [2, 144], strides = [1, 1]} : vector<2x512xf32> to vector<2x144xf32>
    %321 = vector.extract_strided_slice %313 {offsets = [0, 0], sizes = [2, 368], strides = [1, 1]} : vector<2x512xf32> to vector<2x368xf32>
    %322 = tpu.concatenate %320, %321 in 1 : vector<2x144xf32>, vector<2x368xf32> -> vector<2x512xf32>
    %c19_71 = arith.constant 19 : index
    %c0_72 = arith.constant 0 : index
    %323 = vector.load %arg2[%c19_71, %c0_72] : memref<51x512xf32, #tpu.memory_space<vmem>>, vector<1x512xf32>
    %324 = vector.broadcast %323 : vector<1x512xf32> to vector<2x512xf32>
    %325 = arith.mulf %322, %324 : vector<2x512xf32>
    %326 = vector.extract_strided_slice %313 {offsets = [0, 369], sizes = [2, 143], strides = [1, 1]} : vector<2x512xf32> to vector<2x143xf32>
    %327 = vector.extract_strided_slice %313 {offsets = [0, 0], sizes = [2, 369], strides = [1, 1]} : vector<2x512xf32> to vector<2x369xf32>
    %328 = tpu.concatenate %326, %327 in 1 : vector<2x143xf32>, vector<2x369xf32> -> vector<2x512xf32>
    %c20_73 = arith.constant 20 : index
    %c0_74 = arith.constant 0 : index
    %329 = vector.load %arg2[%c20_73, %c0_74] : memref<51x512xf32, #tpu.memory_space<vmem>>, vector<1x512xf32>
    %330 = vector.broadcast %329 : vector<1x512xf32> to vector<2x512xf32>
    %331 = arith.mulf %328, %330 : vector<2x512xf32>
    %332 = vector.extract_strided_slice %313 {offsets = [0, 383], sizes = [2, 129], strides = [1, 1]} : vector<2x512xf32> to vector<2x129xf32>
    %333 = vector.extract_strided_slice %313 {offsets = [0, 0], sizes = [2, 383], strides = [1, 1]} : vector<2x512xf32> to vector<2x383xf32>
    %334 = tpu.concatenate %332, %333 in 1 : vector<2x129xf32>, vector<2x383xf32> -> vector<2x512xf32>
    %c21_75 = arith.constant 21 : index
    %c0_76 = arith.constant 0 : index
    %335 = vector.load %arg2[%c21_75, %c0_76] : memref<51x512xf32, #tpu.memory_space<vmem>>, vector<1x512xf32>
    %336 = vector.broadcast %335 : vector<1x512xf32> to vector<2x512xf32>
    %337 = arith.mulf %334, %336 : vector<2x512xf32>
    %338 = vector.extract_strided_slice %313 {offsets = [0, 384], sizes = [2, 128], strides = [1, 1]} : vector<2x512xf32> to vector<2x128xf32>
    %339 = vector.extract_strided_slice %313 {offsets = [0, 0], sizes = [2, 384], strides = [1, 1]} : vector<2x512xf32> to vector<2x384xf32>
    %340 = tpu.concatenate %338, %339 in 1 : vector<2x128xf32>, vector<2x384xf32> -> vector<2x512xf32>
    %c22_77 = arith.constant 22 : index
    %c0_78 = arith.constant 0 : index
    %341 = vector.load %arg2[%c22_77, %c0_78] : memref<51x512xf32, #tpu.memory_space<vmem>>, vector<1x512xf32>
    %342 = vector.broadcast %341 : vector<1x512xf32> to vector<2x512xf32>
    %343 = arith.mulf %340, %342 : vector<2x512xf32>
    %344 = vector.extract_strided_slice %313 {offsets = [0, 385], sizes = [2, 127], strides = [1, 1]} : vector<2x512xf32> to vector<2x127xf32>
    %345 = vector.extract_strided_slice %313 {offsets = [0, 0], sizes = [2, 385], strides = [1, 1]} : vector<2x512xf32> to vector<2x385xf32>
    %346 = tpu.concatenate %344, %345 in 1 : vector<2x127xf32>, vector<2x385xf32> -> vector<2x512xf32>
    %c23_79 = arith.constant 23 : index
    %c0_80 = arith.constant 0 : index
    %347 = vector.load %arg2[%c23_79, %c0_80] : memref<51x512xf32, #tpu.memory_space<vmem>>, vector<1x512xf32>
    %348 = vector.broadcast %347 : vector<1x512xf32> to vector<2x512xf32>
    %349 = arith.mulf %346, %348 : vector<2x512xf32>
    %350 = vector.extract_strided_slice %313 {offsets = [0, 399], sizes = [2, 113], strides = [1, 1]} : vector<2x512xf32> to vector<2x113xf32>
    %351 = vector.extract_strided_slice %313 {offsets = [0, 0], sizes = [2, 399], strides = [1, 1]} : vector<2x512xf32> to vector<2x399xf32>
    %352 = tpu.concatenate %350, %351 in 1 : vector<2x113xf32>, vector<2x399xf32> -> vector<2x512xf32>
    %c24_81 = arith.constant 24 : index
    %c0_82 = arith.constant 0 : index
    %353 = vector.load %arg2[%c24_81, %c0_82] : memref<51x512xf32, #tpu.memory_space<vmem>>, vector<1x512xf32>
    %354 = vector.broadcast %353 : vector<1x512xf32> to vector<2x512xf32>
    %355 = arith.mulf %352, %354 : vector<2x512xf32>
    %356 = vector.extract_strided_slice %313 {offsets = [0, 400], sizes = [2, 112], strides = [1, 1]} : vector<2x512xf32> to vector<2x112xf32>
    %357 = vector.extract_strided_slice %313 {offsets = [0, 0], sizes = [2, 400], strides = [1, 1]} : vector<2x512xf32> to vector<2x400xf32>
    %358 = tpu.concatenate %356, %357 in 1 : vector<2x112xf32>, vector<2x400xf32> -> vector<2x512xf32>
    %c25_83 = arith.constant 25 : index
    %c0_84 = arith.constant 0 : index
    %359 = vector.load %arg2[%c25_83, %c0_84] : memref<51x512xf32, #tpu.memory_space<vmem>>, vector<1x512xf32>
    %360 = vector.broadcast %359 : vector<1x512xf32> to vector<2x512xf32>
    %361 = arith.mulf %358, %360 : vector<2x512xf32>
    %362 = vector.extract_strided_slice %313 {offsets = [0, 401], sizes = [2, 111], strides = [1, 1]} : vector<2x512xf32> to vector<2x111xf32>
    %363 = vector.extract_strided_slice %313 {offsets = [0, 0], sizes = [2, 401], strides = [1, 1]} : vector<2x512xf32> to vector<2x401xf32>
    %364 = tpu.concatenate %362, %363 in 1 : vector<2x111xf32>, vector<2x401xf32> -> vector<2x512xf32>
    %c26_85 = arith.constant 26 : index
    %c0_86 = arith.constant 0 : index
    %365 = vector.load %arg2[%c26_85, %c0_86] : memref<51x512xf32, #tpu.memory_space<vmem>>, vector<1x512xf32>
    %366 = vector.broadcast %365 : vector<1x512xf32> to vector<2x512xf32>
    %367 = arith.mulf %364, %366 : vector<2x512xf32>
    %368 = vector.extract_strided_slice %313 {offsets = [0, 495], sizes = [2, 17], strides = [1, 1]} : vector<2x512xf32> to vector<2x17xf32>
    %369 = vector.extract_strided_slice %313 {offsets = [0, 0], sizes = [2, 495], strides = [1, 1]} : vector<2x512xf32> to vector<2x495xf32>
    %370 = tpu.concatenate %368, %369 in 1 : vector<2x17xf32>, vector<2x495xf32> -> vector<2x512xf32>
    %c27_87 = arith.constant 27 : index
    %c0_88 = arith.constant 0 : index
    %371 = vector.load %arg2[%c27_87, %c0_88] : memref<51x512xf32, #tpu.memory_space<vmem>>, vector<1x512xf32>
    %372 = vector.broadcast %371 : vector<1x512xf32> to vector<2x512xf32>
    %373 = arith.mulf %370, %372 : vector<2x512xf32>
    %374 = vector.extract_strided_slice %313 {offsets = [0, 496], sizes = [2, 16], strides = [1, 1]} : vector<2x512xf32> to vector<2x16xf32>
    %375 = vector.extract_strided_slice %313 {offsets = [0, 0], sizes = [2, 496], strides = [1, 1]} : vector<2x512xf32> to vector<2x496xf32>
    %376 = tpu.concatenate %374, %375 in 1 : vector<2x16xf32>, vector<2x496xf32> -> vector<2x512xf32>
    %c28_89 = arith.constant 28 : index
    %c0_90 = arith.constant 0 : index
    %377 = vector.load %arg2[%c28_89, %c0_90] : memref<51x512xf32, #tpu.memory_space<vmem>>, vector<1x512xf32>
    %378 = vector.broadcast %377 : vector<1x512xf32> to vector<2x512xf32>
    %379 = arith.mulf %376, %378 : vector<2x512xf32>
    %380 = vector.extract_strided_slice %313 {offsets = [0, 497], sizes = [2, 15], strides = [1, 1]} : vector<2x512xf32> to vector<2x15xf32>
    %381 = vector.extract_strided_slice %313 {offsets = [0, 0], sizes = [2, 497], strides = [1, 1]} : vector<2x512xf32> to vector<2x497xf32>
    %382 = tpu.concatenate %380, %381 in 1 : vector<2x15xf32>, vector<2x497xf32> -> vector<2x512xf32>
    %c29_91 = arith.constant 29 : index
    %c0_92 = arith.constant 0 : index
    %383 = vector.load %arg2[%c29_91, %c0_92] : memref<51x512xf32, #tpu.memory_space<vmem>>, vector<1x512xf32>
    %384 = vector.broadcast %383 : vector<1x512xf32> to vector<2x512xf32>
    %385 = arith.mulf %382, %384 : vector<2x512xf32>
    %386 = vector.extract_strided_slice %313 {offsets = [0, 511], sizes = [2, 1], strides = [1, 1]} : vector<2x512xf32> to vector<2x1xf32>
    %387 = vector.extract_strided_slice %313 {offsets = [0, 0], sizes = [2, 511], strides = [1, 1]} : vector<2x512xf32> to vector<2x511xf32>
    %388 = tpu.concatenate %386, %387 in 1 : vector<2x1xf32>, vector<2x511xf32> -> vector<2x512xf32>
    %c30_93 = arith.constant 30 : index
    %c0_94 = arith.constant 0 : index
    %389 = vector.load %arg2[%c30_93, %c0_94] : memref<51x512xf32, #tpu.memory_space<vmem>>, vector<1x512xf32>
    %390 = vector.broadcast %389 : vector<1x512xf32> to vector<2x512xf32>
    %391 = arith.mulf %388, %390 : vector<2x512xf32>
    %392 = vector.extract_strided_slice %313 {offsets = [0, 1], sizes = [2, 511], strides = [1, 1]} : vector<2x512xf32> to vector<2x511xf32>
    %393 = vector.extract_strided_slice %313 {offsets = [0, 0], sizes = [2, 1], strides = [1, 1]} : vector<2x512xf32> to vector<2x1xf32>
    %394 = tpu.concatenate %392, %393 in 1 : vector<2x511xf32>, vector<2x1xf32> -> vector<2x512xf32>
    %c32_95 = arith.constant 32 : index
    %c0_96 = arith.constant 0 : index
    %395 = vector.load %arg2[%c32_95, %c0_96] : memref<51x512xf32, #tpu.memory_space<vmem>>, vector<1x512xf32>
    %396 = vector.broadcast %395 : vector<1x512xf32> to vector<2x512xf32>
    %397 = arith.mulf %394, %396 : vector<2x512xf32>
    %398 = vector.extract_strided_slice %313 {offsets = [0, 15], sizes = [2, 497], strides = [1, 1]} : vector<2x512xf32> to vector<2x497xf32>
    %399 = vector.extract_strided_slice %313 {offsets = [0, 0], sizes = [2, 15], strides = [1, 1]} : vector<2x512xf32> to vector<2x15xf32>
    %400 = tpu.concatenate %398, %399 in 1 : vector<2x497xf32>, vector<2x15xf32> -> vector<2x512xf32>
    %c33_97 = arith.constant 33 : index
    %c0_98 = arith.constant 0 : index
    %401 = vector.load %arg2[%c33_97, %c0_98] : memref<51x512xf32, #tpu.memory_space<vmem>>, vector<1x512xf32>
    %402 = vector.broadcast %401 : vector<1x512xf32> to vector<2x512xf32>
    %403 = arith.mulf %400, %402 : vector<2x512xf32>
    %404 = vector.extract_strided_slice %313 {offsets = [0, 16], sizes = [2, 496], strides = [1, 1]} : vector<2x512xf32> to vector<2x496xf32>
    %405 = vector.extract_strided_slice %313 {offsets = [0, 0], sizes = [2, 16], strides = [1, 1]} : vector<2x512xf32> to vector<2x16xf32>
    %406 = tpu.concatenate %404, %405 in 1 : vector<2x496xf32>, vector<2x16xf32> -> vector<2x512xf32>
    %c34_99 = arith.constant 34 : index
    %c0_100 = arith.constant 0 : index
    %407 = vector.load %arg2[%c34_99, %c0_100] : memref<51x512xf32, #tpu.memory_space<vmem>>, vector<1x512xf32>
    %408 = vector.broadcast %407 : vector<1x512xf32> to vector<2x512xf32>
    %409 = arith.mulf %406, %408 : vector<2x512xf32>
    %410 = vector.extract_strided_slice %313 {offsets = [0, 17], sizes = [2, 495], strides = [1, 1]} : vector<2x512xf32> to vector<2x495xf32>
    %411 = vector.extract_strided_slice %313 {offsets = [0, 0], sizes = [2, 17], strides = [1, 1]} : vector<2x512xf32> to vector<2x17xf32>
    %412 = tpu.concatenate %410, %411 in 1 : vector<2x495xf32>, vector<2x17xf32> -> vector<2x512xf32>
    %c35_101 = arith.constant 35 : index
    %c0_102 = arith.constant 0 : index
    %413 = vector.load %arg2[%c35_101, %c0_102] : memref<51x512xf32, #tpu.memory_space<vmem>>, vector<1x512xf32>
    %414 = vector.broadcast %413 : vector<1x512xf32> to vector<2x512xf32>
    %415 = arith.mulf %412, %414 : vector<2x512xf32>
    %416 = vector.extract_strided_slice %313 {offsets = [0, 111], sizes = [2, 401], strides = [1, 1]} : vector<2x512xf32> to vector<2x401xf32>
    %417 = vector.extract_strided_slice %313 {offsets = [0, 0], sizes = [2, 111], strides = [1, 1]} : vector<2x512xf32> to vector<2x111xf32>
    %418 = tpu.concatenate %416, %417 in 1 : vector<2x401xf32>, vector<2x111xf32> -> vector<2x512xf32>
    %c36_103 = arith.constant 36 : index
    %c0_104 = arith.constant 0 : index
    %419 = vector.load %arg2[%c36_103, %c0_104] : memref<51x512xf32, #tpu.memory_space<vmem>>, vector<1x512xf32>
    %420 = vector.broadcast %419 : vector<1x512xf32> to vector<2x512xf32>
    %421 = arith.mulf %418, %420 : vector<2x512xf32>
    %422 = vector.extract_strided_slice %313 {offsets = [0, 112], sizes = [2, 400], strides = [1, 1]} : vector<2x512xf32> to vector<2x400xf32>
    %423 = vector.extract_strided_slice %313 {offsets = [0, 0], sizes = [2, 112], strides = [1, 1]} : vector<2x512xf32> to vector<2x112xf32>
    %424 = tpu.concatenate %422, %423 in 1 : vector<2x400xf32>, vector<2x112xf32> -> vector<2x512xf32>
    %c37_105 = arith.constant 37 : index
    %c0_106 = arith.constant 0 : index
    %425 = vector.load %arg2[%c37_105, %c0_106] : memref<51x512xf32, #tpu.memory_space<vmem>>, vector<1x512xf32>
    %426 = vector.broadcast %425 : vector<1x512xf32> to vector<2x512xf32>
    %427 = arith.mulf %424, %426 : vector<2x512xf32>
    %428 = vector.extract_strided_slice %313 {offsets = [0, 113], sizes = [2, 399], strides = [1, 1]} : vector<2x512xf32> to vector<2x399xf32>
    %429 = vector.extract_strided_slice %313 {offsets = [0, 0], sizes = [2, 113], strides = [1, 1]} : vector<2x512xf32> to vector<2x113xf32>
    %430 = tpu.concatenate %428, %429 in 1 : vector<2x399xf32>, vector<2x113xf32> -> vector<2x512xf32>
    %c38_107 = arith.constant 38 : index
    %c0_108 = arith.constant 0 : index
    %431 = vector.load %arg2[%c38_107, %c0_108] : memref<51x512xf32, #tpu.memory_space<vmem>>, vector<1x512xf32>
    %432 = vector.broadcast %431 : vector<1x512xf32> to vector<2x512xf32>
    %433 = arith.mulf %430, %432 : vector<2x512xf32>
    %434 = vector.extract_strided_slice %313 {offsets = [0, 127], sizes = [2, 385], strides = [1, 1]} : vector<2x512xf32> to vector<2x385xf32>
    %435 = vector.extract_strided_slice %313 {offsets = [0, 0], sizes = [2, 127], strides = [1, 1]} : vector<2x512xf32> to vector<2x127xf32>
    %436 = tpu.concatenate %434, %435 in 1 : vector<2x385xf32>, vector<2x127xf32> -> vector<2x512xf32>
    %c39_109 = arith.constant 39 : index
    %c0_110 = arith.constant 0 : index
    %437 = vector.load %arg2[%c39_109, %c0_110] : memref<51x512xf32, #tpu.memory_space<vmem>>, vector<1x512xf32>
    %438 = vector.broadcast %437 : vector<1x512xf32> to vector<2x512xf32>
    %439 = arith.mulf %436, %438 : vector<2x512xf32>
    %440 = vector.extract_strided_slice %313 {offsets = [0, 128], sizes = [2, 384], strides = [1, 1]} : vector<2x512xf32> to vector<2x384xf32>
    %441 = vector.extract_strided_slice %313 {offsets = [0, 0], sizes = [2, 128], strides = [1, 1]} : vector<2x512xf32> to vector<2x128xf32>
    %442 = tpu.concatenate %440, %441 in 1 : vector<2x384xf32>, vector<2x128xf32> -> vector<2x512xf32>
    %c40_111 = arith.constant 40 : index
    %c0_112 = arith.constant 0 : index
    %443 = vector.load %arg2[%c40_111, %c0_112] : memref<51x512xf32, #tpu.memory_space<vmem>>, vector<1x512xf32>
    %444 = vector.broadcast %443 : vector<1x512xf32> to vector<2x512xf32>
    %445 = arith.mulf %442, %444 : vector<2x512xf32>
    %446 = vector.extract_strided_slice %313 {offsets = [0, 129], sizes = [2, 383], strides = [1, 1]} : vector<2x512xf32> to vector<2x383xf32>
    %447 = vector.extract_strided_slice %313 {offsets = [0, 0], sizes = [2, 129], strides = [1, 1]} : vector<2x512xf32> to vector<2x129xf32>
    %448 = tpu.concatenate %446, %447 in 1 : vector<2x383xf32>, vector<2x129xf32> -> vector<2x512xf32>
    %c41_113 = arith.constant 41 : index
    %c0_114 = arith.constant 0 : index
    %449 = vector.load %arg2[%c41_113, %c0_114] : memref<51x512xf32, #tpu.memory_space<vmem>>, vector<1x512xf32>
    %450 = vector.broadcast %449 : vector<1x512xf32> to vector<2x512xf32>
    %451 = arith.mulf %448, %450 : vector<2x512xf32>
    %452 = vector.extract_strided_slice %313 {offsets = [0, 143], sizes = [2, 369], strides = [1, 1]} : vector<2x512xf32> to vector<2x369xf32>
    %453 = vector.extract_strided_slice %313 {offsets = [0, 0], sizes = [2, 143], strides = [1, 1]} : vector<2x512xf32> to vector<2x143xf32>
    %454 = tpu.concatenate %452, %453 in 1 : vector<2x369xf32>, vector<2x143xf32> -> vector<2x512xf32>
    %c42_115 = arith.constant 42 : index
    %c0_116 = arith.constant 0 : index
    %455 = vector.load %arg2[%c42_115, %c0_116] : memref<51x512xf32, #tpu.memory_space<vmem>>, vector<1x512xf32>
    %456 = vector.broadcast %455 : vector<1x512xf32> to vector<2x512xf32>
    %457 = arith.mulf %454, %456 : vector<2x512xf32>
    %458 = vector.extract_strided_slice %313 {offsets = [0, 144], sizes = [2, 368], strides = [1, 1]} : vector<2x512xf32> to vector<2x368xf32>
    %459 = vector.extract_strided_slice %313 {offsets = [0, 0], sizes = [2, 144], strides = [1, 1]} : vector<2x512xf32> to vector<2x144xf32>
    %460 = tpu.concatenate %458, %459 in 1 : vector<2x368xf32>, vector<2x144xf32> -> vector<2x512xf32>
    %c43_117 = arith.constant 43 : index
    %c0_118 = arith.constant 0 : index
    %461 = vector.load %arg2[%c43_117, %c0_118] : memref<51x512xf32, #tpu.memory_space<vmem>>, vector<1x512xf32>
    %462 = vector.broadcast %461 : vector<1x512xf32> to vector<2x512xf32>
    %463 = arith.mulf %460, %462 : vector<2x512xf32>
    %464 = vector.extract_strided_slice %313 {offsets = [0, 145], sizes = [2, 367], strides = [1, 1]} : vector<2x512xf32> to vector<2x367xf32>
    %465 = vector.extract_strided_slice %313 {offsets = [0, 0], sizes = [2, 145], strides = [1, 1]} : vector<2x512xf32> to vector<2x145xf32>
    %466 = tpu.concatenate %464, %465 in 1 : vector<2x367xf32>, vector<2x145xf32> -> vector<2x512xf32>
    %c44_119 = arith.constant 44 : index
    %c0_120 = arith.constant 0 : index
    %467 = vector.load %arg2[%c44_119, %c0_120] : memref<51x512xf32, #tpu.memory_space<vmem>>, vector<1x512xf32>
    %468 = vector.broadcast %467 : vector<1x512xf32> to vector<2x512xf32>
    %469 = arith.mulf %466, %468 : vector<2x512xf32>
    %470 = tpu.concatenate %319, %325, %331, %337, %343, %349, %355, %361, %367, %373, %379, %385, %391, %313, %397, %403 in 0 : vector<2x512xf32>, vector<2x512xf32>, vector<2x512xf32>, vector<2x512xf32>, vector<2x512xf32>, vector<2x512xf32>, vector<2x512xf32>, vector<2x512xf32>, vector<2x512xf32>, vector<2x512xf32>, vector<2x512xf32>, vector<2x512xf32>, vector<2x512xf32>, vector<2x512xf32>, vector<2x512xf32>, vector<2x512xf32> -> vector<32x512xf32>
    %471 = tpu.concatenate %409, %415, %421, %427, %433, %439, %445, %451, %457, %463, %469, %2 in 0 : vector<2x512xf32>, vector<2x512xf32>, vector<2x512xf32>, vector<2x512xf32>, vector<2x512xf32>, vector<2x512xf32>, vector<2x512xf32>, vector<2x512xf32>, vector<2x512xf32>, vector<2x512xf32>, vector<2x512xf32>, vector<1x512xf32> -> vector<23x512xf32>
    %472 = tpu.concatenate %470, %471 in 0 : vector<32x512xf32>, vector<23x512xf32> -> vector<55x512xf32>
    %473 = arith.truncf %472 : vector<55x512xf32> to vector<55x512xbf16>
    %c0_121 = arith.constant 0 : index
    %c0_122 = arith.constant 0 : index
    %474 = vector.load %arg8[%c0_121, %c0_122] : memref<2x55xbf16, #tpu.memory_space<vmem>>, vector<2x55xbf16>
    %cst_123 = arith.constant dense<0.000000e+00> : vector<2x512xf32>
    %475 = tpu.matmul %474, %473, %cst_123 {dimension_numbers = #tpu.dot_dimension_numbers<[1], [0], [0], [1], [0, 0, 1, 1], [], []>} : vector<2x55xbf16>, vector<55x512xbf16>, vector<2x512xf32> -> vector<2x512xf32>
    %cst_124 = arith.constant 0.000000e+00 : f32
    %476 = vector.broadcast %cst_124 : f32 to vector<2x512xf32>
    %477 = arith.maximumf %475, %476 : vector<2x512xf32>
    %478 = arith.mulf %477, %277 : vector<2x512xf32>
    %479 = vector.extract_strided_slice %1 {offsets = [4, 0], sizes = [2, 512], strides = [1, 1]} : vector<8x512xf32> to vector<2x512xf32>
    %480 = vector.extract_strided_slice %479 {offsets = [0, 496], sizes = [2, 16], strides = [1, 1]} : vector<2x512xf32> to vector<2x16xf32>
    %481 = vector.extract_strided_slice %479 {offsets = [0, 0], sizes = [2, 496], strides = [1, 1]} : vector<2x512xf32> to vector<2x496xf32>
    %482 = tpu.concatenate %480, %481 in 1 : vector<2x16xf32>, vector<2x496xf32> -> vector<2x512xf32>
    %c48_125 = arith.constant 48 : index
    %c0_126 = arith.constant 0 : index
    %483 = vector.load %arg2[%c48_125, %c0_126] : memref<51x512xf32, #tpu.memory_space<vmem>>, vector<1x512xf32>
    %484 = vector.broadcast %483 : vector<1x512xf32> to vector<2x512xf32>
    %485 = arith.mulf %482, %484 : vector<2x512xf32>
    %486 = vector.extract_strided_slice %479 {offsets = [0, 16], sizes = [2, 496], strides = [1, 1]} : vector<2x512xf32> to vector<2x496xf32>
    %487 = vector.extract_strided_slice %479 {offsets = [0, 0], sizes = [2, 16], strides = [1, 1]} : vector<2x512xf32> to vector<2x16xf32>
    %488 = tpu.concatenate %486, %487 in 1 : vector<2x496xf32>, vector<2x16xf32> -> vector<2x512xf32>
    %c50_127 = arith.constant 50 : index
    %c0_128 = arith.constant 0 : index
    %489 = vector.load %arg2[%c50_127, %c0_128] : memref<51x512xf32, #tpu.memory_space<vmem>>, vector<1x512xf32>
    %490 = vector.broadcast %489 : vector<1x512xf32> to vector<2x512xf32>
    %491 = arith.mulf %488, %490 : vector<2x512xf32>
    %492 = tpu.concatenate %485, %479, %491, %2 in 0 : vector<2x512xf32>, vector<2x512xf32>, vector<2x512xf32>, vector<1x512xf32> -> vector<7x512xf32>
    %493 = arith.truncf %492 : vector<7x512xf32> to vector<7x512xbf16>
    %c0_129 = arith.constant 0 : index
    %c0_130 = arith.constant 0 : index
    %494 = vector.load %arg9[%c0_129, %c0_130] : memref<2x7xbf16, #tpu.memory_space<vmem>>, vector<2x7xbf16>
    %cst_131 = arith.constant dense<0.000000e+00> : vector<2x512xf32>
    %495 = tpu.matmul %494, %493, %cst_131 {dimension_numbers = #tpu.dot_dimension_numbers<[1], [0], [0], [1], [0, 0, 1, 1], [], []>} : vector<2x7xbf16>, vector<7x512xbf16>, vector<2x512xf32> -> vector<2x512xf32>
    %cst_132 = arith.constant 0.000000e+00 : f32
    %496 = vector.broadcast %cst_132 : f32 to vector<2x512xf32>
    %497 = arith.maximumf %495, %496 : vector<2x512xf32>
    %498 = vector.extract_strided_slice %497 {offsets = [0, 511], sizes = [2, 1], strides = [1, 1]} : vector<2x512xf32> to vector<2x1xf32>
    %499 = vector.extract_strided_slice %497 {offsets = [0, 0], sizes = [2, 511], strides = [1, 1]} : vector<2x512xf32> to vector<2x511xf32>
    %500 = tpu.concatenate %498, %499 in 1 : vector<2x1xf32>, vector<2x511xf32> -> vector<2x512xf32>
    %c45_133 = arith.constant 45 : index
    %c0_134 = arith.constant 0 : index
    %501 = vector.load %arg2[%c45_133, %c0_134] : memref<51x512xf32, #tpu.memory_space<vmem>>, vector<1x512xf32>
    %502 = vector.broadcast %501 : vector<1x512xf32> to vector<2x512xf32>
    %503 = arith.mulf %500, %502 : vector<2x512xf32>
    %504 = vector.extract_strided_slice %497 {offsets = [0, 1], sizes = [2, 511], strides = [1, 1]} : vector<2x512xf32> to vector<2x511xf32>
    %505 = vector.extract_strided_slice %497 {offsets = [0, 0], sizes = [2, 1], strides = [1, 1]} : vector<2x512xf32> to vector<2x1xf32>
    %506 = tpu.concatenate %504, %505 in 1 : vector<2x511xf32>, vector<2x1xf32> -> vector<2x512xf32>
    %c47_135 = arith.constant 47 : index
    %c0_136 = arith.constant 0 : index
    %507 = vector.load %arg2[%c47_135, %c0_136] : memref<51x512xf32, #tpu.memory_space<vmem>>, vector<1x512xf32>
    %508 = vector.broadcast %507 : vector<1x512xf32> to vector<2x512xf32>
    %509 = arith.mulf %506, %508 : vector<2x512xf32>
    %510 = tpu.concatenate %503, %497, %509, %2 in 0 : vector<2x512xf32>, vector<2x512xf32>, vector<2x512xf32>, vector<1x512xf32> -> vector<7x512xf32>
    %511 = arith.truncf %510 : vector<7x512xf32> to vector<7x512xbf16>
    %c0_137 = arith.constant 0 : index
    %c0_138 = arith.constant 0 : index
    %512 = vector.load %arg10[%c0_137, %c0_138] : memref<2x7xbf16, #tpu.memory_space<vmem>>, vector<2x7xbf16>
    %cst_139 = arith.constant dense<0.000000e+00> : vector<2x512xf32>
    %513 = tpu.matmul %512, %511, %cst_139 {dimension_numbers = #tpu.dot_dimension_numbers<[1], [0], [0], [1], [0, 0, 1, 1], [], []>} : vector<2x7xbf16>, vector<7x512xbf16>, vector<2x512xf32> -> vector<2x512xf32>
    %cst_140 = arith.constant 0.000000e+00 : f32
    %514 = vector.broadcast %cst_140 : f32 to vector<2x512xf32>
    %515 = arith.maximumf %513, %514 : vector<2x512xf32>
    %516 = vector.extract_strided_slice %515 {offsets = [0, 367], sizes = [2, 145], strides = [1, 1]} : vector<2x512xf32> to vector<2x145xf32>
    %517 = vector.extract_strided_slice %515 {offsets = [0, 0], sizes = [2, 367], strides = [1, 1]} : vector<2x512xf32> to vector<2x367xf32>
    %518 = tpu.concatenate %516, %517 in 1 : vector<2x145xf32>, vector<2x367xf32> -> vector<2x512xf32>
    %c18_141 = arith.constant 18 : index
    %c0_142 = arith.constant 0 : index
    %519 = vector.load %arg2[%c18_141, %c0_142] : memref<51x512xf32, #tpu.memory_space<vmem>>, vector<1x512xf32>
    %520 = vector.broadcast %519 : vector<1x512xf32> to vector<2x512xf32>
    %521 = arith.mulf %518, %520 : vector<2x512xf32>
    %522 = vector.extract_strided_slice %515 {offsets = [0, 368], sizes = [2, 144], strides = [1, 1]} : vector<2x512xf32> to vector<2x144xf32>
    %523 = vector.extract_strided_slice %515 {offsets = [0, 0], sizes = [2, 368], strides = [1, 1]} : vector<2x512xf32> to vector<2x368xf32>
    %524 = tpu.concatenate %522, %523 in 1 : vector<2x144xf32>, vector<2x368xf32> -> vector<2x512xf32>
    %c19_143 = arith.constant 19 : index
    %c0_144 = arith.constant 0 : index
    %525 = vector.load %arg2[%c19_143, %c0_144] : memref<51x512xf32, #tpu.memory_space<vmem>>, vector<1x512xf32>
    %526 = vector.broadcast %525 : vector<1x512xf32> to vector<2x512xf32>
    %527 = arith.mulf %524, %526 : vector<2x512xf32>
    %528 = vector.extract_strided_slice %515 {offsets = [0, 369], sizes = [2, 143], strides = [1, 1]} : vector<2x512xf32> to vector<2x143xf32>
    %529 = vector.extract_strided_slice %515 {offsets = [0, 0], sizes = [2, 369], strides = [1, 1]} : vector<2x512xf32> to vector<2x369xf32>
    %530 = tpu.concatenate %528, %529 in 1 : vector<2x143xf32>, vector<2x369xf32> -> vector<2x512xf32>
    %c20_145 = arith.constant 20 : index
    %c0_146 = arith.constant 0 : index
    %531 = vector.load %arg2[%c20_145, %c0_146] : memref<51x512xf32, #tpu.memory_space<vmem>>, vector<1x512xf32>
    %532 = vector.broadcast %531 : vector<1x512xf32> to vector<2x512xf32>
    %533 = arith.mulf %530, %532 : vector<2x512xf32>
    %534 = vector.extract_strided_slice %515 {offsets = [0, 383], sizes = [2, 129], strides = [1, 1]} : vector<2x512xf32> to vector<2x129xf32>
    %535 = vector.extract_strided_slice %515 {offsets = [0, 0], sizes = [2, 383], strides = [1, 1]} : vector<2x512xf32> to vector<2x383xf32>
    %536 = tpu.concatenate %534, %535 in 1 : vector<2x129xf32>, vector<2x383xf32> -> vector<2x512xf32>
    %c21_147 = arith.constant 21 : index
    %c0_148 = arith.constant 0 : index
    %537 = vector.load %arg2[%c21_147, %c0_148] : memref<51x512xf32, #tpu.memory_space<vmem>>, vector<1x512xf32>
    %538 = vector.broadcast %537 : vector<1x512xf32> to vector<2x512xf32>
    %539 = arith.mulf %536, %538 : vector<2x512xf32>
    %540 = vector.extract_strided_slice %515 {offsets = [0, 384], sizes = [2, 128], strides = [1, 1]} : vector<2x512xf32> to vector<2x128xf32>
    %541 = vector.extract_strided_slice %515 {offsets = [0, 0], sizes = [2, 384], strides = [1, 1]} : vector<2x512xf32> to vector<2x384xf32>
    %542 = tpu.concatenate %540, %541 in 1 : vector<2x128xf32>, vector<2x384xf32> -> vector<2x512xf32>
    %c22_149 = arith.constant 22 : index
    %c0_150 = arith.constant 0 : index
    %543 = vector.load %arg2[%c22_149, %c0_150] : memref<51x512xf32, #tpu.memory_space<vmem>>, vector<1x512xf32>
    %544 = vector.broadcast %543 : vector<1x512xf32> to vector<2x512xf32>
    %545 = arith.mulf %542, %544 : vector<2x512xf32>
    %546 = vector.extract_strided_slice %515 {offsets = [0, 385], sizes = [2, 127], strides = [1, 1]} : vector<2x512xf32> to vector<2x127xf32>
    %547 = vector.extract_strided_slice %515 {offsets = [0, 0], sizes = [2, 385], strides = [1, 1]} : vector<2x512xf32> to vector<2x385xf32>
    %548 = tpu.concatenate %546, %547 in 1 : vector<2x127xf32>, vector<2x385xf32> -> vector<2x512xf32>
    %c23_151 = arith.constant 23 : index
    %c0_152 = arith.constant 0 : index
    %549 = vector.load %arg2[%c23_151, %c0_152] : memref<51x512xf32, #tpu.memory_space<vmem>>, vector<1x512xf32>
    %550 = vector.broadcast %549 : vector<1x512xf32> to vector<2x512xf32>
    %551 = arith.mulf %548, %550 : vector<2x512xf32>
    %552 = vector.extract_strided_slice %515 {offsets = [0, 399], sizes = [2, 113], strides = [1, 1]} : vector<2x512xf32> to vector<2x113xf32>
    %553 = vector.extract_strided_slice %515 {offsets = [0, 0], sizes = [2, 399], strides = [1, 1]} : vector<2x512xf32> to vector<2x399xf32>
    %554 = tpu.concatenate %552, %553 in 1 : vector<2x113xf32>, vector<2x399xf32> -> vector<2x512xf32>
    %c24_153 = arith.constant 24 : index
    %c0_154 = arith.constant 0 : index
    %555 = vector.load %arg2[%c24_153, %c0_154] : memref<51x512xf32, #tpu.memory_space<vmem>>, vector<1x512xf32>
    %556 = vector.broadcast %555 : vector<1x512xf32> to vector<2x512xf32>
    %557 = arith.mulf %554, %556 : vector<2x512xf32>
    %558 = vector.extract_strided_slice %515 {offsets = [0, 400], sizes = [2, 112], strides = [1, 1]} : vector<2x512xf32> to vector<2x112xf32>
    %559 = vector.extract_strided_slice %515 {offsets = [0, 0], sizes = [2, 400], strides = [1, 1]} : vector<2x512xf32> to vector<2x400xf32>
    %560 = tpu.concatenate %558, %559 in 1 : vector<2x112xf32>, vector<2x400xf32> -> vector<2x512xf32>
    %c25_155 = arith.constant 25 : index
    %c0_156 = arith.constant 0 : index
    %561 = vector.load %arg2[%c25_155, %c0_156] : memref<51x512xf32, #tpu.memory_space<vmem>>, vector<1x512xf32>
    %562 = vector.broadcast %561 : vector<1x512xf32> to vector<2x512xf32>
    %563 = arith.mulf %560, %562 : vector<2x512xf32>
    %564 = vector.extract_strided_slice %515 {offsets = [0, 401], sizes = [2, 111], strides = [1, 1]} : vector<2x512xf32> to vector<2x111xf32>
    %565 = vector.extract_strided_slice %515 {offsets = [0, 0], sizes = [2, 401], strides = [1, 1]} : vector<2x512xf32> to vector<2x401xf32>
    %566 = tpu.concatenate %564, %565 in 1 : vector<2x111xf32>, vector<2x401xf32> -> vector<2x512xf32>
    %c26_157 = arith.constant 26 : index
    %c0_158 = arith.constant 0 : index
    %567 = vector.load %arg2[%c26_157, %c0_158] : memref<51x512xf32, #tpu.memory_space<vmem>>, vector<1x512xf32>
    %568 = vector.broadcast %567 : vector<1x512xf32> to vector<2x512xf32>
    %569 = arith.mulf %566, %568 : vector<2x512xf32>
    %570 = vector.extract_strided_slice %515 {offsets = [0, 495], sizes = [2, 17], strides = [1, 1]} : vector<2x512xf32> to vector<2x17xf32>
    %571 = vector.extract_strided_slice %515 {offsets = [0, 0], sizes = [2, 495], strides = [1, 1]} : vector<2x512xf32> to vector<2x495xf32>
    %572 = tpu.concatenate %570, %571 in 1 : vector<2x17xf32>, vector<2x495xf32> -> vector<2x512xf32>
    %c27_159 = arith.constant 27 : index
    %c0_160 = arith.constant 0 : index
    %573 = vector.load %arg2[%c27_159, %c0_160] : memref<51x512xf32, #tpu.memory_space<vmem>>, vector<1x512xf32>
    %574 = vector.broadcast %573 : vector<1x512xf32> to vector<2x512xf32>
    %575 = arith.mulf %572, %574 : vector<2x512xf32>
    %576 = vector.extract_strided_slice %515 {offsets = [0, 496], sizes = [2, 16], strides = [1, 1]} : vector<2x512xf32> to vector<2x16xf32>
    %577 = vector.extract_strided_slice %515 {offsets = [0, 0], sizes = [2, 496], strides = [1, 1]} : vector<2x512xf32> to vector<2x496xf32>
    %578 = tpu.concatenate %576, %577 in 1 : vector<2x16xf32>, vector<2x496xf32> -> vector<2x512xf32>
    %c28_161 = arith.constant 28 : index
    %c0_162 = arith.constant 0 : index
    %579 = vector.load %arg2[%c28_161, %c0_162] : memref<51x512xf32, #tpu.memory_space<vmem>>, vector<1x512xf32>
    %580 = vector.broadcast %579 : vector<1x512xf32> to vector<2x512xf32>
    %581 = arith.mulf %578, %580 : vector<2x512xf32>
    %582 = vector.extract_strided_slice %515 {offsets = [0, 497], sizes = [2, 15], strides = [1, 1]} : vector<2x512xf32> to vector<2x15xf32>
    %583 = vector.extract_strided_slice %515 {offsets = [0, 0], sizes = [2, 497], strides = [1, 1]} : vector<2x512xf32> to vector<2x497xf32>
    %584 = tpu.concatenate %582, %583 in 1 : vector<2x15xf32>, vector<2x497xf32> -> vector<2x512xf32>
    %c29_163 = arith.constant 29 : index
    %c0_164 = arith.constant 0 : index
    %585 = vector.load %arg2[%c29_163, %c0_164] : memref<51x512xf32, #tpu.memory_space<vmem>>, vector<1x512xf32>
    %586 = vector.broadcast %585 : vector<1x512xf32> to vector<2x512xf32>
    %587 = arith.mulf %584, %586 : vector<2x512xf32>
    %588 = vector.extract_strided_slice %515 {offsets = [0, 511], sizes = [2, 1], strides = [1, 1]} : vector<2x512xf32> to vector<2x1xf32>
    %589 = vector.extract_strided_slice %515 {offsets = [0, 0], sizes = [2, 511], strides = [1, 1]} : vector<2x512xf32> to vector<2x511xf32>
    %590 = tpu.concatenate %588, %589 in 1 : vector<2x1xf32>, vector<2x511xf32> -> vector<2x512xf32>
    %c30_165 = arith.constant 30 : index
    %c0_166 = arith.constant 0 : index
    %591 = vector.load %arg2[%c30_165, %c0_166] : memref<51x512xf32, #tpu.memory_space<vmem>>, vector<1x512xf32>
    %592 = vector.broadcast %591 : vector<1x512xf32> to vector<2x512xf32>
    %593 = arith.mulf %590, %592 : vector<2x512xf32>
    %594 = vector.extract_strided_slice %515 {offsets = [0, 1], sizes = [2, 511], strides = [1, 1]} : vector<2x512xf32> to vector<2x511xf32>
    %595 = vector.extract_strided_slice %515 {offsets = [0, 0], sizes = [2, 1], strides = [1, 1]} : vector<2x512xf32> to vector<2x1xf32>
    %596 = tpu.concatenate %594, %595 in 1 : vector<2x511xf32>, vector<2x1xf32> -> vector<2x512xf32>
    %c32_167 = arith.constant 32 : index
    %c0_168 = arith.constant 0 : index
    %597 = vector.load %arg2[%c32_167, %c0_168] : memref<51x512xf32, #tpu.memory_space<vmem>>, vector<1x512xf32>
    %598 = vector.broadcast %597 : vector<1x512xf32> to vector<2x512xf32>
    %599 = arith.mulf %596, %598 : vector<2x512xf32>
    %600 = vector.extract_strided_slice %515 {offsets = [0, 15], sizes = [2, 497], strides = [1, 1]} : vector<2x512xf32> to vector<2x497xf32>
    %601 = vector.extract_strided_slice %515 {offsets = [0, 0], sizes = [2, 15], strides = [1, 1]} : vector<2x512xf32> to vector<2x15xf32>
    %602 = tpu.concatenate %600, %601 in 1 : vector<2x497xf32>, vector<2x15xf32> -> vector<2x512xf32>
    %c33_169 = arith.constant 33 : index
    %c0_170 = arith.constant 0 : index
    %603 = vector.load %arg2[%c33_169, %c0_170] : memref<51x512xf32, #tpu.memory_space<vmem>>, vector<1x512xf32>
    %604 = vector.broadcast %603 : vector<1x512xf32> to vector<2x512xf32>
    %605 = arith.mulf %602, %604 : vector<2x512xf32>
    %606 = vector.extract_strided_slice %515 {offsets = [0, 16], sizes = [2, 496], strides = [1, 1]} : vector<2x512xf32> to vector<2x496xf32>
    %607 = vector.extract_strided_slice %515 {offsets = [0, 0], sizes = [2, 16], strides = [1, 1]} : vector<2x512xf32> to vector<2x16xf32>
    %608 = tpu.concatenate %606, %607 in 1 : vector<2x496xf32>, vector<2x16xf32> -> vector<2x512xf32>
    %c34_171 = arith.constant 34 : index
    %c0_172 = arith.constant 0 : index
    %609 = vector.load %arg2[%c34_171, %c0_172] : memref<51x512xf32, #tpu.memory_space<vmem>>, vector<1x512xf32>
    %610 = vector.broadcast %609 : vector<1x512xf32> to vector<2x512xf32>
    %611 = arith.mulf %608, %610 : vector<2x512xf32>
    %612 = vector.extract_strided_slice %515 {offsets = [0, 17], sizes = [2, 495], strides = [1, 1]} : vector<2x512xf32> to vector<2x495xf32>
    %613 = vector.extract_strided_slice %515 {offsets = [0, 0], sizes = [2, 17], strides = [1, 1]} : vector<2x512xf32> to vector<2x17xf32>
    %614 = tpu.concatenate %612, %613 in 1 : vector<2x495xf32>, vector<2x17xf32> -> vector<2x512xf32>
    %c35_173 = arith.constant 35 : index
    %c0_174 = arith.constant 0 : index
    %615 = vector.load %arg2[%c35_173, %c0_174] : memref<51x512xf32, #tpu.memory_space<vmem>>, vector<1x512xf32>
    %616 = vector.broadcast %615 : vector<1x512xf32> to vector<2x512xf32>
    %617 = arith.mulf %614, %616 : vector<2x512xf32>
    %618 = vector.extract_strided_slice %515 {offsets = [0, 111], sizes = [2, 401], strides = [1, 1]} : vector<2x512xf32> to vector<2x401xf32>
    %619 = vector.extract_strided_slice %515 {offsets = [0, 0], sizes = [2, 111], strides = [1, 1]} : vector<2x512xf32> to vector<2x111xf32>
    %620 = tpu.concatenate %618, %619 in 1 : vector<2x401xf32>, vector<2x111xf32> -> vector<2x512xf32>
    %c36_175 = arith.constant 36 : index
    %c0_176 = arith.constant 0 : index
    %621 = vector.load %arg2[%c36_175, %c0_176] : memref<51x512xf32, #tpu.memory_space<vmem>>, vector<1x512xf32>
    %622 = vector.broadcast %621 : vector<1x512xf32> to vector<2x512xf32>
    %623 = arith.mulf %620, %622 : vector<2x512xf32>
    %624 = vector.extract_strided_slice %515 {offsets = [0, 112], sizes = [2, 400], strides = [1, 1]} : vector<2x512xf32> to vector<2x400xf32>
    %625 = vector.extract_strided_slice %515 {offsets = [0, 0], sizes = [2, 112], strides = [1, 1]} : vector<2x512xf32> to vector<2x112xf32>
    %626 = tpu.concatenate %624, %625 in 1 : vector<2x400xf32>, vector<2x112xf32> -> vector<2x512xf32>
    %c37_177 = arith.constant 37 : index
    %c0_178 = arith.constant 0 : index
    %627 = vector.load %arg2[%c37_177, %c0_178] : memref<51x512xf32, #tpu.memory_space<vmem>>, vector<1x512xf32>
    %628 = vector.broadcast %627 : vector<1x512xf32> to vector<2x512xf32>
    %629 = arith.mulf %626, %628 : vector<2x512xf32>
    %630 = vector.extract_strided_slice %515 {offsets = [0, 113], sizes = [2, 399], strides = [1, 1]} : vector<2x512xf32> to vector<2x399xf32>
    %631 = vector.extract_strided_slice %515 {offsets = [0, 0], sizes = [2, 113], strides = [1, 1]} : vector<2x512xf32> to vector<2x113xf32>
    %632 = tpu.concatenate %630, %631 in 1 : vector<2x399xf32>, vector<2x113xf32> -> vector<2x512xf32>
    %c38_179 = arith.constant 38 : index
    %c0_180 = arith.constant 0 : index
    %633 = vector.load %arg2[%c38_179, %c0_180] : memref<51x512xf32, #tpu.memory_space<vmem>>, vector<1x512xf32>
    %634 = vector.broadcast %633 : vector<1x512xf32> to vector<2x512xf32>
    %635 = arith.mulf %632, %634 : vector<2x512xf32>
    %636 = vector.extract_strided_slice %515 {offsets = [0, 127], sizes = [2, 385], strides = [1, 1]} : vector<2x512xf32> to vector<2x385xf32>
    %637 = vector.extract_strided_slice %515 {offsets = [0, 0], sizes = [2, 127], strides = [1, 1]} : vector<2x512xf32> to vector<2x127xf32>
    %638 = tpu.concatenate %636, %637 in 1 : vector<2x385xf32>, vector<2x127xf32> -> vector<2x512xf32>
    %c39_181 = arith.constant 39 : index
    %c0_182 = arith.constant 0 : index
    %639 = vector.load %arg2[%c39_181, %c0_182] : memref<51x512xf32, #tpu.memory_space<vmem>>, vector<1x512xf32>
    %640 = vector.broadcast %639 : vector<1x512xf32> to vector<2x512xf32>
    %641 = arith.mulf %638, %640 : vector<2x512xf32>
    %642 = vector.extract_strided_slice %515 {offsets = [0, 128], sizes = [2, 384], strides = [1, 1]} : vector<2x512xf32> to vector<2x384xf32>
    %643 = vector.extract_strided_slice %515 {offsets = [0, 0], sizes = [2, 128], strides = [1, 1]} : vector<2x512xf32> to vector<2x128xf32>
    %644 = tpu.concatenate %642, %643 in 1 : vector<2x384xf32>, vector<2x128xf32> -> vector<2x512xf32>
    %c40_183 = arith.constant 40 : index
    %c0_184 = arith.constant 0 : index
    %645 = vector.load %arg2[%c40_183, %c0_184] : memref<51x512xf32, #tpu.memory_space<vmem>>, vector<1x512xf32>
    %646 = vector.broadcast %645 : vector<1x512xf32> to vector<2x512xf32>
    %647 = arith.mulf %644, %646 : vector<2x512xf32>
    %648 = vector.extract_strided_slice %515 {offsets = [0, 129], sizes = [2, 383], strides = [1, 1]} : vector<2x512xf32> to vector<2x383xf32>
    %649 = vector.extract_strided_slice %515 {offsets = [0, 0], sizes = [2, 129], strides = [1, 1]} : vector<2x512xf32> to vector<2x129xf32>
    %650 = tpu.concatenate %648, %649 in 1 : vector<2x383xf32>, vector<2x129xf32> -> vector<2x512xf32>
    %c41_185 = arith.constant 41 : index
    %c0_186 = arith.constant 0 : index
    %651 = vector.load %arg2[%c41_185, %c0_186] : memref<51x512xf32, #tpu.memory_space<vmem>>, vector<1x512xf32>
    %652 = vector.broadcast %651 : vector<1x512xf32> to vector<2x512xf32>
    %653 = arith.mulf %650, %652 : vector<2x512xf32>
    %654 = vector.extract_strided_slice %515 {offsets = [0, 143], sizes = [2, 369], strides = [1, 1]} : vector<2x512xf32> to vector<2x369xf32>
    %655 = vector.extract_strided_slice %515 {offsets = [0, 0], sizes = [2, 143], strides = [1, 1]} : vector<2x512xf32> to vector<2x143xf32>
    %656 = tpu.concatenate %654, %655 in 1 : vector<2x369xf32>, vector<2x143xf32> -> vector<2x512xf32>
    %c42_187 = arith.constant 42 : index
    %c0_188 = arith.constant 0 : index
    %657 = vector.load %arg2[%c42_187, %c0_188] : memref<51x512xf32, #tpu.memory_space<vmem>>, vector<1x512xf32>
    %658 = vector.broadcast %657 : vector<1x512xf32> to vector<2x512xf32>
    %659 = arith.mulf %656, %658 : vector<2x512xf32>
    %660 = vector.extract_strided_slice %515 {offsets = [0, 144], sizes = [2, 368], strides = [1, 1]} : vector<2x512xf32> to vector<2x368xf32>
    %661 = vector.extract_strided_slice %515 {offsets = [0, 0], sizes = [2, 144], strides = [1, 1]} : vector<2x512xf32> to vector<2x144xf32>
    %662 = tpu.concatenate %660, %661 in 1 : vector<2x368xf32>, vector<2x144xf32> -> vector<2x512xf32>
    %c43_189 = arith.constant 43 : index
    %c0_190 = arith.constant 0 : index
    %663 = vector.load %arg2[%c43_189, %c0_190] : memref<51x512xf32, #tpu.memory_space<vmem>>, vector<1x512xf32>
    %664 = vector.broadcast %663 : vector<1x512xf32> to vector<2x512xf32>
    %665 = arith.mulf %662, %664 : vector<2x512xf32>
    %666 = vector.extract_strided_slice %515 {offsets = [0, 145], sizes = [2, 367], strides = [1, 1]} : vector<2x512xf32> to vector<2x367xf32>
    %667 = vector.extract_strided_slice %515 {offsets = [0, 0], sizes = [2, 145], strides = [1, 1]} : vector<2x512xf32> to vector<2x145xf32>
    %668 = tpu.concatenate %666, %667 in 1 : vector<2x367xf32>, vector<2x145xf32> -> vector<2x512xf32>
    %c44_191 = arith.constant 44 : index
    %c0_192 = arith.constant 0 : index
    %669 = vector.load %arg2[%c44_191, %c0_192] : memref<51x512xf32, #tpu.memory_space<vmem>>, vector<1x512xf32>
    %670 = vector.broadcast %669 : vector<1x512xf32> to vector<2x512xf32>
    %671 = arith.mulf %668, %670 : vector<2x512xf32>
    %672 = tpu.concatenate %521, %527, %533, %539, %545, %551, %557, %563, %569, %575, %581, %587, %593, %515, %599, %605 in 0 : vector<2x512xf32>, vector<2x512xf32>, vector<2x512xf32>, vector<2x512xf32>, vector<2x512xf32>, vector<2x512xf32>, vector<2x512xf32>, vector<2x512xf32>, vector<2x512xf32>, vector<2x512xf32>, vector<2x512xf32>, vector<2x512xf32>, vector<2x512xf32>, vector<2x512xf32>, vector<2x512xf32>, vector<2x512xf32> -> vector<32x512xf32>
    %673 = tpu.concatenate %611, %617, %623, %629, %635, %641, %647, %653, %659, %665, %671, %2 in 0 : vector<2x512xf32>, vector<2x512xf32>, vector<2x512xf32>, vector<2x512xf32>, vector<2x512xf32>, vector<2x512xf32>, vector<2x512xf32>, vector<2x512xf32>, vector<2x512xf32>, vector<2x512xf32>, vector<2x512xf32>, vector<1x512xf32> -> vector<23x512xf32>
    %674 = tpu.concatenate %672, %673 in 0 : vector<32x512xf32>, vector<23x512xf32> -> vector<55x512xf32>
    %675 = arith.truncf %674 : vector<55x512xf32> to vector<55x512xbf16>
    %c0_193 = arith.constant 0 : index
    %c0_194 = arith.constant 0 : index
    %676 = vector.load %arg11[%c0_193, %c0_194] : memref<2x55xbf16, #tpu.memory_space<vmem>>, vector<2x55xbf16>
    %cst_195 = arith.constant dense<0.000000e+00> : vector<2x512xf32>
    %677 = tpu.matmul %676, %675, %cst_195 {dimension_numbers = #tpu.dot_dimension_numbers<[1], [0], [0], [1], [0, 0, 1, 1], [], []>} : vector<2x55xbf16>, vector<55x512xbf16>, vector<2x512xf32> -> vector<2x512xf32>
    %cst_196 = arith.constant 0.000000e+00 : f32
    %678 = vector.broadcast %cst_196 : f32 to vector<2x512xf32>
    %679 = arith.maximumf %677, %678 : vector<2x512xf32>
    %680 = arith.addf %679, %479 : vector<2x512xf32>
    %681 = vector.extract_strided_slice %1 {offsets = [6, 0], sizes = [2, 512], strides = [1, 1]} : vector<8x512xf32> to vector<2x512xf32>
    %682 = vector.extract_strided_slice %681 {offsets = [0, 368], sizes = [2, 144], strides = [1, 1]} : vector<2x512xf32> to vector<2x144xf32>
    %683 = vector.extract_strided_slice %681 {offsets = [0, 0], sizes = [2, 368], strides = [1, 1]} : vector<2x512xf32> to vector<2x368xf32>
    %684 = tpu.concatenate %682, %683 in 1 : vector<2x144xf32>, vector<2x368xf32> -> vector<2x512xf32>
    %c9_197 = arith.constant 9 : index
    %c0_198 = arith.constant 0 : index
    %685 = vector.load %arg2[%c9_197, %c0_198] : memref<51x512xf32, #tpu.memory_space<vmem>>, vector<1x512xf32>
    %686 = vector.broadcast %685 : vector<1x512xf32> to vector<2x512xf32>
    %687 = arith.mulf %684, %686 : vector<2x512xf32>
    %688 = vector.extract_strided_slice %681 {offsets = [0, 384], sizes = [2, 128], strides = [1, 1]} : vector<2x512xf32> to vector<2x128xf32>
    %689 = vector.extract_strided_slice %681 {offsets = [0, 0], sizes = [2, 384], strides = [1, 1]} : vector<2x512xf32> to vector<2x384xf32>
    %690 = tpu.concatenate %688, %689 in 1 : vector<2x128xf32>, vector<2x384xf32> -> vector<2x512xf32>
    %c10_199 = arith.constant 10 : index
    %c0_200 = arith.constant 0 : index
    %691 = vector.load %arg2[%c10_199, %c0_200] : memref<51x512xf32, #tpu.memory_space<vmem>>, vector<1x512xf32>
    %692 = vector.broadcast %691 : vector<1x512xf32> to vector<2x512xf32>
    %693 = arith.mulf %690, %692 : vector<2x512xf32>
    %694 = vector.extract_strided_slice %681 {offsets = [0, 400], sizes = [2, 112], strides = [1, 1]} : vector<2x512xf32> to vector<2x112xf32>
    %695 = vector.extract_strided_slice %681 {offsets = [0, 0], sizes = [2, 400], strides = [1, 1]} : vector<2x512xf32> to vector<2x400xf32>
    %696 = tpu.concatenate %694, %695 in 1 : vector<2x112xf32>, vector<2x400xf32> -> vector<2x512xf32>
    %c11_201 = arith.constant 11 : index
    %c0_202 = arith.constant 0 : index
    %697 = vector.load %arg2[%c11_201, %c0_202] : memref<51x512xf32, #tpu.memory_space<vmem>>, vector<1x512xf32>
    %698 = vector.broadcast %697 : vector<1x512xf32> to vector<2x512xf32>
    %699 = arith.mulf %696, %698 : vector<2x512xf32>
    %700 = vector.extract_strided_slice %681 {offsets = [0, 496], sizes = [2, 16], strides = [1, 1]} : vector<2x512xf32> to vector<2x16xf32>
    %701 = vector.extract_strided_slice %681 {offsets = [0, 0], sizes = [2, 496], strides = [1, 1]} : vector<2x512xf32> to vector<2x496xf32>
    %702 = tpu.concatenate %700, %701 in 1 : vector<2x16xf32>, vector<2x496xf32> -> vector<2x512xf32>
    %c12_203 = arith.constant 12 : index
    %c0_204 = arith.constant 0 : index
    %703 = vector.load %arg2[%c12_203, %c0_204] : memref<51x512xf32, #tpu.memory_space<vmem>>, vector<1x512xf32>
    %704 = vector.broadcast %703 : vector<1x512xf32> to vector<2x512xf32>
    %705 = arith.mulf %702, %704 : vector<2x512xf32>
    %706 = vector.extract_strided_slice %681 {offsets = [0, 16], sizes = [2, 496], strides = [1, 1]} : vector<2x512xf32> to vector<2x496xf32>
    %707 = vector.extract_strided_slice %681 {offsets = [0, 0], sizes = [2, 16], strides = [1, 1]} : vector<2x512xf32> to vector<2x16xf32>
    %708 = tpu.concatenate %706, %707 in 1 : vector<2x496xf32>, vector<2x16xf32> -> vector<2x512xf32>
    %c14_205 = arith.constant 14 : index
    %c0_206 = arith.constant 0 : index
    %709 = vector.load %arg2[%c14_205, %c0_206] : memref<51x512xf32, #tpu.memory_space<vmem>>, vector<1x512xf32>
    %710 = vector.broadcast %709 : vector<1x512xf32> to vector<2x512xf32>
    %711 = arith.mulf %708, %710 : vector<2x512xf32>
    %712 = vector.extract_strided_slice %681 {offsets = [0, 112], sizes = [2, 400], strides = [1, 1]} : vector<2x512xf32> to vector<2x400xf32>
    %713 = vector.extract_strided_slice %681 {offsets = [0, 0], sizes = [2, 112], strides = [1, 1]} : vector<2x512xf32> to vector<2x112xf32>
    %714 = tpu.concatenate %712, %713 in 1 : vector<2x400xf32>, vector<2x112xf32> -> vector<2x512xf32>
    %c15_207 = arith.constant 15 : index
    %c0_208 = arith.constant 0 : index
    %715 = vector.load %arg2[%c15_207, %c0_208] : memref<51x512xf32, #tpu.memory_space<vmem>>, vector<1x512xf32>
    %716 = vector.broadcast %715 : vector<1x512xf32> to vector<2x512xf32>
    %717 = arith.mulf %714, %716 : vector<2x512xf32>
    %718 = vector.extract_strided_slice %681 {offsets = [0, 128], sizes = [2, 384], strides = [1, 1]} : vector<2x512xf32> to vector<2x384xf32>
    %719 = vector.extract_strided_slice %681 {offsets = [0, 0], sizes = [2, 128], strides = [1, 1]} : vector<2x512xf32> to vector<2x128xf32>
    %720 = tpu.concatenate %718, %719 in 1 : vector<2x384xf32>, vector<2x128xf32> -> vector<2x512xf32>
    %c16_209 = arith.constant 16 : index
    %c0_210 = arith.constant 0 : index
    %721 = vector.load %arg2[%c16_209, %c0_210] : memref<51x512xf32, #tpu.memory_space<vmem>>, vector<1x512xf32>
    %722 = vector.broadcast %721 : vector<1x512xf32> to vector<2x512xf32>
    %723 = arith.mulf %720, %722 : vector<2x512xf32>
    %724 = vector.extract_strided_slice %681 {offsets = [0, 144], sizes = [2, 368], strides = [1, 1]} : vector<2x512xf32> to vector<2x368xf32>
    %725 = vector.extract_strided_slice %681 {offsets = [0, 0], sizes = [2, 144], strides = [1, 1]} : vector<2x512xf32> to vector<2x144xf32>
    %726 = tpu.concatenate %724, %725 in 1 : vector<2x368xf32>, vector<2x144xf32> -> vector<2x512xf32>
    %c17_211 = arith.constant 17 : index
    %c0_212 = arith.constant 0 : index
    %727 = vector.load %arg2[%c17_211, %c0_212] : memref<51x512xf32, #tpu.memory_space<vmem>>, vector<1x512xf32>
    %728 = vector.broadcast %727 : vector<1x512xf32> to vector<2x512xf32>
    %729 = arith.mulf %726, %728 : vector<2x512xf32>
    %730 = tpu.concatenate %687, %693, %699, %705, %681, %711, %717, %723, %729, %2 in 0 : vector<2x512xf32>, vector<2x512xf32>, vector<2x512xf32>, vector<2x512xf32>, vector<2x512xf32>, vector<2x512xf32>, vector<2x512xf32>, vector<2x512xf32>, vector<2x512xf32>, vector<1x512xf32> -> vector<19x512xf32>
    %731 = arith.truncf %730 : vector<19x512xf32> to vector<19x512xbf16>
    %c0_213 = arith.constant 0 : index
    %c0_214 = arith.constant 0 : index
    %732 = vector.load %arg12[%c0_213, %c0_214] : memref<2x19xbf16, #tpu.memory_space<vmem>>, vector<2x19xbf16>
    %cst_215 = arith.constant dense<0.000000e+00> : vector<2x512xf32>
    %733 = tpu.matmul %732, %731, %cst_215 {dimension_numbers = #tpu.dot_dimension_numbers<[1], [0], [0], [1], [0, 0, 1, 1], [], []>} : vector<2x19xbf16>, vector<19x512xbf16>, vector<2x512xf32> -> vector<2x512xf32>
    %cst_216 = arith.constant 0.000000e+00 : f32
    %734 = vector.broadcast %cst_216 : f32 to vector<2x512xf32>
    %735 = arith.maximumf %733, %734 : vector<2x512xf32>
    %736 = vector.extract_strided_slice %735 {offsets = [0, 495], sizes = [2, 17], strides = [1, 1]} : vector<2x512xf32> to vector<2x17xf32>
    %737 = vector.extract_strided_slice %735 {offsets = [0, 0], sizes = [2, 495], strides = [1, 1]} : vector<2x512xf32> to vector<2x495xf32>
    %738 = tpu.concatenate %736, %737 in 1 : vector<2x17xf32>, vector<2x495xf32> -> vector<2x512xf32>
    %c0_217 = arith.constant 0 : index
    %c0_218 = arith.constant 0 : index
    %739 = vector.load %arg2[%c0_217, %c0_218] : memref<51x512xf32, #tpu.memory_space<vmem>>, vector<1x512xf32>
    %740 = vector.broadcast %739 : vector<1x512xf32> to vector<2x512xf32>
    %741 = arith.mulf %738, %740 : vector<2x512xf32>
    %742 = vector.extract_strided_slice %735 {offsets = [0, 496], sizes = [2, 16], strides = [1, 1]} : vector<2x512xf32> to vector<2x16xf32>
    %743 = vector.extract_strided_slice %735 {offsets = [0, 0], sizes = [2, 496], strides = [1, 1]} : vector<2x512xf32> to vector<2x496xf32>
    %744 = tpu.concatenate %742, %743 in 1 : vector<2x16xf32>, vector<2x496xf32> -> vector<2x512xf32>
    %c1_219 = arith.constant 1 : index
    %c0_220 = arith.constant 0 : index
    %745 = vector.load %arg2[%c1_219, %c0_220] : memref<51x512xf32, #tpu.memory_space<vmem>>, vector<1x512xf32>
    %746 = vector.broadcast %745 : vector<1x512xf32> to vector<2x512xf32>
    %747 = arith.mulf %744, %746 : vector<2x512xf32>
    %748 = vector.extract_strided_slice %735 {offsets = [0, 497], sizes = [2, 15], strides = [1, 1]} : vector<2x512xf32> to vector<2x15xf32>
    %749 = vector.extract_strided_slice %735 {offsets = [0, 0], sizes = [2, 497], strides = [1, 1]} : vector<2x512xf32> to vector<2x497xf32>
    %750 = tpu.concatenate %748, %749 in 1 : vector<2x15xf32>, vector<2x497xf32> -> vector<2x512xf32>
    %c2_221 = arith.constant 2 : index
    %c0_222 = arith.constant 0 : index
    %751 = vector.load %arg2[%c2_221, %c0_222] : memref<51x512xf32, #tpu.memory_space<vmem>>, vector<1x512xf32>
    %752 = vector.broadcast %751 : vector<1x512xf32> to vector<2x512xf32>
    %753 = arith.mulf %750, %752 : vector<2x512xf32>
    %754 = vector.extract_strided_slice %735 {offsets = [0, 511], sizes = [2, 1], strides = [1, 1]} : vector<2x512xf32> to vector<2x1xf32>
    %755 = vector.extract_strided_slice %735 {offsets = [0, 0], sizes = [2, 511], strides = [1, 1]} : vector<2x512xf32> to vector<2x511xf32>
    %756 = tpu.concatenate %754, %755 in 1 : vector<2x1xf32>, vector<2x511xf32> -> vector<2x512xf32>
    %c3_223 = arith.constant 3 : index
    %c0_224 = arith.constant 0 : index
    %757 = vector.load %arg2[%c3_223, %c0_224] : memref<51x512xf32, #tpu.memory_space<vmem>>, vector<1x512xf32>
    %758 = vector.broadcast %757 : vector<1x512xf32> to vector<2x512xf32>
    %759 = arith.mulf %756, %758 : vector<2x512xf32>
    %760 = vector.extract_strided_slice %735 {offsets = [0, 1], sizes = [2, 511], strides = [1, 1]} : vector<2x512xf32> to vector<2x511xf32>
    %761 = vector.extract_strided_slice %735 {offsets = [0, 0], sizes = [2, 1], strides = [1, 1]} : vector<2x512xf32> to vector<2x1xf32>
    %762 = tpu.concatenate %760, %761 in 1 : vector<2x511xf32>, vector<2x1xf32> -> vector<2x512xf32>
    %c5_225 = arith.constant 5 : index
    %c0_226 = arith.constant 0 : index
    %763 = vector.load %arg2[%c5_225, %c0_226] : memref<51x512xf32, #tpu.memory_space<vmem>>, vector<1x512xf32>
    %764 = vector.broadcast %763 : vector<1x512xf32> to vector<2x512xf32>
    %765 = arith.mulf %762, %764 : vector<2x512xf32>
    %766 = vector.extract_strided_slice %735 {offsets = [0, 15], sizes = [2, 497], strides = [1, 1]} : vector<2x512xf32> to vector<2x497xf32>
    %767 = vector.extract_strided_slice %735 {offsets = [0, 0], sizes = [2, 15], strides = [1, 1]} : vector<2x512xf32> to vector<2x15xf32>
    %768 = tpu.concatenate %766, %767 in 1 : vector<2x497xf32>, vector<2x15xf32> -> vector<2x512xf32>
    %c6_227 = arith.constant 6 : index
    %c0_228 = arith.constant 0 : index
    %769 = vector.load %arg2[%c6_227, %c0_228] : memref<51x512xf32, #tpu.memory_space<vmem>>, vector<1x512xf32>
    %770 = vector.broadcast %769 : vector<1x512xf32> to vector<2x512xf32>
    %771 = arith.mulf %768, %770 : vector<2x512xf32>
    %772 = vector.extract_strided_slice %735 {offsets = [0, 16], sizes = [2, 496], strides = [1, 1]} : vector<2x512xf32> to vector<2x496xf32>
    %773 = vector.extract_strided_slice %735 {offsets = [0, 0], sizes = [2, 16], strides = [1, 1]} : vector<2x512xf32> to vector<2x16xf32>
    %774 = tpu.concatenate %772, %773 in 1 : vector<2x496xf32>, vector<2x16xf32> -> vector<2x512xf32>
    %c7_229 = arith.constant 7 : index
    %c0_230 = arith.constant 0 : index
    %775 = vector.load %arg2[%c7_229, %c0_230] : memref<51x512xf32, #tpu.memory_space<vmem>>, vector<1x512xf32>
    %776 = vector.broadcast %775 : vector<1x512xf32> to vector<2x512xf32>
    %777 = arith.mulf %774, %776 : vector<2x512xf32>
    %778 = vector.extract_strided_slice %735 {offsets = [0, 17], sizes = [2, 495], strides = [1, 1]} : vector<2x512xf32> to vector<2x495xf32>
    %779 = vector.extract_strided_slice %735 {offsets = [0, 0], sizes = [2, 17], strides = [1, 1]} : vector<2x512xf32> to vector<2x17xf32>
    %780 = tpu.concatenate %778, %779 in 1 : vector<2x495xf32>, vector<2x17xf32> -> vector<2x512xf32>
    %c8_231 = arith.constant 8 : index
    %c0_232 = arith.constant 0 : index
    %781 = vector.load %arg2[%c8_231, %c0_232] : memref<51x512xf32, #tpu.memory_space<vmem>>, vector<1x512xf32>
    %782 = vector.broadcast %781 : vector<1x512xf32> to vector<2x512xf32>
    %783 = arith.mulf %780, %782 : vector<2x512xf32>
    %784 = tpu.concatenate %741, %747, %753, %759, %735, %765, %771, %777, %783, %2 in 0 : vector<2x512xf32>, vector<2x512xf32>, vector<2x512xf32>, vector<2x512xf32>, vector<2x512xf32>, vector<2x512xf32>, vector<2x512xf32>, vector<2x512xf32>, vector<2x512xf32>, vector<1x512xf32> -> vector<19x512xf32>
    %785 = arith.truncf %784 : vector<19x512xf32> to vector<19x512xbf16>
    %c0_233 = arith.constant 0 : index
    %c0_234 = arith.constant 0 : index
    %786 = vector.load %arg13[%c0_233, %c0_234] : memref<2x19xbf16, #tpu.memory_space<vmem>>, vector<2x19xbf16>
    %cst_235 = arith.constant dense<0.000000e+00> : vector<2x512xf32>
    %787 = tpu.matmul %786, %785, %cst_235 {dimension_numbers = #tpu.dot_dimension_numbers<[1], [0], [0], [1], [0, 0, 1, 1], [], []>} : vector<2x19xbf16>, vector<19x512xbf16>, vector<2x512xf32> -> vector<2x512xf32>
    %cst_236 = arith.constant 0.000000e+00 : f32
    %788 = vector.broadcast %cst_236 : f32 to vector<2x512xf32>
    %789 = arith.maximumf %787, %788 : vector<2x512xf32>
    %790 = vector.extract_strided_slice %789 {offsets = [0, 367], sizes = [2, 145], strides = [1, 1]} : vector<2x512xf32> to vector<2x145xf32>
    %791 = vector.extract_strided_slice %789 {offsets = [0, 0], sizes = [2, 367], strides = [1, 1]} : vector<2x512xf32> to vector<2x367xf32>
    %792 = tpu.concatenate %790, %791 in 1 : vector<2x145xf32>, vector<2x367xf32> -> vector<2x512xf32>
    %c18_237 = arith.constant 18 : index
    %c0_238 = arith.constant 0 : index
    %793 = vector.load %arg2[%c18_237, %c0_238] : memref<51x512xf32, #tpu.memory_space<vmem>>, vector<1x512xf32>
    %794 = vector.broadcast %793 : vector<1x512xf32> to vector<2x512xf32>
    %795 = arith.mulf %792, %794 : vector<2x512xf32>
    %796 = vector.extract_strided_slice %789 {offsets = [0, 368], sizes = [2, 144], strides = [1, 1]} : vector<2x512xf32> to vector<2x144xf32>
    %797 = vector.extract_strided_slice %789 {offsets = [0, 0], sizes = [2, 368], strides = [1, 1]} : vector<2x512xf32> to vector<2x368xf32>
    %798 = tpu.concatenate %796, %797 in 1 : vector<2x144xf32>, vector<2x368xf32> -> vector<2x512xf32>
    %c19_239 = arith.constant 19 : index
    %c0_240 = arith.constant 0 : index
    %799 = vector.load %arg2[%c19_239, %c0_240] : memref<51x512xf32, #tpu.memory_space<vmem>>, vector<1x512xf32>
    %800 = vector.broadcast %799 : vector<1x512xf32> to vector<2x512xf32>
    %801 = arith.mulf %798, %800 : vector<2x512xf32>
    %802 = vector.extract_strided_slice %789 {offsets = [0, 369], sizes = [2, 143], strides = [1, 1]} : vector<2x512xf32> to vector<2x143xf32>
    %803 = vector.extract_strided_slice %789 {offsets = [0, 0], sizes = [2, 369], strides = [1, 1]} : vector<2x512xf32> to vector<2x369xf32>
    %804 = tpu.concatenate %802, %803 in 1 : vector<2x143xf32>, vector<2x369xf32> -> vector<2x512xf32>
    %c20_241 = arith.constant 20 : index
    %c0_242 = arith.constant 0 : index
    %805 = vector.load %arg2[%c20_241, %c0_242] : memref<51x512xf32, #tpu.memory_space<vmem>>, vector<1x512xf32>
    %806 = vector.broadcast %805 : vector<1x512xf32> to vector<2x512xf32>
    %807 = arith.mulf %804, %806 : vector<2x512xf32>
    %808 = vector.extract_strided_slice %789 {offsets = [0, 383], sizes = [2, 129], strides = [1, 1]} : vector<2x512xf32> to vector<2x129xf32>
    %809 = vector.extract_strided_slice %789 {offsets = [0, 0], sizes = [2, 383], strides = [1, 1]} : vector<2x512xf32> to vector<2x383xf32>
    %810 = tpu.concatenate %808, %809 in 1 : vector<2x129xf32>, vector<2x383xf32> -> vector<2x512xf32>
    %c21_243 = arith.constant 21 : index
    %c0_244 = arith.constant 0 : index
    %811 = vector.load %arg2[%c21_243, %c0_244] : memref<51x512xf32, #tpu.memory_space<vmem>>, vector<1x512xf32>
    %812 = vector.broadcast %811 : vector<1x512xf32> to vector<2x512xf32>
    %813 = arith.mulf %810, %812 : vector<2x512xf32>
    %814 = vector.extract_strided_slice %789 {offsets = [0, 384], sizes = [2, 128], strides = [1, 1]} : vector<2x512xf32> to vector<2x128xf32>
    %815 = vector.extract_strided_slice %789 {offsets = [0, 0], sizes = [2, 384], strides = [1, 1]} : vector<2x512xf32> to vector<2x384xf32>
    %816 = tpu.concatenate %814, %815 in 1 : vector<2x128xf32>, vector<2x384xf32> -> vector<2x512xf32>
    %c22_245 = arith.constant 22 : index
    %c0_246 = arith.constant 0 : index
    %817 = vector.load %arg2[%c22_245, %c0_246] : memref<51x512xf32, #tpu.memory_space<vmem>>, vector<1x512xf32>
    %818 = vector.broadcast %817 : vector<1x512xf32> to vector<2x512xf32>
    %819 = arith.mulf %816, %818 : vector<2x512xf32>
    %820 = vector.extract_strided_slice %789 {offsets = [0, 385], sizes = [2, 127], strides = [1, 1]} : vector<2x512xf32> to vector<2x127xf32>
    %821 = vector.extract_strided_slice %789 {offsets = [0, 0], sizes = [2, 385], strides = [1, 1]} : vector<2x512xf32> to vector<2x385xf32>
    %822 = tpu.concatenate %820, %821 in 1 : vector<2x127xf32>, vector<2x385xf32> -> vector<2x512xf32>
    %c23_247 = arith.constant 23 : index
    %c0_248 = arith.constant 0 : index
    %823 = vector.load %arg2[%c23_247, %c0_248] : memref<51x512xf32, #tpu.memory_space<vmem>>, vector<1x512xf32>
    %824 = vector.broadcast %823 : vector<1x512xf32> to vector<2x512xf32>
    %825 = arith.mulf %822, %824 : vector<2x512xf32>
    %826 = vector.extract_strided_slice %789 {offsets = [0, 399], sizes = [2, 113], strides = [1, 1]} : vector<2x512xf32> to vector<2x113xf32>
    %827 = vector.extract_strided_slice %789 {offsets = [0, 0], sizes = [2, 399], strides = [1, 1]} : vector<2x512xf32> to vector<2x399xf32>
    %828 = tpu.concatenate %826, %827 in 1 : vector<2x113xf32>, vector<2x399xf32> -> vector<2x512xf32>
    %c24_249 = arith.constant 24 : index
    %c0_250 = arith.constant 0 : index
    %829 = vector.load %arg2[%c24_249, %c0_250] : memref<51x512xf32, #tpu.memory_space<vmem>>, vector<1x512xf32>
    %830 = vector.broadcast %829 : vector<1x512xf32> to vector<2x512xf32>
    %831 = arith.mulf %828, %830 : vector<2x512xf32>
    %832 = vector.extract_strided_slice %789 {offsets = [0, 400], sizes = [2, 112], strides = [1, 1]} : vector<2x512xf32> to vector<2x112xf32>
    %833 = vector.extract_strided_slice %789 {offsets = [0, 0], sizes = [2, 400], strides = [1, 1]} : vector<2x512xf32> to vector<2x400xf32>
    %834 = tpu.concatenate %832, %833 in 1 : vector<2x112xf32>, vector<2x400xf32> -> vector<2x512xf32>
    %c25_251 = arith.constant 25 : index
    %c0_252 = arith.constant 0 : index
    %835 = vector.load %arg2[%c25_251, %c0_252] : memref<51x512xf32, #tpu.memory_space<vmem>>, vector<1x512xf32>
    %836 = vector.broadcast %835 : vector<1x512xf32> to vector<2x512xf32>
    %837 = arith.mulf %834, %836 : vector<2x512xf32>
    %838 = vector.extract_strided_slice %789 {offsets = [0, 401], sizes = [2, 111], strides = [1, 1]} : vector<2x512xf32> to vector<2x111xf32>
    %839 = vector.extract_strided_slice %789 {offsets = [0, 0], sizes = [2, 401], strides = [1, 1]} : vector<2x512xf32> to vector<2x401xf32>
    %840 = tpu.concatenate %838, %839 in 1 : vector<2x111xf32>, vector<2x401xf32> -> vector<2x512xf32>
    %c26_253 = arith.constant 26 : index
    %c0_254 = arith.constant 0 : index
    %841 = vector.load %arg2[%c26_253, %c0_254] : memref<51x512xf32, #tpu.memory_space<vmem>>, vector<1x512xf32>
    %842 = vector.broadcast %841 : vector<1x512xf32> to vector<2x512xf32>
    %843 = arith.mulf %840, %842 : vector<2x512xf32>
    %844 = vector.extract_strided_slice %789 {offsets = [0, 495], sizes = [2, 17], strides = [1, 1]} : vector<2x512xf32> to vector<2x17xf32>
    %845 = vector.extract_strided_slice %789 {offsets = [0, 0], sizes = [2, 495], strides = [1, 1]} : vector<2x512xf32> to vector<2x495xf32>
    %846 = tpu.concatenate %844, %845 in 1 : vector<2x17xf32>, vector<2x495xf32> -> vector<2x512xf32>
    %c27_255 = arith.constant 27 : index
    %c0_256 = arith.constant 0 : index
    %847 = vector.load %arg2[%c27_255, %c0_256] : memref<51x512xf32, #tpu.memory_space<vmem>>, vector<1x512xf32>
    %848 = vector.broadcast %847 : vector<1x512xf32> to vector<2x512xf32>
    %849 = arith.mulf %846, %848 : vector<2x512xf32>
    %850 = vector.extract_strided_slice %789 {offsets = [0, 496], sizes = [2, 16], strides = [1, 1]} : vector<2x512xf32> to vector<2x16xf32>
    %851 = vector.extract_strided_slice %789 {offsets = [0, 0], sizes = [2, 496], strides = [1, 1]} : vector<2x512xf32> to vector<2x496xf32>
    %852 = tpu.concatenate %850, %851 in 1 : vector<2x16xf32>, vector<2x496xf32> -> vector<2x512xf32>
    %c28_257 = arith.constant 28 : index
    %c0_258 = arith.constant 0 : index
    %853 = vector.load %arg2[%c28_257, %c0_258] : memref<51x512xf32, #tpu.memory_space<vmem>>, vector<1x512xf32>
    %854 = vector.broadcast %853 : vector<1x512xf32> to vector<2x512xf32>
    %855 = arith.mulf %852, %854 : vector<2x512xf32>
    %856 = vector.extract_strided_slice %789 {offsets = [0, 497], sizes = [2, 15], strides = [1, 1]} : vector<2x512xf32> to vector<2x15xf32>
    %857 = vector.extract_strided_slice %789 {offsets = [0, 0], sizes = [2, 497], strides = [1, 1]} : vector<2x512xf32> to vector<2x497xf32>
    %858 = tpu.concatenate %856, %857 in 1 : vector<2x15xf32>, vector<2x497xf32> -> vector<2x512xf32>
    %c29_259 = arith.constant 29 : index
    %c0_260 = arith.constant 0 : index
    %859 = vector.load %arg2[%c29_259, %c0_260] : memref<51x512xf32, #tpu.memory_space<vmem>>, vector<1x512xf32>
    %860 = vector.broadcast %859 : vector<1x512xf32> to vector<2x512xf32>
    %861 = arith.mulf %858, %860 : vector<2x512xf32>
    %862 = vector.extract_strided_slice %789 {offsets = [0, 511], sizes = [2, 1], strides = [1, 1]} : vector<2x512xf32> to vector<2x1xf32>
    %863 = vector.extract_strided_slice %789 {offsets = [0, 0], sizes = [2, 511], strides = [1, 1]} : vector<2x512xf32> to vector<2x511xf32>
    %864 = tpu.concatenate %862, %863 in 1 : vector<2x1xf32>, vector<2x511xf32> -> vector<2x512xf32>
    %c30_261 = arith.constant 30 : index
    %c0_262 = arith.constant 0 : index
    %865 = vector.load %arg2[%c30_261, %c0_262] : memref<51x512xf32, #tpu.memory_space<vmem>>, vector<1x512xf32>
    %866 = vector.broadcast %865 : vector<1x512xf32> to vector<2x512xf32>
    %867 = arith.mulf %864, %866 : vector<2x512xf32>
    %868 = vector.extract_strided_slice %789 {offsets = [0, 1], sizes = [2, 511], strides = [1, 1]} : vector<2x512xf32> to vector<2x511xf32>
    %869 = vector.extract_strided_slice %789 {offsets = [0, 0], sizes = [2, 1], strides = [1, 1]} : vector<2x512xf32> to vector<2x1xf32>
    %870 = tpu.concatenate %868, %869 in 1 : vector<2x511xf32>, vector<2x1xf32> -> vector<2x512xf32>
    %c32_263 = arith.constant 32 : index
    %c0_264 = arith.constant 0 : index
    %871 = vector.load %arg2[%c32_263, %c0_264] : memref<51x512xf32, #tpu.memory_space<vmem>>, vector<1x512xf32>
    %872 = vector.broadcast %871 : vector<1x512xf32> to vector<2x512xf32>
    %873 = arith.mulf %870, %872 : vector<2x512xf32>
    %874 = vector.extract_strided_slice %789 {offsets = [0, 15], sizes = [2, 497], strides = [1, 1]} : vector<2x512xf32> to vector<2x497xf32>
    %875 = vector.extract_strided_slice %789 {offsets = [0, 0], sizes = [2, 15], strides = [1, 1]} : vector<2x512xf32> to vector<2x15xf32>
    %876 = tpu.concatenate %874, %875 in 1 : vector<2x497xf32>, vector<2x15xf32> -> vector<2x512xf32>
    %c33_265 = arith.constant 33 : index
    %c0_266 = arith.constant 0 : index
    %877 = vector.load %arg2[%c33_265, %c0_266] : memref<51x512xf32, #tpu.memory_space<vmem>>, vector<1x512xf32>
    %878 = vector.broadcast %877 : vector<1x512xf32> to vector<2x512xf32>
    %879 = arith.mulf %876, %878 : vector<2x512xf32>
    %880 = vector.extract_strided_slice %789 {offsets = [0, 16], sizes = [2, 496], strides = [1, 1]} : vector<2x512xf32> to vector<2x496xf32>
    %881 = vector.extract_strided_slice %789 {offsets = [0, 0], sizes = [2, 16], strides = [1, 1]} : vector<2x512xf32> to vector<2x16xf32>
    %882 = tpu.concatenate %880, %881 in 1 : vector<2x496xf32>, vector<2x16xf32> -> vector<2x512xf32>
    %c34_267 = arith.constant 34 : index
    %c0_268 = arith.constant 0 : index
    %883 = vector.load %arg2[%c34_267, %c0_268] : memref<51x512xf32, #tpu.memory_space<vmem>>, vector<1x512xf32>
    %884 = vector.broadcast %883 : vector<1x512xf32> to vector<2x512xf32>
    %885 = arith.mulf %882, %884 : vector<2x512xf32>
    %886 = vector.extract_strided_slice %789 {offsets = [0, 17], sizes = [2, 495], strides = [1, 1]} : vector<2x512xf32> to vector<2x495xf32>
    %887 = vector.extract_strided_slice %789 {offsets = [0, 0], sizes = [2, 17], strides = [1, 1]} : vector<2x512xf32> to vector<2x17xf32>
    %888 = tpu.concatenate %886, %887 in 1 : vector<2x495xf32>, vector<2x17xf32> -> vector<2x512xf32>
    %c35_269 = arith.constant 35 : index
    %c0_270 = arith.constant 0 : index
    %889 = vector.load %arg2[%c35_269, %c0_270] : memref<51x512xf32, #tpu.memory_space<vmem>>, vector<1x512xf32>
    %890 = vector.broadcast %889 : vector<1x512xf32> to vector<2x512xf32>
    %891 = arith.mulf %888, %890 : vector<2x512xf32>
    %892 = vector.extract_strided_slice %789 {offsets = [0, 111], sizes = [2, 401], strides = [1, 1]} : vector<2x512xf32> to vector<2x401xf32>
    %893 = vector.extract_strided_slice %789 {offsets = [0, 0], sizes = [2, 111], strides = [1, 1]} : vector<2x512xf32> to vector<2x111xf32>
    %894 = tpu.concatenate %892, %893 in 1 : vector<2x401xf32>, vector<2x111xf32> -> vector<2x512xf32>
    %c36_271 = arith.constant 36 : index
    %c0_272 = arith.constant 0 : index
    %895 = vector.load %arg2[%c36_271, %c0_272] : memref<51x512xf32, #tpu.memory_space<vmem>>, vector<1x512xf32>
    %896 = vector.broadcast %895 : vector<1x512xf32> to vector<2x512xf32>
    %897 = arith.mulf %894, %896 : vector<2x512xf32>
    %898 = vector.extract_strided_slice %789 {offsets = [0, 112], sizes = [2, 400], strides = [1, 1]} : vector<2x512xf32> to vector<2x400xf32>
    %899 = vector.extract_strided_slice %789 {offsets = [0, 0], sizes = [2, 112], strides = [1, 1]} : vector<2x512xf32> to vector<2x112xf32>
    %900 = tpu.concatenate %898, %899 in 1 : vector<2x400xf32>, vector<2x112xf32> -> vector<2x512xf32>
    %c37_273 = arith.constant 37 : index
    %c0_274 = arith.constant 0 : index
    %901 = vector.load %arg2[%c37_273, %c0_274] : memref<51x512xf32, #tpu.memory_space<vmem>>, vector<1x512xf32>
    %902 = vector.broadcast %901 : vector<1x512xf32> to vector<2x512xf32>
    %903 = arith.mulf %900, %902 : vector<2x512xf32>
    %904 = vector.extract_strided_slice %789 {offsets = [0, 113], sizes = [2, 399], strides = [1, 1]} : vector<2x512xf32> to vector<2x399xf32>
    %905 = vector.extract_strided_slice %789 {offsets = [0, 0], sizes = [2, 113], strides = [1, 1]} : vector<2x512xf32> to vector<2x113xf32>
    %906 = tpu.concatenate %904, %905 in 1 : vector<2x399xf32>, vector<2x113xf32> -> vector<2x512xf32>
    %c38_275 = arith.constant 38 : index
    %c0_276 = arith.constant 0 : index
    %907 = vector.load %arg2[%c38_275, %c0_276] : memref<51x512xf32, #tpu.memory_space<vmem>>, vector<1x512xf32>
    %908 = vector.broadcast %907 : vector<1x512xf32> to vector<2x512xf32>
    %909 = arith.mulf %906, %908 : vector<2x512xf32>
    %910 = vector.extract_strided_slice %789 {offsets = [0, 127], sizes = [2, 385], strides = [1, 1]} : vector<2x512xf32> to vector<2x385xf32>
    %911 = vector.extract_strided_slice %789 {offsets = [0, 0], sizes = [2, 127], strides = [1, 1]} : vector<2x512xf32> to vector<2x127xf32>
    %912 = tpu.concatenate %910, %911 in 1 : vector<2x385xf32>, vector<2x127xf32> -> vector<2x512xf32>
    %c39_277 = arith.constant 39 : index
    %c0_278 = arith.constant 0 : index
    %913 = vector.load %arg2[%c39_277, %c0_278] : memref<51x512xf32, #tpu.memory_space<vmem>>, vector<1x512xf32>
    %914 = vector.broadcast %913 : vector<1x512xf32> to vector<2x512xf32>
    %915 = arith.mulf %912, %914 : vector<2x512xf32>
    %916 = vector.extract_strided_slice %789 {offsets = [0, 128], sizes = [2, 384], strides = [1, 1]} : vector<2x512xf32> to vector<2x384xf32>
    %917 = vector.extract_strided_slice %789 {offsets = [0, 0], sizes = [2, 128], strides = [1, 1]} : vector<2x512xf32> to vector<2x128xf32>
    %918 = tpu.concatenate %916, %917 in 1 : vector<2x384xf32>, vector<2x128xf32> -> vector<2x512xf32>
    %c40_279 = arith.constant 40 : index
    %c0_280 = arith.constant 0 : index
    %919 = vector.load %arg2[%c40_279, %c0_280] : memref<51x512xf32, #tpu.memory_space<vmem>>, vector<1x512xf32>
    %920 = vector.broadcast %919 : vector<1x512xf32> to vector<2x512xf32>
    %921 = arith.mulf %918, %920 : vector<2x512xf32>
    %922 = vector.extract_strided_slice %789 {offsets = [0, 129], sizes = [2, 383], strides = [1, 1]} : vector<2x512xf32> to vector<2x383xf32>
    %923 = vector.extract_strided_slice %789 {offsets = [0, 0], sizes = [2, 129], strides = [1, 1]} : vector<2x512xf32> to vector<2x129xf32>
    %924 = tpu.concatenate %922, %923 in 1 : vector<2x383xf32>, vector<2x129xf32> -> vector<2x512xf32>
    %c41_281 = arith.constant 41 : index
    %c0_282 = arith.constant 0 : index
    %925 = vector.load %arg2[%c41_281, %c0_282] : memref<51x512xf32, #tpu.memory_space<vmem>>, vector<1x512xf32>
    %926 = vector.broadcast %925 : vector<1x512xf32> to vector<2x512xf32>
    %927 = arith.mulf %924, %926 : vector<2x512xf32>
    %928 = vector.extract_strided_slice %789 {offsets = [0, 143], sizes = [2, 369], strides = [1, 1]} : vector<2x512xf32> to vector<2x369xf32>
    %929 = vector.extract_strided_slice %789 {offsets = [0, 0], sizes = [2, 143], strides = [1, 1]} : vector<2x512xf32> to vector<2x143xf32>
    %930 = tpu.concatenate %928, %929 in 1 : vector<2x369xf32>, vector<2x143xf32> -> vector<2x512xf32>
    %c42_283 = arith.constant 42 : index
    %c0_284 = arith.constant 0 : index
    %931 = vector.load %arg2[%c42_283, %c0_284] : memref<51x512xf32, #tpu.memory_space<vmem>>, vector<1x512xf32>
    %932 = vector.broadcast %931 : vector<1x512xf32> to vector<2x512xf32>
    %933 = arith.mulf %930, %932 : vector<2x512xf32>
    %934 = vector.extract_strided_slice %789 {offsets = [0, 144], sizes = [2, 368], strides = [1, 1]} : vector<2x512xf32> to vector<2x368xf32>
    %935 = vector.extract_strided_slice %789 {offsets = [0, 0], sizes = [2, 144], strides = [1, 1]} : vector<2x512xf32> to vector<2x144xf32>
    %936 = tpu.concatenate %934, %935 in 1 : vector<2x368xf32>, vector<2x144xf32> -> vector<2x512xf32>
    %c43_285 = arith.constant 43 : index
    %c0_286 = arith.constant 0 : index
    %937 = vector.load %arg2[%c43_285, %c0_286] : memref<51x512xf32, #tpu.memory_space<vmem>>, vector<1x512xf32>
    %938 = vector.broadcast %937 : vector<1x512xf32> to vector<2x512xf32>
    %939 = arith.mulf %936, %938 : vector<2x512xf32>
    %940 = vector.extract_strided_slice %789 {offsets = [0, 145], sizes = [2, 367], strides = [1, 1]} : vector<2x512xf32> to vector<2x367xf32>
    %941 = vector.extract_strided_slice %789 {offsets = [0, 0], sizes = [2, 145], strides = [1, 1]} : vector<2x512xf32> to vector<2x145xf32>
    %942 = tpu.concatenate %940, %941 in 1 : vector<2x367xf32>, vector<2x145xf32> -> vector<2x512xf32>
    %c44_287 = arith.constant 44 : index
    %c0_288 = arith.constant 0 : index
    %943 = vector.load %arg2[%c44_287, %c0_288] : memref<51x512xf32, #tpu.memory_space<vmem>>, vector<1x512xf32>
    %944 = vector.broadcast %943 : vector<1x512xf32> to vector<2x512xf32>
    %945 = arith.mulf %942, %944 : vector<2x512xf32>
    %946 = tpu.concatenate %795, %801, %807, %813, %819, %825, %831, %837, %843, %849, %855, %861, %867, %789, %873, %879 in 0 : vector<2x512xf32>, vector<2x512xf32>, vector<2x512xf32>, vector<2x512xf32>, vector<2x512xf32>, vector<2x512xf32>, vector<2x512xf32>, vector<2x512xf32>, vector<2x512xf32>, vector<2x512xf32>, vector<2x512xf32>, vector<2x512xf32>, vector<2x512xf32>, vector<2x512xf32>, vector<2x512xf32>, vector<2x512xf32> -> vector<32x512xf32>
    %947 = tpu.concatenate %885, %891, %897, %903, %909, %915, %921, %927, %933, %939, %945, %2 in 0 : vector<2x512xf32>, vector<2x512xf32>, vector<2x512xf32>, vector<2x512xf32>, vector<2x512xf32>, vector<2x512xf32>, vector<2x512xf32>, vector<2x512xf32>, vector<2x512xf32>, vector<2x512xf32>, vector<2x512xf32>, vector<1x512xf32> -> vector<23x512xf32>
    %948 = tpu.concatenate %946, %947 in 0 : vector<32x512xf32>, vector<23x512xf32> -> vector<55x512xf32>
    %949 = arith.truncf %948 : vector<55x512xf32> to vector<55x512xbf16>
    %c0_289 = arith.constant 0 : index
    %c0_290 = arith.constant 0 : index
    %950 = vector.load %arg14[%c0_289, %c0_290] : memref<2x55xbf16, #tpu.memory_space<vmem>>, vector<2x55xbf16>
    %cst_291 = arith.constant dense<0.000000e+00> : vector<2x512xf32>
    %951 = tpu.matmul %950, %949, %cst_291 {dimension_numbers = #tpu.dot_dimension_numbers<[1], [0], [0], [1], [0, 0, 1, 1], [], []>} : vector<2x55xbf16>, vector<55x512xbf16>, vector<2x512xf32> -> vector<2x512xf32>
    %cst_292 = arith.constant 0.000000e+00 : f32
    %952 = vector.broadcast %cst_292 : f32 to vector<2x512xf32>
    %953 = arith.maximumf %951, %952 : vector<2x512xf32>
    %954 = arith.mulf %953, %681 : vector<2x512xf32>
    %955 = tpu.concatenate %276, %478, %680, %954 in 0 : vector<2x512xf32>, vector<2x512xf32>, vector<2x512xf32>, vector<2x512xf32> -> vector<8x512xf32>
    %956 = vector.extract_strided_slice %955 {offsets = [0, 495], sizes = [8, 17], strides = [1, 1]} : vector<8x512xf32> to vector<8x17xf32>
    %957 = vector.extract_strided_slice %955 {offsets = [0, 0], sizes = [8, 495], strides = [1, 1]} : vector<8x512xf32> to vector<8x495xf32>
    %958 = tpu.concatenate %956, %957 in 1 : vector<8x17xf32>, vector<8x495xf32> -> vector<8x512xf32>
    %c0_293 = arith.constant 0 : index
    %c0_294 = arith.constant 0 : index
    %959 = vector.load %arg2[%c0_293, %c0_294] : memref<51x512xf32, #tpu.memory_space<vmem>>, vector<1x512xf32>
    %960 = vector.broadcast %959 : vector<1x512xf32> to vector<8x512xf32>
    %961 = arith.mulf %958, %960 : vector<8x512xf32>
    %962 = vector.extract_strided_slice %955 {offsets = [0, 496], sizes = [8, 16], strides = [1, 1]} : vector<8x512xf32> to vector<8x16xf32>
    %963 = vector.extract_strided_slice %955 {offsets = [0, 0], sizes = [8, 496], strides = [1, 1]} : vector<8x512xf32> to vector<8x496xf32>
    %964 = tpu.concatenate %962, %963 in 1 : vector<8x16xf32>, vector<8x496xf32> -> vector<8x512xf32>
    %c1_295 = arith.constant 1 : index
    %c0_296 = arith.constant 0 : index
    %965 = vector.load %arg2[%c1_295, %c0_296] : memref<51x512xf32, #tpu.memory_space<vmem>>, vector<1x512xf32>
    %966 = vector.broadcast %965 : vector<1x512xf32> to vector<8x512xf32>
    %967 = arith.mulf %964, %966 : vector<8x512xf32>
    %968 = vector.extract_strided_slice %955 {offsets = [0, 497], sizes = [8, 15], strides = [1, 1]} : vector<8x512xf32> to vector<8x15xf32>
    %969 = vector.extract_strided_slice %955 {offsets = [0, 0], sizes = [8, 497], strides = [1, 1]} : vector<8x512xf32> to vector<8x497xf32>
    %970 = tpu.concatenate %968, %969 in 1 : vector<8x15xf32>, vector<8x497xf32> -> vector<8x512xf32>
    %c2_297 = arith.constant 2 : index
    %c0_298 = arith.constant 0 : index
    %971 = vector.load %arg2[%c2_297, %c0_298] : memref<51x512xf32, #tpu.memory_space<vmem>>, vector<1x512xf32>
    %972 = vector.broadcast %971 : vector<1x512xf32> to vector<8x512xf32>
    %973 = arith.mulf %970, %972 : vector<8x512xf32>
    %974 = vector.extract_strided_slice %955 {offsets = [0, 511], sizes = [8, 1], strides = [1, 1]} : vector<8x512xf32> to vector<8x1xf32>
    %975 = vector.extract_strided_slice %955 {offsets = [0, 0], sizes = [8, 511], strides = [1, 1]} : vector<8x512xf32> to vector<8x511xf32>
    %976 = tpu.concatenate %974, %975 in 1 : vector<8x1xf32>, vector<8x511xf32> -> vector<8x512xf32>
    %c3_299 = arith.constant 3 : index
    %c0_300 = arith.constant 0 : index
    %977 = vector.load %arg2[%c3_299, %c0_300] : memref<51x512xf32, #tpu.memory_space<vmem>>, vector<1x512xf32>
    %978 = vector.broadcast %977 : vector<1x512xf32> to vector<8x512xf32>
    %979 = arith.mulf %976, %978 : vector<8x512xf32>
    %980 = vector.extract_strided_slice %955 {offsets = [0, 1], sizes = [8, 511], strides = [1, 1]} : vector<8x512xf32> to vector<8x511xf32>
    %981 = vector.extract_strided_slice %955 {offsets = [0, 0], sizes = [8, 1], strides = [1, 1]} : vector<8x512xf32> to vector<8x1xf32>
    %982 = tpu.concatenate %980, %981 in 1 : vector<8x511xf32>, vector<8x1xf32> -> vector<8x512xf32>
    %c5_301 = arith.constant 5 : index
    %c0_302 = arith.constant 0 : index
    %983 = vector.load %arg2[%c5_301, %c0_302] : memref<51x512xf32, #tpu.memory_space<vmem>>, vector<1x512xf32>
    %984 = vector.broadcast %983 : vector<1x512xf32> to vector<8x512xf32>
    %985 = arith.mulf %982, %984 : vector<8x512xf32>
    %986 = vector.extract_strided_slice %955 {offsets = [0, 15], sizes = [8, 497], strides = [1, 1]} : vector<8x512xf32> to vector<8x497xf32>
    %987 = vector.extract_strided_slice %955 {offsets = [0, 0], sizes = [8, 15], strides = [1, 1]} : vector<8x512xf32> to vector<8x15xf32>
    %988 = tpu.concatenate %986, %987 in 1 : vector<8x497xf32>, vector<8x15xf32> -> vector<8x512xf32>
    %c6_303 = arith.constant 6 : index
    %c0_304 = arith.constant 0 : index
    %989 = vector.load %arg2[%c6_303, %c0_304] : memref<51x512xf32, #tpu.memory_space<vmem>>, vector<1x512xf32>
    %990 = vector.broadcast %989 : vector<1x512xf32> to vector<8x512xf32>
    %991 = arith.mulf %988, %990 : vector<8x512xf32>
    %992 = vector.extract_strided_slice %955 {offsets = [0, 16], sizes = [8, 496], strides = [1, 1]} : vector<8x512xf32> to vector<8x496xf32>
    %993 = vector.extract_strided_slice %955 {offsets = [0, 0], sizes = [8, 16], strides = [1, 1]} : vector<8x512xf32> to vector<8x16xf32>
    %994 = tpu.concatenate %992, %993 in 1 : vector<8x496xf32>, vector<8x16xf32> -> vector<8x512xf32>
    %c7_305 = arith.constant 7 : index
    %c0_306 = arith.constant 0 : index
    %995 = vector.load %arg2[%c7_305, %c0_306] : memref<51x512xf32, #tpu.memory_space<vmem>>, vector<1x512xf32>
    %996 = vector.broadcast %995 : vector<1x512xf32> to vector<8x512xf32>
    %997 = arith.mulf %994, %996 : vector<8x512xf32>
    %998 = vector.extract_strided_slice %955 {offsets = [0, 17], sizes = [8, 495], strides = [1, 1]} : vector<8x512xf32> to vector<8x495xf32>
    %999 = vector.extract_strided_slice %955 {offsets = [0, 0], sizes = [8, 17], strides = [1, 1]} : vector<8x512xf32> to vector<8x17xf32>
    %1000 = tpu.concatenate %998, %999 in 1 : vector<8x495xf32>, vector<8x17xf32> -> vector<8x512xf32>
    %c8_307 = arith.constant 8 : index
    %c0_308 = arith.constant 0 : index
    %1001 = vector.load %arg2[%c8_307, %c0_308] : memref<51x512xf32, #tpu.memory_space<vmem>>, vector<1x512xf32>
    %1002 = vector.broadcast %1001 : vector<1x512xf32> to vector<8x512xf32>
    %1003 = arith.mulf %1000, %1002 : vector<8x512xf32>
    %1004 = tpu.concatenate %961, %967, %973, %979, %955, %985, %991, %997, %1003, %2 in 0 : vector<8x512xf32>, vector<8x512xf32>, vector<8x512xf32>, vector<8x512xf32>, vector<8x512xf32>, vector<8x512xf32>, vector<8x512xf32>, vector<8x512xf32>, vector<8x512xf32>, vector<1x512xf32> -> vector<73x512xf32>
    %1005 = arith.truncf %1004 : vector<73x512xf32> to vector<73x512xbf16>
    %c0_309 = arith.constant 0 : index
    %c0_310 = arith.constant 0 : index
    %1006 = vector.load %arg15[%c0_309, %c0_310] : memref<8x73xbf16, #tpu.memory_space<vmem>>, vector<8x73xbf16>
    %cst_311 = arith.constant dense<0.000000e+00> : vector<8x512xf32>
    %1007 = tpu.matmul %1006, %1005, %cst_311 {dimension_numbers = #tpu.dot_dimension_numbers<[1], [0], [0], [1], [0, 0, 1, 1], [], []>} : vector<8x73xbf16>, vector<73x512xbf16>, vector<8x512xf32> -> vector<8x512xf32>
    %cst_312 = arith.constant 0.000000e+00 : f32
    %1008 = vector.broadcast %cst_312 : f32 to vector<8x512xf32>
    %1009 = arith.maximumf %1007, %1008 : vector<8x512xf32>
    %1010 = arith.addf %1009, %1 : vector<8x512xf32>
    %c0_313 = arith.constant 0 : index
    %c0_314 = arith.constant 0 : index
    %c0_315 = arith.constant 0 : index
    %1011 = vector.load %arg16[%c0_313, %c0_314, %c0_315] : memref<1x8x512xf32, #tpu.memory_space<vmem>>, vector<1x8x512xf32>
    %1012 = vector.shape_cast %1011 : vector<1x8x512xf32> to vector<8x512xf32>
    %1013 = vector.shape_cast %1010 : vector<8x512xf32> to vector<1x8x512xf32>
    tpu.vector_store %arg16[%c0_313, %c0_314, %c0_315], %1013 {strides = array<i32>} : memref<1x8x512xf32, #tpu.memory_space<vmem>>, vector<1x8x512xf32>,
    return
  }
  func.func @transform_0(%arg0: i32) -> (i32, i32, i32) {
    %c0_i32 = arith.constant 0 : i32
    %c0_i32_0 = arith.constant 0 : i32
    %c0_i32_1 = arith.constant 0 : i32
    return %arg0, %c0_i32, %c0_i32_0 : i32, i32, i32
  }
  func.func @transform_1(%arg0: i32) -> (i32, i32) {
    %c0_i32 = arith.constant 0 : i32
    %c0_i32_0 = arith.constant 0 : i32
    %c0_i32_1 = arith.constant 0 : i32
    return %c0_i32, %c0_i32_0 : i32, i32
  }
  func.func @transform_2(%arg0: i32) -> (i32, i32) {
    %c0_i32 = arith.constant 0 : i32
    %c0_i32_0 = arith.constant 0 : i32
    %c0_i32_1 = arith.constant 0 : i32
    return %c0_i32, %c0_i32_0 : i32, i32
  }
  func.func @transform_3(%arg0: i32) -> (i32, i32) {
    %c0_i32 = arith.constant 0 : i32
    %c0_i32_0 = arith.constant 0 : i32
    %c0_i32_1 = arith.constant 0 : i32
    return %c0_i32, %c0_i32_0 : i32, i32
  }
  func.func @transform_4(%arg0: i32) -> (i32, i32) {
    %c0_i32 = arith.constant 0 : i32
    %c0_i32_0 = arith.constant 0 : i32
    %c0_i32_1 = arith.constant 0 : i32
    return %c0_i32, %c0_i32_0 : i32, i32
  }
  func.func @transform_5(%arg0: i32) -> (i32, i32) {
    %c0_i32 = arith.constant 0 : i32
    %c0_i32_0 = arith.constant 0 : i32
    %c0_i32_1 = arith.constant 0 : i32
    return %c0_i32, %c0_i32_0 : i32, i32
  }
  func.func @transform_6(%arg0: i32) -> (i32, i32) {
    %c0_i32 = arith.constant 0 : i32
    %c0_i32_0 = arith.constant 0 : i32
    %c0_i32_1 = arith.constant 0 : i32
    return %c0_i32, %c0_i32_0 : i32, i32
  }
  func.func @transform_7(%arg0: i32) -> (i32, i32) {
    %c0_i32 = arith.constant 0 : i32
    %c0_i32_0 = arith.constant 0 : i32
    %c0_i32_1 = arith.constant 0 : i32
    return %c0_i32, %c0_i32_0 : i32, i32
  }
  func.func @transform_8(%arg0: i32) -> (i32, i32) {
    %c0_i32 = arith.constant 0 : i32
    %c0_i32_0 = arith.constant 0 : i32
    %c0_i32_1 = arith.constant 0 : i32
    return %c0_i32, %c0_i32_0 : i32, i32
  }
  func.func @transform_9(%arg0: i32) -> (i32, i32) {
    %c0_i32 = arith.constant 0 : i32
    %c0_i32_0 = arith.constant 0 : i32
    %c0_i32_1 = arith.constant 0 : i32
    return %c0_i32, %c0_i32_0 : i32, i32
  }
  func.func @transform_10(%arg0: i32) -> (i32, i32) {
    %c0_i32 = arith.constant 0 : i32
    %c0_i32_0 = arith.constant 0 : i32
    %c0_i32_1 = arith.constant 0 : i32
    return %c0_i32, %c0_i32_0 : i32, i32
  }
  func.func @transform_11(%arg0: i32) -> (i32, i32) {
    %c0_i32 = arith.constant 0 : i32
    %c0_i32_0 = arith.constant 0 : i32
    %c0_i32_1 = arith.constant 0 : i32
    return %c0_i32, %c0_i32_0 : i32, i32
  }
  func.func @transform_12(%arg0: i32) -> (i32, i32) {
    %c0_i32 = arith.constant 0 : i32
    %c0_i32_0 = arith.constant 0 : i32
    %c0_i32_1 = arith.constant 0 : i32
    return %c0_i32, %c0_i32_0 : i32, i32
  }
  func.func @transform_13(%arg0: i32) -> (i32, i32) {
    %c0_i32 = arith.constant 0 : i32
    %c0_i32_0 = arith.constant 0 : i32
    %c0_i32_1 = arith.constant 0 : i32
    return %c0_i32, %c0_i32_0 : i32, i32
  }
  func.func @transform_14(%arg0: i32) -> (i32, i32) {
    %c0_i32 = arith.constant 0 : i32
    %c0_i32_0 = arith.constant 0 : i32
    %c0_i32_1 = arith.constant 0 : i32
    return %c0_i32, %c0_i32_0 : i32, i32
  }
  func.func @transform_15(%arg0: i32) -> (i32, i32, i32) {
    %c0_i32 = arith.constant 0 : i32
    %c0_i32_0 = arith.constant 0 : i32
    %c0_i32_1 = arith.constant 0 : i32
    return %arg0, %c0_i32, %c0_i32_0 : i32, i32, i32
  }
}

</mosaic_0001>

<llo_original>
// kernel: tpu_custom_call.1
$region0: #{tpu_custom_call.1}
  #allocation0 [shape = 'u32[]', space=smem, size = 0x4, offset = 0x4, fixed_abs, tag = 'smem constant byte address 0x4 - core index']
  #allocation1 [shape = 'u32[144,128]{1,0:T(1,128)}', space=vmem, size = 0x12000, scoped, tag = 'internal scratch']
  %s0 = inlined_call_operand.hbm [shape: f32[2,512], index: 0, kind: input, shape index: {}]
  %s1 = inlined_call_operand.hbm [shape: f32[2,512], index: 1, kind: output, shape index: {}]
  %s2 = sld [smem:[#allocation0]]
  $region18: #{tpu_custom_call.1} parent=0
    _
  %s4 = ssub.s32 1, %s2
  %s5 = scalar_select 0, %s4, %s2
  $region1: #{tpu_custom_call.1} parent=0
    #allocation2 [shape = 'u8[4096]{0}', space=vmem, size = 0x1000, scoped, tag = 'input window, operand 0, single buffered']
    #allocation3 [shape = 's32[1]{0}', space=sflag, size = 0x4, scoped, tag = 'scoped memory for tpu_custom_call.1']
    #allocation4 [shape = 's32[1]{0}', space=sflag, size = 0x4, scoped, tag = 'scoped memory for tpu_custom_call.1']
    #allocation5 [shape = 'u8[4096]{0}', space=vmem, size = 0x1000, scoped, tag = 'output window, operand 0, single buffered']
    %6 = vsyncpa [#allocation3], 0
    %7 = vsyncpa [#allocation4], 0
    // Predicated region
    $region2: #{tpu_custom_call.1} parent=1 // pred_check
      _
    $region3: #{tpu_custom_call.1} parent=1 // pred_check_branch
      %9 = sbr.rel (0) target = $region5
    $region4: #{tpu_custom_call.1} parent=1 // pred_region
      %s11 = ssub.s32 128, 128
      %12 = vsyncadd [#allocation3], %s11
      %s14 = sshll.u32 [#allocation2], 4
      %s15 = int_to_ptr.vmem [resolvable:$true] %s14
      %17 = dma.hbm_to_vmem [thread:$0]  %s0, 128, %s15, [#allocation3]
    $region5: #{tpu_custom_call.1} parent=1 // pred_fallthru
      _
    // Predicated region
    $region6: #{tpu_custom_call.1} parent=1 // pred_check
      _
    $region7: #{tpu_custom_call.1} parent=1 // pred_check_branch
      %19 = sbr.rel (0) target = $region9
    $region8: #{tpu_custom_call.1} parent=1 // pred_region
      %20 = dma.done [#allocation3], 128
    $region9: #{tpu_custom_call.1} parent=1 // pred_fallthru
      _
    %v21 = vld [vmem:[#allocation2] sm:$0xff]
    %v23 = vcombine.high %v21, %v21
    %v25 = vunpack.c.l.s4 1983009808
    %v26 = vunpack.c.0.s8 %v25
    %v27 = vlaneseq
    %v28 = vshrl.u32 %v27, 7
    %v29 = vsub.s32 %v26, %v28
    %v30 = vrot.slane %v21, %v29
    %v32 = vunpack.c.l.s4 1983009808
    %v33 = vunpack.c.0.s8 %v32
    %v34 = vlaneseq
    %v35 = vshrl.u32 %v34, 7
    %v36 = vsub.s32 %v33, %v35
    %v37 = vrot.slane %v23, %v36
    %v38 = vcombine.high %v30, %v30
    %v39 = vcombine.high %v37, %v37
    %44 = vrot.lane.b32.xlu0 %v30, 1
    %v45 = vpop.permute.xlu0 %44
    %46 = vrot.lane.b32.xlu0 %v38, 1
    %v47 = vpop.permute.xlu0 %46
    %48 = vrot.lane.b32.xlu0 %v37, 1
    %v49 = vpop.permute.xlu0 %48
    %50 = vrot.lane.b32.xlu0 %v39, 1
    %v51 = vpop.permute.xlu0 %50
    %v52 = vlaneseq
    %v53 = vand.u32 %v52, 127
    %vm54 = vcmp.lt.s32.totalorder %v53, 1
    %v55 = vsel %vm54, %v49, %v51
    %v56 = vsel %vm54, %v47, %v49
    %v57 = vsel %vm54, %v45, %v47
    %v58 = vsel %vm54, %v51, %v45
    %v63 = vcombine.low %v58, %v57
    %v64 = vcombine.low %v56, %v55
    %v66 = vunpack.c.l.s4 1983009808
    %v67 = vunpack.c.0.s8 %v66
    %v68 = vlaneseq
    %v69 = vshrl.u32 %v68, 7
    %v70 = vsub.s32 %v67, %v69
    %v71 = vrot.slane %v63, %v70
    %v73 = vunpack.c.l.s4 1983009808
    %v74 = vunpack.c.0.s8 %v73
    %v75 = vlaneseq
    %v76 = vshrl.u32 %v75, 7
    %v77 = vsub.s32 %v74, %v76
    %v78 = vrot.slane %v64, %v77
    %v79 = vcombine.low %v71, %v78
    %81 = vst [vmem:[#allocation5] sm:$0xff] %v79
    // Predicated region
    $region10: #{tpu_custom_call.1} parent=1 // pred_check
      _
    $region11: #{tpu_custom_call.1} parent=1 // pred_check_branch
      %83 = sbr.rel (0) target = $region13
    $region12: #{tpu_custom_call.1} parent=1 // pred_region
      %s85 = ssub.s32 128, 128
      %86 = vsyncadd [#allocation4], %s85
      %s88 = sshll.u32 [#allocation5], 4
      %s89 = int_to_ptr.vmem [resolvable:$true] %s88
      %91 = dma.vmem_to_hbm [thread:$0]  %s89, 128, %s1, [#allocation4]
    $region13: #{tpu_custom_call.1} parent=1 // pred_fallthru
      _
    // Predicated region
    $region14: #{tpu_custom_call.1} parent=1 // pred_check
      _
    $region15: #{tpu_custom_call.1} parent=1 // pred_check_branch
      %93 = sbr.rel (0) target = $region17
    $region16: #{tpu_custom_call.1} parent=1 // pred_region
      %94 = dma.done [#allocation4], 128
    $region17: #{tpu_custom_call.1} parent=1 // pred_fallthru
      _
    %95 = vsyncpa [#allocation3], 1
    %96 = vsyncpa [#allocation4], 1

// kernel: _lambda_.1
$region0: #{_lambda_.1}
  #allocation0 [shape = 'u32[]', space=smem, size = 0x4, offset = 0x4, fixed_abs, tag = 'smem constant byte address 0x4 - core index']
  #allocation1 [shape = 'u32[144,128]{1,0:T(1,128)}', space=vmem, size = 0x12000, scoped, tag = 'internal scratch']
  %s0 = inlined_call_operand.vmem [shape: f32[2,8,512], index: 0, kind: input, shape index: {}]
  %s1 = inlined_call_operand.vmem [shape: f32[51,512], index: 1, kind: input, shape index: {}]
  %s2 = inlined_call_operand.vmem [shape: bf16[2,19], index: 2, kind: input, shape index: {}]
  %s3 = inlined_call_operand.vmem [shape: bf16[2,19], index: 3, kind: input, shape index: {}]
  %s4 = inlined_call_operand.vmem [shape: bf16[2,55], index: 4, kind: input, shape index: {}]
  %s5 = inlined_call_operand.vmem [shape: bf16[2,7], index: 5, kind: input, shape index: {}]
  %s6 = inlined_call_operand.vmem [shape: bf16[2,7], index: 6, kind: input, shape index: {}]
  %s7 = inlined_call_operand.vmem [shape: bf16[2,55], index: 7, kind: input, shape index: {}]
  %s8 = inlined_call_operand.vmem [shape: bf16[2,7], index: 8, kind: input, shape index: {}]
  %s9 = inlined_call_operand.vmem [shape: bf16[2,7], index: 9, kind: input, shape index: {}]
  %s10 = inlined_call_operand.vmem [shape: bf16[2,55], index: 10, kind: input, shape index: {}]
  %s11 = inlined_call_operand.vmem [shape: bf16[2,19], index: 11, kind: input, shape index: {}]
  %s12 = inlined_call_operand.vmem [shape: bf16[2,19], index: 12, kind: input, shape index: {}]
  %s13 = inlined_call_operand.vmem [shape: bf16[2,55], index: 13, kind: input, shape index: {}]
  %s14 = inlined_call_operand.vmem [shape: bf16[8,73], index: 14, kind: input, shape index: {}]
  %s15 = inlined_call_operand.vmem [shape: f32[2,8,512], index: 15, kind: output, shape index: {}]
  %s16 = sld [smem:[#allocation0]]
  $region93: #{_lambda_.1} parent=0
    _
  %s18 = ssub.s32 1, %s16
  %s19 = scalar_select 0, %s18, %s16
  loop: start=0, step=1, limit=4
  $region2: #{_lambda_.1} parent=0 // loop_pre_header
    _
  $region3: #{_lambda_.1} parent=0 // loop_header
    %s21 = sphi 0, %s25
    %p22 = scmp.ge.s32.totalorder %s21, 4
    %s31 = sphi 0, %s33
    %s34 = sphi 0, %s31
    %s35 = sphi 0, %s34
    %s51 = sphi 0, %s35
    %s55 = sphi 0, %s55
    %s57 = sphi 0, %s55
    %s58 = sphi 0, %s57
    %s72 = sphi 0, %s58
    %s76 = sphi 0, %s76
    %s78 = sphi 0, %s76
    %s79 = sphi 0, %s78
    %s93 = sphi 0, %s79
    %s97 = sphi 0, %s97
    %s99 = sphi 0, %s97
    %s100 = sphi 0, %s99
    %s114 = sphi 0, %s100
    %s118 = sphi 0, %s118
    %s120 = sphi 0, %s118
    %s121 = sphi 0, %s120
    %s135 = sphi 0, %s121
    %s139 = sphi 0, %s139
    %s141 = sphi 0, %s139
    %s142 = sphi 0, %s141
    %s156 = sphi 0, %s142
    %s160 = sphi 0, %s160
    %s162 = sphi 0, %s160
    %s163 = sphi 0, %s162
    %s177 = sphi 0, %s163
    %s181 = sphi 0, %s181
    %s183 = sphi 0, %s181
    %s184 = sphi 0, %s183
    %s198 = sphi 0, %s184
    %s202 = sphi 0, %s202
    %s204 = sphi 0, %s202
    %s205 = sphi 0, %s204
    %s219 = sphi 0, %s205
    %s223 = sphi 0, %s223
    %s225 = sphi 0, %s223
    %s226 = sphi 0, %s225
    %s240 = sphi 0, %s226
    %s244 = sphi 0, %s244
    %s246 = sphi 0, %s244
    %s247 = sphi 0, %s246
    %s261 = sphi 0, %s247
    %s265 = sphi 0, %s265
    %s267 = sphi 0, %s265
    %s268 = sphi 0, %s267
    %s282 = sphi 0, %s268
    %s286 = sphi 0, %s286
    %s288 = sphi 0, %s286
    %s289 = sphi 0, %s288
    %s303 = sphi 0, %s289
    %s307 = sphi 0, %s307
    %s309 = sphi 0, %s307
    %s310 = sphi 0, %s309
    %s324 = sphi 0, %s310
    %s328 = sphi 0, %s328
    %s330 = sphi 0, %s328
    %s331 = sphi 0, %s330
    %s345 = sphi 0, %s331
    %s351 = sphi 0, %s353
    %s354 = sphi 0, %s351
    %s355 = sphi 0, %s354
    %s371 = sphi 0, %s355
  $region4: #{_lambda_.1} parent=0 // loop_header_branch
    %24 = sbr.rel (%p22) target = $region8
  $region5: #{_lambda_.1} parent=0 // loop_body
    %s26 = ssub.s32 %s21, 1
    %s27 = ssub.s32 %s21, 2
    %s28 = sadd.s32 %s21, 1
    %s29 = ssub.s32 %s21, %s28
    %p30 = scmp.eq.s32.totalorder %s29, 0
    %s32 = sadd.s32 %s31, 1
    %s33 = scalar_select %p30, %s31, %s32
    %p36 = pneg %p30
    %p37 = scmp.eq.s32.totalorder %s21, 1
    %p38 = por %p36, %p37
    %p39 = scmp.ne.s32.totalorder %s31, %s34
    %p40 = scmp.eq.s32.totalorder %s21, 0
    %p41 = por %p39, %p40
    %p42 = scmp.ne.s32.totalorder %s31, %s34
    %p43 = scmp.eq.s32.totalorder %s26, 1
    %p44 = por %p42, %p43
    %p45 = scmp.ne.s32.totalorder %s34, %s35
    %p46 = scmp.eq.s32.totalorder %s26, 0
    %p47 = por %p45, %p46
    %p48 = scmp.ne.s32.totalorder %s34, %s35
    %p49 = scmp.eq.s32.totalorder %s27, 1
    %p50 = por %p48, %p49
    %p52 = scmp.ne.s32.totalorder %s35, %s51
    %p53 = scmp.eq.s32.totalorder %s27, 0
    %p54 = por %p52, %p53
    %s56 = sadd.s32 %s55, 1
    %p59 = scmp.eq.s32.totalorder %s21, 1
    %p60 = scmp.ne.s32.totalorder %s55, %s57
    %p61 = scmp.eq.s32.totalorder %s21, 0
    %p62 = por %p60, %p61
    %p63 = scmp.ne.s32.totalorder %s55, %s57
    %p64 = scmp.eq.s32.totalorder %s26, 1
    %p65 = por %p63, %p64
    %p66 = scmp.ne.s32.totalorder %s57, %s58
    %p67 = scmp.eq.s32.totalorder %s26, 0
    %p68 = por %p66, %p67
    %p69 = scmp.ne.s32.totalorder %s57, %s58
    %p70 = scmp.eq.s32.totalorder %s27, 1
    %p71 = por %p69, %p70
    %p73 = scmp.ne.s32.totalorder %s58, %s72
    %p74 = scmp.eq.s32.totalorder %s27, 0
    %p75 = por %p73, %p74
    %s77 = sadd.s32 %s76, 1
    %p80 = scmp.eq.s32.totalorder %s21, 1
    %p81 = scmp.ne.s32.totalorder %s76, %s78
    %p82 = scmp.eq.s32.totalorder %s21, 0
    %p83 = por %p81, %p82
    %p84 = scmp.ne.s32.totalorder %s76, %s78
    %p85 = scmp.eq.s32.totalorder %s26, 1
    %p86 = por %p84, %p85
    %p87 = scmp.ne.s32.totalorder %s78, %s79
    %p88 = scmp.eq.s32.totalorder %s26, 0
    %p89 = por %p87, %p88
    %p90 = scmp.ne.s32.totalorder %s78, %s79
    %p91 = scmp.eq.s32.totalorder %s27, 1
    %p92 = por %p90, %p91
    %p94 = scmp.ne.s32.totalorder %s79, %s93
    %p95 = scmp.eq.s32.totalorder %s27, 0
    %p96 = por %p94, %p95
    %s98 = sadd.s32 %s97, 1
    %p101 = scmp.eq.s32.totalorder %s21, 1
    %p102 = scmp.ne.s32.totalorder %s97, %s99
    %p103 = scmp.eq.s32.totalorder %s21, 0
    %p104 = por %p102, %p103
    %p105 = scmp.ne.s32.totalorder %s97, %s99
    %p106 = scmp.eq.s32.totalorder %s26, 1
    %p107 = por %p105, %p106
    %p108 = scmp.ne.s32.totalorder %s99, %s100
    %p109 = scmp.eq.s32.totalorder %s26, 0
    %p110 = por %p108, %p109
    %p111 = scmp.ne.s32.totalorder %s99, %s100
    %p112 = scmp.eq.s32.totalorder %s27, 1
    %p113 = por %p111, %p112
    %p115 = scmp.ne.s32.totalorder %s100, %s114
    %p116 = scmp.eq.s32.totalorder %s27, 0
    %p117 = por %p115, %p116
    %s119 = sadd.s32 %s118, 1
    %p122 = scmp.eq.s32.totalorder %s21, 1
    %p123 = scmp.ne.s32.totalorder %s118, %s120
    %p124 = scmp.eq.s32.totalorder %s21, 0
    %p125 = por %p123, %p124
    %p126 = scmp.ne.s32.totalorder %s118, %s120
    %p127 = scmp.eq.s32.totalorder %s26, 1
    %p128 = por %p126, %p127
    %p129 = scmp.ne.s32.totalorder %s120, %s121
    %p130 = scmp.eq.s32.totalorder %s26, 0
    %p131 = por %p129, %p130
    %p132 = scmp.ne.s32.totalorder %s120, %s121
    %p133 = scmp.eq.s32.totalorder %s27, 1
    %p134 = por %p132, %p133
    %p136 = scmp.ne.s32.totalorder %s121, %s135
    %p137 = scmp.eq.s32.totalorder %s27, 0
    %p138 = por %p136, %p137
    %s140 = sadd.s32 %s139, 1
    %p143 = scmp.eq.s32.totalorder %s21, 1
    %p144 = scmp.ne.s32.totalorder %s139, %s141
    %p145 = scmp.eq.s32.totalorder %s21, 0
    %p146 = por %p144, %p145
    %p147 = scmp.ne.s32.totalorder %s139, %s141
    %p148 = scmp.eq.s32.totalorder %s26, 1
    %p149 = por %p147, %p148
    %p150 = scmp.ne.s32.totalorder %s141, %s142
    %p151 = scmp.eq.s32.totalorder %s26, 0
    %p152 = por %p150, %p151
    %p153 = scmp.ne.s32.totalorder %s141, %s142
    %p154 = scmp.eq.s32.totalorder %s27, 1
    %p155 = por %p153, %p154
    %p157 = scmp.ne.s32.totalorder %s142, %s156
    %p158 = scmp.eq.s32.totalorder %s27, 0
    %p159 = por %p157, %p158
    %s161 = sadd.s32 %s160, 1
    %p164 = scmp.eq.s32.totalorder %s21, 1
    %p165 = scmp.ne.s32.totalorder %s160, %s162
    %p166 = scmp.eq.s32.totalorder %s21, 0
    %p167 = por %p165, %p166
    %p168 = scmp.ne.s32.totalorder %s160, %s162
    %p169 = scmp.eq.s32.totalorder %s26, 1
    %p170 = por %p168, %p169
    %p171 = scmp.ne.s32.totalorder %s162, %s163
    %p172 = scmp.eq.s32.totalorder %s26, 0
    %p173 = por %p171, %p172
    %p174 = scmp.ne.s32.totalorder %s162, %s163
    %p175 = scmp.eq.s32.totalorder %s27, 1
    %p176 = por %p174, %p175
    %p178 = scmp.ne.s32.totalorder %s163, %s177
    %p179 = scmp.eq.s32.totalorder %s27, 0
    %p180 = por %p178, %p179
    %s182 = sadd.s32 %s181, 1
    %p185 = scmp.eq.s32.totalorder %s21, 1
    %p186 = scmp.ne.s32.totalorder %s181, %s183
    %p187 = scmp.eq.s32.totalorder %s21, 0
    %p188 = por %p186, %p187
    %p189 = scmp.ne.s32.totalorder %s181, %s183
    %p190 = scmp.eq.s32.totalorder %s26, 1
    %p191 = por %p189, %p190
    %p192 = scmp.ne.s32.totalorder %s183, %s184
    %p193 = scmp.eq.s32.totalorder %s26, 0
    %p194 = por %p192, %p193
    %p195 = scmp.ne.s32.totalorder %s183, %s184
    %p196 = scmp.eq.s32.totalorder %s27, 1
    %p197 = por %p195, %p196
    %p199 = scmp.ne.s32.totalorder %s184, %s198
    %p200 = scmp.eq.s32.totalorder %s27, 0
    %p201 = por %p199, %p200
    %s203 = sadd.s32 %s202, 1
    %p206 = scmp.eq.s32.totalorder %s21, 1
    %p207 = scmp.ne.s32.totalorder %s202, %s204
    %p208 = scmp.eq.s32.totalorder %s21, 0
    %p209 = por %p207, %p208
    %p210 = scmp.ne.s32.totalorder %s202, %s204
    %p211 = scmp.eq.s32.totalorder %s26, 1
    %p212 = por %p210, %p211
    %p213 = scmp.ne.s32.totalorder %s204, %s205
    %p214 = scmp.eq.s32.totalorder %s26, 0
    %p215 = por %p213, %p214
    %p216 = scmp.ne.s32.totalorder %s204, %s205
    %p217 = scmp.eq.s32.totalorder %s27, 1
    %p218 = por %p216, %p217
    %p220 = scmp.ne.s32.totalorder %s205, %s219
    %p221 = scmp.eq.s32.totalorder %s27, 0
    %p222 = por %p220, %p221
    %s224 = sadd.s32 %s223, 1
    %p227 = scmp.eq.s32.totalorder %s21, 1
    %p228 = scmp.ne.s32.totalorder %s223, %s225
    %p229 = scmp.eq.s32.totalorder %s21, 0
    %p230 = por %p228, %p229
    %p231 = scmp.ne.s32.totalorder %s223, %s225
    %p232 = scmp.eq.s32.totalorder %s26, 1
    %p233 = por %p231, %p232
    %p234 = scmp.ne.s32.totalorder %s225, %s226
    %p235 = scmp.eq.s32.totalorder %s26, 0
    %p236 = por %p234, %p235
    %p237 = scmp.ne.s32.totalorder %s225, %s226
    %p238 = scmp.eq.s32.totalorder %s27, 1
    %p239 = por %p237, %p238
    %p241 = scmp.ne.s32.totalorder %s226, %s240
    %p242 = scmp.eq.s32.totalorder %s27, 0
    %p243 = por %p241, %p242
    %s245 = sadd.s32 %s244, 1
    %p248 = scmp.eq.s32.totalorder %s21, 1
    %p249 = scmp.ne.s32.totalorder %s244, %s246
    %p250 = scmp.eq.s32.totalorder %s21, 0
    %p251 = por %p249, %p250
    %p252 = scmp.ne.s32.totalorder %s244, %s246
    %p253 = scmp.eq.s32.totalorder %s26, 1
    %p254 = por %p252, %p253
    %p255 = scmp.ne.s32.totalorder %s246, %s247
    %p256 = scmp.eq.s32.totalorder %s26, 0
    %p257 = por %p255, %p256
    %p258 = scmp.ne.s32.totalorder %s246, %s247
    %p259 = scmp.eq.s32.totalorder %s27, 1
    %p260 = por %p258, %p259
    %p262 = scmp.ne.s32.totalorder %s247, %s261
    %p263 = scmp.eq.s32.totalorder %s27, 0
    %p264 = por %p262, %p263
    %s266 = sadd.s32 %s265, 1
    %p269 = scmp.eq.s32.totalorder %s21, 1
    %p270 = scmp.ne.s32.totalorder %s265, %s267
    %p271 = scmp.eq.s32.totalorder %s21, 0
    %p272 = por %p270, %p271
    %p273 = scmp.ne.s32.totalorder %s265, %s267
    %p274 = scmp.eq.s32.totalorder %s26, 1
    %p275 = por %p273, %p274
    %p276 = scmp.ne.s32.totalorder %s267, %s268
    %p277 = scmp.eq.s32.totalorder %s26, 0
    %p278 = por %p276, %p277
    %p279 = scmp.ne.s32.totalorder %s267, %s268
    %p280 = scmp.eq.s32.totalorder %s27, 1
    %p281 = por %p279, %p280
    %p283 = scmp.ne.s32.totalorder %s268, %s282
    %p284 = scmp.eq.s32.totalorder %s27, 0
    %p285 = por %p283, %p284
    %s287 = sadd.s32 %s286, 1
    %p290 = scmp.eq.s32.totalorder %s21, 1
    %p291 = scmp.ne.s32.totalorder %s286, %s288
    %p292 = scmp.eq.s32.totalorder %s21, 0
    %p293 = por %p291, %p292
    %p294 = scmp.ne.s32.totalorder %s286, %s288
    %p295 = scmp.eq.s32.totalorder %s26, 1
    %p296 = por %p294, %p295
    %p297 = scmp.ne.s32.totalorder %s288, %s289
    %p298 = scmp.eq.s32.totalorder %s26, 0
    %p299 = por %p297, %p298
    %p300 = scmp.ne.s32.totalorder %s288, %s289
    %p301 = scmp.eq.s32.totalorder %s27, 1
    %p302 = por %p300, %p301
    %p304 = scmp.ne.s32.totalorder %s289, %s303
    %p305 = scmp.eq.s32.totalorder %s27, 0
    %p306 = por %p304, %p305
    %s308 = sadd.s32 %s307, 1
    %p311 = scmp.eq.s32.totalorder %s21, 1
    %p312 = scmp.ne.s32.totalorder %s307, %s309
    %p313 = scmp.eq.s32.totalorder %s21, 0
    %p314 = por %p312, %p313
    %p315 = scmp.ne.s32.totalorder %s307, %s309
    %p316 = scmp.eq.s32.totalorder %s26, 1
    %p317 = por %p315, %p316
    %p318 = scmp.ne.s32.totalorder %s309, %s310
    %p319 = scmp.eq.s32.totalorder %s26, 0
    %p320 = por %p318, %p319
    %p321 = scmp.ne.s32.totalorder %s309, %s310
    %p322 = scmp.eq.s32.totalorder %s27, 1
    %p323 = por %p321, %p322
    %p325 = scmp.ne.s32.totalorder %s310, %s324
    %p326 = scmp.eq.s32.totalorder %s27, 0
    %p327 = por %p325, %p326
    %s329 = sadd.s32 %s328, 1
    %p332 = scmp.eq.s32.totalorder %s21, 1
    %p333 = scmp.ne.s32.totalorder %s328, %s330
    %p334 = scmp.eq.s32.totalorder %s21, 0
    %p335 = por %p333, %p334
    %p336 = scmp.ne.s32.totalorder %s328, %s330
    %p337 = scmp.eq.s32.totalorder %s26, 1
    %p338 = por %p336, %p337
    %p339 = scmp.ne.s32.totalorder %s330, %s331
    %p340 = scmp.eq.s32.totalorder %s26, 0
    %p341 = por %p339, %p340
    %p342 = scmp.ne.s32.totalorder %s330, %s331
    %p343 = scmp.eq.s32.totalorder %s27, 1
    %p344 = por %p342, %p343
    %p346 = scmp.ne.s32.totalorder %s331, %s345
    %p347 = scmp.eq.s32.totalorder %s27, 0
    %p348 = por %p346, %p347
    %s349 = ssub.s32 %s21, %s28
    %p350 = scmp.eq.s32.totalorder %s349, 0
    %s352 = sadd.s32 %s351, 1
    %s353 = scalar_select %p350, %s351, %s352
    %p356 = pneg %p350
    %p357 = scmp.eq.s32.totalorder %s21, 1
    %p358 = por %p356, %p357
    %p359 = scmp.ne.s32.totalorder %s351, %s354
    %p360 = scmp.eq.s32.totalorder %s21, 0
    %p361 = por %p359, %p360
    %p362 = scmp.ne.s32.totalorder %s351, %s354
    %p363 = scmp.eq.s32.totalorder %s26, 1
    %p364 = por %p362, %p363
    %p365 = scmp.ne.s32.totalorder %s354, %s355
    %p366 = scmp.eq.s32.totalorder %s26, 0
    %p367 = por %p365, %p366
    %p368 = scmp.ne.s32.totalorder %s354, %s355
    %p369 = scmp.eq.s32.totalorder %s27, 1
    %p370 = por %p368, %p369
    %p372 = scmp.ne.s32.totalorder %s355, %s371
    %p373 = scmp.eq.s32.totalorder %s27, 0
    %p374 = por %p372, %p373
    %p375 = scmp.le.s32.totalorder 1, %s21
    %p376 = scmp.lt.s32.totalorder %s21, 3
    %p377 = pnand %p375, %p376
    %p378 = pneg %p377
    // Predicated region
    $region9: #{_lambda_.1} parent=5 // pred_check
      _
    $region10: #{_lambda_.1} parent=5 // pred_check_branch
      %380 = sbr.rel (%p377) target = $region12
    $region11: #{_lambda_.1} parent=5 // pred_region
      %s381 = ssub.s32 %s21, 1
      // Predicated region
      $region13: #{_lambda_.1} parent=11 // pred_check
        %p382 = pneg %p68
      $region14: #{_lambda_.1} parent=11 // pred_check_branch
        %384 = sbr.rel (%p382) target = $region16
      $region15: #{_lambda_.1} parent=11 // pred_region
        _
      $region16: #{_lambda_.1} parent=11 // pred_fallthru
        _
      // Predicated region
      $region17: #{_lambda_.1} parent=11 // pred_check
        %p385 = pneg %p89
      $region18: #{_lambda_.1} parent=11 // pred_check_branch
        %387 = sbr.rel (%p385) target = $region20
      $region19: #{_lambda_.1} parent=11 // pred_region
        _
      $region20: #{_lambda_.1} parent=11 // pred_fallthru
        _
      // Predicated region
      $region21: #{_lambda_.1} parent=11 // pred_check
        %p388 = pneg %p110
      $region22: #{_lambda_.1} parent=11 // pred_check_branch
        %390 = sbr.rel (%p388) target = $region24
      $region23: #{_lambda_.1} parent=11 // pred_region
        _
      $region24: #{_lambda_.1} parent=11 // pred_fallthru
        _
      // Predicated region
      $region25: #{_lambda_.1} parent=11 // pred_check
        %p391 = pneg %p131
      $region26: #{_lambda_.1} parent=11 // pred_check_branch
        %393 = sbr.rel (%p391) target = $region28
      $region27: #{_lambda_.1} parent=11 // pred_region
        _
      $region28: #{_lambda_.1} parent=11 // pred_fallthru
        _
      // Predicated region
      $region29: #{_lambda_.1} parent=11 // pred_check
        %p394 = pneg %p152
      $region30: #{_lambda_.1} parent=11 // pred_check_branch
        %396 = sbr.rel (%p394) target = $region32
      $region31: #{_lambda_.1} parent=11 // pred_region
        _
      $region32: #{_lambda_.1} parent=11 // pred_fallthru
        _
      // Predicated region
      $region33: #{_lambda_.1} parent=11 // pred_check
        %p397 = pneg %p173
      $region34: #{_lambda_.1} parent=11 // pred_check_branch
        %399 = sbr.rel (%p397) target = $region36
      $region35: #{_lambda_.1} parent=11 // pred_region
        _
      $region36: #{_lambda_.1} parent=11 // pred_fallthru
        _
      // Predicated region
      $region37: #{_lambda_.1} parent=11 // pred_check
        %p400 = pneg %p194
      $region38: #{_lambda_.1} parent=11 // pred_check_branch
        %402 = sbr.rel (%p400) target = $region40
      $region39: #{_lambda_.1} parent=11 // pred_region
        _
      $region40: #{_lambda_.1} parent=11 // pred_fallthru
        _
      // Predicated region
      $region41: #{_lambda_.1} parent=11 // pred_check
        %p403 = pneg %p215
      $region42: #{_lambda_.1} parent=11 // pred_check_branch
        %405 = sbr.rel (%p403) target = $region44
      $region43: #{_lambda_.1} parent=11 // pred_region
        _
      $region44: #{_lambda_.1} parent=11 // pred_fallthru
        _
      // Predicated region
      $region45: #{_lambda_.1} parent=11 // pred_check
        %p406 = pneg %p236
      $region46: #{_lambda_.1} parent=11 // pred_check_branch
        %408 = sbr.rel (%p406) target = $region48
      $region47: #{_lambda_.1} parent=11 // pred_region
        _
      $region48: #{_lambda_.1} parent=11 // pred_fallthru
        _
      // Predicated region
      $region49: #{_lambda_.1} parent=11 // pred_check
        %p409 = pneg %p257
      $region50: #{_lambda_.1} parent=11 // pred_check_branch
        %411 = sbr.rel (%p409) target = $region52
      $region51: #{_lambda_.1} parent=11 // pred_region
        _
      $region52: #{_lambda_.1} parent=11 // pred_fallthru
        _
      // Predicated region
      $region53: #{_lambda_.1} parent=11 // pred_check
        %p412 = pneg %p278
      $region54: #{_lambda_.1} parent=11 // pred_check_branch
        %414 = sbr.rel (%p412) target = $region56
      $region55: #{_lambda_.1} parent=11 // pred_region
        _
      $region56: #{_lambda_.1} parent=11 // pred_fallthru
        _
      // Predicated region
      $region57: #{_lambda_.1} parent=11 // pred_check
        %p415 = pneg %p299
      $region58: #{_lambda_.1} parent=11 // pred_check_branch
        %417 = sbr.rel (%p415) target = $region60
      $region59: #{_lambda_.1} parent=11 // pred_region
        _
      $region60: #{_lambda_.1} parent=11 // pred_fallthru
        _
      // Predicated region
      $region61: #{_lambda_.1} parent=11 // pred_check
        %p418 = pneg %p320
      $region62: #{_lambda_.1} parent=11 // pred_check_branch
        %420 = sbr.rel (%p418) target = $region64
      $region63: #{_lambda_.1} parent=11 // pred_region
        _
      $region64: #{_lambda_.1} parent=11 // pred_fallthru
        _
      // Predicated region
      $region65: #{_lambda_.1} parent=11 // pred_check
        %p421 = pneg %p341
      $region66: #{_lambda_.1} parent=11 // pred_check_branch
        %423 = sbr.rel (%p421) target = $region68
      $region67: #{_lambda_.1} parent=11 // pred_region
        _
      $region68: #{_lambda_.1} parent=11 // pred_fallthru
        _
    $region12: #{_lambda_.1} parent=5 // pred_fallthru
      _
    %p424 = scmp.lt.s32.totalorder %s21, 2
    // Predicated region
    $region69: #{_lambda_.1} parent=5 // pred_check
      %p425 = pneg %p424
    $region70: #{_lambda_.1} parent=5 // pred_check_branch
      %427 = sbr.rel (%p425) target = $region72
    $region71: #{_lambda_.1} parent=5 // pred_region
      // Predicated region
      $region73: #{_lambda_.1} parent=71 // pred_check
        %p428 = pneg %p41
      $region74: #{_lambda_.1} parent=71 // pred_check_branch
        %430 = sbr.rel (%p428) target = $region76
      $region75: #{_lambda_.1} parent=71 // pred_region
        %p431 = scmp.lt.s32.totalorder %s21, 1
        %s432 = scalar_select %p431, %s21, 1
        %s433 = smul.addr %s432, 4
        %s434 = smul.addr %s433, 8
        %s435 = scalar_lea.vmem %s0, %s434
      $region76: #{_lambda_.1} parent=71 // pred_fallthru
        _
    $region72: #{_lambda_.1} parent=5 // pred_fallthru
      _
    %p436 = scmp.le.s32.totalorder 1, %s21
    %p437 = scmp.lt.s32.totalorder %s21, 3
    %p438 = pnand %p436, %p437
    %p439 = pneg %p438
    // Predicated region
    $region77: #{_lambda_.1} parent=5 // pred_check
      _
    $region78: #{_lambda_.1} parent=5 // pred_check_branch
      %441 = sbr.rel (%p438) target = $region80
    $region79: #{_lambda_.1} parent=5 // pred_region
      %s442 = ssub.s32 %s21, 1
      %p443 = scmp.lt.s32.totalorder %s26, 1
      %s444 = scalar_select %p443, %s26, 1
      %s445 = smul.addr %s444, 4
      %s446 = smul.addr %s445, 8
      %s447 = scalar_lea.vmem %s0, %s446
      %p448 = pneg %p47
      %p449 = pneg %p44
      %p450 = pneg %p68
      %p451 = pneg %p65
      %p452 = pneg %p89
      %p453 = pneg %p86
      %p454 = pneg %p110
      %p455 = pneg %p107
      %p456 = pneg %p131
      %p457 = pneg %p128
      %p458 = pneg %p152
      %p459 = pneg %p149
      %p460 = pneg %p173
      %p461 = pneg %p170
      %p462 = pneg %p194
      %p463 = pneg %p191
      %p464 = pneg %p215
      %p465 = pneg %p212
      %p466 = pneg %p236
      %p467 = pneg %p233
      %p468 = pneg %p257
      %p469 = pneg %p254
      %p470 = pneg %p278
      %p471 = pneg %p275
      %p472 = pneg %p299
      %p473 = pneg %p296
      %p474 = pneg %p320
      %p475 = pneg %p317
      %p476 = pneg %p341
      %p477 = pneg %p338
      %p478 = pneg %p367
      %p479 = pneg %p364
      %p480 = scmp.lt.s32.totalorder %s26, 1
      %s481 = scalar_select %p480, %s26, 1
      %s482 = smul.addr %s481, 4
      %s483 = smul.addr %s482, 8
      %s484 = scalar_lea.vmem %s15, %s483
      %p485 = scmp.lt.s32.totalorder %s26, 1
      %s486 = scalar_select %p485, %s26, 1
      %s487 = smul.addr %s486, 4
      %s488 = smul.addr %s487, 8
      %s489 = scalar_lea.vmem %s0, %s488
      %p490 = scmp.lt.s32.totalorder %s26, 1
      %s491 = scalar_select %p490, %s26, 1
      %s492 = smul.addr %s491, 4
      %s493 = smul.addr %s492, 8
      %s494 = scalar_lea.vmem %s15, %s493
      %v496 = vld [vmem:[%s489] sm:$0xff]
      %v497 = vld [vmem:[%s489 + $0x8] sm:$0xff]
      %v498 = vld [vmem:[%s489 + $0x10] sm:$0xff]
      %v499 = vld [vmem:[%s489 + $0x18] sm:$0xff]
      %501 = vrot.lane.b32.xlu0 %v499, 17
      %v502 = vpop.permute.xlu0 %501
      %507 = vrot.lane.b32.xlu0 %v496, 17
      %v508 = vpop.permute.xlu0 %507
      %509 = vrot.lane.b32.xlu0 %v497, 17
      %v510 = vpop.permute.xlu0 %509
      %511 = vrot.lane.b32.xlu0 %v498, 17
      %v512 = vpop.permute.xlu0 %511
      %vm513 = vcmask 138240
      %v514 = vsel %vm513, %v508, %v510
      %v515 = vsel %vm513, %v510, %v512
      %v516 = vsel %vm513, %v512, %v502
      %v521 = vsel %vm513, %v502, %v508
      %v522 = vld [vmem:[%s1] ss:$8 sm:$0xf]
      %v524 = vlaneseq
      %v525 = vshrl.u32 %v524, 7
      %v526 = vsub.s32 0, %v525
      %v527 = vrot.slane %v522, %v526
      %v528 = vlaneseq
      %v529 = vshrl.u32 %v528, 7
      %v530 = vsub.s32 1, %v529
      %v531 = vrot.slane %v522, %v530
      %v532 = vlaneseq
      %v533 = vshrl.u32 %v532, 7
      %v534 = vsub.s32 2, %v533
      %v535 = vrot.slane %v522, %v534
      %v536 = vlaneseq
      %v537 = vshrl.u32 %v536, 7
      %v538 = vsub.s32 3, %v537
      %v539 = vrot.slane %v522, %v538
      %v544 = vmul.f32 %v521, %v527
      %v545 = vmul.f32 %v514, %v531
      %v546 = vmul.f32 %v515, %v535
      %v547 = vmul.f32 %v516, %v539
      %548 = vrot.lane.b32.xlu0 %v499, 16
      %v549 = vpop.permute.xlu0 %548
      %551 = vrot.lane.b32.xlu0 %v496, 16
      %v552 = vpop.permute.xlu0 %551
      %553 = vrot.lane.b32.xlu0 %v497, 16
      %v554 = vpop.permute.xlu0 %553
      %555 = vrot.lane.b32.xlu0 %v498, 16
      %v556 = vpop.permute.xlu0 %555
      %vm557 = vcmask 130048
      %v558 = vsel %vm557, %v552, %v554
      %v559 = vsel %vm557, %v554, %v556
      %v560 = vsel %vm557, %v556, %v549
      %v565 = vsel %vm557, %v549, %v552
      %s566 = scalar_lea.vmem %s1, 1
      %v567 = vld [vmem:[%s566] ss:$8 sm:$0xf]
      %v569 = vlaneseq
      %v570 = vshrl.u32 %v569, 7
      %v571 = vsub.s32 0, %v570
      %v572 = vrot.slane %v567, %v571
      %v573 = vlaneseq
      %v574 = vshrl.u32 %v573, 7
      %v575 = vsub.s32 1, %v574
      %v576 = vrot.slane %v567, %v575
      %v577 = vlaneseq
      %v578 = vshrl.u32 %v577, 7
      %v579 = vsub.s32 2, %v578
      %v580 = vrot.slane %v567, %v579
      %v581 = vlaneseq
      %v582 = vshrl.u32 %v581, 7
      %v583 = vsub.s32 3, %v582
      %v584 = vrot.slane %v567, %v583
      %v589 = vmul.f32 %v565, %v572
      %v590 = vmul.f32 %v558, %v576
      %v591 = vmul.f32 %v559, %v580
      %v592 = vmul.f32 %v560, %v584
      %593 = vrot.lane.b32.xlu0 %v499, 15
      %v594 = vpop.permute.xlu0 %593
      %596 = vrot.lane.b32.xlu0 %v496, 15
      %v597 = vpop.permute.xlu0 %596
      %598 = vrot.lane.b32.xlu0 %v497, 15
      %v599 = vpop.permute.xlu0 %598
      %600 = vrot.lane.b32.xlu0 %v498, 15
      %v601 = vpop.permute.xlu0 %600
      %vm602 = vcmask 121856
      %v603 = vsel %vm602, %v597, %v599
      %v604 = vsel %vm602, %v599, %v601
      %v605 = vsel %vm602, %v601, %v594
      %v610 = vsel %vm602, %v594, %v597
      %s611 = scalar_lea.vmem %s1, 2
      %v612 = vld [vmem:[%s611] ss:$8 sm:$0xf]
      %v614 = vlaneseq
      %v615 = vshrl.u32 %v614, 7
      %v616 = vsub.s32 0, %v615
      %v617 = vrot.slane %v612, %v616
      %v618 = vlaneseq
      %v619 = vshrl.u32 %v618, 7
      %v620 = vsub.s32 1, %v619
      %v621 = vrot.slane %v612, %v620
      %v622 = vlaneseq
      %v623 = vshrl.u32 %v622, 7
      %v624 = vsub.s32 2, %v623
      %v625 = vrot.slane %v612, %v624
      %v626 = vlaneseq
      %v627 = vshrl.u32 %v626, 7
      %v628 = vsub.s32 3, %v627
      %v629 = vrot.slane %v612, %v628
      %v634 = vmul.f32 %v610, %v617
      %v635 = vmul.f32 %v603, %v621
      %v636 = vmul.f32 %v604, %v625
      %v637 = vmul.f32 %v605, %v629
      %638 = vrot.lane.b32.xlu0 %v499, 1
      %v639 = vpop.permute.xlu0 %638
      %641 = vrot.lane.b32.xlu0 %v496, 1
      %v642 = vpop.permute.xlu0 %641
      %643 = vrot.lane.b32.xlu0 %v497, 1
      %v644 = vpop.permute.xlu0 %643
      %645 = vrot.lane.b32.xlu0 %v498, 1
      %v646 = vpop.permute.xlu0 %645
      %vm647 = vcmask 7168
      %v648 = vsel %vm647, %v642, %v644
      %v649 = vsel %vm647, %v644, %v646
      %v650 = vsel %vm647, %v646, %v639
      %v655 = vsel %vm647, %v639, %v642
      %s656 = scalar_lea.vmem %s1, 3
      %v657 = vld [vmem:[%s656] ss:$8 sm:$0xf]
      %v659 = vlaneseq
      %v660 = vshrl.u32 %v659, 7
      %v661 = vsub.s32 0, %v660
      %v662 = vrot.slane %v657, %v661
      %v663 = vlaneseq
      %v664 = vshrl.u32 %v663, 7
      %v665 = vsub.s32 1, %v664
      %v666 = vrot.slane %v657, %v665
      %v667 = vlaneseq
      %v668 = vshrl.u32 %v667, 7
      %v669 = vsub.s32 2, %v668
      %v670 = vrot.slane %v657, %v669
      %v671 = vlaneseq
      %v672 = vshrl.u32 %v671, 7
      %v673 = vsub.s32 3, %v672
      %v674 = vrot.slane %v657, %v673
      %v679 = vmul.f32 %v655, %v662
      %v680 = vmul.f32 %v648, %v666
      %v681 = vmul.f32 %v649, %v670
      %v682 = vmul.f32 %v650, %v674
      %683 = vrot.lane.b32.xlu0 %v496, 127
      %v684 = vpop.permute.xlu0 %683
      %685 = vrot.lane.b32.xlu0 %v497, 127
      %v686 = vpop.permute.xlu0 %685
      %687 = vrot.lane.b32.xlu0 %v498, 127
      %v688 = vpop.permute.xlu0 %687
      %689 = vrot.lane.b32.xlu0 %v499, 127
      %v690 = vpop.permute.xlu0 %689
      %vm691 = vcmask 1039360
      %v692 = vsel %vm691, %v684, %v686
      %v693 = vsel %vm691, %v686, %v688
      %v694 = vsel %vm691, %v688, %v690
      %v700 = vsel %vm691, %v690, %v684
      %s701 = scalar_lea.vmem %s1, 5
      %v702 = vld [vmem:[%s701] ss:$8 sm:$0xf]
      %v704 = vlaneseq
      %v705 = vshrl.u32 %v704, 7
      %v706 = vsub.s32 0, %v705
      %v707 = vrot.slane %v702, %v706
      %v708 = vlaneseq
      %v709 = vshrl.u32 %v708, 7
      %v710 = vsub.s32 1, %v709
      %v711 = vrot.slane %v702, %v710
      %v712 = vlaneseq
      %v713 = vshrl.u32 %v712, 7
      %v714 = vsub.s32 2, %v713
      %v715 = vrot.slane %v702, %v714
      %v716 = vlaneseq
      %v717 = vshrl.u32 %v716, 7
      %v718 = vsub.s32 3, %v717
      %v719 = vrot.slane %v702, %v718
      %v724 = vmul.f32 %v692, %v707
      %v725 = vmul.f32 %v693, %v711
      %v726 = vmul.f32 %v694, %v715
      %v727 = vmul.f32 %v700, %v719
      %728 = vrot.lane.b32.xlu0 %v496, 113
      %v729 = vpop.permute.xlu0 %728
      %730 = vrot.lane.b32.xlu0 %v497, 113
      %v731 = vpop.permute.xlu0 %730
      %732 = vrot.lane.b32.xlu0 %v498, 113
      %v733 = vpop.permute.xlu0 %732
      %734 = vrot.lane.b32.xlu0 %v499, 113
      %v735 = vpop.permute.xlu0 %734
      %vm736 = vcmask 924672
      %v737 = vsel %vm736, %v729, %v731
      %v738 = vsel %vm736, %v731, %v733
      %v739 = vsel %vm736, %v733, %v735
      %v745 = vsel %vm736, %v735, %v729
      %s746 = scalar_lea.vmem %s1, 6
      %v747 = vld [vmem:[%s746] ss:$8 sm:$0xf]
      %v749 = vlaneseq
      %v750 = vshrl.u32 %v749, 7
      %v751 = vsub.s32 0, %v750
      %v752 = vrot.slane %v747, %v751
      %v753 = vlaneseq
      %v754 = vshrl.u32 %v753, 7
      %v755 = vsub.s32 1, %v754
      %v756 = vrot.slane %v747, %v755
      %v757 = vlaneseq
      %v758 = vshrl.u32 %v757, 7
      %v759 = vsub.s32 2, %v758
      %v760 = vrot.slane %v747, %v759
      %v761 = vlaneseq
      %v762 = vshrl.u32 %v761, 7
      %v763 = vsub.s32 3, %v762
      %v764 = vrot.slane %v747, %v763
      %v769 = vmul.f32 %v737, %v752
      %v770 = vmul.f32 %v738, %v756
      %v771 = vmul.f32 %v739, %v760
      %v772 = vmul.f32 %v745, %v764
      %773 = vrot.lane.b32.xlu0 %v496, 112
      %v774 = vpop.permute.xlu0 %773
      %775 = vrot.lane.b32.xlu0 %v497, 112
      %v776 = vpop.permute.xlu0 %775
      %777 = vrot.lane.b32.xlu0 %v498, 112
      %v778 = vpop.permute.xlu0 %777
      %779 = vrot.lane.b32.xlu0 %v499, 112
      %v780 = vpop.permute.xlu0 %779
      %vm781 = vcmask 916480
      %v782 = vsel %vm781, %v774, %v776
      %v783 = vsel %vm781, %v776, %v778
      %v784 = vsel %vm781, %v778, %v780
      %v790 = vsel %vm781, %v780, %v774
      %s791 = scalar_lea.vmem %s1, 7
      %v792 = vld [vmem:[%s791] ss:$8 sm:$0xf]
      %v794 = vlaneseq
      %v795 = vshrl.u32 %v794, 7
      %v796 = vsub.s32 0, %v795
      %v797 = vrot.slane %v792, %v796
      %v798 = vlaneseq
      %v799 = vshrl.u32 %v798, 7
      %v800 = vsub.s32 1, %v799
      %v801 = vrot.slane %v792, %v800
      %v802 = vlaneseq
      %v803 = vshrl.u32 %v802, 7
      %v804 = vsub.s32 2, %v803
      %v805 = vrot.slane %v792, %v804
      %v806 = vlaneseq
      %v807 = vshrl.u32 %v806, 7
      %v808 = vsub.s32 3, %v807
      %v809 = vrot.slane %v792, %v808
      %v814 = vmul.f32 %v782, %v797
      %v815 = vmul.f32 %v783, %v801
      %v816 = vmul.f32 %v784, %v805
      %v817 = vmul.f32 %v790, %v809
      %818 = vrot.lane.b32.xlu0 %v496, 111
      %v819 = vpop.permute.xlu0 %818
      %820 = vrot.lane.b32.xlu0 %v497, 111
      %v821 = vpop.permute.xlu0 %820
      %822 = vrot.lane.b32.xlu0 %v498, 111
      %v823 = vpop.permute.xlu0 %822
      %824 = vrot.lane.b32.xlu0 %v499, 111
      %v825 = vpop.permute.xlu0 %824
      %vm826 = vcmask 908288
      %v827 = vsel %vm826, %v819, %v821
      %v828 = vsel %vm826, %v821, %v823
      %v829 = vsel %vm826, %v823, %v825
      %v835 = vsel %vm826, %v825, %v819
      %s836 = scalar_lea.vmem %s1, 32
      %v837 = vld [vmem:[%s836] ss:$8 sm:$0xf]
      %v839 = vlaneseq
      %v840 = vshrl.u32 %v839, 7
      %v841 = vsub.s32 0, %v840
      %v842 = vrot.slane %v837, %v841
      %v843 = vlaneseq
      %v844 = vshrl.u32 %v843, 7
      %v845 = vsub.s32 1, %v844
      %v846 = vrot.slane %v837, %v845
      %v847 = vlaneseq
      %v848 = vshrl.u32 %v847, 7
      %v849 = vsub.s32 2, %v848
      %v850 = vrot.slane %v837, %v849
      %v851 = vlaneseq
      %v852 = vshrl.u32 %v851, 7
      %v853 = vsub.s32 3, %v852
      %v854 = vrot.slane %v837, %v853
      %v859 = vmul.f32 %v827, %v842
      %v860 = vmul.f32 %v828, %v846
      %v861 = vmul.f32 %v829, %v850
      %v862 = vmul.f32 %v835, %v854
      %v867 = vrot.slane %v589, 6
      %v868 = vrot.slane %v590, 6
      %v869 = vrot.slane %v591, 6
      %v870 = vrot.slane %v592, 6
      %v879 = vrot.slane %v634, 4
      %v880 = vrot.slane %v635, 4
      %v881 = vrot.slane %v636, 4
      %v882 = vrot.slane %v637, 4
      %v891 = vrot.slane %v679, 2
      %v892 = vrot.slane %v680, 2
      %v893 = vrot.slane %v681, 2
      %v894 = vrot.slane %v682, 2
      %v903 = vrot.slane %v724, 6
      %v904 = vrot.slane %v725, 6
      %v905 = vrot.slane %v726, 6
      %v906 = vrot.slane %v727, 6
      %v915 = vrot.slane %v769, 4
      %v916 = vrot.slane %v770, 4
      %v917 = vrot.slane %v771, 4
      %v918 = vrot.slane %v772, 4
      %v927 = vrot.slane %v814, 2
      %v928 = vrot.slane %v815, 2
      %v929 = vrot.slane %v816, 2
      %v930 = vrot.slane %v817, 2
      %vm935 = vcmask 1041408
      %v936 = vsel %vm935, %v544, %v867
      %v937 = vsel %vm935, %v545, %v868
      %v938 = vsel %vm935, %v546, %v869
      %v939 = vsel %vm935, %v547, %v870
      %vm940 = vcmask 1043456
      %v941 = vsel %vm940, %v936, %v879
      %v942 = vsel %vm940, %v937, %v880
      %v943 = vsel %vm940, %v938, %v881
      %v944 = vsel %vm940, %v939, %v882
      %vm945 = vcmask 1045504
      %v946 = vsel %vm945, %v941, %v891
      %v947 = vsel %vm945, %v942, %v892
      %v948 = vsel %vm945, %v943, %v893
      %v949 = vsel %vm945, %v944, %v894
      %v950 = vsel %vm935, %v496, %v903
      %v951 = vsel %vm935, %v497, %v904
      %v952 = vsel %vm935, %v498, %v905
      %v953 = vsel %vm935, %v499, %v906
      %v954 = vsel %vm940, %v950, %v915
      %v955 = vsel %vm940, %v951, %v916
      %v956 = vsel %vm940, %v952, %v917
      %v957 = vsel %vm940, %v953, %v918
      %v958 = vsel %vm945, %v954, %v927
      %v959 = vsel %vm945, %v955, %v928
      %v960 = vsel %vm945, %v956, %v929
      %v961 = vsel %vm945, %v957, %v930
      %v962 = vsel %vm935, %v859, 1.0
      %v963 = vsel %vm935, %v860, 1.0
      %v964 = vsel %vm935, %v861, 1.0
      %v965 = vsel %vm935, %v862, 1.0
      %v966 = vpack.c.bf16 %v958, %v946
      %v967 = vpack.c.bf16 %v959, %v947
      %v968 = vpack.c.bf16 %v960, %v948
      %v969 = vpack.c.bf16 %v961, %v949
      %v970 = vpack.c.bf16 %v962, %v962
      %v971 = vpack.c.bf16 %v963, %v963
      %v972 = vpack.c.bf16 %v964, %v964
      %v973 = vpack.c.bf16 %v965, %v965
      %v974 = vld [vmem:[%s2] sm:$0x1]
      %vm975 = vcmask 154624
      %v977 = vsel %vm975, %v974, 0
      %vm979 = vcmask 1040384
      %v980 = vsel %vm979, 4294967295, 65535
      %v981 = vsel %vm935, %v980, 0
      %v983 = vand.u32 %v970, %v981
      %v986 = vand.u32 %v971, %v981
      %v989 = vand.u32 %v972, %v981
      %v992 = vand.u32 %v973, %v981
      %994 = vmatprep.subr.bf16.mxu0 %v967
      %995 = vmatpush1.bf16.msra.mxu0 %v966
      %996 = vmatprep.subr.bf16.mxu0 %v986
      %997 = vmatpush1.bf16.msra.mxu0 %v983
      %998 = vmatprep.subr.bf16.mxu0 0
      %999 = vmatpush1.bf16.msra.mxu0 0
      %1000 = vmatprep.subr.bf16.mxu0 0
      %1001 = vmatpush1.bf16.msra.mxu0 0
      %1002 = vmatprep.subr.bf16.mxu0 0
      %1003 = vmatpush1.bf16.msra.mxu0 0
      %1004 = vmatprep.subr.bf16.mxu0 0
      %1005 = vmatpush1.bf16.msra.mxu0 0
      %1006 = vmatprep.subr.bf16.mxu0 0
      %1007 = vmatpush1.bf16.msra.mxu0 0
      %1008 = vmatprep.subr.bf16.mxu0 0
      %1009 = vmatpush1.bf16.msra.mxu0 0
      %1010 = vmatprep.subr.bf16.mxu0 0
      %1011 = vmatpush1.bf16.msra.mxu0 0
      %1012 = vmatprep.subr.bf16.mxu0 0
      %1013 = vmatpush1.bf16.msra.mxu0 0
      %1014 = vmatprep.subr.bf16.mxu0 0
      %1015 = vmatpush1.bf16.msra.mxu0 0
      %1016 = vmatprep.subr.bf16.mxu0 0
      %1017 = vmatpush1.bf16.msra.mxu0 0
      %1018 = vmatprep.subr.bf16.mxu0 0
      %1019 = vmatpush1.bf16.msra.mxu0 0
      %1020 = vmatprep.subr.bf16.mxu0 0
      %1021 = vmatpush1.bf16.msra.mxu0 0
      %1022 = vmatprep.subr.bf16.mxu0 0
      %1023 = vmatpush1.bf16.msra.mxu0 0
      %1024 = vmatprep.subr.bf16.mxu0 0
      %1025 = vmatpush1.bf16.msra.mxu0 0
      %1026 = vmatprep.mubr.bf16.mxu0 0
      %1027 = vmatmul.mubr.bf16.gmra.mrb[0].mxu0 %v977
      %v1028 = vpop.f32.mrb[0].mxu0
      %v1029 = vadd.f32 0.0, %v1028
      %v1030 = vpop.f32.mrb[0].mxu0
      %v1031 = vadd.f32 0.0, %v1030
      %v1032 = vpop.f32.mrb[0].mxu0
      %v1033 = vpop.f32.mrb[0].mxu0
      %1034 = vdwg.mxu0
      %1035 = vmatprep.subr.bf16.mxu0 %v969
      %1036 = vmatpush1.bf16.msra.mxu0 %v968
      %1037 = vmatprep.subr.bf16.mxu0 %v992
      %1038 = vmatpush1.bf16.msra.mxu0 %v989
      %1039 = vmatprep.subr.bf16.mxu0 0
      %1040 = vmatpush1.bf16.msra.mxu0 0
      %1041 = vmatprep.subr.bf16.mxu0 0
      %1042 = vmatpush1.bf16.msra.mxu0 0
      %1043 = vmatprep.subr.bf16.mxu0 0
      %1044 = vmatpush1.bf16.msra.mxu0 0
      %1045 = vmatprep.subr.bf16.mxu0 0
      %1046 = vmatpush1.bf16.msra.mxu0 0
      %1047 = vmatprep.subr.bf16.mxu0 0
      %1048 = vmatpush1.bf16.msra.mxu0 0
      %1049 = vmatprep.subr.bf16.mxu0 0
      %1050 = vmatpush1.bf16.msra.mxu0 0
      %1051 = vmatprep.subr.bf16.mxu0 0
      %1052 = vmatpush1.bf16.msra.mxu0 0
      %1053 = vmatprep.subr.bf16.mxu0 0
      %1054 = vmatpush1.bf16.msra.mxu0 0
      %1055 = vmatprep.subr.bf16.mxu0 0
      %1056 = vmatpush1.bf16.msra.mxu0 0
      %1057 = vmatprep.subr.bf16.mxu0 0
      %1058 = vmatpush1.bf16.msra.mxu0 0
      %1059 = vmatprep.subr.bf16.mxu0 0
      %1060 = vmatpush1.bf16.msra.mxu0 0
      %1061 = vmatprep.subr.bf16.mxu0 0
      %1062 = vmatpush1.bf16.msra.mxu0 0
      %1063 = vmatprep.subr.bf16.mxu0 0
      %1064 = vmatpush1.bf16.msra.mxu0 0
      %1065 = vmatprep.subr.bf16.mxu0 0
      %1066 = vmatpush1.bf16.msra.mxu0 0
      %1067 = vmatprep.mubr.bf16.mxu0 0
      %1068 = vmatmul.mubr.bf16.gmra.mrb[0].mxu0 %v977
      %v1069 = vpop.f32.mrb[0].mxu0
      %v1070 = vadd.f32 0.0, %v1069
      %v1071 = vpop.f32.mrb[0].mxu0
      %v1072 = vadd.f32 0.0, %v1071
      %v1073 = vpop.f32.mrb[0].mxu0
      %v1074 = vpop.f32.mrb[0].mxu0
      %1075 = vdwg.mxu0
      %v1076 = vmax.f32 %v1029, 0.0
      %v1077 = vmax.f32 %v1031, 0.0
      %v1078 = vmax.f32 %v1070, 0.0
      %v1079 = vmax.f32 %v1072, 0.0
      %1082 = vrot.lane.b32.xlu0 %v1078, 16
      %v1083 = vpop.permute.xlu0 %1082
      %1084 = vrot.lane.b32.xlu0 %v1079, 16
      %v1085 = vpop.permute.xlu0 %1084
      %v1086 = vsel %vm557, %v1083, %v1085
      %1091 = vrot.lane.b32.xlu0 %v1076, 16
      %v1092 = vpop.permute.xlu0 %1091
      %1093 = vrot.lane.b32.xlu0 %v1077, 16
      %v1094 = vpop.permute.xlu0 %1093
      %v1095 = vsel %vm557, %v1092, %v1094
      %v1096 = vsel %vm557, %v1094, %v1083
      %v1100 = vsel %vm557, %v1085, %v1092
      %s1101 = scalar_lea.vmem %s1, 33
      %v1102 = vld [vmem:[%s1101] ss:$8 sm:$0xf]
      %v1104 = vlaneseq
      %v1105 = vshrl.u32 %v1104, 7
      %v1106 = vsub.s32 0, %v1105
      %v1107 = vrot.slane %v1102, %v1106
      %v1108 = vlaneseq
      %v1109 = vshrl.u32 %v1108, 7
      %v1110 = vsub.s32 1, %v1109
      %v1111 = vrot.slane %v1102, %v1110
      %v1112 = vlaneseq
      %v1113 = vshrl.u32 %v1112, 7
      %v1114 = vsub.s32 2, %v1113
      %v1115 = vrot.slane %v1102, %v1114
      %v1116 = vlaneseq
      %v1117 = vshrl.u32 %v1116, 7
      %v1118 = vsub.s32 3, %v1117
      %v1119 = vrot.slane %v1102, %v1118
      %v1124 = vmul.f32 %v1086, %v1107
      %v1125 = vmul.f32 %v1100, %v1111
      %v1126 = vmul.f32 %v1095, %v1115
      %v1127 = vmul.f32 %v1096, %v1119
      %s1128 = scalar_lea.vmem %s1, 34
      %v1129 = vld [vmem:[%s1128] ss:$8 sm:$0xf]
      %v1131 = vlaneseq
      %v1132 = vshrl.u32 %v1131, 7
      %v1133 = vsub.s32 0, %v1132
      %v1134 = vrot.slane %v1129, %v1133
      %v1135 = vlaneseq
      %v1136 = vshrl.u32 %v1135, 7
      %v1137 = vsub.s32 1, %v1136
      %v1138 = vrot.slane %v1129, %v1137
      %v1139 = vlaneseq
      %v1140 = vshrl.u32 %v1139, 7
      %v1141 = vsub.s32 2, %v1140
      %v1142 = vrot.slane %v1129, %v1141
      %v1143 = vlaneseq
      %v1144 = vshrl.u32 %v1143, 7
      %v1145 = vsub.s32 3, %v1144
      %v1146 = vrot.slane %v1129, %v1145
      %v1151 = vmul.f32 %v1079, %v1134
      %v1152 = vmul.f32 %v1076, %v1138
      %v1153 = vmul.f32 %v1077, %v1142
      %v1154 = vmul.f32 %v1078, %v1146
      %1155 = vrot.lane.b32.xlu0 %v1079, 112
      %v1156 = vpop.permute.xlu0 %1155
      %1158 = vrot.lane.b32.xlu0 %v1076, 112
      %v1159 = vpop.permute.xlu0 %1158
      %1160 = vrot.lane.b32.xlu0 %v1077, 112
      %v1161 = vpop.permute.xlu0 %1160
      %1162 = vrot.lane.b32.xlu0 %v1078, 112
      %v1163 = vpop.permute.xlu0 %1162
      %v1164 = vsel %vm781, %v1159, %v1161
      %v1165 = vsel %vm781, %v1161, %v1163
      %v1166 = vsel %vm781, %v1163, %v1156
      %v1171 = vsel %vm781, %v1156, %v1159
      %s1172 = scalar_lea.vmem %s1, 35
      %v1173 = vld [vmem:[%s1172] ss:$8 sm:$0xf]
      %v1175 = vlaneseq
      %v1176 = vshrl.u32 %v1175, 7
      %v1177 = vsub.s32 0, %v1176
      %v1178 = vrot.slane %v1173, %v1177
      %v1179 = vlaneseq
      %v1180 = vshrl.u32 %v1179, 7
      %v1181 = vsub.s32 1, %v1180
      %v1182 = vrot.slane %v1173, %v1181
      %v1183 = vlaneseq
      %v1184 = vshrl.u32 %v1183, 7
      %v1185 = vsub.s32 2, %v1184
      %v1186 = vrot.slane %v1173, %v1185
      %v1187 = vlaneseq
      %v1188 = vshrl.u32 %v1187, 7
      %v1189 = vsub.s32 3, %v1188
      %v1190 = vrot.slane %v1173, %v1189
      %v1195 = vmul.f32 %v1171, %v1178
      %v1196 = vmul.f32 %v1164, %v1182
      %v1197 = vmul.f32 %v1165, %v1186
      %v1198 = vmul.f32 %v1166, %v1190
      %s1199 = scalar_lea.vmem %s1, 36
      %v1200 = vld [vmem:[%s1199] ss:$8 sm:$0xf]
      %v1202 = vlaneseq
      %v1203 = vshrl.u32 %v1202, 7
      %v1204 = vsub.s32 0, %v1203
      %v1205 = vrot.slane %v1200, %v1204
      %v1206 = vlaneseq
      %v1207 = vshrl.u32 %v1206, 7
      %v1208 = vsub.s32 1, %v1207
      %v1209 = vrot.slane %v1200, %v1208
      %v1210 = vlaneseq
      %v1211 = vshrl.u32 %v1210, 7
      %v1212 = vsub.s32 2, %v1211
      %v1213 = vrot.slane %v1200, %v1212
      %v1214 = vlaneseq
      %v1215 = vshrl.u32 %v1214, 7
      %v1216 = vsub.s32 3, %v1215
      %v1217 = vrot.slane %v1200, %v1216
      %v1222 = vmul.f32 %v1100, %v1205
      %v1223 = vmul.f32 %v1095, %v1209
      %v1224 = vmul.f32 %v1096, %v1213
      %v1225 = vmul.f32 %v1086, %v1217
      %s1226 = scalar_lea.vmem %s1, 38
      %v1227 = vld [vmem:[%s1226] ss:$8 sm:$0xf]
      %v1229 = vlaneseq
      %v1230 = vshrl.u32 %v1229, 7
      %v1231 = vsub.s32 0, %v1230
      %v1232 = vrot.slane %v1227, %v1231
      %v1233 = vlaneseq
      %v1234 = vshrl.u32 %v1233, 7
      %v1235 = vsub.s32 1, %v1234
      %v1236 = vrot.slane %v1227, %v1235
      %v1237 = vlaneseq
      %v1238 = vshrl.u32 %v1237, 7
      %v1239 = vsub.s32 2, %v1238
      %v1240 = vrot.slane %v1227, %v1239
      %v1241 = vlaneseq
      %v1242 = vshrl.u32 %v1241, 7
      %v1243 = vsub.s32 3, %v1242
      %v1244 = vrot.slane %v1227, %v1243
      %v1249 = vmul.f32 %v1164, %v1232
      %v1250 = vmul.f32 %v1165, %v1236
      %v1251 = vmul.f32 %v1166, %v1240
      %v1252 = vmul.f32 %v1171, %v1244
      %s1253 = scalar_lea.vmem %s1, 39
      %v1254 = vld [vmem:[%s1253] ss:$8 sm:$0xf]
      %v1256 = vlaneseq
      %v1257 = vshrl.u32 %v1256, 7
      %v1258 = vsub.s32 0, %v1257
      %v1259 = vrot.slane %v1254, %v1258
      %v1260 = vlaneseq
      %v1261 = vshrl.u32 %v1260, 7
      %v1262 = vsub.s32 1, %v1261
      %v1263 = vrot.slane %v1254, %v1262
      %v1264 = vlaneseq
      %v1265 = vshrl.u32 %v1264, 7
      %v1266 = vsub.s32 2, %v1265
      %v1267 = vrot.slane %v1254, %v1266
      %v1268 = vlaneseq
      %v1269 = vshrl.u32 %v1268, 7
      %v1270 = vsub.s32 3, %v1269
      %v1271 = vrot.slane %v1254, %v1270
      %v1276 = vmul.f32 %v1095, %v1259
      %v1277 = vmul.f32 %v1096, %v1263
      %v1278 = vmul.f32 %v1086, %v1267
      %v1279 = vmul.f32 %v1100, %v1271
      %s1280 = scalar_lea.vmem %s1, 64
      %v1281 = vld [vmem:[%s1280] ss:$8 sm:$0xf]
      %v1283 = vlaneseq
      %v1284 = vshrl.u32 %v1283, 7
      %v1285 = vsub.s32 0, %v1284
      %v1286 = vrot.slane %v1281, %v1285
      %v1287 = vlaneseq
      %v1288 = vshrl.u32 %v1287, 7
      %v1289 = vsub.s32 1, %v1288
      %v1290 = vrot.slane %v1281, %v1289
      %v1291 = vlaneseq
      %v1292 = vshrl.u32 %v1291, 7
      %v1293 = vsub.s32 2, %v1292
      %v1294 = vrot.slane %v1281, %v1293
      %v1295 = vlaneseq
      %v1296 = vshrl.u32 %v1295, 7
      %v1297 = vsub.s32 3, %v1296
      %v1298 = vrot.slane %v1281, %v1297
      %v1303 = vmul.f32 %v1077, %v1286
      %v1304 = vmul.f32 %v1078, %v1290
      %v1305 = vmul.f32 %v1079, %v1294
      %v1306 = vmul.f32 %v1076, %v1298
      %s1307 = scalar_lea.vmem %s1, 65
      %v1308 = vld [vmem:[%s1307] ss:$8 sm:$0xf]
      %v1310 = vlaneseq
      %v1311 = vshrl.u32 %v1310, 7
      %v1312 = vsub.s32 0, %v1311
      %v1313 = vrot.slane %v1308, %v1312
      %v1314 = vlaneseq
      %v1315 = vshrl.u32 %v1314, 7
      %v1316 = vsub.s32 1, %v1315
      %v1317 = vrot.slane %v1308, %v1316
      %v1318 = vlaneseq
      %v1319 = vshrl.u32 %v1318, 7
      %v1320 = vsub.s32 2, %v1319
      %v1321 = vrot.slane %v1308, %v1320
      %v1322 = vlaneseq
      %v1323 = vshrl.u32 %v1322, 7
      %v1324 = vsub.s32 3, %v1323
      %v1325 = vrot.slane %v1308, %v1324
      %v1330 = vmul.f32 %v1165, %v1313
      %v1331 = vmul.f32 %v1166, %v1317
      %v1332 = vmul.f32 %v1171, %v1321
      %v1333 = vmul.f32 %v1164, %v1325
      %v1338 = vrot.slane %v1151, 6
      %v1339 = vrot.slane %v1152, 6
      %v1340 = vrot.slane %v1153, 6
      %v1341 = vrot.slane %v1154, 6
      %v1350 = vrot.slane %v1195, 4
      %v1351 = vrot.slane %v1196, 4
      %v1352 = vrot.slane %v1197, 4
      %v1353 = vrot.slane %v1198, 4
      %v1362 = vrot.slane %v1222, 2
      %v1363 = vrot.slane %v1223, 2
      %v1364 = vrot.slane %v1224, 2
      %v1365 = vrot.slane %v1225, 2
      %v1374 = vrot.slane %v1249, 6
      %v1375 = vrot.slane %v1250, 6
      %v1376 = vrot.slane %v1251, 6
      %v1377 = vrot.slane %v1252, 6
      %v1386 = vrot.slane %v1276, 4
      %v1387 = vrot.slane %v1277, 4
      %v1388 = vrot.slane %v1278, 4
      %v1389 = vrot.slane %v1279, 4
      %v1398 = vrot.slane %v1303, 2
      %v1399 = vrot.slane %v1304, 2
      %v1400 = vrot.slane %v1305, 2
      %v1401 = vrot.slane %v1306, 2
      %v1406 = vsel %vm935, %v1124, %v1338
      %v1407 = vsel %vm935, %v1125, %v1339
      %v1408 = vsel %vm935, %v1126, %v1340
      %v1409 = vsel %vm935, %v1127, %v1341
      %v1410 = vsel %vm940, %v1406, %v1350
      %v1411 = vsel %vm940, %v1407, %v1351
      %v1412 = vsel %vm940, %v1408, %v1352
      %v1413 = vsel %vm940, %v1409, %v1353
      %v1414 = vsel %vm945, %v1410, %v1362
      %v1415 = vsel %vm945, %v1411, %v1363
      %v1416 = vsel %vm945, %v1412, %v1364
      %v1417 = vsel %vm945, %v1413, %v1365
      %v1418 = vsel %vm935, %v1076, %v1374
      %v1419 = vsel %vm935, %v1077, %v1375
      %v1420 = vsel %vm935, %v1078, %v1376
      %v1421 = vsel %vm935, %v1079, %v1377
      %v1422 = vsel %vm940, %v1418, %v1386
      %v1423 = vsel %vm940, %v1419, %v1387
      %v1424 = vsel %vm940, %v1420, %v1388
      %v1425 = vsel %vm940, %v1421, %v1389
      %v1426 = vsel %vm945, %v1422, %v1398
      %v1427 = vsel %vm945, %v1423, %v1399
      %v1428 = vsel %vm945, %v1424, %v1400
      %v1429 = vsel %vm945, %v1425, %v1401
      %v1430 = vsel %vm935, %v1330, 1.0
      %v1431 = vsel %vm935, %v1331, 1.0
      %v1432 = vsel %vm935, %v1332, 1.0
      %v1433 = vsel %vm935, %v1333, 1.0
      %v1434 = vpack.c.bf16 %v1426, %v1414
      %v1435 = vpack.c.bf16 %v1427, %v1415
      %v1436 = vpack.c.bf16 %v1428, %v1416
      %v1437 = vpack.c.bf16 %v1429, %v1417
      %v1438 = vpack.c.bf16 %v1430, %v1430
      %v1439 = vpack.c.bf16 %v1431, %v1431
      %v1440 = vpack.c.bf16 %v1432, %v1432
      %v1441 = vpack.c.bf16 %v1433, %v1433
      %v1442 = vld [vmem:[%s3] sm:$0x1]
      %v1444 = vsel %vm975, %v1442, 0
      %v1447 = vand.u32 %v1438, %v981
      %v1450 = vand.u32 %v1439, %v981
      %v1453 = vand.u32 %v1440, %v981
      %v1456 = vand.u32 %v1441, %v981
      %1458 = vmatprep.subr.bf16.mxu0 %v1435
      %1459 = vmatpush1.bf16.msra.mxu0 %v1434
      %1460 = vmatprep.subr.bf16.mxu0 %v1450
      %1461 = vmatpush1.bf16.msra.mxu0 %v1447
      %1462 = vmatprep.subr.bf16.mxu0 0
      %1463 = vmatpush1.bf16.msra.mxu0 0
      %1464 = vmatprep.subr.bf16.mxu0 0
      %1465 = vmatpush1.bf16.msra.mxu0 0
      %1466 = vmatprep.subr.bf16.mxu0 0
      %1467 = vmatpush1.bf16.msra.mxu0 0
      %1468 = vmatprep.subr.bf16.mxu0 0
      %1469 = vmatpush1.bf16.msra.mxu0 0
      %1470 = vmatprep.subr.bf16.mxu0 0
      %1471 = vmatpush1.bf16.msra.mxu0 0
      %1472 = vmatprep.subr.bf16.mxu0 0
      %1473 = vmatpush1.bf16.msra.mxu0 0
      %1474 = vmatprep.subr.bf16.mxu0 0
      %1475 = vmatpush1.bf16.msra.mxu0 0
      %1476 = vmatprep.subr.bf16.mxu0 0
      %1477 = vmatpush1.bf16.msra.mxu0 0
      %1478 = vmatprep.subr.bf16.mxu0 0
      %1479 = vmatpush1.bf16.msra.mxu0 0
      %1480 = vmatprep.subr.bf16.mxu0 0
      %1481 = vmatpush1.bf16.msra.mxu0 0
      %1482 = vmatprep.subr.bf16.mxu0 0
      %1483 = vmatpush1.bf16.msra.mxu0 0
      %1484 = vmatprep.subr.bf16.mxu0 0
      %1485 = vmatpush1.bf16.msra.mxu0 0
      %1486 = vmatprep.subr.bf16.mxu0 0
      %1487 = vmatpush1.bf16.msra.mxu0 0
      %1488 = vmatprep.subr.bf16.mxu0 0
      %1489 = vmatpush1.bf16.msra.mxu0 0
      %1490 = vmatprep.mubr.bf16.mxu0 0
      %1491 = vmatmul.mubr.bf16.gmra.mrb[0].mxu0 %v1444
      %v1492 = vpop.f32.mrb[0].mxu0
      %v1493 = vadd.f32 0.0, %v1492
      %v1494 = vpop.f32.mrb[0].mxu0
      %v1495 = vadd.f32 0.0, %v1494
      %v1496 = vpop.f32.mrb[0].mxu0
      %v1497 = vpop.f32.mrb[0].mxu0
      %1498 = vdwg.mxu0
      %1499 = vmatprep.subr.bf16.mxu0 %v1437
      %1500 = vmatpush1.bf16.msra.mxu0 %v1436
      %1501 = vmatprep.subr.bf16.mxu0 %v1456
      %1502 = vmatpush1.bf16.msra.mxu0 %v1453
      %1503 = vmatprep.subr.bf16.mxu0 0
      %1504 = vmatpush1.bf16.msra.mxu0 0
      %1505 = vmatprep.subr.bf16.mxu0 0
      %1506 = vmatpush1.bf16.msra.mxu0 0
      %1507 = vmatprep.subr.bf16.mxu0 0
      %1508 = vmatpush1.bf16.msra.mxu0 0
      %1509 = vmatprep.subr.bf16.mxu0 0
      %1510 = vmatpush1.bf16.msra.mxu0 0
      %1511 = vmatprep.subr.bf16.mxu0 0
      %1512 = vmatpush1.bf16.msra.mxu0 0
      %1513 = vmatprep.subr.bf16.mxu0 0
      %1514 = vmatpush1.bf16.msra.mxu0 0
      %1515 = vmatprep.subr.bf16.mxu0 0
      %1516 = vmatpush1.bf16.msra.mxu0 0
      %1517 = vmatprep.subr.bf16.mxu0 0
      %1518 = vmatpush1.bf16.msra.mxu0 0
      %1519 = vmatprep.subr.bf16.mxu0 0
      %1520 = vmatpush1.bf16.msra.mxu0 0
      %1521 = vmatprep.subr.bf16.mxu0 0
      %1522 = vmatpush1.bf16.msra.mxu0 0
      %1523 = vmatprep.subr.bf16.mxu0 0
      %1524 = vmatpush1.bf16.msra.mxu0 0
      %1525 = vmatprep.subr.bf16.mxu0 0
      %1526 = vmatpush1.bf16.msra.mxu0 0
      %1527 = vmatprep.subr.bf16.mxu0 0
      %1528 = vmatpush1.bf16.msra.mxu0 0
      %1529 = vmatprep.subr.bf16.mxu0 0
      %1530 = vmatpush1.bf16.msra.mxu0 0
      %1531 = vmatprep.mubr.bf16.mxu0 0
      %1532 = vmatmul.mubr.bf16.gmra.mrb[0].mxu0 %v1444
      %v1533 = vpop.f32.mrb[0].mxu0
      %v1534 = vadd.f32 0.0, %v1533
      %v1535 = vpop.f32.mrb[0].mxu0
      %v1536 = vadd.f32 0.0, %v1535
      %v1537 = vpop.f32.mrb[0].mxu0
      %v1538 = vpop.f32.mrb[0].mxu0
      %1539 = vdwg.mxu0
      %v1540 = vmax.f32 %v1493, 0.0
      %v1541 = vmax.f32 %v1495, 0.0
      %v1542 = vmax.f32 %v1534, 0.0
      %v1543 = vmax.f32 %v1536, 0.0
      %1546 = vrot.lane.b32.xlu0 %v1542, 17
      %v1547 = vpop.permute.xlu0 %1546
      %1548 = vrot.lane.b32.xlu0 %v1543, 17
      %v1549 = vpop.permute.xlu0 %1548
      %v1550 = vsel %vm513, %v1547, %v1549
      %1555 = vrot.lane.b32.xlu0 %v1540, 17
      %v1556 = vpop.permute.xlu0 %1555
      %1557 = vrot.lane.b32.xlu0 %v1541, 17
      %v1558 = vpop.permute.xlu0 %1557
      %v1559 = vsel %vm513, %v1556, %v1558
      %v1560 = vsel %vm513, %v1558, %v1547
      %v1564 = vsel %vm513, %v1549, %v1556
      %s1565 = scalar_lea.vmem %s1, 66
      %v1566 = vld [vmem:[%s1565] ss:$8 sm:$0xf]
      %v1568 = vlaneseq
      %v1569 = vshrl.u32 %v1568, 7
      %v1570 = vsub.s32 0, %v1569
      %v1571 = vrot.slane %v1566, %v1570
      %v1572 = vlaneseq
      %v1573 = vshrl.u32 %v1572, 7
      %v1574 = vsub.s32 1, %v1573
      %v1575 = vrot.slane %v1566, %v1574
      %v1576 = vlaneseq
      %v1577 = vshrl.u32 %v1576, 7
      %v1578 = vsub.s32 2, %v1577
      %v1579 = vrot.slane %v1566, %v1578
      %v1580 = vlaneseq
      %v1581 = vshrl.u32 %v1580, 7
      %v1582 = vsub.s32 3, %v1581
      %v1583 = vrot.slane %v1566, %v1582
      %v1588 = vmul.f32 %v1550, %v1571
      %v1589 = vmul.f32 %v1564, %v1575
      %v1590 = vmul.f32 %v1559, %v1579
      %v1591 = vmul.f32 %v1560, %v1583
      %1592 = vrot.lane.b32.xlu0 %v1542, 16
      %v1593 = vpop.permute.xlu0 %1592
      %1594 = vrot.lane.b32.xlu0 %v1543, 16
      %v1595 = vpop.permute.xlu0 %1594
      %v1596 = vsel %vm557, %v1593, %v1595
      %1599 = vrot.lane.b32.xlu0 %v1540, 16
      %v1600 = vpop.permute.xlu0 %1599
      %1601 = vrot.lane.b32.xlu0 %v1541, 16
      %v1602 = vpop.permute.xlu0 %1601
      %v1603 = vsel %vm557, %v1600, %v1602
      %v1604 = vsel %vm557, %v1602, %v1593
      %v1608 = vsel %vm557, %v1595, %v1600
      %s1609 = scalar_lea.vmem %s1, 67
      %v1610 = vld [vmem:[%s1609] ss:$8 sm:$0xf]
      %v1612 = vlaneseq
      %v1613 = vshrl.u32 %v1612, 7
      %v1614 = vsub.s32 0, %v1613
      %v1615 = vrot.slane %v1610, %v1614
      %v1616 = vlaneseq
      %v1617 = vshrl.u32 %v1616, 7
      %v1618 = vsub.s32 1, %v1617
      %v1619 = vrot.slane %v1610, %v1618
      %v1620 = vlaneseq
      %v1621 = vshrl.u32 %v1620, 7
      %v1622 = vsub.s32 2, %v1621
      %v1623 = vrot.slane %v1610, %v1622
      %v1624 = vlaneseq
      %v1625 = vshrl.u32 %v1624, 7
      %v1626 = vsub.s32 3, %v1625
      %v1627 = vrot.slane %v1610, %v1626
      %v1632 = vmul.f32 %v1596, %v1615
      %v1633 = vmul.f32 %v1608, %v1619
      %v1634 = vmul.f32 %v1603, %v1623
      %v1635 = vmul.f32 %v1604, %v1627
      %1636 = vrot.lane.b32.xlu0 %v1542, 15
      %v1637 = vpop.permute.xlu0 %1636
      %1638 = vrot.lane.b32.xlu0 %v1543, 15
      %v1639 = vpop.permute.xlu0 %1638
      %v1640 = vsel %vm602, %v1637, %v1639
      %1643 = vrot.lane.b32.xlu0 %v1540, 15
      %v1644 = vpop.permute.xlu0 %1643
      %1645 = vrot.lane.b32.xlu0 %v1541, 15
      %v1646 = vpop.permute.xlu0 %1645
      %v1647 = vsel %vm602, %v1644, %v1646
      %v1648 = vsel %vm602, %v1646, %v1637
      %v1652 = vsel %vm602, %v1639, %v1644
      %s1653 = scalar_lea.vmem %s1, 68
      %v1654 = vld [vmem:[%s1653] ss:$8 sm:$0xf]
      %v1656 = vlaneseq
      %v1657 = vshrl.u32 %v1656, 7
      %v1658 = vsub.s32 0, %v1657
      %v1659 = vrot.slane %v1654, %v1658
      %v1660 = vlaneseq
      %v1661 = vshrl.u32 %v1660, 7
      %v1662 = vsub.s32 1, %v1661
      %v1663 = vrot.slane %v1654, %v1662
      %v1664 = vlaneseq
      %v1665 = vshrl.u32 %v1664, 7
      %v1666 = vsub.s32 2, %v1665
      %v1667 = vrot.slane %v1654, %v1666
      %v1668 = vlaneseq
      %v1669 = vshrl.u32 %v1668, 7
      %v1670 = vsub.s32 3, %v1669
      %v1671 = vrot.slane %v1654, %v1670
      %v1676 = vmul.f32 %v1640, %v1659
      %v1677 = vmul.f32 %v1652, %v1663
      %v1678 = vmul.f32 %v1647, %v1667
      %v1679 = vmul.f32 %v1648, %v1671
      %1680 = vrot.lane.b32.xlu0 %v1542, 1
      %v1681 = vpop.permute.xlu0 %1680
      %1682 = vrot.lane.b32.xlu0 %v1543, 1
      %v1683 = vpop.permute.xlu0 %1682
      %v1684 = vsel %vm647, %v1681, %v1683
      %1687 = vrot.lane.b32.xlu0 %v1540, 1
      %v1688 = vpop.permute.xlu0 %1687
      %1689 = vrot.lane.b32.xlu0 %v1541, 1
      %v1690 = vpop.permute.xlu0 %1689
      %v1691 = vsel %vm647, %v1688, %v1690
      %v1692 = vsel %vm647, %v1690, %v1681
      %v1696 = vsel %vm647, %v1683, %v1688
      %s1697 = scalar_lea.vmem %s1, 69
      %v1698 = vld [vmem:[%s1697] ss:$8 sm:$0xf]
      %v1700 = vlaneseq
      %v1701 = vshrl.u32 %v1700, 7
      %v1702 = vsub.s32 0, %v1701
      %v1703 = vrot.slane %v1698, %v1702
      %v1704 = vlaneseq
      %v1705 = vshrl.u32 %v1704, 7
      %v1706 = vsub.s32 1, %v1705
      %v1707 = vrot.slane %v1698, %v1706
      %v1708 = vlaneseq
      %v1709 = vshrl.u32 %v1708, 7
      %v1710 = vsub.s32 2, %v1709
      %v1711 = vrot.slane %v1698, %v1710
      %v1712 = vlaneseq
      %v1713 = vshrl.u32 %v1712, 7
      %v1714 = vsub.s32 3, %v1713
      %v1715 = vrot.slane %v1698, %v1714
      %v1720 = vmul.f32 %v1684, %v1703
      %v1721 = vmul.f32 %v1696, %v1707
      %v1722 = vmul.f32 %v1691, %v1711
      %v1723 = vmul.f32 %v1692, %v1715
      %s1724 = scalar_lea.vmem %s1, 70
      %v1725 = vld [vmem:[%s1724] ss:$8 sm:$0xf]
      %v1727 = vlaneseq
      %v1728 = vshrl.u32 %v1727, 7
      %v1729 = vsub.s32 0, %v1728
      %v1730 = vrot.slane %v1725, %v1729
      %v1731 = vlaneseq
      %v1732 = vshrl.u32 %v1731, 7
      %v1733 = vsub.s32 1, %v1732
      %v1734 = vrot.slane %v1725, %v1733
      %v1735 = vlaneseq
      %v1736 = vshrl.u32 %v1735, 7
      %v1737 = vsub.s32 2, %v1736
      %v1738 = vrot.slane %v1725, %v1737
      %v1739 = vlaneseq
      %v1740 = vshrl.u32 %v1739, 7
      %v1741 = vsub.s32 3, %v1740
      %v1742 = vrot.slane %v1725, %v1741
      %v1747 = vmul.f32 %v1543, %v1730
      %v1748 = vmul.f32 %v1540, %v1734
      %v1749 = vmul.f32 %v1541, %v1738
      %v1750 = vmul.f32 %v1542, %v1742
      %1751 = vrot.lane.b32.xlu0 %v1543, 127
      %v1752 = vpop.permute.xlu0 %1751
      %1754 = vrot.lane.b32.xlu0 %v1540, 127
      %v1755 = vpop.permute.xlu0 %1754
      %1756 = vrot.lane.b32.xlu0 %v1541, 127
      %v1757 = vpop.permute.xlu0 %1756
      %1758 = vrot.lane.b32.xlu0 %v1542, 127
      %v1759 = vpop.permute.xlu0 %1758
      %v1760 = vsel %vm691, %v1755, %v1757
      %v1761 = vsel %vm691, %v1757, %v1759
      %v1762 = vsel %vm691, %v1759, %v1752
      %v1767 = vsel %vm691, %v1752, %v1755
      %s1768 = scalar_lea.vmem %s1, 71
      %v1769 = vld [vmem:[%s1768] ss:$8 sm:$0xf]
      %v1771 = vlaneseq
      %v1772 = vshrl.u32 %v1771, 7
      %v1773 = vsub.s32 0, %v1772
      %v1774 = vrot.slane %v1769, %v1773
      %v1775 = vlaneseq
      %v1776 = vshrl.u32 %v1775, 7
      %v1777 = vsub.s32 1, %v1776
      %v1778 = vrot.slane %v1769, %v1777
      %v1779 = vlaneseq
      %v1780 = vshrl.u32 %v1779, 7
      %v1781 = vsub.s32 2, %v1780
      %v1782 = vrot.slane %v1769, %v1781
      %v1783 = vlaneseq
      %v1784 = vshrl.u32 %v1783, 7
      %v1785 = vsub.s32 3, %v1784
      %v1786 = vrot.slane %v1769, %v1785
      %v1791 = vmul.f32 %v1767, %v1774
      %v1792 = vmul.f32 %v1760, %v1778
      %v1793 = vmul.f32 %v1761, %v1782
      %v1794 = vmul.f32 %v1762, %v1786
      %1795 = vrot.lane.b32.xlu0 %v1543, 113
      %v1796 = vpop.permute.xlu0 %1795
      %1798 = vrot.lane.b32.xlu0 %v1540, 113
      %v1799 = vpop.permute.xlu0 %1798
      %1800 = vrot.lane.b32.xlu0 %v1541, 113
      %v1801 = vpop.permute.xlu0 %1800
      %1802 = vrot.lane.b32.xlu0 %v1542, 113
      %v1803 = vpop.permute.xlu0 %1802
      %v1804 = vsel %vm736, %v1799, %v1801
      %v1805 = vsel %vm736, %v1801, %v1803
      %v1806 = vsel %vm736, %v1803, %v1796
      %v1811 = vsel %vm736, %v1796, %v1799
      %s1812 = scalar_lea.vmem %s1, 96
      %v1813 = vld [vmem:[%s1812] ss:$8 sm:$0xf]
      %v1815 = vlaneseq
      %v1816 = vshrl.u32 %v1815, 7
      %v1817 = vsub.s32 0, %v1816
      %v1818 = vrot.slane %v1813, %v1817
      %v1819 = vlaneseq
      %v1820 = vshrl.u32 %v1819, 7
      %v1821 = vsub.s32 1, %v1820
      %v1822 = vrot.slane %v1813, %v1821
      %v1823 = vlaneseq
      %v1824 = vshrl.u32 %v1823, 7
      %v1825 = vsub.s32 2, %v1824
      %v1826 = vrot.slane %v1813, %v1825
      %v1827 = vlaneseq
      %v1828 = vshrl.u32 %v1827, 7
      %v1829 = vsub.s32 3, %v1828
      %v1830 = vrot.slane %v1813, %v1829
      %v1835 = vmul.f32 %v1811, %v1818
      %v1836 = vmul.f32 %v1804, %v1822
      %v1837 = vmul.f32 %v1805, %v1826
      %v1838 = vmul.f32 %v1806, %v1830
      %1839 = vrot.lane.b32.xlu0 %v1543, 112
      %v1840 = vpop.permute.xlu0 %1839
      %1842 = vrot.lane.b32.xlu0 %v1540, 112
      %v1843 = vpop.permute.xlu0 %1842
      %1844 = vrot.lane.b32.xlu0 %v1541, 112
      %v1845 = vpop.permute.xlu0 %1844
      %1846 = vrot.lane.b32.xlu0 %v1542, 112
      %v1847 = vpop.permute.xlu0 %1846
      %v1848 = vsel %vm781, %v1843, %v1845
      %v1849 = vsel %vm781, %v1845, %v1847
      %v1850 = vsel %vm781, %v1847, %v1840
      %v1855 = vsel %vm781, %v1840, %v1843
      %s1856 = scalar_lea.vmem %s1, 97
      %v1857 = vld [vmem:[%s1856] ss:$8 sm:$0xf]
      %v1859 = vlaneseq
      %v1860 = vshrl.u32 %v1859, 7
      %v1861 = vsub.s32 0, %v1860
      %v1862 = vrot.slane %v1857, %v1861
      %v1863 = vlaneseq
      %v1864 = vshrl.u32 %v1863, 7
      %v1865 = vsub.s32 1, %v1864
      %v1866 = vrot.slane %v1857, %v1865
      %v1867 = vlaneseq
      %v1868 = vshrl.u32 %v1867, 7
      %v1869 = vsub.s32 2, %v1868
      %v1870 = vrot.slane %v1857, %v1869
      %v1871 = vlaneseq
      %v1872 = vshrl.u32 %v1871, 7
      %v1873 = vsub.s32 3, %v1872
      %v1874 = vrot.slane %v1857, %v1873
      %v1879 = vmul.f32 %v1855, %v1862
      %v1880 = vmul.f32 %v1848, %v1866
      %v1881 = vmul.f32 %v1849, %v1870
      %v1882 = vmul.f32 %v1850, %v1874
      %1883 = vrot.lane.b32.xlu0 %v1543, 111
      %v1884 = vpop.permute.xlu0 %1883
      %1886 = vrot.lane.b32.xlu0 %v1540, 111
      %v1887 = vpop.permute.xlu0 %1886
      %1888 = vrot.lane.b32.xlu0 %v1541, 111
      %v1889 = vpop.permute.xlu0 %1888
      %1890 = vrot.lane.b32.xlu0 %v1542, 111
      %v1891 = vpop.permute.xlu0 %1890
      %v1892 = vsel %vm826, %v1887, %v1889
      %v1893 = vsel %vm826, %v1889, %v1891
      %v1894 = vsel %vm826, %v1891, %v1884
      %v1899 = vsel %vm826, %v1884, %v1887
      %s1900 = scalar_lea.vmem %s1, 98
      %v1901 = vld [vmem:[%s1900] ss:$8 sm:$0xf]
      %v1903 = vlaneseq
      %v1904 = vshrl.u32 %v1903, 7
      %v1905 = vsub.s32 0, %v1904
      %v1906 = vrot.slane %v1901, %v1905
      %v1907 = vlaneseq
      %v1908 = vshrl.u32 %v1907, 7
      %v1909 = vsub.s32 1, %v1908
      %v1910 = vrot.slane %v1901, %v1909
      %v1911 = vlaneseq
      %v1912 = vshrl.u32 %v1911, 7
      %v1913 = vsub.s32 2, %v1912
      %v1914 = vrot.slane %v1901, %v1913
      %v1915 = vlaneseq
      %v1916 = vshrl.u32 %v1915, 7
      %v1917 = vsub.s32 3, %v1916
      %v1918 = vrot.slane %v1901, %v1917
      %v1923 = vmul.f32 %v1899, %v1906
      %v1924 = vmul.f32 %v1892, %v1910
      %v1925 = vmul.f32 %v1893, %v1914
      %v1926 = vmul.f32 %v1894, %v1918
      %s1927 = scalar_lea.vmem %s1, 99
      %v1928 = vld [vmem:[%s1927] ss:$8 sm:$0xf]
      %v1930 = vlaneseq
      %v1931 = vshrl.u32 %v1930, 7
      %v1932 = vsub.s32 0, %v1931
      %v1933 = vrot.slane %v1928, %v1932
      %v1934 = vlaneseq
      %v1935 = vshrl.u32 %v1934, 7
      %v1936 = vsub.s32 1, %v1935
      %v1937 = vrot.slane %v1928, %v1936
      %v1938 = vlaneseq
      %v1939 = vshrl.u32 %v1938, 7
      %v1940 = vsub.s32 2, %v1939
      %v1941 = vrot.slane %v1928, %v1940
      %v1942 = vlaneseq
      %v1943 = vshrl.u32 %v1942, 7
      %v1944 = vsub.s32 3, %v1943
      %v1945 = vrot.slane %v1928, %v1944
      %v1950 = vmul.f32 %v1564, %v1933
      %v1951 = vmul.f32 %v1559, %v1937
      %v1952 = vmul.f32 %v1560, %v1941
      %v1953 = vmul.f32 %v1550, %v1945
      %s1954 = scalar_lea.vmem %s1, 100
      %v1955 = vld [vmem:[%s1954] ss:$8 sm:$0xf]
      %v1957 = vlaneseq
      %v1958 = vshrl.u32 %v1957, 7
      %v1959 = vsub.s32 0, %v1958
      %v1960 = vrot.slane %v1955, %v1959
      %v1961 = vlaneseq
      %v1962 = vshrl.u32 %v1961, 7
      %v1963 = vsub.s32 1, %v1962
      %v1964 = vrot.slane %v1955, %v1963
      %v1965 = vlaneseq
      %v1966 = vshrl.u32 %v1965, 7
      %v1967 = vsub.s32 2, %v1966
      %v1968 = vrot.slane %v1955, %v1967
      %v1969 = vlaneseq
      %v1970 = vshrl.u32 %v1969, 7
      %v1971 = vsub.s32 3, %v1970
      %v1972 = vrot.slane %v1955, %v1971
      %v1977 = vmul.f32 %v1608, %v1960
      %v1978 = vmul.f32 %v1603, %v1964
      %v1979 = vmul.f32 %v1604, %v1968
      %v1980 = vmul.f32 %v1596, %v1972
      %s1981 = scalar_lea.vmem %s1, 101
      %v1982 = vld [vmem:[%s1981] ss:$8 sm:$0xf]
      %v1984 = vlaneseq
      %v1985 = vshrl.u32 %v1984, 7
      %v1986 = vsub.s32 0, %v1985
      %v1987 = vrot.slane %v1982, %v1986
      %v1988 = vlaneseq
      %v1989 = vshrl.u32 %v1988, 7
      %v1990 = vsub.s32 1, %v1989
      %v1991 = vrot.slane %v1982, %v1990
      %v1992 = vlaneseq
      %v1993 = vshrl.u32 %v1992, 7
      %v1994 = vsub.s32 2, %v1993
      %v1995 = vrot.slane %v1982, %v1994
      %v1996 = vlaneseq
      %v1997 = vshrl.u32 %v1996, 7
      %v1998 = vsub.s32 3, %v1997
      %v1999 = vrot.slane %v1982, %v1998
      %v2004 = vmul.f32 %v1652, %v1987
      %v2005 = vmul.f32 %v1647, %v1991
      %v2006 = vmul.f32 %v1648, %v1995
      %v2007 = vmul.f32 %v1640, %v1999
      %s2008 = scalar_lea.vmem %s1, 102
      %v2009 = vld [vmem:[%s2008] ss:$8 sm:$0xf]
      %v2011 = vlaneseq
      %v2012 = vshrl.u32 %v2011, 7
      %v2013 = vsub.s32 0, %v2012
      %v2014 = vrot.slane %v2009, %v2013
      %v2015 = vlaneseq
      %v2016 = vshrl.u32 %v2015, 7
      %v2017 = vsub.s32 1, %v2016
      %v2018 = vrot.slane %v2009, %v2017
      %v2019 = vlaneseq
      %v2020 = vshrl.u32 %v2019, 7
      %v2021 = vsub.s32 2, %v2020
      %v2022 = vrot.slane %v2009, %v2021
      %v2023 = vlaneseq
      %v2024 = vshrl.u32 %v2023, 7
      %v2025 = vsub.s32 3, %v2024
      %v2026 = vrot.slane %v2009, %v2025
      %v2031 = vmul.f32 %v1696, %v2014
      %v2032 = vmul.f32 %v1691, %v2018
      %v2033 = vmul.f32 %v1692, %v2022
      %v2034 = vmul.f32 %v1684, %v2026
      %s2035 = scalar_lea.vmem %s1, 128
      %v2036 = vld [vmem:[%s2035] ss:$8 sm:$0xf]
      %v2038 = vlaneseq
      %v2039 = vshrl.u32 %v2038, 7
      %v2040 = vsub.s32 0, %v2039
      %v2041 = vrot.slane %v2036, %v2040
      %v2042 = vlaneseq
      %v2043 = vshrl.u32 %v2042, 7
      %v2044 = vsub.s32 1, %v2043
      %v2045 = vrot.slane %v2036, %v2044
      %v2046 = vlaneseq
      %v2047 = vshrl.u32 %v2046, 7
      %v2048 = vsub.s32 2, %v2047
      %v2049 = vrot.slane %v2036, %v2048
      %v2050 = vlaneseq
      %v2051 = vshrl.u32 %v2050, 7
      %v2052 = vsub.s32 3, %v2051
      %v2053 = vrot.slane %v2036, %v2052
      %v2058 = vmul.f32 %v1760, %v2041
      %v2059 = vmul.f32 %v1761, %v2045
      %v2060 = vmul.f32 %v1762, %v2049
      %v2061 = vmul.f32 %v1767, %v2053
      %s2062 = scalar_lea.vmem %s1, 129
      %v2063 = vld [vmem:[%s2062] ss:$8 sm:$0xf]
      %v2065 = vlaneseq
      %v2066 = vshrl.u32 %v2065, 7
      %v2067 = vsub.s32 0, %v2066
      %v2068 = vrot.slane %v2063, %v2067
      %v2069 = vlaneseq
      %v2070 = vshrl.u32 %v2069, 7
      %v2071 = vsub.s32 1, %v2070
      %v2072 = vrot.slane %v2063, %v2071
      %v2073 = vlaneseq
      %v2074 = vshrl.u32 %v2073, 7
      %v2075 = vsub.s32 2, %v2074
      %v2076 = vrot.slane %v2063, %v2075
      %v2077 = vlaneseq
      %v2078 = vshrl.u32 %v2077, 7
      %v2079 = vsub.s32 3, %v2078
      %v2080 = vrot.slane %v2063, %v2079
      %v2085 = vmul.f32 %v1804, %v2068
      %v2086 = vmul.f32 %v1805, %v2072
      %v2087 = vmul.f32 %v1806, %v2076
      %v2088 = vmul.f32 %v1811, %v2080
      %s2089 = scalar_lea.vmem %s1, 130
      %v2090 = vld [vmem:[%s2089] ss:$8 sm:$0xf]
      %v2092 = vlaneseq
      %v2093 = vshrl.u32 %v2092, 7
      %v2094 = vsub.s32 0, %v2093
      %v2095 = vrot.slane %v2090, %v2094
      %v2096 = vlaneseq
      %v2097 = vshrl.u32 %v2096, 7
      %v2098 = vsub.s32 1, %v2097
      %v2099 = vrot.slane %v2090, %v2098
      %v2100 = vlaneseq
      %v2101 = vshrl.u32 %v2100, 7
      %v2102 = vsub.s32 2, %v2101
      %v2103 = vrot.slane %v2090, %v2102
      %v2104 = vlaneseq
      %v2105 = vshrl.u32 %v2104, 7
      %v2106 = vsub.s32 3, %v2105
      %v2107 = vrot.slane %v2090, %v2106
      %v2112 = vmul.f32 %v1848, %v2095
      %v2113 = vmul.f32 %v1849, %v2099
      %v2114 = vmul.f32 %v1850, %v2103
      %v2115 = vmul.f32 %v1855, %v2107
      %s2116 = scalar_lea.vmem %s1, 131
      %v2117 = vld [vmem:[%s2116] ss:$8 sm:$0xf]
      %v2119 = vlaneseq
      %v2120 = vshrl.u32 %v2119, 7
      %v2121 = vsub.s32 0, %v2120
      %v2122 = vrot.slane %v2117, %v2121
      %v2123 = vlaneseq
      %v2124 = vshrl.u32 %v2123, 7
      %v2125 = vsub.s32 1, %v2124
      %v2126 = vrot.slane %v2117, %v2125
      %v2127 = vlaneseq
      %v2128 = vshrl.u32 %v2127, 7
      %v2129 = vsub.s32 2, %v2128
      %v2130 = vrot.slane %v2117, %v2129
      %v2131 = vlaneseq
      %v2132 = vshrl.u32 %v2131, 7
      %v2133 = vsub.s32 3, %v2132
      %v2134 = vrot.slane %v2117, %v2133
      %v2139 = vmul.f32 %v1892, %v2122
      %v2140 = vmul.f32 %v1893, %v2126
      %v2141 = vmul.f32 %v1894, %v2130
      %v2142 = vmul.f32 %v1899, %v2134
      %s2143 = scalar_lea.vmem %s1, 132
      %v2144 = vld [vmem:[%s2143] ss:$8 sm:$0xf]
      %v2146 = vlaneseq
      %v2147 = vshrl.u32 %v2146, 7
      %v2148 = vsub.s32 0, %v2147
      %v2149 = vrot.slane %v2144, %v2148
      %v2150 = vlaneseq
      %v2151 = vshrl.u32 %v2150, 7
      %v2152 = vsub.s32 1, %v2151
      %v2153 = vrot.slane %v2144, %v2152
      %v2154 = vlaneseq
      %v2155 = vshrl.u32 %v2154, 7
      %v2156 = vsub.s32 2, %v2155
      %v2157 = vrot.slane %v2144, %v2156
      %v2158 = vlaneseq
      %v2159 = vshrl.u32 %v2158, 7
      %v2160 = vsub.s32 3, %v2159
      %v2161 = vrot.slane %v2144, %v2160
      %v2166 = vmul.f32 %v1559, %v2149
      %v2167 = vmul.f32 %v1560, %v2153
      %v2168 = vmul.f32 %v1550, %v2157
      %v2169 = vmul.f32 %v1564, %v2161
      %s2170 = scalar_lea.vmem %s1, 133
      %v2171 = vld [vmem:[%s2170] ss:$8 sm:$0xf]
      %v2173 = vlaneseq
      %v2174 = vshrl.u32 %v2173, 7
      %v2175 = vsub.s32 0, %v2174
      %v2176 = vrot.slane %v2171, %v2175
      %v2177 = vlaneseq
      %v2178 = vshrl.u32 %v2177, 7
      %v2179 = vsub.s32 1, %v2178
      %v2180 = vrot.slane %v2171, %v2179
      %v2181 = vlaneseq
      %v2182 = vshrl.u32 %v2181, 7
      %v2183 = vsub.s32 2, %v2182
      %v2184 = vrot.slane %v2171, %v2183
      %v2185 = vlaneseq
      %v2186 = vshrl.u32 %v2185, 7
      %v2187 = vsub.s32 3, %v2186
      %v2188 = vrot.slane %v2171, %v2187
      %v2193 = vmul.f32 %v1603, %v2176
      %v2194 = vmul.f32 %v1604, %v2180
      %v2195 = vmul.f32 %v1596, %v2184
      %v2196 = vmul.f32 %v1608, %v2188
      %s2197 = scalar_lea.vmem %s1, 134
      %v2198 = vld [vmem:[%s2197] ss:$8 sm:$0xf]
      %v2200 = vlaneseq
      %v2201 = vshrl.u32 %v2200, 7
      %v2202 = vsub.s32 0, %v2201
      %v2203 = vrot.slane %v2198, %v2202
      %v2204 = vlaneseq
      %v2205 = vshrl.u32 %v2204, 7
      %v2206 = vsub.s32 1, %v2205
      %v2207 = vrot.slane %v2198, %v2206
      %v2208 = vlaneseq
      %v2209 = vshrl.u32 %v2208, 7
      %v2210 = vsub.s32 2, %v2209
      %v2211 = vrot.slane %v2198, %v2210
      %v2212 = vlaneseq
      %v2213 = vshrl.u32 %v2212, 7
      %v2214 = vsub.s32 3, %v2213
      %v2215 = vrot.slane %v2198, %v2214
      %v2220 = vmul.f32 %v1647, %v2203
      %v2221 = vmul.f32 %v1648, %v2207
      %v2222 = vmul.f32 %v1640, %v2211
      %v2223 = vmul.f32 %v1652, %v2215
      %s2224 = scalar_lea.vmem %s1, 135
      %v2225 = vld [vmem:[%s2224] ss:$8 sm:$0xf]
      %v2227 = vlaneseq
      %v2228 = vshrl.u32 %v2227, 7
      %v2229 = vsub.s32 0, %v2228
      %v2230 = vrot.slane %v2225, %v2229
      %v2231 = vlaneseq
      %v2232 = vshrl.u32 %v2231, 7
      %v2233 = vsub.s32 1, %v2232
      %v2234 = vrot.slane %v2225, %v2233
      %v2235 = vlaneseq
      %v2236 = vshrl.u32 %v2235, 7
      %v2237 = vsub.s32 2, %v2236
      %v2238 = vrot.slane %v2225, %v2237
      %v2239 = vlaneseq
      %v2240 = vshrl.u32 %v2239, 7
      %v2241 = vsub.s32 3, %v2240
      %v2242 = vrot.slane %v2225, %v2241
      %v2247 = vmul.f32 %v1691, %v2230
      %v2248 = vmul.f32 %v1692, %v2234
      %v2249 = vmul.f32 %v1684, %v2238
      %v2250 = vmul.f32 %v1696, %v2242
      %s2251 = scalar_lea.vmem %s1, 160
      %v2252 = vld [vmem:[%s2251] ss:$8 sm:$0xf]
      %v2254 = vlaneseq
      %v2255 = vshrl.u32 %v2254, 7
      %v2256 = vsub.s32 0, %v2255
      %v2257 = vrot.slane %v2252, %v2256
      %v2258 = vlaneseq
      %v2259 = vshrl.u32 %v2258, 7
      %v2260 = vsub.s32 1, %v2259
      %v2261 = vrot.slane %v2252, %v2260
      %v2262 = vlaneseq
      %v2263 = vshrl.u32 %v2262, 7
      %v2264 = vsub.s32 2, %v2263
      %v2265 = vrot.slane %v2252, %v2264
      %v2266 = vlaneseq
      %v2267 = vshrl.u32 %v2266, 7
      %v2268 = vsub.s32 3, %v2267
      %v2269 = vrot.slane %v2252, %v2268
      %v2274 = vmul.f32 %v1541, %v2257
      %v2275 = vmul.f32 %v1542, %v2261
      %v2276 = vmul.f32 %v1543, %v2265
      %v2277 = vmul.f32 %v1540, %v2269
      %s2278 = scalar_lea.vmem %s1, 161
      %v2279 = vld [vmem:[%s2278] ss:$8 sm:$0xf]
      %v2281 = vlaneseq
      %v2282 = vshrl.u32 %v2281, 7
      %v2283 = vsub.s32 0, %v2282
      %v2284 = vrot.slane %v2279, %v2283
      %v2285 = vlaneseq
      %v2286 = vshrl.u32 %v2285, 7
      %v2287 = vsub.s32 1, %v2286
      %v2288 = vrot.slane %v2279, %v2287
      %v2289 = vlaneseq
      %v2290 = vshrl.u32 %v2289, 7
      %v2291 = vsub.s32 2, %v2290
      %v2292 = vrot.slane %v2279, %v2291
      %v2293 = vlaneseq
      %v2294 = vshrl.u32 %v2293, 7
      %v2295 = vsub.s32 3, %v2294
      %v2296 = vrot.slane %v2279, %v2295
      %v2301 = vmul.f32 %v1761, %v2284
      %v2302 = vmul.f32 %v1762, %v2288
      %v2303 = vmul.f32 %v1767, %v2292
      %v2304 = vmul.f32 %v1760, %v2296
      %s2305 = scalar_lea.vmem %s1, 162
      %v2306 = vld [vmem:[%s2305] ss:$8 sm:$0xf]
      %v2308 = vlaneseq
      %v2309 = vshrl.u32 %v2308, 7
      %v2310 = vsub.s32 0, %v2309
      %v2311 = vrot.slane %v2306, %v2310
      %v2312 = vlaneseq
      %v2313 = vshrl.u32 %v2312, 7
      %v2314 = vsub.s32 1, %v2313
      %v2315 = vrot.slane %v2306, %v2314
      %v2316 = vlaneseq
      %v2317 = vshrl.u32 %v2316, 7
      %v2318 = vsub.s32 2, %v2317
      %v2319 = vrot.slane %v2306, %v2318
      %v2320 = vlaneseq
      %v2321 = vshrl.u32 %v2320, 7
      %v2322 = vsub.s32 3, %v2321
      %v2323 = vrot.slane %v2306, %v2322
      %v2328 = vmul.f32 %v1805, %v2311
      %v2329 = vmul.f32 %v1806, %v2315
      %v2330 = vmul.f32 %v1811, %v2319
      %v2331 = vmul.f32 %v1804, %v2323
      %s2332 = scalar_lea.vmem %s1, 163
      %v2333 = vld [vmem:[%s2332] ss:$8 sm:$0xf]
      %v2335 = vlaneseq
      %v2336 = vshrl.u32 %v2335, 7
      %v2337 = vsub.s32 0, %v2336
      %v2338 = vrot.slane %v2333, %v2337
      %v2339 = vlaneseq
      %v2340 = vshrl.u32 %v2339, 7
      %v2341 = vsub.s32 1, %v2340
      %v2342 = vrot.slane %v2333, %v2341
      %v2343 = vlaneseq
      %v2344 = vshrl.u32 %v2343, 7
      %v2345 = vsub.s32 2, %v2344
      %v2346 = vrot.slane %v2333, %v2345
      %v2347 = vlaneseq
      %v2348 = vshrl.u32 %v2347, 7
      %v2349 = vsub.s32 3, %v2348
      %v2350 = vrot.slane %v2333, %v2349
      %v2355 = vmul.f32 %v1849, %v2338
      %v2356 = vmul.f32 %v1850, %v2342
      %v2357 = vmul.f32 %v1855, %v2346
      %v2358 = vmul.f32 %v1848, %v2350
      %s2359 = scalar_lea.vmem %s1, 164
      %v2360 = vld [vmem:[%s2359] ss:$8 sm:$0xf]
      %v2362 = vlaneseq
      %v2363 = vshrl.u32 %v2362, 7
      %v2364 = vsub.s32 0, %v2363
      %v2365 = vrot.slane %v2360, %v2364
      %v2366 = vlaneseq
      %v2367 = vshrl.u32 %v2366, 7
      %v2368 = vsub.s32 1, %v2367
      %v2369 = vrot.slane %v2360, %v2368
      %v2370 = vlaneseq
      %v2371 = vshrl.u32 %v2370, 7
      %v2372 = vsub.s32 2, %v2371
      %v2373 = vrot.slane %v2360, %v2372
      %v2374 = vlaneseq
      %v2375 = vshrl.u32 %v2374, 7
      %v2376 = vsub.s32 3, %v2375
      %v2377 = vrot.slane %v2360, %v2376
      %v2382 = vmul.f32 %v1893, %v2365
      %v2383 = vmul.f32 %v1894, %v2369
      %v2384 = vmul.f32 %v1899, %v2373
      %v2385 = vmul.f32 %v1892, %v2377
      %v2390 = vrot.slane %v1632, 6
      %v2391 = vrot.slane %v1633, 6
      %v2392 = vrot.slane %v1634, 6
      %v2393 = vrot.slane %v1635, 6
      %v2402 = vrot.slane %v1676, 4
      %v2403 = vrot.slane %v1677, 4
      %v2404 = vrot.slane %v1678, 4
      %v2405 = vrot.slane %v1679, 4
      %v2414 = vrot.slane %v1720, 2
      %v2415 = vrot.slane %v1721, 2
      %v2416 = vrot.slane %v1722, 2
      %v2417 = vrot.slane %v1723, 2
      %v2426 = vrot.slane %v1791, 6
      %v2427 = vrot.slane %v1792, 6
      %v2428 = vrot.slane %v1793, 6
      %v2429 = vrot.slane %v1794, 6
      %v2438 = vrot.slane %v1835, 4
      %v2439 = vrot.slane %v1836, 4
      %v2440 = vrot.slane %v1837, 4
      %v2441 = vrot.slane %v1838, 4
      %v2450 = vrot.slane %v1879, 2
      %v2451 = vrot.slane %v1880, 2
      %v2452 = vrot.slane %v1881, 2
      %v2453 = vrot.slane %v1882, 2
      %v2462 = vrot.slane %v1950, 6
      %v2463 = vrot.slane %v1951, 6
      %v2464 = vrot.slane %v1952, 6
      %v2465 = vrot.slane %v1953, 6
      %v2474 = vrot.slane %v1977, 4
      %v2475 = vrot.slane %v1978, 4
      %v2476 = vrot.slane %v1979, 4
      %v2477 = vrot.slane %v1980, 4
      %v2486 = vrot.slane %v2004, 2
      %v2487 = vrot.slane %v2005, 2
      %v2488 = vrot.slane %v2006, 2
      %v2489 = vrot.slane %v2007, 2
      %v2494 = vrot.slane %v1540, 6
      %v2495 = vrot.slane %v1541, 6
      %v2496 = vrot.slane %v1542, 6
      %v2497 = vrot.slane %v1543, 6
      %v2506 = vrot.slane %v2058, 4
      %v2507 = vrot.slane %v2059, 4
      %v2508 = vrot.slane %v2060, 4
      %v2509 = vrot.slane %v2061, 4
      %v2518 = vrot.slane %v2085, 2
      %v2519 = vrot.slane %v2086, 2
      %v2520 = vrot.slane %v2087, 2
      %v2521 = vrot.slane %v2088, 2
      %v2526 = vsel %vm935, %v1588, %v2390
      %v2527 = vsel %vm935, %v1589, %v2391
      %v2528 = vsel %vm935, %v1590, %v2392
      %v2529 = vsel %vm935, %v1591, %v2393
      %v2530 = vsel %vm940, %v2526, %v2402
      %v2531 = vsel %vm940, %v2527, %v2403
      %v2532 = vsel %vm940, %v2528, %v2404
      %v2533 = vsel %vm940, %v2529, %v2405
      %v2534 = vsel %vm945, %v2530, %v2414
      %v2535 = vsel %vm945, %v2531, %v2415
      %v2536 = vsel %vm945, %v2532, %v2416
      %v2537 = vsel %vm945, %v2533, %v2417
      %v2538 = vsel %vm935, %v1747, %v2426
      %v2539 = vsel %vm935, %v1748, %v2427
      %v2540 = vsel %vm935, %v1749, %v2428
      %v2541 = vsel %vm935, %v1750, %v2429
      %v2542 = vsel %vm940, %v2538, %v2438
      %v2543 = vsel %vm940, %v2539, %v2439
      %v2544 = vsel %vm940, %v2540, %v2440
      %v2545 = vsel %vm940, %v2541, %v2441
      %v2546 = vsel %vm945, %v2542, %v2450
      %v2547 = vsel %vm945, %v2543, %v2451
      %v2548 = vsel %vm945, %v2544, %v2452
      %v2549 = vsel %vm945, %v2545, %v2453
      %v2550 = vsel %vm935, %v1923, %v2462
      %v2551 = vsel %vm935, %v1924, %v2463
      %v2552 = vsel %vm935, %v1925, %v2464
      %v2553 = vsel %vm935, %v1926, %v2465
      %v2554 = vsel %vm940, %v2550, %v2474
      %v2555 = vsel %vm940, %v2551, %v2475
      %v2556 = vsel %vm940, %v2552, %v2476
      %v2557 = vsel %vm940, %v2553, %v2477
      %v2558 = vsel %vm945, %v2554, %v2486
      %v2559 = vsel %vm945, %v2555, %v2487
      %v2560 = vsel %vm945, %v2556, %v2488
      %v2561 = vsel %vm945, %v2557, %v2489
      %v2562 = vsel %vm935, %v2031, %v2494
      %v2563 = vsel %vm935, %v2032, %v2495
      %v2564 = vsel %vm935, %v2033, %v2496
      %v2565 = vsel %vm935, %v2034, %v2497
      %v2566 = vsel %vm940, %v2562, %v2506
      %v2567 = vsel %vm940, %v2563, %v2507
      %v2568 = vsel %vm940, %v2564, %v2508
      %v2569 = vsel %vm940, %v2565, %v2509
      %v2570 = vsel %vm945, %v2566, %v2518
      %v2571 = vsel %vm945, %v2567, %v2519
      %v2572 = vsel %vm945, %v2568, %v2520
      %v2573 = vsel %vm945, %v2569, %v2521
      %v2578 = vrot.slane %v2139, 6
      %v2579 = vrot.slane %v2140, 6
      %v2580 = vrot.slane %v2141, 6
      %v2581 = vrot.slane %v2142, 6
      %v2590 = vrot.slane %v2166, 4
      %v2591 = vrot.slane %v2167, 4
      %v2592 = vrot.slane %v2168, 4
      %v2593 = vrot.slane %v2169, 4
      %v2602 = vrot.slane %v2193, 2
      %v2603 = vrot.slane %v2194, 2
      %v2604 = vrot.slane %v2195, 2
      %v2605 = vrot.slane %v2196, 2
      %v2614 = vrot.slane %v2247, 6
      %v2615 = vrot.slane %v2248, 6
      %v2616 = vrot.slane %v2249, 6
      %v2617 = vrot.slane %v2250, 6
      %v2626 = vrot.slane %v2274, 4
      %v2627 = vrot.slane %v2275, 4
      %v2628 = vrot.slane %v2276, 4
      %v2629 = vrot.slane %v2277, 4
      %v2638 = vrot.slane %v2301, 2
      %v2639 = vrot.slane %v2302, 2
      %v2640 = vrot.slane %v2303, 2
      %v2641 = vrot.slane %v2304, 2
      %v2650 = vrot.slane %v2355, 6
      %v2651 = vrot.slane %v2356, 6
      %v2652 = vrot.slane %v2357, 6
      %v2653 = vrot.slane %v2358, 6
      %v2662 = vrot.slane %v2382, 4
      %v2663 = vrot.slane %v2383, 4
      %v2664 = vrot.slane %v2384, 4
      %v2665 = vrot.slane %v2385, 4
      %v2670 = vsel %vm935, %v2112, %v2578
      %v2671 = vsel %vm935, %v2113, %v2579
      %v2672 = vsel %vm935, %v2114, %v2580
      %v2673 = vsel %vm935, %v2115, %v2581
      %v2674 = vsel %vm940, %v2670, %v2590
      %v2675 = vsel %vm940, %v2671, %v2591
      %v2676 = vsel %vm940, %v2672, %v2592
      %v2677 = vsel %vm940, %v2673, %v2593
      %v2678 = vsel %vm945, %v2674, %v2602
      %v2679 = vsel %vm945, %v2675, %v2603
      %v2680 = vsel %vm945, %v2676, %v2604
      %v2681 = vsel %vm945, %v2677, %v2605
      %v2682 = vsel %vm935, %v2220, %v2614
      %v2683 = vsel %vm935, %v2221, %v2615
      %v2684 = vsel %vm935, %v2222, %v2616
      %v2685 = vsel %vm935, %v2223, %v2617
      %v2686 = vsel %vm940, %v2682, %v2626
      %v2687 = vsel %vm940, %v2683, %v2627
      %v2688 = vsel %vm940, %v2684, %v2628
      %v2689 = vsel %vm940, %v2685, %v2629
      %v2690 = vsel %vm945, %v2686, %v2638
      %v2691 = vsel %vm945, %v2687, %v2639
      %v2692 = vsel %vm945, %v2688, %v2640
      %v2693 = vsel %vm945, %v2689, %v2641
      %v2694 = vsel %vm935, %v2328, %v2650
      %v2695 = vsel %vm935, %v2329, %v2651
      %v2696 = vsel %vm935, %v2330, %v2652
      %v2697 = vsel %vm935, %v2331, %v2653
      %v2698 = vsel %vm940, %v2694, %v2662
      %v2699 = vsel %vm940, %v2695, %v2663
      %v2700 = vsel %vm940, %v2696, %v2664
      %v2701 = vsel %vm940, %v2697, %v2665
      %v2702 = vsel %vm945, %v2698, 1.0
      %v2703 = vsel %vm945, %v2699, 1.0
      %v2704 = vsel %vm945, %v2700, 1.0
      %v2705 = vsel %vm945, %v2701, 1.0
      %v2706 = vpack.c.bf16 %v2546, %v2534
      %v2707 = vpack.c.bf16 %v2547, %v2535
      %v2708 = vpack.c.bf16 %v2548, %v2536
      %v2709 = vpack.c.bf16 %v2549, %v2537
      %v2710 = vpack.c.bf16 %v2570, %v2558
      %v2711 = vpack.c.bf16 %v2571, %v2559
      %v2712 = vpack.c.bf16 %v2572, %v2560
      %v2713 = vpack.c.bf16 %v2573, %v2561
      %v2714 = vpack.c.bf16 %v2690, %v2678
      %v2715 = vpack.c.bf16 %v2691, %v2679
      %v2716 = vpack.c.bf16 %v2692, %v2680
      %v2717 = vpack.c.bf16 %v2693, %v2681
      %v2718 = vpack.c.bf16 %v2702, %v2702
      %v2719 = vpack.c.bf16 %v2703, %v2703
      %v2720 = vpack.c.bf16 %v2704, %v2704
      %v2721 = vpack.c.bf16 %v2705, %v2705
      %v2722 = vld [vmem:[%s4] sm:$0x1]
      %vm2723 = vcmask 449536
      %v2725 = vsel %vm2723, %v2722, 0
      %vm2727 = vcmask 1042432
      %v2728 = vsel %vm2727, 4294967295, 65535
      %v2729 = vsel %vm940, %v2728, 0
      %v2731 = vand.u32 %v2718, %v2729
      %v2734 = vand.u32 %v2719, %v2729
      %v2737 = vand.u32 %v2720, %v2729
      %v2740 = vand.u32 %v2721, %v2729
      %2742 = vmatprep.subr.bf16.mxu0 %v2707
      %2743 = vmatpush1.bf16.msra.mxu0 %v2706
      %2744 = vmatprep.subr.bf16.mxu0 %v2711
      %2745 = vmatpush1.bf16.msra.mxu0 %v2710
      %2746 = vmatprep.subr.bf16.mxu0 %v2715
      %2747 = vmatpush1.bf16.msra.mxu0 %v2714
      %2748 = vmatprep.subr.bf16.mxu0 %v2734
      %2749 = vmatpush1.bf16.msra.mxu0 %v2731
      %2750 = vmatprep.subr.bf16.mxu0 0
      %2751 = vmatpush1.bf16.msra.mxu0 0
      %2752 = vmatprep.subr.bf16.mxu0 0
      %2753 = vmatpush1.bf16.msra.mxu0 0
      %2754 = vmatprep.subr.bf16.mxu0 0
      %2755 = vmatpush1.bf16.msra.mxu0 0
      %2756 = vmatprep.subr.bf16.mxu0 0
      %2757 = vmatpush1.bf16.msra.mxu0 0
      %2758 = vmatprep.subr.bf16.mxu0 0
      %2759 = vmatpush1.bf16.msra.mxu0 0
      %2760 = vmatprep.subr.bf16.mxu0 0
      %2761 = vmatpush1.bf16.msra.mxu0 0
      %2762 = vmatprep.subr.bf16.mxu0 0
      %2763 = vmatpush1.bf16.msra.mxu0 0
      %2764 = vmatprep.subr.bf16.mxu0 0
      %2765 = vmatpush1.bf16.msra.mxu0 0
      %2766 = vmatprep.subr.bf16.mxu0 0
      %2767 = vmatpush1.bf16.msra.mxu0 0
      %2768 = vmatprep.subr.bf16.mxu0 0
      %2769 = vmatpush1.bf16.msra.mxu0 0
      %2770 = vmatprep.subr.bf16.mxu0 0
      %2771 = vmatpush1.bf16.msra.mxu0 0
      %2772 = vmatprep.subr.bf16.mxu0 0
      %2773 = vmatpush1.bf16.msra.mxu0 0
      %2774 = vmatprep.mubr.bf16.mxu0 0
      %2775 = vmatmul.mubr.bf16.gmra.mrb[0].mxu0 %v2725
      %v2776 = vpop.f32.mrb[0].mxu0
      %v2777 = vadd.f32 0.0, %v2776
      %v2778 = vpop.f32.mrb[0].mxu0
      %v2779 = vadd.f32 0.0, %v2778
      %v2780 = vpop.f32.mrb[0].mxu0
      %v2781 = vpop.f32.mrb[0].mxu0
      %2782 = vdwg.mxu0
      %2783 = vmatprep.subr.bf16.mxu0 %v2709
      %2784 = vmatpush1.bf16.msra.mxu0 %v2708
      %2785 = vmatprep.subr.bf16.mxu0 %v2713
      %2786 = vmatpush1.bf16.msra.mxu0 %v2712
      %2787 = vmatprep.subr.bf16.mxu0 %v2717
      %2788 = vmatpush1.bf16.msra.mxu0 %v2716
      %2789 = vmatprep.subr.bf16.mxu0 %v2740
      %2790 = vmatpush1.bf16.msra.mxu0 %v2737
      %2791 = vmatprep.subr.bf16.mxu0 0
      %2792 = vmatpush1.bf16.msra.mxu0 0
      %2793 = vmatprep.subr.bf16.mxu0 0
      %2794 = vmatpush1.bf16.msra.mxu0 0
      %2795 = vmatprep.subr.bf16.mxu0 0
      %2796 = vmatpush1.bf16.msra.mxu0 0
      %2797 = vmatprep.subr.bf16.mxu0 0
      %2798 = vmatpush1.bf16.msra.mxu0 0
      %2799 = vmatprep.subr.bf16.mxu0 0
      %2800 = vmatpush1.bf16.msra.mxu0 0
      %2801 = vmatprep.subr.bf16.mxu0 0
      %2802 = vmatpush1.bf16.msra.mxu0 0
      %2803 = vmatprep.subr.bf16.mxu0 0
      %2804 = vmatpush1.bf16.msra.mxu0 0
      %2805 = vmatprep.subr.bf16.mxu0 0
      %2806 = vmatpush1.bf16.msra.mxu0 0
      %2807 = vmatprep.subr.bf16.mxu0 0
      %2808 = vmatpush1.bf16.msra.mxu0 0
      %2809 = vmatprep.subr.bf16.mxu0 0
      %2810 = vmatpush1.bf16.msra.mxu0 0
      %2811 = vmatprep.subr.bf16.mxu0 0
      %2812 = vmatpush1.bf16.msra.mxu0 0
      %2813 = vmatprep.subr.bf16.mxu0 0
      %2814 = vmatpush1.bf16.msra.mxu0 0
      %2815 = vmatprep.mubr.bf16.mxu0 0
      %2816 = vmatmul.mubr.bf16.gmra.mrb[0].mxu0 %v2725
      %v2817 = vpop.f32.mrb[0].mxu0
      %v2818 = vadd.f32 0.0, %v2817
      %v2819 = vpop.f32.mrb[0].mxu0
      %v2820 = vadd.f32 0.0, %v2819
      %v2821 = vpop.f32.mrb[0].mxu0
      %v2822 = vpop.f32.mrb[0].mxu0
      %2823 = vdwg.mxu0
      %v2824 = vmax.f32 %v2777, 0.0
      %v2825 = vmax.f32 %v2779, 0.0
      %v2826 = vmax.f32 %v2818, 0.0
      %v2827 = vmax.f32 %v2820, 0.0
      %v2828 = vadd.f32 %v2824, %v496
      %v2829 = vadd.f32 %v2825, %v497
      %v2830 = vadd.f32 %v2826, %v498
      %v2831 = vadd.f32 %v2827, %v499
      %s2832 = scalar_lea.vmem %s1, 165
      %v2833 = vld [vmem:[%s2832] ss:$8 sm:$0xf]
      %v2835 = vlaneseq
      %v2836 = vshrl.u32 %v2835, 7
      %v2837 = vsub.s32 0, %v2836
      %v2838 = vrot.slane %v2833, %v2837
      %v2839 = vlaneseq
      %v2840 = vshrl.u32 %v2839, 7
      %v2841 = vsub.s32 1, %v2840
      %v2842 = vrot.slane %v2833, %v2841
      %v2843 = vlaneseq
      %v2844 = vshrl.u32 %v2843, 7
      %v2845 = vsub.s32 2, %v2844
      %v2846 = vrot.slane %v2833, %v2845
      %v2847 = vlaneseq
      %v2848 = vshrl.u32 %v2847, 7
      %v2849 = vsub.s32 3, %v2848
      %v2850 = vrot.slane %v2833, %v2849
      %v2855 = vmul.f32 %v655, %v2838
      %v2856 = vmul.f32 %v648, %v2842
      %v2857 = vmul.f32 %v649, %v2846
      %v2858 = vmul.f32 %v650, %v2850
      %s2859 = scalar_lea.vmem %s1, 167
      %v2860 = vld [vmem:[%s2859] ss:$8 sm:$0xf]
      %v2862 = vlaneseq
      %v2863 = vshrl.u32 %v2862, 7
      %v2864 = vsub.s32 0, %v2863
      %v2865 = vrot.slane %v2860, %v2864
      %v2866 = vlaneseq
      %v2867 = vshrl.u32 %v2866, 7
      %v2868 = vsub.s32 1, %v2867
      %v2869 = vrot.slane %v2860, %v2868
      %v2870 = vlaneseq
      %v2871 = vshrl.u32 %v2870, 7
      %v2872 = vsub.s32 2, %v2871
      %v2873 = vrot.slane %v2860, %v2872
      %v2874 = vlaneseq
      %v2875 = vshrl.u32 %v2874, 7
      %v2876 = vsub.s32 3, %v2875
      %v2877 = vrot.slane %v2860, %v2876
      %v2882 = vmul.f32 %v692, %v2865
      %v2883 = vmul.f32 %v693, %v2869
      %v2884 = vmul.f32 %v694, %v2873
      %v2885 = vmul.f32 %v700, %v2877
      %v2890 = vrot.slane %v2855, 2
      %v2891 = vrot.slane %v2856, 2
      %v2892 = vrot.slane %v2857, 2
      %v2893 = vrot.slane %v2858, 2
      %v2902 = vrot.slane %v2882, 6
      %v2903 = vrot.slane %v2883, 6
      %v2904 = vrot.slane %v2884, 6
      %v2905 = vrot.slane %v2885, 6
      %v2910 = vsel %vm935, %v2890, %v496
      %v2911 = vsel %vm935, %v2891, %v497
      %v2912 = vsel %vm935, %v2892, %v498
      %v2913 = vsel %vm935, %v2893, %v499
      %v2914 = vsel %vm940, %v2910, %v2902
      %v2915 = vsel %vm940, %v2911, %v2903
      %v2916 = vsel %vm940, %v2912, %v2904
      %v2917 = vsel %vm940, %v2913, %v2905
      %v2918 = vsel %vm945, %v2914, 1.0
      %v2919 = vsel %vm945, %v2915, 1.0
      %v2920 = vsel %vm945, %v2916, 1.0
      %v2921 = vsel %vm945, %v2917, 1.0
      %v2922 = vpack.c.bf16 %v2918, %v2918
      %v2923 = vpack.c.bf16 %v2919, %v2919
      %v2924 = vpack.c.bf16 %v2920, %v2920
      %v2925 = vpack.c.bf16 %v2921, %v2921
      %v2926 = vld [vmem:[%s5] sm:$0x1]
      %vm2927 = vcmask 56320
      %v2929 = vsel %vm2927, %v2926, 0
      %v2932 = vand.u32 %v2922, %v2729
      %v2935 = vand.u32 %v2923, %v2729
      %v2938 = vand.u32 %v2924, %v2729
      %v2941 = vand.u32 %v2925, %v2729
      %2943 = vmatprep.subr.bf16.mxu0 %v2935
      %2944 = vmatpush1.bf16.msra.mxu0 %v2932
      %2945 = vmatprep.subr.bf16.mxu0 0
      %2946 = vmatpush1.bf16.msra.mxu0 0
      %2947 = vmatprep.subr.bf16.mxu0 0
      %2948 = vmatpush1.bf16.msra.mxu0 0
      %2949 = vmatprep.subr.bf16.mxu0 0
      %2950 = vmatpush1.bf16.msra.mxu0 0
      %2951 = vmatprep.subr.bf16.mxu0 0
      %2952 = vmatpush1.bf16.msra.mxu0 0
      %2953 = vmatprep.subr.bf16.mxu0 0
      %2954 = vmatpush1.bf16.msra.mxu0 0
      %2955 = vmatprep.subr.bf16.mxu0 0
      %2956 = vmatpush1.bf16.msra.mxu0 0
      %2957 = vmatprep.subr.bf16.mxu0 0
      %2958 = vmatpush1.bf16.msra.mxu0 0
      %2959 = vmatprep.subr.bf16.mxu0 0
      %2960 = vmatpush1.bf16.msra.mxu0 0
      %2961 = vmatprep.subr.bf16.mxu0 0
      %2962 = vmatpush1.bf16.msra.mxu0 0
      %2963 = vmatprep.subr.bf16.mxu0 0
      %2964 = vmatpush1.bf16.msra.mxu0 0
      %2965 = vmatprep.subr.bf16.mxu0 0
      %2966 = vmatpush1.bf16.msra.mxu0 0
      %2967 = vmatprep.subr.bf16.mxu0 0
      %2968 = vmatpush1.bf16.msra.mxu0 0
      %2969 = vmatprep.subr.bf16.mxu0 0
      %2970 = vmatpush1.bf16.msra.mxu0 0
      %2971 = vmatprep.subr.bf16.mxu0 0
      %2972 = vmatpush1.bf16.msra.mxu0 0
      %2973 = vmatprep.subr.bf16.mxu0 0
      %2974 = vmatpush1.bf16.msra.mxu0 0
      %2975 = vmatprep.mubr.bf16.mxu0 0
      %2976 = vmatmul.mubr.bf16.gmra.mrb[0].mxu0 %v2929
      %v2977 = vpop.f32.mrb[0].mxu0
      %v2978 = vadd.f32 0.0, %v2977
      %v2979 = vpop.f32.mrb[0].mxu0
      %v2980 = vadd.f32 0.0, %v2979
      %v2981 = vpop.f32.mrb[0].mxu0
      %v2982 = vpop.f32.mrb[0].mxu0
      %2983 = vdwg.mxu0
      %2984 = vmatprep.subr.bf16.mxu0 %v2941
      %2985 = vmatpush1.bf16.msra.mxu0 %v2938
      %2986 = vmatprep.subr.bf16.mxu0 0
      %2987 = vmatpush1.bf16.msra.mxu0 0
      %2988 = vmatprep.subr.bf16.mxu0 0
      %2989 = vmatpush1.bf16.msra.mxu0 0
      %2990 = vmatprep.subr.bf16.mxu0 0
      %2991 = vmatpush1.bf16.msra.mxu0 0
      %2992 = vmatprep.subr.bf16.mxu0 0
      %2993 = vmatpush1.bf16.msra.mxu0 0
      %2994 = vmatprep.subr.bf16.mxu0 0
      %2995 = vmatpush1.bf16.msra.mxu0 0
      %2996 = vmatprep.subr.bf16.mxu0 0
      %2997 = vmatpush1.bf16.msra.mxu0 0
      %2998 = vmatprep.subr.bf16.mxu0 0
      %2999 = vmatpush1.bf16.msra.mxu0 0
      %3000 = vmatprep.subr.bf16.mxu0 0
      %3001 = vmatpush1.bf16.msra.mxu0 0
      %3002 = vmatprep.subr.bf16.mxu0 0
      %3003 = vmatpush1.bf16.msra.mxu0 0
      %3004 = vmatprep.subr.bf16.mxu0 0
      %3005 = vmatpush1.bf16.msra.mxu0 0
      %3006 = vmatprep.subr.bf16.mxu0 0
      %3007 = vmatpush1.bf16.msra.mxu0 0
      %3008 = vmatprep.subr.bf16.mxu0 0
      %3009 = vmatpush1.bf16.msra.mxu0 0
      %3010 = vmatprep.subr.bf16.mxu0 0
      %3011 = vmatpush1.bf16.msra.mxu0 0
      %3012 = vmatprep.subr.bf16.mxu0 0
      %3013 = vmatpush1.bf16.msra.mxu0 0
      %3014 = vmatprep.subr.bf16.mxu0 0
      %3015 = vmatpush1.bf16.msra.mxu0 0
      %3016 = vmatprep.mubr.bf16.mxu0 0
      %3017 = vmatmul.mubr.bf16.gmra.mrb[0].mxu0 %v2929
      %v3018 = vpop.f32.mrb[0].mxu0
      %v3019 = vadd.f32 0.0, %v3018
      %v3020 = vpop.f32.mrb[0].mxu0
      %v3021 = vadd.f32 0.0, %v3020
      %v3022 = vpop.f32.mrb[0].mxu0
      %v3023 = vpop.f32.mrb[0].mxu0
      %3024 = vdwg.mxu0
      %v3025 = vmax.f32 %v2978, 0.0
      %v3026 = vmax.f32 %v2980, 0.0
      %v3027 = vmax.f32 %v3019, 0.0
      %v3028 = vmax.f32 %v3021, 0.0
      %3030 = vrot.lane.b32.xlu0 %v3028, 16
      %v3031 = vpop.permute.xlu0 %3030
      %3036 = vrot.lane.b32.xlu0 %v3025, 16
      %v3037 = vpop.permute.xlu0 %3036
      %3038 = vrot.lane.b32.xlu0 %v3026, 16
      %v3039 = vpop.permute.xlu0 %3038
      %3040 = vrot.lane.b32.xlu0 %v3027, 16
      %v3041 = vpop.permute.xlu0 %3040
      %v3042 = vsel %vm557, %v3037, %v3039
      %v3043 = vsel %vm557, %v3039, %v3041
      %v3044 = vsel %vm557, %v3041, %v3031
      %v3049 = vsel %vm557, %v3031, %v3037
      %s3050 = scalar_lea.vmem %s1, 192
      %v3051 = vld [vmem:[%s3050] ss:$8 sm:$0xf]
      %v3053 = vlaneseq
      %v3054 = vshrl.u32 %v3053, 7
      %v3055 = vsub.s32 0, %v3054
      %v3056 = vrot.slane %v3051, %v3055
      %v3057 = vlaneseq
      %v3058 = vshrl.u32 %v3057, 7
      %v3059 = vsub.s32 1, %v3058
      %v3060 = vrot.slane %v3051, %v3059
      %v3061 = vlaneseq
      %v3062 = vshrl.u32 %v3061, 7
      %v3063 = vsub.s32 2, %v3062
      %v3064 = vrot.slane %v3051, %v3063
      %v3065 = vlaneseq
      %v3066 = vshrl.u32 %v3065, 7
      %v3067 = vsub.s32 3, %v3066
      %v3068 = vrot.slane %v3051, %v3067
      %v3073 = vmul.f32 %v3049, %v3056
      %v3074 = vmul.f32 %v3042, %v3060
      %v3075 = vmul.f32 %v3043, %v3064
      %v3076 = vmul.f32 %v3044, %v3068
      %3077 = vrot.lane.b32.xlu0 %v3025, 112
      %v3078 = vpop.permute.xlu0 %3077
      %3079 = vrot.lane.b32.xlu0 %v3026, 112
      %v3080 = vpop.permute.xlu0 %3079
      %3081 = vrot.lane.b32.xlu0 %v3027, 112
      %v3082 = vpop.permute.xlu0 %3081
      %3083 = vrot.lane.b32.xlu0 %v3028, 112
      %v3084 = vpop.permute.xlu0 %3083
      %v3085 = vsel %vm781, %v3078, %v3080
      %v3086 = vsel %vm781, %v3080, %v3082
      %v3087 = vsel %vm781, %v3082, %v3084
      %v3093 = vsel %vm781, %v3084, %v3078
      %s3094 = scalar_lea.vmem %s1, 194
      %v3095 = vld [vmem:[%s3094] ss:$8 sm:$0xf]
      %v3097 = vlaneseq
      %v3098 = vshrl.u32 %v3097, 7
      %v3099 = vsub.s32 0, %v3098
      %v3100 = vrot.slane %v3095, %v3099
      %v3101 = vlaneseq
      %v3102 = vshrl.u32 %v3101, 7
      %v3103 = vsub.s32 1, %v3102
      %v3104 = vrot.slane %v3095, %v3103
      %v3105 = vlaneseq
      %v3106 = vshrl.u32 %v3105, 7
      %v3107 = vsub.s32 2, %v3106
      %v3108 = vrot.slane %v3095, %v3107
      %v3109 = vlaneseq
      %v3110 = vshrl.u32 %v3109, 7
      %v3111 = vsub.s32 3, %v3110
      %v3112 = vrot.slane %v3095, %v3111
      %v3117 = vmul.f32 %v3085, %v3100
      %v3118 = vmul.f32 %v3086, %v3104
      %v3119 = vmul.f32 %v3087, %v3108
      %v3120 = vmul.f32 %v3093, %v3112
      %v3121 = vrot.slane %v3025, 6
      %v3122 = vrot.slane %v3026, 6
      %v3123 = vrot.slane %v3027, 6
      %v3124 = vrot.slane %v3028, 6
      %v3133 = vrot.slane %v3117, 4
      %v3134 = vrot.slane %v3118, 4
      %v3135 = vrot.slane %v3119, 4
      %v3136 = vrot.slane %v3120, 4
      %v3141 = vsel %vm935, %v3073, %v3121
      %v3142 = vsel %vm935, %v3074, %v3122
      %v3143 = vsel %vm935, %v3075, %v3123
      %v3144 = vsel %vm935, %v3076, %v3124
      %v3145 = vsel %vm940, %v3141, %v3133
      %v3146 = vsel %vm940, %v3142, %v3134
      %v3147 = vsel %vm940, %v3143, %v3135
      %v3148 = vsel %vm940, %v3144, %v3136
      %v3149 = vsel %vm945, %v3145, 1.0
      %v3150 = vsel %vm945, %v3146, 1.0
      %v3151 = vsel %vm945, %v3147, 1.0
      %v3152 = vsel %vm945, %v3148, 1.0
      %v3153 = vpack.c.bf16 %v3149, %v3149
      %v3154 = vpack.c.bf16 %v3150, %v3150
      %v3155 = vpack.c.bf16 %v3151, %v3151
      %v3156 = vpack.c.bf16 %v3152, %v3152
      %v3157 = vld [vmem:[%s6] sm:$0x1]
      %v3159 = vsel %vm2927, %v3157, 0
      %v3162 = vand.u32 %v3153, %v2729
      %v3165 = vand.u32 %v3154, %v2729
      %v3168 = vand.u32 %v3155, %v2729
      %v3171 = vand.u32 %v3156, %v2729
      %3173 = vmatprep.subr.bf16.mxu0 %v3165
      %3174 = vmatpush1.bf16.msra.mxu0 %v3162
      %3175 = vmatprep.subr.bf16.mxu0 0
      %3176 = vmatpush1.bf16.msra.mxu0 0
      %3177 = vmatprep.subr.bf16.mxu0 0
      %3178 = vmatpush1.bf16.msra.mxu0 0
      %3179 = vmatprep.subr.bf16.mxu0 0
      %3180 = vmatpush1.bf16.msra.mxu0 0
      %3181 = vmatprep.subr.bf16.mxu0 0
      %3182 = vmatpush1.bf16.msra.mxu0 0
      %3183 = vmatprep.subr.bf16.mxu0 0
      %3184 = vmatpush1.bf16.msra.mxu0 0
      %3185 = vmatprep.subr.bf16.mxu0 0
      %3186 = vmatpush1.bf16.msra.mxu0 0
      %3187 = vmatprep.subr.bf16.mxu0 0
      %3188 = vmatpush1.bf16.msra.mxu0 0
      %3189 = vmatprep.subr.bf16.mxu0 0
      %3190 = vmatpush1.bf16.msra.mxu0 0
      %3191 = vmatprep.subr.bf16.mxu0 0
      %3192 = vmatpush1.bf16.msra.mxu0 0
      %3193 = vmatprep.subr.bf16.mxu0 0
      %3194 = vmatpush1.bf16.msra.mxu0 0
      %3195 = vmatprep.subr.bf16.mxu0 0
      %3196 = vmatpush1.bf16.msra.mxu0 0
      %3197 = vmatprep.subr.bf16.mxu0 0
      %3198 = vmatpush1.bf16.msra.mxu0 0
      %3199 = vmatprep.subr.bf16.mxu0 0
      %3200 = vmatpush1.bf16.msra.mxu0 0
      %3201 = vmatprep.subr.bf16.mxu0 0
      %3202 = vmatpush1.bf16.msra.mxu0 0
      %3203 = vmatprep.subr.bf16.mxu0 0
      %3204 = vmatpush1.bf16.msra.mxu0 0
      %3205 = vmatprep.mubr.bf16.mxu0 0
      %3206 = vmatmul.mubr.bf16.gmra.mrb[0].mxu0 %v3159
      %v3207 = vpop.f32.mrb[0].mxu0
      %v3208 = vadd.f32 0.0, %v3207
      %v3209 = vpop.f32.mrb[0].mxu0
      %v3210 = vadd.f32 0.0, %v3209
      %v3211 = vpop.f32.mrb[0].mxu0
      %v3212 = vpop.f32.mrb[0].mxu0
      %3213 = vdwg.mxu0
      %3214 = vmatprep.subr.bf16.mxu0 %v3171
      %3215 = vmatpush1.bf16.msra.mxu0 %v3168
      %3216 = vmatprep.subr.bf16.mxu0 0
      %3217 = vmatpush1.bf16.msra.mxu0 0
      %3218 = vmatprep.subr.bf16.mxu0 0
      %3219 = vmatpush1.bf16.msra.mxu0 0
      %3220 = vmatprep.subr.bf16.mxu0 0
      %3221 = vmatpush1.bf16.msra.mxu0 0
      %3222 = vmatprep.subr.bf16.mxu0 0
      %3223 = vmatpush1.bf16.msra.mxu0 0
      %3224 = vmatprep.subr.bf16.mxu0 0
      %3225 = vmatpush1.bf16.msra.mxu0 0
      %3226 = vmatprep.subr.bf16.mxu0 0
      %3227 = vmatpush1.bf16.msra.mxu0 0
      %3228 = vmatprep.subr.bf16.mxu0 0
      %3229 = vmatpush1.bf16.msra.mxu0 0
      %3230 = vmatprep.subr.bf16.mxu0 0
      %3231 = vmatpush1.bf16.msra.mxu0 0
      %3232 = vmatprep.subr.bf16.mxu0 0
      %3233 = vmatpush1.bf16.msra.mxu0 0
      %3234 = vmatprep.subr.bf16.mxu0 0
      %3235 = vmatpush1.bf16.msra.mxu0 0
      %3236 = vmatprep.subr.bf16.mxu0 0
      %3237 = vmatpush1.bf16.msra.mxu0 0
      %3238 = vmatprep.subr.bf16.mxu0 0
      %3239 = vmatpush1.bf16.msra.mxu0 0
      %3240 = vmatprep.subr.bf16.mxu0 0
      %3241 = vmatpush1.bf16.msra.mxu0 0
      %3242 = vmatprep.subr.bf16.mxu0 0
      %3243 = vmatpush1.bf16.msra.mxu0 0
      %3244 = vmatprep.subr.bf16.mxu0 0
      %3245 = vmatpush1.bf16.msra.mxu0 0
      %3246 = vmatprep.mubr.bf16.mxu0 0
      %3247 = vmatmul.mubr.bf16.gmra.mrb[0].mxu0 %v3159
      %v3248 = vpop.f32.mrb[0].mxu0
      %v3249 = vadd.f32 0.0, %v3248
      %v3250 = vpop.f32.mrb[0].mxu0
      %v3251 = vadd.f32 0.0, %v3250
      %v3252 = vpop.f32.mrb[0].mxu0
      %v3253 = vpop.f32.mrb[0].mxu0
      %3254 = vdwg.mxu0
      %v3255 = vmax.f32 %v3208, 0.0
      %v3256 = vmax.f32 %v3210, 0.0
      %v3257 = vmax.f32 %v3249, 0.0
      %v3258 = vmax.f32 %v3251, 0.0
      %3261 = vrot.lane.b32.xlu0 %v3257, 17
      %v3262 = vpop.permute.xlu0 %3261
      %3263 = vrot.lane.b32.xlu0 %v3258, 17
      %v3264 = vpop.permute.xlu0 %3263
      %v3265 = vsel %vm513, %v3262, %v3264
      %3270 = vrot.lane.b32.xlu0 %v3255, 17
      %v3271 = vpop.permute.xlu0 %3270
      %3272 = vrot.lane.b32.xlu0 %v3256, 17
      %v3273 = vpop.permute.xlu0 %3272
      %v3274 = vsel %vm513, %v3271, %v3273
      %v3275 = vsel %vm513, %v3273, %v3262
      %v3279 = vsel %vm513, %v3264, %v3271
      %v3280 = vmul.f32 %v3265, %v1571
      %v3281 = vmul.f32 %v3279, %v1575
      %v3282 = vmul.f32 %v3274, %v1579
      %v3283 = vmul.f32 %v3275, %v1583
      %3284 = vrot.lane.b32.xlu0 %v3257, 16
      %v3285 = vpop.permute.xlu0 %3284
      %3286 = vrot.lane.b32.xlu0 %v3258, 16
      %v3287 = vpop.permute.xlu0 %3286
      %v3288 = vsel %vm557, %v3285, %v3287
      %3291 = vrot.lane.b32.xlu0 %v3255, 16
      %v3292 = vpop.permute.xlu0 %3291
      %3293 = vrot.lane.b32.xlu0 %v3256, 16
      %v3294 = vpop.permute.xlu0 %3293
      %v3295 = vsel %vm557, %v3292, %v3294
      %v3296 = vsel %vm557, %v3294, %v3285
      %v3300 = vsel %vm557, %v3287, %v3292
      %v3301 = vmul.f32 %v3288, %v1615
      %v3302 = vmul.f32 %v3300, %v1619
      %v3303 = vmul.f32 %v3295, %v1623
      %v3304 = vmul.f32 %v3296, %v1627
      %3305 = vrot.lane.b32.xlu0 %v3257, 15
      %v3306 = vpop.permute.xlu0 %3305
      %3307 = vrot.lane.b32.xlu0 %v3258, 15
      %v3308 = vpop.permute.xlu0 %3307
      %v3309 = vsel %vm602, %v3306, %v3308
      %3312 = vrot.lane.b32.xlu0 %v3255, 15
      %v3313 = vpop.permute.xlu0 %3312
      %3314 = vrot.lane.b32.xlu0 %v3256, 15
      %v3315 = vpop.permute.xlu0 %3314
      %v3316 = vsel %vm602, %v3313, %v3315
      %v3317 = vsel %vm602, %v3315, %v3306
      %v3321 = vsel %vm602, %v3308, %v3313
      %v3322 = vmul.f32 %v3309, %v1659
      %v3323 = vmul.f32 %v3321, %v1663
      %v3324 = vmul.f32 %v3316, %v1667
      %v3325 = vmul.f32 %v3317, %v1671
      %3326 = vrot.lane.b32.xlu0 %v3257, 1
      %v3327 = vpop.permute.xlu0 %3326
      %3328 = vrot.lane.b32.xlu0 %v3258, 1
      %v3329 = vpop.permute.xlu0 %3328
      %v3330 = vsel %vm647, %v3327, %v3329
      %3333 = vrot.lane.b32.xlu0 %v3255, 1
      %v3334 = vpop.permute.xlu0 %3333
      %3335 = vrot.lane.b32.xlu0 %v3256, 1
      %v3336 = vpop.permute.xlu0 %3335
      %v3337 = vsel %vm647, %v3334, %v3336
      %v3338 = vsel %vm647, %v3336, %v3327
      %v3342 = vsel %vm647, %v3329, %v3334
      %v3343 = vmul.f32 %v3330, %v1703
      %v3344 = vmul.f32 %v3342, %v1707
      %v3345 = vmul.f32 %v3337, %v1711
      %v3346 = vmul.f32 %v3338, %v1715
      %v3347 = vmul.f32 %v3258, %v1730
      %v3348 = vmul.f32 %v3255, %v1734
      %v3349 = vmul.f32 %v3256, %v1738
      %v3350 = vmul.f32 %v3257, %v1742
      %3351 = vrot.lane.b32.xlu0 %v3258, 127
      %v3352 = vpop.permute.xlu0 %3351
      %3354 = vrot.lane.b32.xlu0 %v3255, 127
      %v3355 = vpop.permute.xlu0 %3354
      %3356 = vrot.lane.b32.xlu0 %v3256, 127
      %v3357 = vpop.permute.xlu0 %3356
      %3358 = vrot.lane.b32.xlu0 %v3257, 127
      %v3359 = vpop.permute.xlu0 %3358
      %v3360 = vsel %vm691, %v3355, %v3357
      %v3361 = vsel %vm691, %v3357, %v3359
      %v3362 = vsel %vm691, %v3359, %v3352
      %v3367 = vsel %vm691, %v3352, %v3355
      %v3368 = vmul.f32 %v3367, %v1774
      %v3369 = vmul.f32 %v3360, %v1778
      %v3370 = vmul.f32 %v3361, %v1782
      %v3371 = vmul.f32 %v3362, %v1786
      %3372 = vrot.lane.b32.xlu0 %v3258, 113
      %v3373 = vpop.permute.xlu0 %3372
      %3375 = vrot.lane.b32.xlu0 %v3255, 113
      %v3376 = vpop.permute.xlu0 %3375
      %3377 = vrot.lane.b32.xlu0 %v3256, 113
      %v3378 = vpop.permute.xlu0 %3377
      %3379 = vrot.lane.b32.xlu0 %v3257, 113
      %v3380 = vpop.permute.xlu0 %3379
      %v3381 = vsel %vm736, %v3376, %v3378
      %v3382 = vsel %vm736, %v3378, %v3380
      %v3383 = vsel %vm736, %v3380, %v3373
      %v3388 = vsel %vm736, %v3373, %v3376
      %v3389 = vmul.f32 %v3388, %v1818
      %v3390 = vmul.f32 %v3381, %v1822
      %v3391 = vmul.f32 %v3382, %v1826
      %v3392 = vmul.f32 %v3383, %v1830
      %3393 = vrot.lane.b32.xlu0 %v3258, 112
      %v3394 = vpop.permute.xlu0 %3393
      %3396 = vrot.lane.b32.xlu0 %v3255, 112
      %v3397 = vpop.permute.xlu0 %3396
      %3398 = vrot.lane.b32.xlu0 %v3256, 112
      %v3399 = vpop.permute.xlu0 %3398
      %3400 = vrot.lane.b32.xlu0 %v3257, 112
      %v3401 = vpop.permute.xlu0 %3400
      %v3402 = vsel %vm781, %v3397, %v3399
      %v3403 = vsel %vm781, %v3399, %v3401
      %v3404 = vsel %vm781, %v3401, %v3394
      %v3409 = vsel %vm781, %v3394, %v3397
      %v3410 = vmul.f32 %v3409, %v1862
      %v3411 = vmul.f32 %v3402, %v1866
      %v3412 = vmul.f32 %v3403, %v1870
      %v3413 = vmul.f32 %v3404, %v1874
      %3414 = vrot.lane.b32.xlu0 %v3258, 111
      %v3415 = vpop.permute.xlu0 %3414
      %3417 = vrot.lane.b32.xlu0 %v3255, 111
      %v3418 = vpop.permute.xlu0 %3417
      %3419 = vrot.lane.b32.xlu0 %v3256, 111
      %v3420 = vpop.permute.xlu0 %3419
      %3421 = vrot.lane.b32.xlu0 %v3257, 111
      %v3422 = vpop.permute.xlu0 %3421
      %v3423 = vsel %vm826, %v3418, %v3420
      %v3424 = vsel %vm826, %v3420, %v3422
      %v3425 = vsel %vm826, %v3422, %v3415
      %v3430 = vsel %vm826, %v3415, %v3418
      %v3431 = vmul.f32 %v3430, %v1906
      %v3432 = vmul.f32 %v3423, %v1910
      %v3433 = vmul.f32 %v3424, %v1914
      %v3434 = vmul.f32 %v3425, %v1918
      %v3435 = vmul.f32 %v3279, %v1933
      %v3436 = vmul.f32 %v3274, %v1937
      %v3437 = vmul.f32 %v3275, %v1941
      %v3438 = vmul.f32 %v3265, %v1945
      %v3439 = vmul.f32 %v3300, %v1960
      %v3440 = vmul.f32 %v3295, %v1964
      %v3441 = vmul.f32 %v3296, %v1968
      %v3442 = vmul.f32 %v3288, %v1972
      %v3443 = vmul.f32 %v3321, %v1987
      %v3444 = vmul.f32 %v3316, %v1991
      %v3445 = vmul.f32 %v3317, %v1995
      %v3446 = vmul.f32 %v3309, %v1999
      %v3447 = vmul.f32 %v3342, %v2014
      %v3448 = vmul.f32 %v3337, %v2018
      %v3449 = vmul.f32 %v3338, %v2022
      %v3450 = vmul.f32 %v3330, %v2026
      %v3451 = vmul.f32 %v3360, %v2041
      %v3452 = vmul.f32 %v3361, %v2045
      %v3453 = vmul.f32 %v3362, %v2049
      %v3454 = vmul.f32 %v3367, %v2053
      %v3455 = vmul.f32 %v3381, %v2068
      %v3456 = vmul.f32 %v3382, %v2072
      %v3457 = vmul.f32 %v3383, %v2076
      %v3458 = vmul.f32 %v3388, %v2080
      %v3459 = vmul.f32 %v3402, %v2095
      %v3460 = vmul.f32 %v3403, %v2099
      %v3461 = vmul.f32 %v3404, %v2103
      %v3462 = vmul.f32 %v3409, %v2107
      %v3463 = vmul.f32 %v3423, %v2122
      %v3464 = vmul.f32 %v3424, %v2126
      %v3465 = vmul.f32 %v3425, %v2130
      %v3466 = vmul.f32 %v3430, %v2134
      %v3467 = vmul.f32 %v3274, %v2149
      %v3468 = vmul.f32 %v3275, %v2153
      %v3469 = vmul.f32 %v3265, %v2157
      %v3470 = vmul.f32 %v3279, %v2161
      %v3471 = vmul.f32 %v3295, %v2176
      %v3472 = vmul.f32 %v3296, %v2180
      %v3473 = vmul.f32 %v3288, %v2184
      %v3474 = vmul.f32 %v3300, %v2188
      %v3475 = vmul.f32 %v3316, %v2203
      %v3476 = vmul.f32 %v3317, %v2207
      %v3477 = vmul.f32 %v3309, %v2211
      %v3478 = vmul.f32 %v3321, %v2215
      %v3479 = vmul.f32 %v3337, %v2230
      %v3480 = vmul.f32 %v3338, %v2234
      %v3481 = vmul.f32 %v3330, %v2238
      %v3482 = vmul.f32 %v3342, %v2242
      %v3483 = vmul.f32 %v3256, %v2257
      %v3484 = vmul.f32 %v3257, %v2261
      %v3485 = vmul.f32 %v3258, %v2265
      %v3486 = vmul.f32 %v3255, %v2269
      %v3487 = vmul.f32 %v3361, %v2284
      %v3488 = vmul.f32 %v3362, %v2288
      %v3489 = vmul.f32 %v3367, %v2292
      %v3490 = vmul.f32 %v3360, %v2296
      %v3491 = vmul.f32 %v3382, %v2311
      %v3492 = vmul.f32 %v3383, %v2315
      %v3493 = vmul.f32 %v3388, %v2319
      %v3494 = vmul.f32 %v3381, %v2323
      %v3495 = vmul.f32 %v3403, %v2338
      %v3496 = vmul.f32 %v3404, %v2342
      %v3497 = vmul.f32 %v3409, %v2346
      %v3498 = vmul.f32 %v3402, %v2350
      %v3499 = vmul.f32 %v3424, %v2365
      %v3500 = vmul.f32 %v3425, %v2369
      %v3501 = vmul.f32 %v3430, %v2373
      %v3502 = vmul.f32 %v3423, %v2377
      %v3507 = vrot.slane %v3301, 6
      %v3508 = vrot.slane %v3302, 6
      %v3509 = vrot.slane %v3303, 6
      %v3510 = vrot.slane %v3304, 6
      %v3519 = vrot.slane %v3322, 4
      %v3520 = vrot.slane %v3323, 4
      %v3521 = vrot.slane %v3324, 4
      %v3522 = vrot.slane %v3325, 4
      %v3531 = vrot.slane %v3343, 2
      %v3532 = vrot.slane %v3344, 2
      %v3533 = vrot.slane %v3345, 2
      %v3534 = vrot.slane %v3346, 2
      %v3543 = vrot.slane %v3368, 6
      %v3544 = vrot.slane %v3369, 6
      %v3545 = vrot.slane %v3370, 6
      %v3546 = vrot.slane %v3371, 6
      %v3555 = vrot.slane %v3389, 4
      %v3556 = vrot.slane %v3390, 4
      %v3557 = vrot.slane %v3391, 4
      %v3558 = vrot.slane %v3392, 4
      %v3567 = vrot.slane %v3410, 2
      %v3568 = vrot.slane %v3411, 2
      %v3569 = vrot.slane %v3412, 2
      %v3570 = vrot.slane %v3413, 2
      %v3579 = vrot.slane %v3435, 6
      %v3580 = vrot.slane %v3436, 6
      %v3581 = vrot.slane %v3437, 6
      %v3582 = vrot.slane %v3438, 6
      %v3591 = vrot.slane %v3439, 4
      %v3592 = vrot.slane %v3440, 4
      %v3593 = vrot.slane %v3441, 4
      %v3594 = vrot.slane %v3442, 4
      %v3603 = vrot.slane %v3443, 2
      %v3604 = vrot.slane %v3444, 2
      %v3605 = vrot.slane %v3445, 2
      %v3606 = vrot.slane %v3446, 2
      %v3611 = vrot.slane %v3255, 6
      %v3612 = vrot.slane %v3256, 6
      %v3613 = vrot.slane %v3257, 6
      %v3614 = vrot.slane %v3258, 6
      %v3623 = vrot.slane %v3451, 4
      %v3624 = vrot.slane %v3452, 4
      %v3625 = vrot.slane %v3453, 4
      %v3626 = vrot.slane %v3454, 4
      %v3635 = vrot.slane %v3455, 2
      %v3636 = vrot.slane %v3456, 2
      %v3637 = vrot.slane %v3457, 2
      %v3638 = vrot.slane %v3458, 2
      %v3643 = vsel %vm935, %v3280, %v3507
      %v3644 = vsel %vm935, %v3281, %v3508
      %v3645 = vsel %vm935, %v3282, %v3509
      %v3646 = vsel %vm935, %v3283, %v3510
      %v3647 = vsel %vm940, %v3643, %v3519
      %v3648 = vsel %vm940, %v3644, %v3520
      %v3649 = vsel %vm940, %v3645, %v3521
      %v3650 = vsel %vm940, %v3646, %v3522
      %v3651 = vsel %vm945, %v3647, %v3531
      %v3652 = vsel %vm945, %v3648, %v3532
      %v3653 = vsel %vm945, %v3649, %v3533
      %v3654 = vsel %vm945, %v3650, %v3534
      %v3655 = vsel %vm935, %v3347, %v3543
      %v3656 = vsel %vm935, %v3348, %v3544
      %v3657 = vsel %vm935, %v3349, %v3545
      %v3658 = vsel %vm935, %v3350, %v3546
      %v3659 = vsel %vm940, %v3655, %v3555
      %v3660 = vsel %vm940, %v3656, %v3556
      %v3661 = vsel %vm940, %v3657, %v3557
      %v3662 = vsel %vm940, %v3658, %v3558
      %v3663 = vsel %vm945, %v3659, %v3567
      %v3664 = vsel %vm945, %v3660, %v3568
      %v3665 = vsel %vm945, %v3661, %v3569
      %v3666 = vsel %vm945, %v3662, %v3570
      %v3667 = vsel %vm935, %v3431, %v3579
      %v3668 = vsel %vm935, %v3432, %v3580
      %v3669 = vsel %vm935, %v3433, %v3581
      %v3670 = vsel %vm935, %v3434, %v3582
      %v3671 = vsel %vm940, %v3667, %v3591
      %v3672 = vsel %vm940, %v3668, %v3592
      %v3673 = vsel %vm940, %v3669, %v3593
      %v3674 = vsel %vm940, %v3670, %v3594
      %v3675 = vsel %vm945, %v3671, %v3603
      %v3676 = vsel %vm945, %v3672, %v3604
      %v3677 = vsel %vm945, %v3673, %v3605
      %v3678 = vsel %vm945, %v3674, %v3606
      %v3679 = vsel %vm935, %v3447, %v3611
      %v3680 = vsel %vm935, %v3448, %v3612
      %v3681 = vsel %vm935, %v3449, %v3613
      %v3682 = vsel %vm935, %v3450, %v3614
      %v3683 = vsel %vm940, %v3679, %v3623
      %v3684 = vsel %vm940, %v3680, %v3624
      %v3685 = vsel %vm940, %v3681, %v3625
      %v3686 = vsel %vm940, %v3682, %v3626
      %v3687 = vsel %vm945, %v3683, %v3635
      %v3688 = vsel %vm945, %v3684, %v3636
      %v3689 = vsel %vm945, %v3685, %v3637
      %v3690 = vsel %vm945, %v3686, %v3638
      %v3695 = vrot.slane %v3463, 6
      %v3696 = vrot.slane %v3464, 6
      %v3697 = vrot.slane %v3465, 6
      %v3698 = vrot.slane %v3466, 6
      %v3707 = vrot.slane %v3467, 4
      %v3708 = vrot.slane %v3468, 4
      %v3709 = vrot.slane %v3469, 4
      %v3710 = vrot.slane %v3470, 4
      %v3719 = vrot.slane %v3471, 2
      %v3720 = vrot.slane %v3472, 2
      %v3721 = vrot.slane %v3473, 2
      %v3722 = vrot.slane %v3474, 2
      %v3731 = vrot.slane %v3479, 6
      %v3732 = vrot.slane %v3480, 6
      %v3733 = vrot.slane %v3481, 6
      %v3734 = vrot.slane %v3482, 6
      %v3743 = vrot.slane %v3483, 4
      %v3744 = vrot.slane %v3484, 4
      %v3745 = vrot.slane %v3485, 4
      %v3746 = vrot.slane %v3486, 4
      %v3755 = vrot.slane %v3487, 2
      %v3756 = vrot.slane %v3488, 2
      %v3757 = vrot.slane %v3489, 2
      %v3758 = vrot.slane %v3490, 2
      %v3767 = vrot.slane %v3495, 6
      %v3768 = vrot.slane %v3496, 6
      %v3769 = vrot.slane %v3497, 6
      %v3770 = vrot.slane %v3498, 6
      %v3779 = vrot.slane %v3499, 4
      %v3780 = vrot.slane %v3500, 4
      %v3781 = vrot.slane %v3501, 4
      %v3782 = vrot.slane %v3502, 4
      %v3787 = vsel %vm935, %v3459, %v3695
      %v3788 = vsel %vm935, %v3460, %v3696
      %v3789 = vsel %vm935, %v3461, %v3697
      %v3790 = vsel %vm935, %v3462, %v3698
      %v3791 = vsel %vm940, %v3787, %v3707
      %v3792 = vsel %vm940, %v3788, %v3708
      %v3793 = vsel %vm940, %v3789, %v3709
      %v3794 = vsel %vm940, %v3790, %v3710
      %v3795 = vsel %vm945, %v3791, %v3719
      %v3796 = vsel %vm945, %v3792, %v3720
      %v3797 = vsel %vm945, %v3793, %v3721
      %v3798 = vsel %vm945, %v3794, %v3722
      %v3799 = vsel %vm935, %v3475, %v3731
      %v3800 = vsel %vm935, %v3476, %v3732
      %v3801 = vsel %vm935, %v3477, %v3733
      %v3802 = vsel %vm935, %v3478, %v3734
      %v3803 = vsel %vm940, %v3799, %v3743
      %v3804 = vsel %vm940, %v3800, %v3744
      %v3805 = vsel %vm940, %v3801, %v3745
      %v3806 = vsel %vm940, %v3802, %v3746
      %v3807 = vsel %vm945, %v3803, %v3755
      %v3808 = vsel %vm945, %v3804, %v3756
      %v3809 = vsel %vm945, %v3805, %v3757
      %v3810 = vsel %vm945, %v3806, %v3758
      %v3811 = vsel %vm935, %v3491, %v3767
      %v3812 = vsel %vm935, %v3492, %v3768
      %v3813 = vsel %vm935, %v3493, %v3769
      %v3814 = vsel %vm935, %v3494, %v3770
      %v3815 = vsel %vm940, %v3811, %v3779
      %v3816 = vsel %vm940, %v3812, %v3780
      %v3817 = vsel %vm940, %v3813, %v3781
      %v3818 = vsel %vm940, %v3814, %v3782
      %v3819 = vsel %vm945, %v3815, 1.0
      %v3820 = vsel %vm945, %v3816, 1.0
      %v3821 = vsel %vm945, %v3817, 1.0
      %v3822 = vsel %vm945, %v3818, 1.0
      %v3823 = vpack.c.bf16 %v3663, %v3651
      %v3824 = vpack.c.bf16 %v3664, %v3652
      %v3825 = vpack.c.bf16 %v3665, %v3653
      %v3826 = vpack.c.bf16 %v3666, %v3654
      %v3827 = vpack.c.bf16 %v3687, %v3675
      %v3828 = vpack.c.bf16 %v3688, %v3676
      %v3829 = vpack.c.bf16 %v3689, %v3677
      %v3830 = vpack.c.bf16 %v3690, %v3678
      %v3831 = vpack.c.bf16 %v3807, %v3795
      %v3832 = vpack.c.bf16 %v3808, %v3796
      %v3833 = vpack.c.bf16 %v3809, %v3797
      %v3834 = vpack.c.bf16 %v3810, %v3798
      %v3835 = vpack.c.bf16 %v3819, %v3819
      %v3836 = vpack.c.bf16 %v3820, %v3820
      %v3837 = vpack.c.bf16 %v3821, %v3821
      %v3838 = vpack.c.bf16 %v3822, %v3822
      %v3839 = vld [vmem:[%s7] sm:$0x1]
      %v3841 = vsel %vm2723, %v3839, 0
      %v3844 = vand.u32 %v3835, %v2729
      %v3847 = vand.u32 %v3836, %v2729
      %v3850 = vand.u32 %v3837, %v2729
      %v3853 = vand.u32 %v3838, %v2729
      %3855 = vmatprep.subr.bf16.mxu0 %v3824
      %3856 = vmatpush1.bf16.msra.mxu0 %v3823
      %3857 = vmatprep.subr.bf16.mxu0 %v3828
      %3858 = vmatpush1.bf16.msra.mxu0 %v3827
      %3859 = vmatprep.subr.bf16.mxu0 %v3832
      %3860 = vmatpush1.bf16.msra.mxu0 %v3831
      %3861 = vmatprep.subr.bf16.mxu0 %v3847
      %3862 = vmatpush1.bf16.msra.mxu0 %v3844
      %3863 = vmatprep.subr.bf16.mxu0 0
      %3864 = vmatpush1.bf16.msra.mxu0 0
      %3865 = vmatprep.subr.bf16.mxu0 0
      %3866 = vmatpush1.bf16.msra.mxu0 0
      %3867 = vmatprep.subr.bf16.mxu0 0
      %3868 = vmatpush1.bf16.msra.mxu0 0
      %3869 = vmatprep.subr.bf16.mxu0 0
      %3870 = vmatpush1.bf16.msra.mxu0 0
      %3871 = vmatprep.subr.bf16.mxu0 0
      %3872 = vmatpush1.bf16.msra.mxu0 0
      %3873 = vmatprep.subr.bf16.mxu0 0
      %3874 = vmatpush1.bf16.msra.mxu0 0
      %3875 = vmatprep.subr.bf16.mxu0 0
      %3876 = vmatpush1.bf16.msra.mxu0 0
      %3877 = vmatprep.subr.bf16.mxu0 0
      %3878 = vmatpush1.bf16.msra.mxu0 0
      %3879 = vmatprep.subr.bf16.mxu0 0
      %3880 = vmatpush1.bf16.msra.mxu0 0
      %3881 = vmatprep.subr.bf16.mxu0 0
      %3882 = vmatpush1.bf16.msra.mxu0 0
      %3883 = vmatprep.subr.bf16.mxu0 0
      %3884 = vmatpush1.bf16.msra.mxu0 0
      %3885 = vmatprep.subr.bf16.mxu0 0
      %3886 = vmatpush1.bf16.msra.mxu0 0
      %3887 = vmatprep.mubr.bf16.mxu0 0
      %3888 = vmatmul.mubr.bf16.gmra.mrb[0].mxu0 %v3841
      %v3889 = vpop.f32.mrb[0].mxu0
      %v3890 = vadd.f32 0.0, %v3889
      %v3891 = vpop.f32.mrb[0].mxu0
      %v3892 = vadd.f32 0.0, %v3891
      %v3893 = vpop.f32.mrb[0].mxu0
      %v3894 = vpop.f32.mrb[0].mxu0
      %3895 = vdwg.mxu0
      %3896 = vmatprep.subr.bf16.mxu0 %v3826
      %3897 = vmatpush1.bf16.msra.mxu0 %v3825
      %3898 = vmatprep.subr.bf16.mxu0 %v3830
      %3899 = vmatpush1.bf16.msra.mxu0 %v3829
      %3900 = vmatprep.subr.bf16.mxu0 %v3834
      %3901 = vmatpush1.bf16.msra.mxu0 %v3833
      %3902 = vmatprep.subr.bf16.mxu0 %v3853
      %3903 = vmatpush1.bf16.msra.mxu0 %v3850
      %3904 = vmatprep.subr.bf16.mxu0 0
      %3905 = vmatpush1.bf16.msra.mxu0 0
      %3906 = vmatprep.subr.bf16.mxu0 0
      %3907 = vmatpush1.bf16.msra.mxu0 0
      %3908 = vmatprep.subr.bf16.mxu0 0
      %3909 = vmatpush1.bf16.msra.mxu0 0
      %3910 = vmatprep.subr.bf16.mxu0 0
      %3911 = vmatpush1.bf16.msra.mxu0 0
      %3912 = vmatprep.subr.bf16.mxu0 0
      %3913 = vmatpush1.bf16.msra.mxu0 0
      %3914 = vmatprep.subr.bf16.mxu0 0
      %3915 = vmatpush1.bf16.msra.mxu0 0
      %3916 = vmatprep.subr.bf16.mxu0 0
      %3917 = vmatpush1.bf16.msra.mxu0 0
      %3918 = vmatprep.subr.bf16.mxu0 0
      %3919 = vmatpush1.bf16.msra.mxu0 0
      %3920 = vmatprep.subr.bf16.mxu0 0
      %3921 = vmatpush1.bf16.msra.mxu0 0
      %3922 = vmatprep.subr.bf16.mxu0 0
      %3923 = vmatpush1.bf16.msra.mxu0 0
      %3924 = vmatprep.subr.bf16.mxu0 0
      %3925 = vmatpush1.bf16.msra.mxu0 0
      %3926 = vmatprep.subr.bf16.mxu0 0
      %3927 = vmatpush1.bf16.msra.mxu0 0
      %3928 = vmatprep.mubr.bf16.mxu0 0
      %3929 = vmatmul.mubr.bf16.gmra.mrb[0].mxu0 %v3841
      %v3930 = vpop.f32.mrb[0].mxu0
      %v3931 = vadd.f32 0.0, %v3930
      %v3932 = vpop.f32.mrb[0].mxu0
      %v3933 = vadd.f32 0.0, %v3932
      %v3934 = vpop.f32.mrb[0].mxu0
      %v3935 = vpop.f32.mrb[0].mxu0
      %3936 = vdwg.mxu0
      %v3937 = vmax.f32 %v3890, 0.0
      %v3938 = vmax.f32 %v3892, 0.0
      %v3939 = vmax.f32 %v3931, 0.0
      %v3940 = vmax.f32 %v3933, 0.0
      %v3941 = vrot.slane %v496, 2
      %v3942 = vrot.slane %v497, 2
      %v3943 = vrot.slane %v498, 2
      %v3944 = vrot.slane %v499, 2
      %v3949 = vmul.f32 %v3937, %v3941
      %v3950 = vmul.f32 %v3938, %v3942
      %v3951 = vmul.f32 %v3939, %v3943
      %v3952 = vmul.f32 %v3940, %v3944
      %v3953 = vmul.f32 %v565, %v3056
      %v3954 = vmul.f32 %v558, %v3060
      %v3955 = vmul.f32 %v559, %v3064
      %v3956 = vmul.f32 %v560, %v3068
      %v3957 = vmul.f32 %v782, %v3100
      %v3958 = vmul.f32 %v783, %v3104
      %v3959 = vmul.f32 %v784, %v3108
      %v3960 = vmul.f32 %v790, %v3112
      %v3965 = vrot.slane %v3953, 4
      %v3966 = vrot.slane %v3954, 4
      %v3967 = vrot.slane %v3955, 4
      %v3968 = vrot.slane %v3956, 4
      %v3973 = vsel %vm935, %v3965, %v3941
      %v3974 = vsel %vm935, %v3966, %v3942
      %v3975 = vsel %vm935, %v3967, %v3943
      %v3976 = vsel %vm935, %v3968, %v3944
      %v3977 = vsel %vm940, %v3973, %v3957
      %v3978 = vsel %vm940, %v3974, %v3958
      %v3979 = vsel %vm940, %v3975, %v3959
      %v3980 = vsel %vm940, %v3976, %v3960
      %v3981 = vsel %vm945, %v3977, 1.0
      %v3982 = vsel %vm945, %v3978, 1.0
      %v3983 = vsel %vm945, %v3979, 1.0
      %v3984 = vsel %vm945, %v3980, 1.0
      %v3985 = vpack.c.bf16 %v3981, %v3981
      %v3986 = vpack.c.bf16 %v3982, %v3982
      %v3987 = vpack.c.bf16 %v3983, %v3983
      %v3988 = vpack.c.bf16 %v3984, %v3984
      %v3989 = vld [vmem:[%s8] sm:$0x1]
      %v3991 = vsel %vm2927, %v3989, 0
      %v3994 = vand.u32 %v3985, %v2729
      %v3997 = vand.u32 %v3986, %v2729
      %v4000 = vand.u32 %v3987, %v2729
      %v4003 = vand.u32 %v3988, %v2729
      %4005 = vmatprep.subr.bf16.mxu0 %v3997
      %4006 = vmatpush1.bf16.msra.mxu0 %v3994
      %4007 = vmatprep.subr.bf16.mxu0 0
      %4008 = vmatpush1.bf16.msra.mxu0 0
      %4009 = vmatprep.subr.bf16.mxu0 0
      %4010 = vmatpush1.bf16.msra.mxu0 0
      %4011 = vmatprep.subr.bf16.mxu0 0
      %4012 = vmatpush1.bf16.msra.mxu0 0
      %4013 = vmatprep.subr.bf16.mxu0 0
      %4014 = vmatpush1.bf16.msra.mxu0 0
      %4015 = vmatprep.subr.bf16.mxu0 0
      %4016 = vmatpush1.bf16.msra.mxu0 0
      %4017 = vmatprep.subr.bf16.mxu0 0
      %4018 = vmatpush1.bf16.msra.mxu0 0
      %4019 = vmatprep.subr.bf16.mxu0 0
      %4020 = vmatpush1.bf16.msra.mxu0 0
      %4021 = vmatprep.subr.bf16.mxu0 0
      %4022 = vmatpush1.bf16.msra.mxu0 0
      %4023 = vmatprep.subr.bf16.mxu0 0
      %4024 = vmatpush1.bf16.msra.mxu0 0
      %4025 = vmatprep.subr.bf16.mxu0 0
      %4026 = vmatpush1.bf16.msra.mxu0 0
      %4027 = vmatprep.subr.bf16.mxu0 0
      %4028 = vmatpush1.bf16.msra.mxu0 0
      %4029 = vmatprep.subr.bf16.mxu0 0
      %4030 = vmatpush1.bf16.msra.mxu0 0
      %4031 = vmatprep.subr.bf16.mxu0 0
      %4032 = vmatpush1.bf16.msra.mxu0 0
      %4033 = vmatprep.subr.bf16.mxu0 0
      %4034 = vmatpush1.bf16.msra.mxu0 0
      %4035 = vmatprep.subr.bf16.mxu0 0
      %4036 = vmatpush1.bf16.msra.mxu0 0
      %4037 = vmatprep.mubr.bf16.mxu0 0
      %4038 = vmatmul.mubr.bf16.gmra.mrb[0].mxu0 %v3991
      %v4039 = vpop.f32.mrb[0].mxu0
      %v4040 = vadd.f32 0.0, %v4039
      %v4041 = vpop.f32.mrb[0].mxu0
      %v4042 = vadd.f32 0.0, %v4041
      %v4043 = vpop.f32.mrb[0].mxu0
      %v4044 = vpop.f32.mrb[0].mxu0
      %4045 = vdwg.mxu0
      %4046 = vmatprep.subr.bf16.mxu0 %v4003
      %4047 = vmatpush1.bf16.msra.mxu0 %v4000
      %4048 = vmatprep.subr.bf16.mxu0 0
      %4049 = vmatpush1.bf16.msra.mxu0 0
      %4050 = vmatprep.subr.bf16.mxu0 0
      %4051 = vmatpush1.bf16.msra.mxu0 0
      %4052 = vmatprep.subr.bf16.mxu0 0
      %4053 = vmatpush1.bf16.msra.mxu0 0
      %4054 = vmatprep.subr.bf16.mxu0 0
      %4055 = vmatpush1.bf16.msra.mxu0 0
      %4056 = vmatprep.subr.bf16.mxu0 0
      %4057 = vmatpush1.bf16.msra.mxu0 0
      %4058 = vmatprep.subr.bf16.mxu0 0
      %4059 = vmatpush1.bf16.msra.mxu0 0
      %4060 = vmatprep.subr.bf16.mxu0 0
      %4061 = vmatpush1.bf16.msra.mxu0 0
      %4062 = vmatprep.subr.bf16.mxu0 0
      %4063 = vmatpush1.bf16.msra.mxu0 0
      %4064 = vmatprep.subr.bf16.mxu0 0
      %4065 = vmatpush1.bf16.msra.mxu0 0
      %4066 = vmatprep.subr.bf16.mxu0 0
      %4067 = vmatpush1.bf16.msra.mxu0 0
      %4068 = vmatprep.subr.bf16.mxu0 0
      %4069 = vmatpush1.bf16.msra.mxu0 0
      %4070 = vmatprep.subr.bf16.mxu0 0
      %4071 = vmatpush1.bf16.msra.mxu0 0
      %4072 = vmatprep.subr.bf16.mxu0 0
      %4073 = vmatpush1.bf16.msra.mxu0 0
      %4074 = vmatprep.subr.bf16.mxu0 0
      %4075 = vmatpush1.bf16.msra.mxu0 0
      %4076 = vmatprep.subr.bf16.mxu0 0
      %4077 = vmatpush1.bf16.msra.mxu0 0
      %4078 = vmatprep.mubr.bf16.mxu0 0
      %4079 = vmatmul.mubr.bf16.gmra.mrb[0].mxu0 %v3991
      %v4080 = vpop.f32.mrb[0].mxu0
      %v4081 = vadd.f32 0.0, %v4080
      %v4082 = vpop.f32.mrb[0].mxu0
      %v4083 = vadd.f32 0.0, %v4082
      %v4084 = vpop.f32.mrb[0].mxu0
      %v4085 = vpop.f32.mrb[0].mxu0
      %4086 = vdwg.mxu0
      %v4087 = vmax.f32 %v4040, 0.0
      %v4088 = vmax.f32 %v4042, 0.0
      %v4089 = vmax.f32 %v4081, 0.0
      %v4090 = vmax.f32 %v4083, 0.0
      %4092 = vrot.lane.b32.xlu0 %v4090, 1
      %v4093 = vpop.permute.xlu0 %4092
      %4098 = vrot.lane.b32.xlu0 %v4087, 1
      %v4099 = vpop.permute.xlu0 %4098
      %4100 = vrot.lane.b32.xlu0 %v4088, 1
      %v4101 = vpop.permute.xlu0 %4100
      %4102 = vrot.lane.b32.xlu0 %v4089, 1
      %v4103 = vpop.permute.xlu0 %4102
      %v4104 = vsel %vm647, %v4099, %v4101
      %v4105 = vsel %vm647, %v4101, %v4103
      %v4106 = vsel %vm647, %v4103, %v4093
      %v4111 = vsel %vm647, %v4093, %v4099
      %v4112 = vmul.f32 %v4111, %v2838
      %v4113 = vmul.f32 %v4104, %v2842
      %v4114 = vmul.f32 %v4105, %v2846
      %v4115 = vmul.f32 %v4106, %v2850
      %4116 = vrot.lane.b32.xlu0 %v4087, 127
      %v4117 = vpop.permute.xlu0 %4116
      %4118 = vrot.lane.b32.xlu0 %v4088, 127
      %v4119 = vpop.permute.xlu0 %4118
      %4120 = vrot.lane.b32.xlu0 %v4089, 127
      %v4121 = vpop.permute.xlu0 %4120
      %4122 = vrot.lane.b32.xlu0 %v4090, 127
      %v4123 = vpop.permute.xlu0 %4122
      %v4124 = vsel %vm691, %v4117, %v4119
      %v4125 = vsel %vm691, %v4119, %v4121
      %v4126 = vsel %vm691, %v4121, %v4123
      %v4132 = vsel %vm691, %v4123, %v4117
      %v4133 = vmul.f32 %v4124, %v2865
      %v4134 = vmul.f32 %v4125, %v2869
      %v4135 = vmul.f32 %v4126, %v2873
      %v4136 = vmul.f32 %v4132, %v2877
      %v4137 = vrot.slane %v4087, 6
      %v4138 = vrot.slane %v4088, 6
      %v4139 = vrot.slane %v4089, 6
      %v4140 = vrot.slane %v4090, 6
      %v4149 = vrot.slane %v4133, 4
      %v4150 = vrot.slane %v4134, 4
      %v4151 = vrot.slane %v4135, 4
      %v4152 = vrot.slane %v4136, 4
      %v4157 = vsel %vm935, %v4112, %v4137
      %v4158 = vsel %vm935, %v4113, %v4138
      %v4159 = vsel %vm935, %v4114, %v4139
      %v4160 = vsel %vm935, %v4115, %v4140
      %v4161 = vsel %vm940, %v4157, %v4149
      %v4162 = vsel %vm940, %v4158, %v4150
      %v4163 = vsel %vm940, %v4159, %v4151
      %v4164 = vsel %vm940, %v4160, %v4152
      %v4165 = vsel %vm945, %v4161, 1.0
      %v4166 = vsel %vm945, %v4162, 1.0
      %v4167 = vsel %vm945, %v4163, 1.0
      %v4168 = vsel %vm945, %v4164, 1.0
      %v4169 = vpack.c.bf16 %v4165, %v4165
      %v4170 = vpack.c.bf16 %v4166, %v4166
      %v4171 = vpack.c.bf16 %v4167, %v4167
      %v4172 = vpack.c.bf16 %v4168, %v4168
      %v4173 = vld [vmem:[%s9] sm:$0x1]
      %v4175 = vsel %vm2927, %v4173, 0
      %v4178 = vand.u32 %v4169, %v2729
      %v4181 = vand.u32 %v4170, %v2729
      %v4184 = vand.u32 %v4171, %v2729
      %v4187 = vand.u32 %v4172, %v2729
      %4189 = vmatprep.subr.bf16.mxu0 %v4181
      %4190 = vmatpush1.bf16.msra.mxu0 %v4178
      %4191 = vmatprep.subr.bf16.mxu0 0
      %4192 = vmatpush1.bf16.msra.mxu0 0
      %4193 = vmatprep.subr.bf16.mxu0 0
      %4194 = vmatpush1.bf16.msra.mxu0 0
      %4195 = vmatprep.subr.bf16.mxu0 0
      %4196 = vmatpush1.bf16.msra.mxu0 0
      %4197 = vmatprep.subr.bf16.mxu0 0
      %4198 = vmatpush1.bf16.msra.mxu0 0
      %4199 = vmatprep.subr.bf16.mxu0 0
      %4200 = vmatpush1.bf16.msra.mxu0 0
      %4201 = vmatprep.subr.bf16.mxu0 0
      %4202 = vmatpush1.bf16.msra.mxu0 0
      %4203 = vmatprep.subr.bf16.mxu0 0
      %4204 = vmatpush1.bf16.msra.mxu0 0
      %4205 = vmatprep.subr.bf16.mxu0 0
      %4206 = vmatpush1.bf16.msra.mxu0 0
      %4207 = vmatprep.subr.bf16.mxu0 0
      %4208 = vmatpush1.bf16.msra.mxu0 0
      %4209 = vmatprep.subr.bf16.mxu0 0
      %4210 = vmatpush1.bf16.msra.mxu0 0
      %4211 = vmatprep.subr.bf16.mxu0 0
      %4212 = vmatpush1.bf16.msra.mxu0 0
      %4213 = vmatprep.subr.bf16.mxu0 0
      %4214 = vmatpush1.bf16.msra.mxu0 0
      %4215 = vmatprep.subr.bf16.mxu0 0
      %4216 = vmatpush1.bf16.msra.mxu0 0
      %4217 = vmatprep.subr.bf16.mxu0 0
      %4218 = vmatpush1.bf16.msra.mxu0 0
      %4219 = vmatprep.subr.bf16.mxu0 0
      %4220 = vmatpush1.bf16.msra.mxu0 0
      %4221 = vmatprep.mubr.bf16.mxu0 0
      %4222 = vmatmul.mubr.bf16.gmra.mrb[0].mxu0 %v4175
      %v4223 = vpop.f32.mrb[0].mxu0
      %v4224 = vadd.f32 0.0, %v4223
      %v4225 = vpop.f32.mrb[0].mxu0
      %v4226 = vadd.f32 0.0, %v4225
      %v4227 = vpop.f32.mrb[0].mxu0
      %v4228 = vpop.f32.mrb[0].mxu0
      %4229 = vdwg.mxu0
      %4230 = vmatprep.subr.bf16.mxu0 %v4187
      %4231 = vmatpush1.bf16.msra.mxu0 %v4184
      %4232 = vmatprep.subr.bf16.mxu0 0
      %4233 = vmatpush1.bf16.msra.mxu0 0
      %4234 = vmatprep.subr.bf16.mxu0 0
      %4235 = vmatpush1.bf16.msra.mxu0 0
      %4236 = vmatprep.subr.bf16.mxu0 0
      %4237 = vmatpush1.bf16.msra.mxu0 0
      %4238 = vmatprep.subr.bf16.mxu0 0
      %4239 = vmatpush1.bf16.msra.mxu0 0
      %4240 = vmatprep.subr.bf16.mxu0 0
      %4241 = vmatpush1.bf16.msra.mxu0 0
      %4242 = vmatprep.subr.bf16.mxu0 0
      %4243 = vmatpush1.bf16.msra.mxu0 0
      %4244 = vmatprep.subr.bf16.mxu0 0
      %4245 = vmatpush1.bf16.msra.mxu0 0
      %4246 = vmatprep.subr.bf16.mxu0 0
      %4247 = vmatpush1.bf16.msra.mxu0 0
      %4248 = vmatprep.subr.bf16.mxu0 0
      %4249 = vmatpush1.bf16.msra.mxu0 0
      %4250 = vmatprep.subr.bf16.mxu0 0
      %4251 = vmatpush1.bf16.msra.mxu0 0
      %4252 = vmatprep.subr.bf16.mxu0 0
      %4253 = vmatpush1.bf16.msra.mxu0 0
      %4254 = vmatprep.subr.bf16.mxu0 0
      %4255 = vmatpush1.bf16.msra.mxu0 0
      %4256 = vmatprep.subr.bf16.mxu0 0
      %4257 = vmatpush1.bf16.msra.mxu0 0
      %4258 = vmatprep.subr.bf16.mxu0 0
      %4259 = vmatpush1.bf16.msra.mxu0 0
      %4260 = vmatprep.subr.bf16.mxu0 0
      %4261 = vmatpush1.bf16.msra.mxu0 0
      %4262 = vmatprep.mubr.bf16.mxu0 0
      %4263 = vmatmul.mubr.bf16.gmra.mrb[0].mxu0 %v4175
      %v4264 = vpop.f32.mrb[0].mxu0
      %v4265 = vadd.f32 0.0, %v4264
      %v4266 = vpop.f32.mrb[0].mxu0
      %v4267 = vadd.f32 0.0, %v4266
      %v4268 = vpop.f32.mrb[0].mxu0
      %v4269 = vpop.f32.mrb[0].mxu0
      %4270 = vdwg.mxu0
      %v4271 = vmax.f32 %v4224, 0.0
      %v4272 = vmax.f32 %v4226, 0.0
      %v4273 = vmax.f32 %v4265, 0.0
      %v4274 = vmax.f32 %v4267, 0.0
      %4277 = vrot.lane.b32.xlu0 %v4273, 17
      %v4278 = vpop.permute.xlu0 %4277
      %4279 = vrot.lane.b32.xlu0 %v4274, 17
      %v4280 = vpop.permute.xlu0 %4279
      %v4281 = vsel %vm513, %v4278, %v4280
      %4286 = vrot.lane.b32.xlu0 %v4271, 17
      %v4287 = vpop.permute.xlu0 %4286
      %4288 = vrot.lane.b32.xlu0 %v4272, 17
      %v4289 = vpop.permute.xlu0 %4288
      %v4290 = vsel %vm513, %v4287, %v4289
      %v4291 = vsel %vm513, %v4289, %v4278
      %v4295 = vsel %vm513, %v4280, %v4287
      %v4296 = vmul.f32 %v4281, %v1571
      %v4297 = vmul.f32 %v4295, %v1575
      %v4298 = vmul.f32 %v4290, %v1579
      %v4299 = vmul.f32 %v4291, %v1583
      %4300 = vrot.lane.b32.xlu0 %v4273, 16
      %v4301 = vpop.permute.xlu0 %4300
      %4302 = vrot.lane.b32.xlu0 %v4274, 16
      %v4303 = vpop.permute.xlu0 %4302
      %v4304 = vsel %vm557, %v4301, %v4303
      %4307 = vrot.lane.b32.xlu0 %v4271, 16
      %v4308 = vpop.permute.xlu0 %4307
      %4309 = vrot.lane.b32.xlu0 %v4272, 16
      %v4310 = vpop.permute.xlu0 %4309
      %v4311 = vsel %vm557, %v4308, %v4310
      %v4312 = vsel %vm557, %v4310, %v4301
      %v4316 = vsel %vm557, %v4303, %v4308
      %v4317 = vmul.f32 %v4304, %v1615
      %v4318 = vmul.f32 %v4316, %v1619
      %v4319 = vmul.f32 %v4311, %v1623
      %v4320 = vmul.f32 %v4312, %v1627
      %4321 = vrot.lane.b32.xlu0 %v4273, 15
      %v4322 = vpop.permute.xlu0 %4321
      %4323 = vrot.lane.b32.xlu0 %v4274, 15
      %v4324 = vpop.permute.xlu0 %4323
      %v4325 = vsel %vm602, %v4322, %v4324
      %4328 = vrot.lane.b32.xlu0 %v4271, 15
      %v4329 = vpop.permute.xlu0 %4328
      %4330 = vrot.lane.b32.xlu0 %v4272, 15
      %v4331 = vpop.permute.xlu0 %4330
      %v4332 = vsel %vm602, %v4329, %v4331
      %v4333 = vsel %vm602, %v4331, %v4322
      %v4337 = vsel %vm602, %v4324, %v4329
      %v4338 = vmul.f32 %v4325, %v1659
      %v4339 = vmul.f32 %v4337, %v1663
      %v4340 = vmul.f32 %v4332, %v1667
      %v4341 = vmul.f32 %v4333, %v1671
      %4342 = vrot.lane.b32.xlu0 %v4273, 1
      %v4343 = vpop.permute.xlu0 %4342
      %4344 = vrot.lane.b32.xlu0 %v4274, 1
      %v4345 = vpop.permute.xlu0 %4344
      %v4346 = vsel %vm647, %v4343, %v4345
      %4349 = vrot.lane.b32.xlu0 %v4271, 1
      %v4350 = vpop.permute.xlu0 %4349
      %4351 = vrot.lane.b32.xlu0 %v4272, 1
      %v4352 = vpop.permute.xlu0 %4351
      %v4353 = vsel %vm647, %v4350, %v4352
      %v4354 = vsel %vm647, %v4352, %v4343
      %v4358 = vsel %vm647, %v4345, %v4350
      %v4359 = vmul.f32 %v4346, %v1703
      %v4360 = vmul.f32 %v4358, %v1707
      %v4361 = vmul.f32 %v4353, %v1711
      %v4362 = vmul.f32 %v4354, %v1715
      %v4363 = vmul.f32 %v4274, %v1730
      %v4364 = vmul.f32 %v4271, %v1734
      %v4365 = vmul.f32 %v4272, %v1738
      %v4366 = vmul.f32 %v4273, %v1742
      %4367 = vrot.lane.b32.xlu0 %v4274, 127
      %v4368 = vpop.permute.xlu0 %4367
      %4370 = vrot.lane.b32.xlu0 %v4271, 127
      %v4371 = vpop.permute.xlu0 %4370
      %4372 = vrot.lane.b32.xlu0 %v4272, 127
      %v4373 = vpop.permute.xlu0 %4372
      %4374 = vrot.lane.b32.xlu0 %v4273, 127
      %v4375 = vpop.permute.xlu0 %4374
      %v4376 = vsel %vm691, %v4371, %v4373
      %v4377 = vsel %vm691, %v4373, %v4375
      %v4378 = vsel %vm691, %v4375, %v4368
      %v4383 = vsel %vm691, %v4368, %v4371
      %v4384 = vmul.f32 %v4383, %v1774
      %v4385 = vmul.f32 %v4376, %v1778
      %v4386 = vmul.f32 %v4377, %v1782
      %v4387 = vmul.f32 %v4378, %v1786
      %4388 = vrot.lane.b32.xlu0 %v4274, 113
      %v4389 = vpop.permute.xlu0 %4388
      %4391 = vrot.lane.b32.xlu0 %v4271, 113
      %v4392 = vpop.permute.xlu0 %4391
      %4393 = vrot.lane.b32.xlu0 %v4272, 113
      %v4394 = vpop.permute.xlu0 %4393
      %4395 = vrot.lane.b32.xlu0 %v4273, 113
      %v4396 = vpop.permute.xlu0 %4395
      %v4397 = vsel %vm736, %v4392, %v4394
      %v4398 = vsel %vm736, %v4394, %v4396
      %v4399 = vsel %vm736, %v4396, %v4389
      %v4404 = vsel %vm736, %v4389, %v4392
      %v4405 = vmul.f32 %v4404, %v1818
      %v4406 = vmul.f32 %v4397, %v1822
      %v4407 = vmul.f32 %v4398, %v1826
      %v4408 = vmul.f32 %v4399, %v1830
      %4409 = vrot.lane.b32.xlu0 %v4274, 112
      %v4410 = vpop.permute.xlu0 %4409
      %4412 = vrot.lane.b32.xlu0 %v4271, 112
      %v4413 = vpop.permute.xlu0 %4412
      %4414 = vrot.lane.b32.xlu0 %v4272, 112
      %v4415 = vpop.permute.xlu0 %4414
      %4416 = vrot.lane.b32.xlu0 %v4273, 112
      %v4417 = vpop.permute.xlu0 %4416
      %v4418 = vsel %vm781, %v4413, %v4415
      %v4419 = vsel %vm781, %v4415, %v4417
      %v4420 = vsel %vm781, %v4417, %v4410
      %v4425 = vsel %vm781, %v4410, %v4413
      %v4426 = vmul.f32 %v4425, %v1862
      %v4427 = vmul.f32 %v4418, %v1866
      %v4428 = vmul.f32 %v4419, %v1870
      %v4429 = vmul.f32 %v4420, %v1874
      %4430 = vrot.lane.b32.xlu0 %v4274, 111
      %v4431 = vpop.permute.xlu0 %4430
      %4433 = vrot.lane.b32.xlu0 %v4271, 111
      %v4434 = vpop.permute.xlu0 %4433
      %4435 = vrot.lane.b32.xlu0 %v4272, 111
      %v4436 = vpop.permute.xlu0 %4435
      %4437 = vrot.lane.b32.xlu0 %v4273, 111
      %v4438 = vpop.permute.xlu0 %4437
      %v4439 = vsel %vm826, %v4434, %v4436
      %v4440 = vsel %vm826, %v4436, %v4438
      %v4441 = vsel %vm826, %v4438, %v4431
      %v4446 = vsel %vm826, %v4431, %v4434
      %v4447 = vmul.f32 %v4446, %v1906
      %v4448 = vmul.f32 %v4439, %v1910
      %v4449 = vmul.f32 %v4440, %v1914
      %v4450 = vmul.f32 %v4441, %v1918
      %v4451 = vmul.f32 %v4295, %v1933
      %v4452 = vmul.f32 %v4290, %v1937
      %v4453 = vmul.f32 %v4291, %v1941
      %v4454 = vmul.f32 %v4281, %v1945
      %v4455 = vmul.f32 %v4316, %v1960
      %v4456 = vmul.f32 %v4311, %v1964
      %v4457 = vmul.f32 %v4312, %v1968
      %v4458 = vmul.f32 %v4304, %v1972
      %v4459 = vmul.f32 %v4337, %v1987
      %v4460 = vmul.f32 %v4332, %v1991
      %v4461 = vmul.f32 %v4333, %v1995
      %v4462 = vmul.f32 %v4325, %v1999
      %v4463 = vmul.f32 %v4358, %v2014
      %v4464 = vmul.f32 %v4353, %v2018
      %v4465 = vmul.f32 %v4354, %v2022
      %v4466 = vmul.f32 %v4346, %v2026
      %v4467 = vmul.f32 %v4376, %v2041
      %v4468 = vmul.f32 %v4377, %v2045
      %v4469 = vmul.f32 %v4378, %v2049
      %v4470 = vmul.f32 %v4383, %v2053
      %v4471 = vmul.f32 %v4397, %v2068
      %v4472 = vmul.f32 %v4398, %v2072
      %v4473 = vmul.f32 %v4399, %v2076
      %v4474 = vmul.f32 %v4404, %v2080
      %v4475 = vmul.f32 %v4418, %v2095
      %v4476 = vmul.f32 %v4419, %v2099
      %v4477 = vmul.f32 %v4420, %v2103
      %v4478 = vmul.f32 %v4425, %v2107
      %v4479 = vmul.f32 %v4439, %v2122
      %v4480 = vmul.f32 %v4440, %v2126
      %v4481 = vmul.f32 %v4441, %v2130
      %v4482 = vmul.f32 %v4446, %v2134
      %v4483 = vmul.f32 %v4290, %v2149
      %v4484 = vmul.f32 %v4291, %v2153
      %v4485 = vmul.f32 %v4281, %v2157
      %v4486 = vmul.f32 %v4295, %v2161
      %v4487 = vmul.f32 %v4311, %v2176
      %v4488 = vmul.f32 %v4312, %v2180
      %v4489 = vmul.f32 %v4304, %v2184
      %v4490 = vmul.f32 %v4316, %v2188
      %v4491 = vmul.f32 %v4332, %v2203
      %v4492 = vmul.f32 %v4333, %v2207
      %v4493 = vmul.f32 %v4325, %v2211
      %v4494 = vmul.f32 %v4337, %v2215
      %v4495 = vmul.f32 %v4353, %v2230
      %v4496 = vmul.f32 %v4354, %v2234
      %v4497 = vmul.f32 %v4346, %v2238
      %v4498 = vmul.f32 %v4358, %v2242
      %v4499 = vmul.f32 %v4272, %v2257
      %v4500 = vmul.f32 %v4273, %v2261
      %v4501 = vmul.f32 %v4274, %v2265
      %v4502 = vmul.f32 %v4271, %v2269
      %v4503 = vmul.f32 %v4377, %v2284
      %v4504 = vmul.f32 %v4378, %v2288
      %v4505 = vmul.f32 %v4383, %v2292
      %v4506 = vmul.f32 %v4376, %v2296
      %v4507 = vmul.f32 %v4398, %v2311
      %v4508 = vmul.f32 %v4399, %v2315
      %v4509 = vmul.f32 %v4404, %v2319
      %v4510 = vmul.f32 %v4397, %v2323
      %v4511 = vmul.f32 %v4419, %v2338
      %v4512 = vmul.f32 %v4420, %v2342
      %v4513 = vmul.f32 %v4425, %v2346
      %v4514 = vmul.f32 %v4418, %v2350
      %v4515 = vmul.f32 %v4440, %v2365
      %v4516 = vmul.f32 %v4441, %v2369
      %v4517 = vmul.f32 %v4446, %v2373
      %v4518 = vmul.f32 %v4439, %v2377
      %v4523 = vrot.slane %v4317, 6
      %v4524 = vrot.slane %v4318, 6
      %v4525 = vrot.slane %v4319, 6
      %v4526 = vrot.slane %v4320, 6
      %v4535 = vrot.slane %v4338, 4
      %v4536 = vrot.slane %v4339, 4
      %v4537 = vrot.slane %v4340, 4
      %v4538 = vrot.slane %v4341, 4
      %v4547 = vrot.slane %v4359, 2
      %v4548 = vrot.slane %v4360, 2
      %v4549 = vrot.slane %v4361, 2
      %v4550 = vrot.slane %v4362, 2
      %v4559 = vrot.slane %v4384, 6
      %v4560 = vrot.slane %v4385, 6
      %v4561 = vrot.slane %v4386, 6
      %v4562 = vrot.slane %v4387, 6
      %v4571 = vrot.slane %v4405, 4
      %v4572 = vrot.slane %v4406, 4
      %v4573 = vrot.slane %v4407, 4
      %v4574 = vrot.slane %v4408, 4
      %v4583 = vrot.slane %v4426, 2
      %v4584 = vrot.slane %v4427, 2
      %v4585 = vrot.slane %v4428, 2
      %v4586 = vrot.slane %v4429, 2
      %v4595 = vrot.slane %v4451, 6
      %v4596 = vrot.slane %v4452, 6
      %v4597 = vrot.slane %v4453, 6
      %v4598 = vrot.slane %v4454, 6
      %v4607 = vrot.slane %v4455, 4
      %v4608 = vrot.slane %v4456, 4
      %v4609 = vrot.slane %v4457, 4
      %v4610 = vrot.slane %v4458, 4
      %v4619 = vrot.slane %v4459, 2
      %v4620 = vrot.slane %v4460, 2
      %v4621 = vrot.slane %v4461, 2
      %v4622 = vrot.slane %v4462, 2
      %v4627 = vrot.slane %v4271, 6
      %v4628 = vrot.slane %v4272, 6
      %v4629 = vrot.slane %v4273, 6
      %v4630 = vrot.slane %v4274, 6
      %v4639 = vrot.slane %v4467, 4
      %v4640 = vrot.slane %v4468, 4
      %v4641 = vrot.slane %v4469, 4
      %v4642 = vrot.slane %v4470, 4
      %v4651 = vrot.slane %v4471, 2
      %v4652 = vrot.slane %v4472, 2
      %v4653 = vrot.slane %v4473, 2
      %v4654 = vrot.slane %v4474, 2
      %v4659 = vsel %vm935, %v4296, %v4523
      %v4660 = vsel %vm935, %v4297, %v4524
      %v4661 = vsel %vm935, %v4298, %v4525
      %v4662 = vsel %vm935, %v4299, %v4526
      %v4663 = vsel %vm940, %v4659, %v4535
      %v4664 = vsel %vm940, %v4660, %v4536
      %v4665 = vsel %vm940, %v4661, %v4537
      %v4666 = vsel %vm940, %v4662, %v4538
      %v4667 = vsel %vm945, %v4663, %v4547
      %v4668 = vsel %vm945, %v4664, %v4548
      %v4669 = vsel %vm945, %v4665, %v4549
      %v4670 = vsel %vm945, %v4666, %v4550
      %v4671 = vsel %vm935, %v4363, %v4559
      %v4672 = vsel %vm935, %v4364, %v4560
      %v4673 = vsel %vm935, %v4365, %v4561
      %v4674 = vsel %vm935, %v4366, %v4562
      %v4675 = vsel %vm940, %v4671, %v4571
      %v4676 = vsel %vm940, %v4672, %v4572
      %v4677 = vsel %vm940, %v4673, %v4573
      %v4678 = vsel %vm940, %v4674, %v4574
      %v4679 = vsel %vm945, %v4675, %v4583
      %v4680 = vsel %vm945, %v4676, %v4584
      %v4681 = vsel %vm945, %v4677, %v4585
      %v4682 = vsel %vm945, %v4678, %v4586
      %v4683 = vsel %vm935, %v4447, %v4595
      %v4684 = vsel %vm935, %v4448, %v4596
      %v4685 = vsel %vm935, %v4449, %v4597
      %v4686 = vsel %vm935, %v4450, %v4598
      %v4687 = vsel %vm940, %v4683, %v4607
      %v4688 = vsel %vm940, %v4684, %v4608
      %v4689 = vsel %vm940, %v4685, %v4609
      %v4690 = vsel %vm940, %v4686, %v4610
      %v4691 = vsel %vm945, %v4687, %v4619
      %v4692 = vsel %vm945, %v4688, %v4620
      %v4693 = vsel %vm945, %v4689, %v4621
      %v4694 = vsel %vm945, %v4690, %v4622
      %v4695 = vsel %vm935, %v4463, %v4627
      %v4696 = vsel %vm935, %v4464, %v4628
      %v4697 = vsel %vm935, %v4465, %v4629
      %v4698 = vsel %vm935, %v4466, %v4630
      %v4699 = vsel %vm940, %v4695, %v4639
      %v4700 = vsel %vm940, %v4696, %v4640
      %v4701 = vsel %vm940, %v4697, %v4641
      %v4702 = vsel %vm940, %v4698, %v4642
      %v4703 = vsel %vm945, %v4699, %v4651
      %v4704 = vsel %vm945, %v4700, %v4652
      %v4705 = vsel %vm945, %v4701, %v4653
      %v4706 = vsel %vm945, %v4702, %v4654
      %v4711 = vrot.slane %v4479, 6
      %v4712 = vrot.slane %v4480, 6
      %v4713 = vrot.slane %v4481, 6
      %v4714 = vrot.slane %v4482, 6
      %v4723 = vrot.slane %v4483, 4
      %v4724 = vrot.slane %v4484, 4
      %v4725 = vrot.slane %v4485, 4
      %v4726 = vrot.slane %v4486, 4
      %v4735 = vrot.slane %v4487, 2
      %v4736 = vrot.slane %v4488, 2
      %v4737 = vrot.slane %v4489, 2
      %v4738 = vrot.slane %v4490, 2
      %v4747 = vrot.slane %v4495, 6
      %v4748 = vrot.slane %v4496, 6
      %v4749 = vrot.slane %v4497, 6
      %v4750 = vrot.slane %v4498, 6
      %v4759 = vrot.slane %v4499, 4
      %v4760 = vrot.slane %v4500, 4
      %v4761 = vrot.slane %v4501, 4
      %v4762 = vrot.slane %v4502, 4
      %v4771 = vrot.slane %v4503, 2
      %v4772 = vrot.slane %v4504, 2
      %v4773 = vrot.slane %v4505, 2
      %v4774 = vrot.slane %v4506, 2
      %v4783 = vrot.slane %v4511, 6
      %v4784 = vrot.slane %v4512, 6
      %v4785 = vrot.slane %v4513, 6
      %v4786 = vrot.slane %v4514, 6
      %v4795 = vrot.slane %v4515, 4
      %v4796 = vrot.slane %v4516, 4
      %v4797 = vrot.slane %v4517, 4
      %v4798 = vrot.slane %v4518, 4
      %v4803 = vsel %vm935, %v4475, %v4711
      %v4804 = vsel %vm935, %v4476, %v4712
      %v4805 = vsel %vm935, %v4477, %v4713
      %v4806 = vsel %vm935, %v4478, %v4714
      %v4807 = vsel %vm940, %v4803, %v4723
      %v4808 = vsel %vm940, %v4804, %v4724
      %v4809 = vsel %vm940, %v4805, %v4725
      %v4810 = vsel %vm940, %v4806, %v4726
      %v4811 = vsel %vm945, %v4807, %v4735
      %v4812 = vsel %vm945, %v4808, %v4736
      %v4813 = vsel %vm945, %v4809, %v4737
      %v4814 = vsel %vm945, %v4810, %v4738
      %v4815 = vsel %vm935, %v4491, %v4747
      %v4816 = vsel %vm935, %v4492, %v4748
      %v4817 = vsel %vm935, %v4493, %v4749
      %v4818 = vsel %vm935, %v4494, %v4750
      %v4819 = vsel %vm940, %v4815, %v4759
      %v4820 = vsel %vm940, %v4816, %v4760
      %v4821 = vsel %vm940, %v4817, %v4761
      %v4822 = vsel %vm940, %v4818, %v4762
      %v4823 = vsel %vm945, %v4819, %v4771
      %v4824 = vsel %vm945, %v4820, %v4772
      %v4825 = vsel %vm945, %v4821, %v4773
      %v4826 = vsel %vm945, %v4822, %v4774
      %v4827 = vsel %vm935, %v4507, %v4783
      %v4828 = vsel %vm935, %v4508, %v4784
      %v4829 = vsel %vm935, %v4509, %v4785
      %v4830 = vsel %vm935, %v4510, %v4786
      %v4831 = vsel %vm940, %v4827, %v4795
      %v4832 = vsel %vm940, %v4828, %v4796
      %v4833 = vsel %vm940, %v4829, %v4797
      %v4834 = vsel %vm940, %v4830, %v4798
      %v4835 = vsel %vm945, %v4831, 1.0
      %v4836 = vsel %vm945, %v4832, 1.0
      %v4837 = vsel %vm945, %v4833, 1.0
      %v4838 = vsel %vm945, %v4834, 1.0
      %v4839 = vpack.c.bf16 %v4679, %v4667
      %v4840 = vpack.c.bf16 %v4680, %v4668
      %v4841 = vpack.c.bf16 %v4681, %v4669
      %v4842 = vpack.c.bf16 %v4682, %v4670
      %v4843 = vpack.c.bf16 %v4703, %v4691
      %v4844 = vpack.c.bf16 %v4704, %v4692
      %v4845 = vpack.c.bf16 %v4705, %v4693
      %v4846 = vpack.c.bf16 %v4706, %v4694
      %v4847 = vpack.c.bf16 %v4823, %v4811
      %v4848 = vpack.c.bf16 %v4824, %v4812
      %v4849 = vpack.c.bf16 %v4825, %v4813
      %v4850 = vpack.c.bf16 %v4826, %v4814
      %v4851 = vpack.c.bf16 %v4835, %v4835
      %v4852 = vpack.c.bf16 %v4836, %v4836
      %v4853 = vpack.c.bf16 %v4837, %v4837
      %v4854 = vpack.c.bf16 %v4838, %v4838
      %v4855 = vld [vmem:[%s10] sm:$0x1]
      %v4857 = vsel %vm2723, %v4855, 0
      %v4860 = vand.u32 %v4851, %v2729
      %v4863 = vand.u32 %v4852, %v2729
      %v4866 = vand.u32 %v4853, %v2729
      %v4869 = vand.u32 %v4854, %v2729
      %4871 = vmatprep.subr.bf16.mxu0 %v4840
      %4872 = vmatpush1.bf16.msra.mxu0 %v4839
      %4873 = vmatprep.subr.bf16.mxu0 %v4844
      %4874 = vmatpush1.bf16.msra.mxu0 %v4843
      %4875 = vmatprep.subr.bf16.mxu0 %v4848
      %4876 = vmatpush1.bf16.msra.mxu0 %v4847
      %4877 = vmatprep.subr.bf16.mxu0 %v4863
      %4878 = vmatpush1.bf16.msra.mxu0 %v4860
      %4879 = vmatprep.subr.bf16.mxu0 0
      %4880 = vmatpush1.bf16.msra.mxu0 0
      %4881 = vmatprep.subr.bf16.mxu0 0
      %4882 = vmatpush1.bf16.msra.mxu0 0
      %4883 = vmatprep.subr.bf16.mxu0 0
      %4884 = vmatpush1.bf16.msra.mxu0 0
      %4885 = vmatprep.subr.bf16.mxu0 0
      %4886 = vmatpush1.bf16.msra.mxu0 0
      %4887 = vmatprep.subr.bf16.mxu0 0
      %4888 = vmatpush1.bf16.msra.mxu0 0
      %4889 = vmatprep.subr.bf16.mxu0 0
      %4890 = vmatpush1.bf16.msra.mxu0 0
      %4891 = vmatprep.subr.bf16.mxu0 0
      %4892 = vmatpush1.bf16.msra.mxu0 0
      %4893 = vmatprep.subr.bf16.mxu0 0
      %4894 = vmatpush1.bf16.msra.mxu0 0
      %4895 = vmatprep.subr.bf16.mxu0 0
      %4896 = vmatpush1.bf16.msra.mxu0 0
      %4897 = vmatprep.subr.bf16.mxu0 0
      %4898 = vmatpush1.bf16.msra.mxu0 0
      %4899 = vmatprep.subr.bf16.mxu0 0
      %4900 = vmatpush1.bf16.msra.mxu0 0
      %4901 = vmatprep.subr.bf16.mxu0 0
      %4902 = vmatpush1.bf16.msra.mxu0 0
      %4903 = vmatprep.mubr.bf16.mxu0 0
      %4904 = vmatmul.mubr.bf16.gmra.mrb[0].mxu0 %v4857
      %v4905 = vpop.f32.mrb[0].mxu0
      %v4906 = vadd.f32 0.0, %v4905
      %v4907 = vpop.f32.mrb[0].mxu0
      %v4908 = vadd.f32 0.0, %v4907
      %v4909 = vpop.f32.mrb[0].mxu0
      %v4910 = vpop.f32.mrb[0].mxu0
      %4911 = vdwg.mxu0
      %4912 = vmatprep.subr.bf16.mxu0 %v4842
      %4913 = vmatpush1.bf16.msra.mxu0 %v4841
      %4914 = vmatprep.subr.bf16.mxu0 %v4846
      %4915 = vmatpush1.bf16.msra.mxu0 %v4845
      %4916 = vmatprep.subr.bf16.mxu0 %v4850
      %4917 = vmatpush1.bf16.msra.mxu0 %v4849
      %4918 = vmatprep.subr.bf16.mxu0 %v4869
      %4919 = vmatpush1.bf16.msra.mxu0 %v4866
      %4920 = vmatprep.subr.bf16.mxu0 0
      %4921 = vmatpush1.bf16.msra.mxu0 0
      %4922 = vmatprep.subr.bf16.mxu0 0
      %4923 = vmatpush1.bf16.msra.mxu0 0
      %4924 = vmatprep.subr.bf16.mxu0 0
      %4925 = vmatpush1.bf16.msra.mxu0 0
      %4926 = vmatprep.subr.bf16.mxu0 0
      %4927 = vmatpush1.bf16.msra.mxu0 0
      %4928 = vmatprep.subr.bf16.mxu0 0
      %4929 = vmatpush1.bf16.msra.mxu0 0
      %4930 = vmatprep.subr.bf16.mxu0 0
      %4931 = vmatpush1.bf16.msra.mxu0 0
      %4932 = vmatprep.subr.bf16.mxu0 0
      %4933 = vmatpush1.bf16.msra.mxu0 0
      %4934 = vmatprep.subr.bf16.mxu0 0
      %4935 = vmatpush1.bf16.msra.mxu0 0
      %4936 = vmatprep.subr.bf16.mxu0 0
      %4937 = vmatpush1.bf16.msra.mxu0 0
      %4938 = vmatprep.subr.bf16.mxu0 0
      %4939 = vmatpush1.bf16.msra.mxu0 0
      %4940 = vmatprep.subr.bf16.mxu0 0
      %4941 = vmatpush1.bf16.msra.mxu0 0
      %4942 = vmatprep.subr.bf16.mxu0 0
      %4943 = vmatpush1.bf16.msra.mxu0 0
      %4944 = vmatprep.mubr.bf16.mxu0 0
      %4945 = vmatmul.mubr.bf16.gmra.mrb[0].mxu0 %v4857
      %v4946 = vpop.f32.mrb[0].mxu0
      %v4947 = vadd.f32 0.0, %v4946
      %v4948 = vpop.f32.mrb[0].mxu0
      %v4949 = vadd.f32 0.0, %v4948
      %v4950 = vpop.f32.mrb[0].mxu0
      %v4951 = vpop.f32.mrb[0].mxu0
      %4952 = vdwg.mxu0
      %v4953 = vmax.f32 %v4906, 0.0
      %v4954 = vmax.f32 %v4908, 0.0
      %v4955 = vmax.f32 %v4947, 0.0
      %v4956 = vmax.f32 %v4949, 0.0
      %v4957 = vrot.slane %v496, 4
      %v4958 = vrot.slane %v497, 4
      %v4959 = vrot.slane %v498, 4
      %v4960 = vrot.slane %v499, 4
      %v4965 = vadd.f32 %v4953, %v4957
      %v4966 = vadd.f32 %v4954, %v4958
      %v4967 = vadd.f32 %v4955, %v4959
      %v4968 = vadd.f32 %v4956, %v4960
      %v4969 = vmul.f32 %v560, %v1107
      %v4970 = vmul.f32 %v565, %v1111
      %v4971 = vmul.f32 %v558, %v1115
      %v4972 = vmul.f32 %v559, %v1119
      %v4973 = vmul.f32 %v499, %v1134
      %v4974 = vmul.f32 %v496, %v1138
      %v4975 = vmul.f32 %v497, %v1142
      %v4976 = vmul.f32 %v498, %v1146
      %v4977 = vmul.f32 %v790, %v1178
      %v4978 = vmul.f32 %v782, %v1182
      %v4979 = vmul.f32 %v783, %v1186
      %v4980 = vmul.f32 %v784, %v1190
      %v4981 = vmul.f32 %v565, %v1205
      %v4982 = vmul.f32 %v558, %v1209
      %v4983 = vmul.f32 %v559, %v1213
      %v4984 = vmul.f32 %v560, %v1217
      %v4985 = vmul.f32 %v782, %v1232
      %v4986 = vmul.f32 %v783, %v1236
      %v4987 = vmul.f32 %v784, %v1240
      %v4988 = vmul.f32 %v790, %v1244
      %v4989 = vmul.f32 %v558, %v1259
      %v4990 = vmul.f32 %v559, %v1263
      %v4991 = vmul.f32 %v560, %v1267
      %v4992 = vmul.f32 %v565, %v1271
      %v4993 = vmul.f32 %v497, %v1286
      %v4994 = vmul.f32 %v498, %v1290
      %v4995 = vmul.f32 %v499, %v1294
      %v4996 = vmul.f32 %v496, %v1298
      %v4997 = vmul.f32 %v783, %v1313
      %v4998 = vmul.f32 %v784, %v1317
      %v4999 = vmul.f32 %v790, %v1321
      %v5000 = vmul.f32 %v782, %v1325
      %v5005 = vrot.slane %v4969, 6
      %v5006 = vrot.slane %v4970, 6
      %v5007 = vrot.slane %v4971, 6
      %v5008 = vrot.slane %v4972, 6
      %v5017 = vrot.slane %v4973, 4
      %v5018 = vrot.slane %v4974, 4
      %v5019 = vrot.slane %v4975, 4
      %v5020 = vrot.slane %v4976, 4
      %v5029 = vrot.slane %v4977, 2
      %v5030 = vrot.slane %v4978, 2
      %v5031 = vrot.slane %v4979, 2
      %v5032 = vrot.slane %v4980, 2
      %v5037 = vrot.slane %v496, 6
      %v5038 = vrot.slane %v497, 6
      %v5039 = vrot.slane %v498, 6
      %v5040 = vrot.slane %v499, 6
      %v5049 = vrot.slane %v4985, 4
      %v5050 = vrot.slane %v4986, 4
      %v5051 = vrot.slane %v4987, 4
      %v5052 = vrot.slane %v4988, 4
      %v5061 = vrot.slane %v4989, 2
      %v5062 = vrot.slane %v4990, 2
      %v5063 = vrot.slane %v4991, 2
      %v5064 = vrot.slane %v4992, 2
      %v5073 = vrot.slane %v4997, 6
      %v5074 = vrot.slane %v4998, 6
      %v5075 = vrot.slane %v4999, 6
      %v5076 = vrot.slane %v5000, 6
      %v5081 = vsel %vm935, %v5005, %v5017
      %v5082 = vsel %vm935, %v5006, %v5018
      %v5083 = vsel %vm935, %v5007, %v5019
      %v5084 = vsel %vm935, %v5008, %v5020
      %v5085 = vsel %vm940, %v5081, %v5029
      %v5086 = vsel %vm940, %v5082, %v5030
      %v5087 = vsel %vm940, %v5083, %v5031
      %v5088 = vsel %vm940, %v5084, %v5032
      %v5089 = vsel %vm945, %v5085, %v4981
      %v5090 = vsel %vm945, %v5086, %v4982
      %v5091 = vsel %vm945, %v5087, %v4983
      %v5092 = vsel %vm945, %v5088, %v4984
      %v5093 = vsel %vm935, %v5037, %v5049
      %v5094 = vsel %vm935, %v5038, %v5050
      %v5095 = vsel %vm935, %v5039, %v5051
      %v5096 = vsel %vm935, %v5040, %v5052
      %v5097 = vsel %vm940, %v5093, %v5061
      %v5098 = vsel %vm940, %v5094, %v5062
      %v5099 = vsel %vm940, %v5095, %v5063
      %v5100 = vsel %vm940, %v5096, %v5064
      %v5101 = vsel %vm945, %v5097, %v4993
      %v5102 = vsel %vm945, %v5098, %v4994
      %v5103 = vsel %vm945, %v5099, %v4995
      %v5104 = vsel %vm945, %v5100, %v4996
      %v5105 = vsel %vm935, %v5073, 1.0
      %v5106 = vsel %vm935, %v5074, 1.0
      %v5107 = vsel %vm935, %v5075, 1.0
      %v5108 = vsel %vm935, %v5076, 1.0
      %v5109 = vpack.c.bf16 %v5101, %v5089
      %v5110 = vpack.c.bf16 %v5102, %v5090
      %v5111 = vpack.c.bf16 %v5103, %v5091
      %v5112 = vpack.c.bf16 %v5104, %v5092
      %v5113 = vpack.c.bf16 %v5105, %v5105
      %v5114 = vpack.c.bf16 %v5106, %v5106
      %v5115 = vpack.c.bf16 %v5107, %v5107
      %v5116 = vpack.c.bf16 %v5108, %v5108
      %v5117 = vld [vmem:[%s11] sm:$0x1]
      %v5119 = vsel %vm975, %v5117, 0
      %v5122 = vand.u32 %v5113, %v981
      %v5125 = vand.u32 %v5114, %v981
      %v5128 = vand.u32 %v5115, %v981
      %v5131 = vand.u32 %v5116, %v981
      %5133 = vmatprep.subr.bf16.mxu0 %v5110
      %5134 = vmatpush1.bf16.msra.mxu0 %v5109
      %5135 = vmatprep.subr.bf16.mxu0 %v5125
      %5136 = vmatpush1.bf16.msra.mxu0 %v5122
      %5137 = vmatprep.subr.bf16.mxu0 0
      %5138 = vmatpush1.bf16.msra.mxu0 0
      %5139 = vmatprep.subr.bf16.mxu0 0
      %5140 = vmatpush1.bf16.msra.mxu0 0
      %5141 = vmatprep.subr.bf16.mxu0 0
      %5142 = vmatpush1.bf16.msra.mxu0 0
      %5143 = vmatprep.subr.bf16.mxu0 0
      %5144 = vmatpush1.bf16.msra.mxu0 0
      %5145 = vmatprep.subr.bf16.mxu0 0
      %5146 = vmatpush1.bf16.msra.mxu0 0
      %5147 = vmatprep.subr.bf16.mxu0 0
      %5148 = vmatpush1.bf16.msra.mxu0 0
      %5149 = vmatprep.subr.bf16.mxu0 0
      %5150 = vmatpush1.bf16.msra.mxu0 0
      %5151 = vmatprep.subr.bf16.mxu0 0
      %5152 = vmatpush1.bf16.msra.mxu0 0
      %5153 = vmatprep.subr.bf16.mxu0 0
      %5154 = vmatpush1.bf16.msra.mxu0 0
      %5155 = vmatprep.subr.bf16.mxu0 0
      %5156 = vmatpush1.bf16.msra.mxu0 0
      %5157 = vmatprep.subr.bf16.mxu0 0
      %5158 = vmatpush1.bf16.msra.mxu0 0
      %5159 = vmatprep.subr.bf16.mxu0 0
      %5160 = vmatpush1.bf16.msra.mxu0 0
      %5161 = vmatprep.subr.bf16.mxu0 0
      %5162 = vmatpush1.bf16.msra.mxu0 0
      %5163 = vmatprep.subr.bf16.mxu0 0
      %5164 = vmatpush1.bf16.msra.mxu0 0
      %5165 = vmatprep.mubr.bf16.mxu0 0
      %5166 = vmatmul.mubr.bf16.gmra.mrb[0].mxu0 %v5119
      %v5167 = vpop.f32.mrb[0].mxu0
      %v5168 = vadd.f32 0.0, %v5167
      %v5169 = vpop.f32.mrb[0].mxu0
      %v5170 = vadd.f32 0.0, %v5169
      %v5171 = vpop.f32.mrb[0].mxu0
      %v5172 = vpop.f32.mrb[0].mxu0
      %5173 = vdwg.mxu0
      %5174 = vmatprep.subr.bf16.mxu0 %v5112
      %5175 = vmatpush1.bf16.msra.mxu0 %v5111
      %5176 = vmatprep.subr.bf16.mxu0 %v5131
      %5177 = vmatpush1.bf16.msra.mxu0 %v5128
      %5178 = vmatprep.subr.bf16.mxu0 0
      %5179 = vmatpush1.bf16.msra.mxu0 0
      %5180 = vmatprep.subr.bf16.mxu0 0
      %5181 = vmatpush1.bf16.msra.mxu0 0
      %5182 = vmatprep.subr.bf16.mxu0 0
      %5183 = vmatpush1.bf16.msra.mxu0 0
      %5184 = vmatprep.subr.bf16.mxu0 0
      %5185 = vmatpush1.bf16.msra.mxu0 0
      %5186 = vmatprep.subr.bf16.mxu0 0
      %5187 = vmatpush1.bf16.msra.mxu0 0
      %5188 = vmatprep.subr.bf16.mxu0 0
      %5189 = vmatpush1.bf16.msra.mxu0 0
      %5190 = vmatprep.subr.bf16.mxu0 0
      %5191 = vmatpush1.bf16.msra.mxu0 0
      %5192 = vmatprep.subr.bf16.mxu0 0
      %5193 = vmatpush1.bf16.msra.mxu0 0
      %5194 = vmatprep.subr.bf16.mxu0 0
      %5195 = vmatpush1.bf16.msra.mxu0 0
      %5196 = vmatprep.subr.bf16.mxu0 0
      %5197 = vmatpush1.bf16.msra.mxu0 0
      %5198 = vmatprep.subr.bf16.mxu0 0
      %5199 = vmatpush1.bf16.msra.mxu0 0
      %5200 = vmatprep.subr.bf16.mxu0 0
      %5201 = vmatpush1.bf16.msra.mxu0 0
      %5202 = vmatprep.subr.bf16.mxu0 0
      %5203 = vmatpush1.bf16.msra.mxu0 0
      %5204 = vmatprep.subr.bf16.mxu0 0
      %5205 = vmatpush1.bf16.msra.mxu0 0
      %5206 = vmatprep.mubr.bf16.mxu0 0
      %5207 = vmatmul.mubr.bf16.gmra.mrb[0].mxu0 %v5119
      %v5208 = vpop.f32.mrb[0].mxu0
      %v5209 = vadd.f32 0.0, %v5208
      %v5210 = vpop.f32.mrb[0].mxu0
      %v5211 = vadd.f32 0.0, %v5210
      %v5212 = vpop.f32.mrb[0].mxu0
      %v5213 = vpop.f32.mrb[0].mxu0
      %5214 = vdwg.mxu0
      %v5215 = vmax.f32 %v5168, 0.0
      %v5216 = vmax.f32 %v5170, 0.0
      %v5217 = vmax.f32 %v5209, 0.0
      %v5218 = vmax.f32 %v5211, 0.0
      %5220 = vrot.lane.b32.xlu0 %v5218, 17
      %v5221 = vpop.permute.xlu0 %5220
      %5226 = vrot.lane.b32.xlu0 %v5215, 17
      %v5227 = vpop.permute.xlu0 %5226
      %5228 = vrot.lane.b32.xlu0 %v5216, 17
      %v5229 = vpop.permute.xlu0 %5228
      %5230 = vrot.lane.b32.xlu0 %v5217, 17
      %v5231 = vpop.permute.xlu0 %5230
      %v5232 = vsel %vm513, %v5227, %v5229
      %v5233 = vsel %vm513, %v5229, %v5231
      %v5234 = vsel %vm513, %v5231, %v5221
      %v5239 = vsel %vm513, %v5221, %v5227
      %v5240 = vmul.f32 %v5239, %v527
      %v5241 = vmul.f32 %v5232, %v531
      %v5242 = vmul.f32 %v5233, %v535
      %v5243 = vmul.f32 %v5234, %v539
      %5244 = vrot.lane.b32.xlu0 %v5218, 16
      %v5245 = vpop.permute.xlu0 %5244
      %5247 = vrot.lane.b32.xlu0 %v5215, 16
      %v5248 = vpop.permute.xlu0 %5247
      %5249 = vrot.lane.b32.xlu0 %v5216, 16
      %v5250 = vpop.permute.xlu0 %5249
      %5251 = vrot.lane.b32.xlu0 %v5217, 16
      %v5252 = vpop.permute.xlu0 %5251
      %v5253 = vsel %vm557, %v5248, %v5250
      %v5254 = vsel %vm557, %v5250, %v5252
      %v5255 = vsel %vm557, %v5252, %v5245
      %v5260 = vsel %vm557, %v5245, %v5248
      %v5261 = vmul.f32 %v5260, %v572
      %v5262 = vmul.f32 %v5253, %v576
      %v5263 = vmul.f32 %v5254, %v580
      %v5264 = vmul.f32 %v5255, %v584
      %5265 = vrot.lane.b32.xlu0 %v5218, 15
      %v5266 = vpop.permute.xlu0 %5265
      %5268 = vrot.lane.b32.xlu0 %v5215, 15
      %v5269 = vpop.permute.xlu0 %5268
      %5270 = vrot.lane.b32.xlu0 %v5216, 15
      %v5271 = vpop.permute.xlu0 %5270
      %5272 = vrot.lane.b32.xlu0 %v5217, 15
      %v5273 = vpop.permute.xlu0 %5272
      %v5274 = vsel %vm602, %v5269, %v5271
      %v5275 = vsel %vm602, %v5271, %v5273
      %v5276 = vsel %vm602, %v5273, %v5266
      %v5281 = vsel %vm602, %v5266, %v5269
      %v5282 = vmul.f32 %v5281, %v617
      %v5283 = vmul.f32 %v5274, %v621
      %v5284 = vmul.f32 %v5275, %v625
      %v5285 = vmul.f32 %v5276, %v629
      %5286 = vrot.lane.b32.xlu0 %v5218, 1
      %v5287 = vpop.permute.xlu0 %5286
      %5289 = vrot.lane.b32.xlu0 %v5215, 1
      %v5290 = vpop.permute.xlu0 %5289
      %5291 = vrot.lane.b32.xlu0 %v5216, 1
      %v5292 = vpop.permute.xlu0 %5291
      %5293 = vrot.lane.b32.xlu0 %v5217, 1
      %v5294 = vpop.permute.xlu0 %5293
      %v5295 = vsel %vm647, %v5290, %v5292
      %v5296 = vsel %vm647, %v5292, %v5294
      %v5297 = vsel %vm647, %v5294, %v5287
      %v5302 = vsel %vm647, %v5287, %v5290
      %v5303 = vmul.f32 %v5302, %v662
      %v5304 = vmul.f32 %v5295, %v666
      %v5305 = vmul.f32 %v5296, %v670
      %v5306 = vmul.f32 %v5297, %v674
      %5307 = vrot.lane.b32.xlu0 %v5215, 127
      %v5308 = vpop.permute.xlu0 %5307
      %5309 = vrot.lane.b32.xlu0 %v5216, 127
      %v5310 = vpop.permute.xlu0 %5309
      %5311 = vrot.lane.b32.xlu0 %v5217, 127
      %v5312 = vpop.permute.xlu0 %5311
      %5313 = vrot.lane.b32.xlu0 %v5218, 127
      %v5314 = vpop.permute.xlu0 %5313
      %v5315 = vsel %vm691, %v5308, %v5310
      %v5316 = vsel %vm691, %v5310, %v5312
      %v5317 = vsel %vm691, %v5312, %v5314
      %v5323 = vsel %vm691, %v5314, %v5308
      %v5324 = vmul.f32 %v5315, %v707
      %v5325 = vmul.f32 %v5316, %v711
      %v5326 = vmul.f32 %v5317, %v715
      %v5327 = vmul.f32 %v5323, %v719
      %5328 = vrot.lane.b32.xlu0 %v5215, 113
      %v5329 = vpop.permute.xlu0 %5328
      %5330 = vrot.lane.b32.xlu0 %v5216, 113
      %v5331 = vpop.permute.xlu0 %5330
      %5332 = vrot.lane.b32.xlu0 %v5217, 113
      %v5333 = vpop.permute.xlu0 %5332
      %5334 = vrot.lane.b32.xlu0 %v5218, 113
      %v5335 = vpop.permute.xlu0 %5334
      %v5336 = vsel %vm736, %v5329, %v5331
      %v5337 = vsel %vm736, %v5331, %v5333
      %v5338 = vsel %vm736, %v5333, %v5335
      %v5344 = vsel %vm736, %v5335, %v5329
      %v5345 = vmul.f32 %v5336, %v752
      %v5346 = vmul.f32 %v5337, %v756
      %v5347 = vmul.f32 %v5338, %v760
      %v5348 = vmul.f32 %v5344, %v764
      %5349 = vrot.lane.b32.xlu0 %v5215, 112
      %v5350 = vpop.permute.xlu0 %5349
      %5351 = vrot.lane.b32.xlu0 %v5216, 112
      %v5352 = vpop.permute.xlu0 %5351
      %5353 = vrot.lane.b32.xlu0 %v5217, 112
      %v5354 = vpop.permute.xlu0 %5353
      %5355 = vrot.lane.b32.xlu0 %v5218, 112
      %v5356 = vpop.permute.xlu0 %5355
      %v5357 = vsel %vm781, %v5350, %v5352
      %v5358 = vsel %vm781, %v5352, %v5354
      %v5359 = vsel %vm781, %v5354, %v5356
      %v5365 = vsel %vm781, %v5356, %v5350
      %v5366 = vmul.f32 %v5357, %v797
      %v5367 = vmul.f32 %v5358, %v801
      %v5368 = vmul.f32 %v5359, %v805
      %v5369 = vmul.f32 %v5365, %v809
      %5370 = vrot.lane.b32.xlu0 %v5215, 111
      %v5371 = vpop.permute.xlu0 %5370
      %5372 = vrot.lane.b32.xlu0 %v5216, 111
      %v5373 = vpop.permute.xlu0 %5372
      %5374 = vrot.lane.b32.xlu0 %v5217, 111
      %v5375 = vpop.permute.xlu0 %5374
      %5376 = vrot.lane.b32.xlu0 %v5218, 111
      %v5377 = vpop.permute.xlu0 %5376
      %v5378 = vsel %vm826, %v5371, %v5373
      %v5379 = vsel %vm826, %v5373, %v5375
      %v5380 = vsel %vm826, %v5375, %v5377
      %v5386 = vsel %vm826, %v5377, %v5371
      %v5387 = vmul.f32 %v5378, %v842
      %v5388 = vmul.f32 %v5379, %v846
      %v5389 = vmul.f32 %v5380, %v850
      %v5390 = vmul.f32 %v5386, %v854
      %v5395 = vrot.slane %v5261, 6
      %v5396 = vrot.slane %v5262, 6
      %v5397 = vrot.slane %v5263, 6
      %v5398 = vrot.slane %v5264, 6
      %v5407 = vrot.slane %v5282, 4
      %v5408 = vrot.slane %v5283, 4
      %v5409 = vrot.slane %v5284, 4
      %v5410 = vrot.slane %v5285, 4
      %v5419 = vrot.slane %v5303, 2
      %v5420 = vrot.slane %v5304, 2
      %v5421 = vrot.slane %v5305, 2
      %v5422 = vrot.slane %v5306, 2
      %v5431 = vrot.slane %v5324, 6
      %v5432 = vrot.slane %v5325, 6
      %v5433 = vrot.slane %v5326, 6
      %v5434 = vrot.slane %v5327, 6
      %v5443 = vrot.slane %v5345, 4
      %v5444 = vrot.slane %v5346, 4
      %v5445 = vrot.slane %v5347, 4
      %v5446 = vrot.slane %v5348, 4
      %v5455 = vrot.slane %v5366, 2
      %v5456 = vrot.slane %v5367, 2
      %v5457 = vrot.slane %v5368, 2
      %v5458 = vrot.slane %v5369, 2
      %v5463 = vsel %vm935, %v5240, %v5395
      %v5464 = vsel %vm935, %v5241, %v5396
      %v5465 = vsel %vm935, %v5242, %v5397
      %v5466 = vsel %vm935, %v5243, %v5398
      %v5467 = vsel %vm940, %v5463, %v5407
      %v5468 = vsel %vm940, %v5464, %v5408
      %v5469 = vsel %vm940, %v5465, %v5409
      %v5470 = vsel %vm940, %v5466, %v5410
      %v5471 = vsel %vm945, %v5467, %v5419
      %v5472 = vsel %vm945, %v5468, %v5420
      %v5473 = vsel %vm945, %v5469, %v5421
      %v5474 = vsel %vm945, %v5470, %v5422
      %v5475 = vsel %vm935, %v5215, %v5431
      %v5476 = vsel %vm935, %v5216, %v5432
      %v5477 = vsel %vm935, %v5217, %v5433
      %v5478 = vsel %vm935, %v5218, %v5434
      %v5479 = vsel %vm940, %v5475, %v5443
      %v5480 = vsel %vm940, %v5476, %v5444
      %v5481 = vsel %vm940, %v5477, %v5445
      %v5482 = vsel %vm940, %v5478, %v5446
      %v5483 = vsel %vm945, %v5479, %v5455
      %v5484 = vsel %vm945, %v5480, %v5456
      %v5485 = vsel %vm945, %v5481, %v5457
      %v5486 = vsel %vm945, %v5482, %v5458
      %v5487 = vsel %vm935, %v5387, 1.0
      %v5488 = vsel %vm935, %v5388, 1.0
      %v5489 = vsel %vm935, %v5389, 1.0
      %v5490 = vsel %vm935, %v5390, 1.0
      %v5491 = vpack.c.bf16 %v5483, %v5471
      %v5492 = vpack.c.bf16 %v5484, %v5472
      %v5493 = vpack.c.bf16 %v5485, %v5473
      %v5494 = vpack.c.bf16 %v5486, %v5474
      %v5495 = vpack.c.bf16 %v5487, %v5487
      %v5496 = vpack.c.bf16 %v5488, %v5488
      %v5497 = vpack.c.bf16 %v5489, %v5489
      %v5498 = vpack.c.bf16 %v5490, %v5490
      %v5499 = vld [vmem:[%s12] sm:$0x1]
      %v5501 = vsel %vm975, %v5499, 0
      %v5504 = vand.u32 %v5495, %v981
      %v5507 = vand.u32 %v5496, %v981
      %v5510 = vand.u32 %v5497, %v981
      %v5513 = vand.u32 %v5498, %v981
      %5515 = vmatprep.subr.bf16.mxu0 %v5492
      %5516 = vmatpush1.bf16.msra.mxu0 %v5491
      %5517 = vmatprep.subr.bf16.mxu0 %v5507
      %5518 = vmatpush1.bf16.msra.mxu0 %v5504
      %5519 = vmatprep.subr.bf16.mxu0 0
      %5520 = vmatpush1.bf16.msra.mxu0 0
      %5521 = vmatprep.subr.bf16.mxu0 0
      %5522 = vmatpush1.bf16.msra.mxu0 0
      %5523 = vmatprep.subr.bf16.mxu0 0
      %5524 = vmatpush1.bf16.msra.mxu0 0
      %5525 = vmatprep.subr.bf16.mxu0 0
      %5526 = vmatpush1.bf16.msra.mxu0 0
      %5527 = vmatprep.subr.bf16.mxu0 0
      %5528 = vmatpush1.bf16.msra.mxu0 0
      %5529 = vmatprep.subr.bf16.mxu0 0
      %5530 = vmatpush1.bf16.msra.mxu0 0
      %5531 = vmatprep.subr.bf16.mxu0 0
      %5532 = vmatpush1.bf16.msra.mxu0 0
      %5533 = vmatprep.subr.bf16.mxu0 0
      %5534 = vmatpush1.bf16.msra.mxu0 0
      %5535 = vmatprep.subr.bf16.mxu0 0
      %5536 = vmatpush1.bf16.msra.mxu0 0
      %5537 = vmatprep.subr.bf16.mxu0 0
      %5538 = vmatpush1.bf16.msra.mxu0 0
      %5539 = vmatprep.subr.bf16.mxu0 0
      %5540 = vmatpush1.bf16.msra.mxu0 0
      %5541 = vmatprep.subr.bf16.mxu0 0
      %5542 = vmatpush1.bf16.msra.mxu0 0
      %5543 = vmatprep.subr.bf16.mxu0 0
      %5544 = vmatpush1.bf16.msra.mxu0 0
      %5545 = vmatprep.subr.bf16.mxu0 0
      %5546 = vmatpush1.bf16.msra.mxu0 0
      %5547 = vmatprep.mubr.bf16.mxu0 0
      %5548 = vmatmul.mubr.bf16.gmra.mrb[0].mxu0 %v5501
      %v5549 = vpop.f32.mrb[0].mxu0
      %v5550 = vadd.f32 0.0, %v5549
      %v5551 = vpop.f32.mrb[0].mxu0
      %v5552 = vadd.f32 0.0, %v5551
      %v5553 = vpop.f32.mrb[0].mxu0
      %v5554 = vpop.f32.mrb[0].mxu0
      %5555 = vdwg.mxu0
      %5556 = vmatprep.subr.bf16.mxu0 %v5494
      %5557 = vmatpush1.bf16.msra.mxu0 %v5493
      %5558 = vmatprep.subr.bf16.mxu0 %v5513
      %5559 = vmatpush1.bf16.msra.mxu0 %v5510
      %5560 = vmatprep.subr.bf16.mxu0 0
      %5561 = vmatpush1.bf16.msra.mxu0 0
      %5562 = vmatprep.subr.bf16.mxu0 0
      %5563 = vmatpush1.bf16.msra.mxu0 0
      %5564 = vmatprep.subr.bf16.mxu0 0
      %5565 = vmatpush1.bf16.msra.mxu0 0
      %5566 = vmatprep.subr.bf16.mxu0 0
      %5567 = vmatpush1.bf16.msra.mxu0 0
      %5568 = vmatprep.subr.bf16.mxu0 0
      %5569 = vmatpush1.bf16.msra.mxu0 0
      %5570 = vmatprep.subr.bf16.mxu0 0
      %5571 = vmatpush1.bf16.msra.mxu0 0
      %5572 = vmatprep.subr.bf16.mxu0 0
      %5573 = vmatpush1.bf16.msra.mxu0 0
      %5574 = vmatprep.subr.bf16.mxu0 0
      %5575 = vmatpush1.bf16.msra.mxu0 0
      %5576 = vmatprep.subr.bf16.mxu0 0
      %5577 = vmatpush1.bf16.msra.mxu0 0
      %5578 = vmatprep.subr.bf16.mxu0 0
      %5579 = vmatpush1.bf16.msra.mxu0 0
      %5580 = vmatprep.subr.bf16.mxu0 0
      %5581 = vmatpush1.bf16.msra.mxu0 0
      %5582 = vmatprep.subr.bf16.mxu0 0
      %5583 = vmatpush1.bf16.msra.mxu0 0
      %5584 = vmatprep.subr.bf16.mxu0 0
      %5585 = vmatpush1.bf16.msra.mxu0 0
      %5586 = vmatprep.subr.bf16.mxu0 0
      %5587 = vmatpush1.bf16.msra.mxu0 0
      %5588 = vmatprep.mubr.bf16.mxu0 0
      %5589 = vmatmul.mubr.bf16.gmra.mrb[0].mxu0 %v5501
      %v5590 = vpop.f32.mrb[0].mxu0
      %v5591 = vadd.f32 0.0, %v5590
      %v5592 = vpop.f32.mrb[0].mxu0
      %v5593 = vadd.f32 0.0, %v5592
      %v5594 = vpop.f32.mrb[0].mxu0
      %v5595 = vpop.f32.mrb[0].mxu0
      %5596 = vdwg.mxu0
      %v5597 = vmax.f32 %v5550, 0.0
      %v5598 = vmax.f32 %v5552, 0.0
      %v5599 = vmax.f32 %v5591, 0.0
      %v5600 = vmax.f32 %v5593, 0.0
      %5603 = vrot.lane.b32.xlu0 %v5599, 17
      %v5604 = vpop.permute.xlu0 %5603
      %5605 = vrot.lane.b32.xlu0 %v5600, 17
      %v5606 = vpop.permute.xlu0 %5605
      %v5607 = vsel %vm513, %v5604, %v5606
      %5612 = vrot.lane.b32.xlu0 %v5597, 17
      %v5613 = vpop.permute.xlu0 %5612
      %5614 = vrot.lane.b32.xlu0 %v5598, 17
      %v5615 = vpop.permute.xlu0 %5614
      %v5616 = vsel %vm513, %v5613, %v5615
      %v5617 = vsel %vm513, %v5615, %v5604
      %v5621 = vsel %vm513, %v5606, %v5613
      %v5622 = vmul.f32 %v5607, %v1571
      %v5623 = vmul.f32 %v5621, %v1575
      %v5624 = vmul.f32 %v5616, %v1579
      %v5625 = vmul.f32 %v5617, %v1583
      %5626 = vrot.lane.b32.xlu0 %v5599, 16
      %v5627 = vpop.permute.xlu0 %5626
      %5628 = vrot.lane.b32.xlu0 %v5600, 16
      %v5629 = vpop.permute.xlu0 %5628
      %v5630 = vsel %vm557, %v5627, %v5629
      %5633 = vrot.lane.b32.xlu0 %v5597, 16
      %v5634 = vpop.permute.xlu0 %5633
      %5635 = vrot.lane.b32.xlu0 %v5598, 16
      %v5636 = vpop.permute.xlu0 %5635
      %v5637 = vsel %vm557, %v5634, %v5636
      %v5638 = vsel %vm557, %v5636, %v5627
      %v5642 = vsel %vm557, %v5629, %v5634
      %v5643 = vmul.f32 %v5630, %v1615
      %v5644 = vmul.f32 %v5642, %v1619
      %v5645 = vmul.f32 %v5637, %v1623
      %v5646 = vmul.f32 %v5638, %v1627
      %5647 = vrot.lane.b32.xlu0 %v5599, 15
      %v5648 = vpop.permute.xlu0 %5647
      %5649 = vrot.lane.b32.xlu0 %v5600, 15
      %v5650 = vpop.permute.xlu0 %5649
      %v5651 = vsel %vm602, %v5648, %v5650
      %5654 = vrot.lane.b32.xlu0 %v5597, 15
      %v5655 = vpop.permute.xlu0 %5654
      %5656 = vrot.lane.b32.xlu0 %v5598, 15
      %v5657 = vpop.permute.xlu0 %5656
      %v5658 = vsel %vm602, %v5655, %v5657
      %v5659 = vsel %vm602, %v5657, %v5648
      %v5663 = vsel %vm602, %v5650, %v5655
      %v5664 = vmul.f32 %v5651, %v1659
      %v5665 = vmul.f32 %v5663, %v1663
      %v5666 = vmul.f32 %v5658, %v1667
      %v5667 = vmul.f32 %v5659, %v1671
      %5668 = vrot.lane.b32.xlu0 %v5599, 1
      %v5669 = vpop.permute.xlu0 %5668
      %5670 = vrot.lane.b32.xlu0 %v5600, 1
      %v5671 = vpop.permute.xlu0 %5670
      %v5672 = vsel %vm647, %v5669, %v5671
      %5675 = vrot.lane.b32.xlu0 %v5597, 1
      %v5676 = vpop.permute.xlu0 %5675
      %5677 = vrot.lane.b32.xlu0 %v5598, 1
      %v5678 = vpop.permute.xlu0 %5677
      %v5679 = vsel %vm647, %v5676, %v5678
      %v5680 = vsel %vm647, %v5678, %v5669
      %v5684 = vsel %vm647, %v5671, %v5676
      %v5685 = vmul.f32 %v5672, %v1703
      %v5686 = vmul.f32 %v5684, %v1707
      %v5687 = vmul.f32 %v5679, %v1711
      %v5688 = vmul.f32 %v5680, %v1715
      %v5689 = vmul.f32 %v5600, %v1730
      %v5690 = vmul.f32 %v5597, %v1734
      %v5691 = vmul.f32 %v5598, %v1738
      %v5692 = vmul.f32 %v5599, %v1742
      %5693 = vrot.lane.b32.xlu0 %v5600, 127
      %v5694 = vpop.permute.xlu0 %5693
      %5696 = vrot.lane.b32.xlu0 %v5597, 127
      %v5697 = vpop.permute.xlu0 %5696
      %5698 = vrot.lane.b32.xlu0 %v5598, 127
      %v5699 = vpop.permute.xlu0 %5698
      %5700 = vrot.lane.b32.xlu0 %v5599, 127
      %v5701 = vpop.permute.xlu0 %5700
      %v5702 = vsel %vm691, %v5697, %v5699
      %v5703 = vsel %vm691, %v5699, %v5701
      %v5704 = vsel %vm691, %v5701, %v5694
      %v5709 = vsel %vm691, %v5694, %v5697
      %v5710 = vmul.f32 %v5709, %v1774
      %v5711 = vmul.f32 %v5702, %v1778
      %v5712 = vmul.f32 %v5703, %v1782
      %v5713 = vmul.f32 %v5704, %v1786
      %5714 = vrot.lane.b32.xlu0 %v5600, 113
      %v5715 = vpop.permute.xlu0 %5714
      %5717 = vrot.lane.b32.xlu0 %v5597, 113
      %v5718 = vpop.permute.xlu0 %5717
      %5719 = vrot.lane.b32.xlu0 %v5598, 113
      %v5720 = vpop.permute.xlu0 %5719
      %5721 = vrot.lane.b32.xlu0 %v5599, 113
      %v5722 = vpop.permute.xlu0 %5721
      %v5723 = vsel %vm736, %v5718, %v5720
      %v5724 = vsel %vm736, %v5720, %v5722
      %v5725 = vsel %vm736, %v5722, %v5715
      %v5730 = vsel %vm736, %v5715, %v5718
      %v5731 = vmul.f32 %v5730, %v1818
      %v5732 = vmul.f32 %v5723, %v1822
      %v5733 = vmul.f32 %v5724, %v1826
      %v5734 = vmul.f32 %v5725, %v1830
      %5735 = vrot.lane.b32.xlu0 %v5600, 112
      %v5736 = vpop.permute.xlu0 %5735
      %5738 = vrot.lane.b32.xlu0 %v5597, 112
      %v5739 = vpop.permute.xlu0 %5738
      %5740 = vrot.lane.b32.xlu0 %v5598, 112
      %v5741 = vpop.permute.xlu0 %5740
      %5742 = vrot.lane.b32.xlu0 %v5599, 112
      %v5743 = vpop.permute.xlu0 %5742
      %v5744 = vsel %vm781, %v5739, %v5741
      %v5745 = vsel %vm781, %v5741, %v5743
      %v5746 = vsel %vm781, %v5743, %v5736
      %v5751 = vsel %vm781, %v5736, %v5739
      %v5752 = vmul.f32 %v5751, %v1862
      %v5753 = vmul.f32 %v5744, %v1866
      %v5754 = vmul.f32 %v5745, %v1870
      %v5755 = vmul.f32 %v5746, %v1874
      %5756 = vrot.lane.b32.xlu0 %v5600, 111
      %v5757 = vpop.permute.xlu0 %5756
      %5759 = vrot.lane.b32.xlu0 %v5597, 111
      %v5760 = vpop.permute.xlu0 %5759
      %5761 = vrot.lane.b32.xlu0 %v5598, 111
      %v5762 = vpop.permute.xlu0 %5761
      %5763 = vrot.lane.b32.xlu0 %v5599, 111
      %v5764 = vpop.permute.xlu0 %5763
      %v5765 = vsel %vm826, %v5760, %v5762
      %v5766 = vsel %vm826, %v5762, %v5764
      %v5767 = vsel %vm826, %v5764, %v5757
      %v5772 = vsel %vm826, %v5757, %v5760
      %v5773 = vmul.f32 %v5772, %v1906
      %v5774 = vmul.f32 %v5765, %v1910
      %v5775 = vmul.f32 %v5766, %v1914
      %v5776 = vmul.f32 %v5767, %v1918
      %v5777 = vmul.f32 %v5621, %v1933
      %v5778 = vmul.f32 %v5616, %v1937
      %v5779 = vmul.f32 %v5617, %v1941
      %v5780 = vmul.f32 %v5607, %v1945
      %v5781 = vmul.f32 %v5642, %v1960
      %v5782 = vmul.f32 %v5637, %v1964
      %v5783 = vmul.f32 %v5638, %v1968
      %v5784 = vmul.f32 %v5630, %v1972
      %v5785 = vmul.f32 %v5663, %v1987
      %v5786 = vmul.f32 %v5658, %v1991
      %v5787 = vmul.f32 %v5659, %v1995
      %v5788 = vmul.f32 %v5651, %v1999
      %v5789 = vmul.f32 %v5684, %v2014
      %v5790 = vmul.f32 %v5679, %v2018
      %v5791 = vmul.f32 %v5680, %v2022
      %v5792 = vmul.f32 %v5672, %v2026
      %v5793 = vmul.f32 %v5702, %v2041
      %v5794 = vmul.f32 %v5703, %v2045
      %v5795 = vmul.f32 %v5704, %v2049
      %v5796 = vmul.f32 %v5709, %v2053
      %v5797 = vmul.f32 %v5723, %v2068
      %v5798 = vmul.f32 %v5724, %v2072
      %v5799 = vmul.f32 %v5725, %v2076
      %v5800 = vmul.f32 %v5730, %v2080
      %v5801 = vmul.f32 %v5744, %v2095
      %v5802 = vmul.f32 %v5745, %v2099
      %v5803 = vmul.f32 %v5746, %v2103
      %v5804 = vmul.f32 %v5751, %v2107
      %v5805 = vmul.f32 %v5765, %v2122
      %v5806 = vmul.f32 %v5766, %v2126
      %v5807 = vmul.f32 %v5767, %v2130
      %v5808 = vmul.f32 %v5772, %v2134
      %v5809 = vmul.f32 %v5616, %v2149
      %v5810 = vmul.f32 %v5617, %v2153
      %v5811 = vmul.f32 %v5607, %v2157
      %v5812 = vmul.f32 %v5621, %v2161
      %v5813 = vmul.f32 %v5637, %v2176
      %v5814 = vmul.f32 %v5638, %v2180
      %v5815 = vmul.f32 %v5630, %v2184
      %v5816 = vmul.f32 %v5642, %v2188
      %v5817 = vmul.f32 %v5658, %v2203
      %v5818 = vmul.f32 %v5659, %v2207
      %v5819 = vmul.f32 %v5651, %v2211
      %v5820 = vmul.f32 %v5663, %v2215
      %v5821 = vmul.f32 %v5679, %v2230
      %v5822 = vmul.f32 %v5680, %v2234
      %v5823 = vmul.f32 %v5672, %v2238
      %v5824 = vmul.f32 %v5684, %v2242
      %v5825 = vmul.f32 %v5598, %v2257
      %v5826 = vmul.f32 %v5599, %v2261
      %v5827 = vmul.f32 %v5600, %v2265
      %v5828 = vmul.f32 %v5597, %v2269
      %v5829 = vmul.f32 %v5703, %v2284
      %v5830 = vmul.f32 %v5704, %v2288
      %v5831 = vmul.f32 %v5709, %v2292
      %v5832 = vmul.f32 %v5702, %v2296
      %v5833 = vmul.f32 %v5724, %v2311
      %v5834 = vmul.f32 %v5725, %v2315
      %v5835 = vmul.f32 %v5730, %v2319
      %v5836 = vmul.f32 %v5723, %v2323
      %v5837 = vmul.f32 %v5745, %v2338
      %v5838 = vmul.f32 %v5746, %v2342
      %v5839 = vmul.f32 %v5751, %v2346
      %v5840 = vmul.f32 %v5744, %v2350
      %v5841 = vmul.f32 %v5766, %v2365
      %v5842 = vmul.f32 %v5767, %v2369
      %v5843 = vmul.f32 %v5772, %v2373
      %v5844 = vmul.f32 %v5765, %v2377
      %v5849 = vrot.slane %v5643, 6
      %v5850 = vrot.slane %v5644, 6
      %v5851 = vrot.slane %v5645, 6
      %v5852 = vrot.slane %v5646, 6
      %v5861 = vrot.slane %v5664, 4
      %v5862 = vrot.slane %v5665, 4
      %v5863 = vrot.slane %v5666, 4
      %v5864 = vrot.slane %v5667, 4
      %v5873 = vrot.slane %v5685, 2
      %v5874 = vrot.slane %v5686, 2
      %v5875 = vrot.slane %v5687, 2
      %v5876 = vrot.slane %v5688, 2
      %v5885 = vrot.slane %v5710, 6
      %v5886 = vrot.slane %v5711, 6
      %v5887 = vrot.slane %v5712, 6
      %v5888 = vrot.slane %v5713, 6
      %v5897 = vrot.slane %v5731, 4
      %v5898 = vrot.slane %v5732, 4
      %v5899 = vrot.slane %v5733, 4
      %v5900 = vrot.slane %v5734, 4
      %v5909 = vrot.slane %v5752, 2
      %v5910 = vrot.slane %v5753, 2
      %v5911 = vrot.slane %v5754, 2
      %v5912 = vrot.slane %v5755, 2
      %v5921 = vrot.slane %v5777, 6
      %v5922 = vrot.slane %v5778, 6
      %v5923 = vrot.slane %v5779, 6
      %v5924 = vrot.slane %v5780, 6
      %v5933 = vrot.slane %v5781, 4
      %v5934 = vrot.slane %v5782, 4
      %v5935 = vrot.slane %v5783, 4
      %v5936 = vrot.slane %v5784, 4
      %v5945 = vrot.slane %v5785, 2
      %v5946 = vrot.slane %v5786, 2
      %v5947 = vrot.slane %v5787, 2
      %v5948 = vrot.slane %v5788, 2
      %v5953 = vrot.slane %v5597, 6
      %v5954 = vrot.slane %v5598, 6
      %v5955 = vrot.slane %v5599, 6
      %v5956 = vrot.slane %v5600, 6
      %v5965 = vrot.slane %v5793, 4
      %v5966 = vrot.slane %v5794, 4
      %v5967 = vrot.slane %v5795, 4
      %v5968 = vrot.slane %v5796, 4
      %v5977 = vrot.slane %v5797, 2
      %v5978 = vrot.slane %v5798, 2
      %v5979 = vrot.slane %v5799, 2
      %v5980 = vrot.slane %v5800, 2
      %v5985 = vsel %vm935, %v5622, %v5849
      %v5986 = vsel %vm935, %v5623, %v5850
      %v5987 = vsel %vm935, %v5624, %v5851
      %v5988 = vsel %vm935, %v5625, %v5852
      %v5989 = vsel %vm940, %v5985, %v5861
      %v5990 = vsel %vm940, %v5986, %v5862
      %v5991 = vsel %vm940, %v5987, %v5863
      %v5992 = vsel %vm940, %v5988, %v5864
      %v5993 = vsel %vm945, %v5989, %v5873
      %v5994 = vsel %vm945, %v5990, %v5874
      %v5995 = vsel %vm945, %v5991, %v5875
      %v5996 = vsel %vm945, %v5992, %v5876
      %v5997 = vsel %vm935, %v5689, %v5885
      %v5998 = vsel %vm935, %v5690, %v5886
      %v5999 = vsel %vm935, %v5691, %v5887
      %v6000 = vsel %vm935, %v5692, %v5888
      %v6001 = vsel %vm940, %v5997, %v5897
      %v6002 = vsel %vm940, %v5998, %v5898
      %v6003 = vsel %vm940, %v5999, %v5899
      %v6004 = vsel %vm940, %v6000, %v5900
      %v6005 = vsel %vm945, %v6001, %v5909
      %v6006 = vsel %vm945, %v6002, %v5910
      %v6007 = vsel %vm945, %v6003, %v5911
      %v6008 = vsel %vm945, %v6004, %v5912
      %v6009 = vsel %vm935, %v5773, %v5921
      %v6010 = vsel %vm935, %v5774, %v5922
      %v6011 = vsel %vm935, %v5775, %v5923
      %v6012 = vsel %vm935, %v5776, %v5924
      %v6013 = vsel %vm940, %v6009, %v5933
      %v6014 = vsel %vm940, %v6010, %v5934
      %v6015 = vsel %vm940, %v6011, %v5935
      %v6016 = vsel %vm940, %v6012, %v5936
      %v6017 = vsel %vm945, %v6013, %v5945
      %v6018 = vsel %vm945, %v6014, %v5946
      %v6019 = vsel %vm945, %v6015, %v5947
      %v6020 = vsel %vm945, %v6016, %v5948
      %v6021 = vsel %vm935, %v5789, %v5953
      %v6022 = vsel %vm935, %v5790, %v5954
      %v6023 = vsel %vm935, %v5791, %v5955
      %v6024 = vsel %vm935, %v5792, %v5956
      %v6025 = vsel %vm940, %v6021, %v5965
      %v6026 = vsel %vm940, %v6022, %v5966
      %v6027 = vsel %vm940, %v6023, %v5967
      %v6028 = vsel %vm940, %v6024, %v5968
      %v6029 = vsel %vm945, %v6025, %v5977
      %v6030 = vsel %vm945, %v6026, %v5978
      %v6031 = vsel %vm945, %v6027, %v5979
      %v6032 = vsel %vm945, %v6028, %v5980
      %v6037 = vrot.slane %v5805, 6
      %v6038 = vrot.slane %v5806, 6
      %v6039 = vrot.slane %v5807, 6
      %v6040 = vrot.slane %v5808, 6
      %v6049 = vrot.slane %v5809, 4
      %v6050 = vrot.slane %v5810, 4
      %v6051 = vrot.slane %v5811, 4
      %v6052 = vrot.slane %v5812, 4
      %v6061 = vrot.slane %v5813, 2
      %v6062 = vrot.slane %v5814, 2
      %v6063 = vrot.slane %v5815, 2
      %v6064 = vrot.slane %v5816, 2
      %v6073 = vrot.slane %v5821, 6
      %v6074 = vrot.slane %v5822, 6
      %v6075 = vrot.slane %v5823, 6
      %v6076 = vrot.slane %v5824, 6
      %v6085 = vrot.slane %v5825, 4
      %v6086 = vrot.slane %v5826, 4
      %v6087 = vrot.slane %v5827, 4
      %v6088 = vrot.slane %v5828, 4
      %v6097 = vrot.slane %v5829, 2
      %v6098 = vrot.slane %v5830, 2
      %v6099 = vrot.slane %v5831, 2
      %v6100 = vrot.slane %v5832, 2
      %v6109 = vrot.slane %v5837, 6
      %v6110 = vrot.slane %v5838, 6
      %v6111 = vrot.slane %v5839, 6
      %v6112 = vrot.slane %v5840, 6
      %v6121 = vrot.slane %v5841, 4
      %v6122 = vrot.slane %v5842, 4
      %v6123 = vrot.slane %v5843, 4
      %v6124 = vrot.slane %v5844, 4
      %v6129 = vsel %vm935, %v5801, %v6037
      %v6130 = vsel %vm935, %v5802, %v6038
      %v6131 = vsel %vm935, %v5803, %v6039
      %v6132 = vsel %vm935, %v5804, %v6040
      %v6133 = vsel %vm940, %v6129, %v6049
      %v6134 = vsel %vm940, %v6130, %v6050
      %v6135 = vsel %vm940, %v6131, %v6051
      %v6136 = vsel %vm940, %v6132, %v6052
      %v6137 = vsel %vm945, %v6133, %v6061
      %v6138 = vsel %vm945, %v6134, %v6062
      %v6139 = vsel %vm945, %v6135, %v6063
      %v6140 = vsel %vm945, %v6136, %v6064
      %v6141 = vsel %vm935, %v5817, %v6073
      %v6142 = vsel %vm935, %v5818, %v6074
      %v6143 = vsel %vm935, %v5819, %v6075
      %v6144 = vsel %vm935, %v5820, %v6076
      %v6145 = vsel %vm940, %v6141, %v6085
      %v6146 = vsel %vm940, %v6142, %v6086
      %v6147 = vsel %vm940, %v6143, %v6087
      %v6148 = vsel %vm940, %v6144, %v6088
      %v6149 = vsel %vm945, %v6145, %v6097
      %v6150 = vsel %vm945, %v6146, %v6098
      %v6151 = vsel %vm945, %v6147, %v6099
      %v6152 = vsel %vm945, %v6148, %v6100
      %v6153 = vsel %vm935, %v5833, %v6109
      %v6154 = vsel %vm935, %v5834, %v6110
      %v6155 = vsel %vm935, %v5835, %v6111
      %v6156 = vsel %vm935, %v5836, %v6112
      %v6157 = vsel %vm940, %v6153, %v6121
      %v6158 = vsel %vm940, %v6154, %v6122
      %v6159 = vsel %vm940, %v6155, %v6123
      %v6160 = vsel %vm940, %v6156, %v6124
      %v6161 = vsel %vm945, %v6157, 1.0
      %v6162 = vsel %vm945, %v6158, 1.0
      %v6163 = vsel %vm945, %v6159, 1.0
      %v6164 = vsel %vm945, %v6160, 1.0
      %v6165 = vpack.c.bf16 %v6005, %v5993
      %v6166 = vpack.c.bf16 %v6006, %v5994
      %v6167 = vpack.c.bf16 %v6007, %v5995
      %v6168 = vpack.c.bf16 %v6008, %v5996
      %v6169 = vpack.c.bf16 %v6029, %v6017
      %v6170 = vpack.c.bf16 %v6030, %v6018
      %v6171 = vpack.c.bf16 %v6031, %v6019
      %v6172 = vpack.c.bf16 %v6032, %v6020
      %v6173 = vpack.c.bf16 %v6149, %v6137
      %v6174 = vpack.c.bf16 %v6150, %v6138
      %v6175 = vpack.c.bf16 %v6151, %v6139
      %v6176 = vpack.c.bf16 %v6152, %v6140
      %v6177 = vpack.c.bf16 %v6161, %v6161
      %v6178 = vpack.c.bf16 %v6162, %v6162
      %v6179 = vpack.c.bf16 %v6163, %v6163
      %v6180 = vpack.c.bf16 %v6164, %v6164
      %v6181 = vld [vmem:[%s13] sm:$0x1]
      %v6183 = vsel %vm2723, %v6181, 0
      %v6186 = vand.u32 %v6177, %v2729
      %v6189 = vand.u32 %v6178, %v2729
      %v6192 = vand.u32 %v6179, %v2729
      %v6195 = vand.u32 %v6180, %v2729
      %6197 = vmatprep.subr.bf16.mxu0 %v6166
      %6198 = vmatpush1.bf16.msra.mxu0 %v6165
      %6199 = vmatprep.subr.bf16.mxu0 %v6170
      %6200 = vmatpush1.bf16.msra.mxu0 %v6169
      %6201 = vmatprep.subr.bf16.mxu0 %v6174
      %6202 = vmatpush1.bf16.msra.mxu0 %v6173
      %6203 = vmatprep.subr.bf16.mxu0 %v6189
      %6204 = vmatpush1.bf16.msra.mxu0 %v6186
      %6205 = vmatprep.subr.bf16.mxu0 0
      %6206 = vmatpush1.bf16.msra.mxu0 0
      %6207 = vmatprep.subr.bf16.mxu0 0
      %6208 = vmatpush1.bf16.msra.mxu0 0
      %6209 = vmatprep.subr.bf16.mxu0 0
      %6210 = vmatpush1.bf16.msra.mxu0 0
      %6211 = vmatprep.subr.bf16.mxu0 0
      %6212 = vmatpush1.bf16.msra.mxu0 0
      %6213 = vmatprep.subr.bf16.mxu0 0
      %6214 = vmatpush1.bf16.msra.mxu0 0
      %6215 = vmatprep.subr.bf16.mxu0 0
      %6216 = vmatpush1.bf16.msra.mxu0 0
      %6217 = vmatprep.subr.bf16.mxu0 0
      %6218 = vmatpush1.bf16.msra.mxu0 0
      %6219 = vmatprep.subr.bf16.mxu0 0
      %6220 = vmatpush1.bf16.msra.mxu0 0
      %6221 = vmatprep.subr.bf16.mxu0 0
      %6222 = vmatpush1.bf16.msra.mxu0 0
      %6223 = vmatprep.subr.bf16.mxu0 0
      %6224 = vmatpush1.bf16.msra.mxu0 0
      %6225 = vmatprep.subr.bf16.mxu0 0
      %6226 = vmatpush1.bf16.msra.mxu0 0
      %6227 = vmatprep.subr.bf16.mxu0 0
      %6228 = vmatpush1.bf16.msra.mxu0 0
      %6229 = vmatprep.mubr.bf16.mxu0 0
      %6230 = vmatmul.mubr.bf16.gmra.mrb[0].mxu0 %v6183
      %v6231 = vpop.f32.mrb[0].mxu0
      %v6232 = vadd.f32 0.0, %v6231
      %v6233 = vpop.f32.mrb[0].mxu0
      %v6234 = vadd.f32 0.0, %v6233
      %v6235 = vpop.f32.mrb[0].mxu0
      %v6236 = vpop.f32.mrb[0].mxu0
      %6237 = vdwg.mxu0
      %6238 = vmatprep.subr.bf16.mxu0 %v6168
      %6239 = vmatpush1.bf16.msra.mxu0 %v6167
      %6240 = vmatprep.subr.bf16.mxu0 %v6172
      %6241 = vmatpush1.bf16.msra.mxu0 %v6171
      %6242 = vmatprep.subr.bf16.mxu0 %v6176
      %6243 = vmatpush1.bf16.msra.mxu0 %v6175
      %6244 = vmatprep.subr.bf16.mxu0 %v6195
      %6245 = vmatpush1.bf16.msra.mxu0 %v6192
      %6246 = vmatprep.subr.bf16.mxu0 0
      %6247 = vmatpush1.bf16.msra.mxu0 0
      %6248 = vmatprep.subr.bf16.mxu0 0
      %6249 = vmatpush1.bf16.msra.mxu0 0
      %6250 = vmatprep.subr.bf16.mxu0 0
      %6251 = vmatpush1.bf16.msra.mxu0 0
      %6252 = vmatprep.subr.bf16.mxu0 0
      %6253 = vmatpush1.bf16.msra.mxu0 0
      %6254 = vmatprep.subr.bf16.mxu0 0
      %6255 = vmatpush1.bf16.msra.mxu0 0
      %6256 = vmatprep.subr.bf16.mxu0 0
      %6257 = vmatpush1.bf16.msra.mxu0 0
      %6258 = vmatprep.subr.bf16.mxu0 0
      %6259 = vmatpush1.bf16.msra.mxu0 0
      %6260 = vmatprep.subr.bf16.mxu0 0
      %6261 = vmatpush1.bf16.msra.mxu0 0
      %6262 = vmatprep.subr.bf16.mxu0 0
      %6263 = vmatpush1.bf16.msra.mxu0 0
      %6264 = vmatprep.subr.bf16.mxu0 0
      %6265 = vmatpush1.bf16.msra.mxu0 0
      %6266 = vmatprep.subr.bf16.mxu0 0
      %6267 = vmatpush1.bf16.msra.mxu0 0
      %6268 = vmatprep.subr.bf16.mxu0 0
      %6269 = vmatpush1.bf16.msra.mxu0 0
      %6270 = vmatprep.mubr.bf16.mxu0 0
      %6271 = vmatmul.mubr.bf16.gmra.mrb[0].mxu0 %v6183
      %v6272 = vpop.f32.mrb[0].mxu0
      %v6273 = vadd.f32 0.0, %v6272
      %v6274 = vpop.f32.mrb[0].mxu0
      %v6275 = vadd.f32 0.0, %v6274
      %v6276 = vpop.f32.mrb[0].mxu0
      %v6277 = vpop.f32.mrb[0].mxu0
      %6278 = vdwg.mxu0
      %v6279 = vmax.f32 %v6232, 0.0
      %v6280 = vmax.f32 %v6234, 0.0
      %v6281 = vmax.f32 %v6273, 0.0
      %v6282 = vmax.f32 %v6275, 0.0
      %v6283 = vmul.f32 %v6279, %v5037
      %v6284 = vmul.f32 %v6280, %v5038
      %v6285 = vmul.f32 %v6281, %v5039
      %v6286 = vmul.f32 %v6282, %v5040
      %v6291 = vrot.slane %v3949, 6
      %v6292 = vrot.slane %v3950, 6
      %v6293 = vrot.slane %v3951, 6
      %v6294 = vrot.slane %v3952, 6
      %v6303 = vrot.slane %v4965, 4
      %v6304 = vrot.slane %v4966, 4
      %v6305 = vrot.slane %v4967, 4
      %v6306 = vrot.slane %v4968, 4
      %v6315 = vrot.slane %v6283, 2
      %v6316 = vrot.slane %v6284, 2
      %v6317 = vrot.slane %v6285, 2
      %v6318 = vrot.slane %v6286, 2
      %v6323 = vsel %vm935, %v2828, %v6291
      %v6324 = vsel %vm935, %v2829, %v6292
      %v6325 = vsel %vm935, %v2830, %v6293
      %v6326 = vsel %vm935, %v2831, %v6294
      %v6327 = vsel %vm940, %v6323, %v6303
      %v6328 = vsel %vm940, %v6324, %v6304
      %v6329 = vsel %vm940, %v6325, %v6305
      %v6330 = vsel %vm940, %v6326, %v6306
      %v6331 = vsel %vm945, %v6327, %v6315
      %v6332 = vsel %vm945, %v6328, %v6316
      %v6333 = vsel %vm945, %v6329, %v6317
      %v6334 = vsel %vm945, %v6330, %v6318
      %6336 = vrot.lane.b32.xlu0 %v6334, 17
      %v6337 = vpop.permute.xlu0 %6336
      %6342 = vrot.lane.b32.xlu0 %v6331, 17
      %v6343 = vpop.permute.xlu0 %6342
      %6344 = vrot.lane.b32.xlu0 %v6332, 17
      %v6345 = vpop.permute.xlu0 %6344
      %6346 = vrot.lane.b32.xlu0 %v6333, 17
      %v6347 = vpop.permute.xlu0 %6346
      %v6348 = vsel %vm513, %v6343, %v6345
      %v6349 = vsel %vm513, %v6345, %v6347
      %v6350 = vsel %vm513, %v6347, %v6337
      %v6355 = vsel %vm513, %v6337, %v6343
      %v6356 = vmul.f32 %v6355, %v527
      %v6357 = vmul.f32 %v6348, %v531
      %v6358 = vmul.f32 %v6349, %v535
      %v6359 = vmul.f32 %v6350, %v539
      %6360 = vrot.lane.b32.xlu0 %v6334, 16
      %v6361 = vpop.permute.xlu0 %6360
      %6363 = vrot.lane.b32.xlu0 %v6331, 16
      %v6364 = vpop.permute.xlu0 %6363
      %6365 = vrot.lane.b32.xlu0 %v6332, 16
      %v6366 = vpop.permute.xlu0 %6365
      %6367 = vrot.lane.b32.xlu0 %v6333, 16
      %v6368 = vpop.permute.xlu0 %6367
      %v6369 = vsel %vm557, %v6364, %v6366
      %v6370 = vsel %vm557, %v6366, %v6368
      %v6371 = vsel %vm557, %v6368, %v6361
      %v6376 = vsel %vm557, %v6361, %v6364
      %v6377 = vmul.f32 %v6376, %v572
      %v6378 = vmul.f32 %v6369, %v576
      %v6379 = vmul.f32 %v6370, %v580
      %v6380 = vmul.f32 %v6371, %v584
      %6381 = vrot.lane.b32.xlu0 %v6334, 15
      %v6382 = vpop.permute.xlu0 %6381
      %6384 = vrot.lane.b32.xlu0 %v6331, 15
      %v6385 = vpop.permute.xlu0 %6384
      %6386 = vrot.lane.b32.xlu0 %v6332, 15
      %v6387 = vpop.permute.xlu0 %6386
      %6388 = vrot.lane.b32.xlu0 %v6333, 15
      %v6389 = vpop.permute.xlu0 %6388
      %v6390 = vsel %vm602, %v6385, %v6387
      %v6391 = vsel %vm602, %v6387, %v6389
      %v6392 = vsel %vm602, %v6389, %v6382
      %v6397 = vsel %vm602, %v6382, %v6385
      %v6398 = vmul.f32 %v6397, %v617
      %v6399 = vmul.f32 %v6390, %v621
      %v6400 = vmul.f32 %v6391, %v625
      %v6401 = vmul.f32 %v6392, %v629
      %6402 = vrot.lane.b32.xlu0 %v6334, 1
      %v6403 = vpop.permute.xlu0 %6402
      %6405 = vrot.lane.b32.xlu0 %v6331, 1
      %v6406 = vpop.permute.xlu0 %6405
      %6407 = vrot.lane.b32.xlu0 %v6332, 1
      %v6408 = vpop.permute.xlu0 %6407
      %6409 = vrot.lane.b32.xlu0 %v6333, 1
      %v6410 = vpop.permute.xlu0 %6409
      %v6411 = vsel %vm647, %v6406, %v6408
      %v6412 = vsel %vm647, %v6408, %v6410
      %v6413 = vsel %vm647, %v6410, %v6403
      %v6418 = vsel %vm647, %v6403, %v6406
      %v6419 = vmul.f32 %v6418, %v662
      %v6420 = vmul.f32 %v6411, %v666
      %v6421 = vmul.f32 %v6412, %v670
      %v6422 = vmul.f32 %v6413, %v674
      %6423 = vrot.lane.b32.xlu0 %v6331, 127
      %v6424 = vpop.permute.xlu0 %6423
      %6425 = vrot.lane.b32.xlu0 %v6332, 127
      %v6426 = vpop.permute.xlu0 %6425
      %6427 = vrot.lane.b32.xlu0 %v6333, 127
      %v6428 = vpop.permute.xlu0 %6427
      %6429 = vrot.lane.b32.xlu0 %v6334, 127
      %v6430 = vpop.permute.xlu0 %6429
      %v6431 = vsel %vm691, %v6424, %v6426
      %v6432 = vsel %vm691, %v6426, %v6428
      %v6433 = vsel %vm691, %v6428, %v6430
      %v6439 = vsel %vm691, %v6430, %v6424
      %v6440 = vmul.f32 %v6431, %v707
      %v6441 = vmul.f32 %v6432, %v711
      %v6442 = vmul.f32 %v6433, %v715
      %v6443 = vmul.f32 %v6439, %v719
      %6444 = vrot.lane.b32.xlu0 %v6331, 113
      %v6445 = vpop.permute.xlu0 %6444
      %6446 = vrot.lane.b32.xlu0 %v6332, 113
      %v6447 = vpop.permute.xlu0 %6446
      %6448 = vrot.lane.b32.xlu0 %v6333, 113
      %v6449 = vpop.permute.xlu0 %6448
      %6450 = vrot.lane.b32.xlu0 %v6334, 113
      %v6451 = vpop.permute.xlu0 %6450
      %v6452 = vsel %vm736, %v6445, %v6447
      %v6453 = vsel %vm736, %v6447, %v6449
      %v6454 = vsel %vm736, %v6449, %v6451
      %v6460 = vsel %vm736, %v6451, %v6445
      %v6461 = vmul.f32 %v6452, %v752
      %v6462 = vmul.f32 %v6453, %v756
      %v6463 = vmul.f32 %v6454, %v760
      %v6464 = vmul.f32 %v6460, %v764
      %6465 = vrot.lane.b32.xlu0 %v6331, 112
      %v6466 = vpop.permute.xlu0 %6465
      %6467 = vrot.lane.b32.xlu0 %v6332, 112
      %v6468 = vpop.permute.xlu0 %6467
      %6469 = vrot.lane.b32.xlu0 %v6333, 112
      %v6470 = vpop.permute.xlu0 %6469
      %6471 = vrot.lane.b32.xlu0 %v6334, 112
      %v6472 = vpop.permute.xlu0 %6471
      %v6473 = vsel %vm781, %v6466, %v6468
      %v6474 = vsel %vm781, %v6468, %v6470
      %v6475 = vsel %vm781, %v6470, %v6472
      %v6481 = vsel %vm781, %v6472, %v6466
      %v6482 = vmul.f32 %v6473, %v797
      %v6483 = vmul.f32 %v6474, %v801
      %v6484 = vmul.f32 %v6475, %v805
      %v6485 = vmul.f32 %v6481, %v809
      %6486 = vrot.lane.b32.xlu0 %v6331, 111
      %v6487 = vpop.permute.xlu0 %6486
      %6488 = vrot.lane.b32.xlu0 %v6332, 111
      %v6489 = vpop.permute.xlu0 %6488
      %6490 = vrot.lane.b32.xlu0 %v6333, 111
      %v6491 = vpop.permute.xlu0 %6490
      %6492 = vrot.lane.b32.xlu0 %v6334, 111
      %v6493 = vpop.permute.xlu0 %6492
      %v6494 = vsel %vm826, %v6487, %v6489
      %v6495 = vsel %vm826, %v6489, %v6491
      %v6496 = vsel %vm826, %v6491, %v6493
      %v6502 = vsel %vm826, %v6493, %v6487
      %v6503 = vmul.f32 %v6494, %v842
      %v6504 = vmul.f32 %v6495, %v846
      %v6505 = vmul.f32 %v6496, %v850
      %v6506 = vmul.f32 %v6502, %v854
      %v6507 = vpack.c.bf16 %v6377, %v6356
      %v6508 = vpack.c.bf16 %v6378, %v6357
      %v6509 = vpack.c.bf16 %v6379, %v6358
      %v6510 = vpack.c.bf16 %v6380, %v6359
      %v6511 = vpack.c.bf16 %v6419, %v6398
      %v6512 = vpack.c.bf16 %v6420, %v6399
      %v6513 = vpack.c.bf16 %v6421, %v6400
      %v6514 = vpack.c.bf16 %v6422, %v6401
      %v6515 = vpack.c.bf16 %v6440, %v6331
      %v6516 = vpack.c.bf16 %v6441, %v6332
      %v6517 = vpack.c.bf16 %v6442, %v6333
      %v6518 = vpack.c.bf16 %v6443, %v6334
      %v6519 = vpack.c.bf16 %v6482, %v6461
      %v6520 = vpack.c.bf16 %v6483, %v6462
      %v6521 = vpack.c.bf16 %v6484, %v6463
      %v6522 = vpack.c.bf16 %v6485, %v6464
      %v6523 = vpack.c.bf16 1.0, %v6503
      %v6524 = vpack.c.bf16 1.0, %v6504
      %v6525 = vpack.c.bf16 1.0, %v6505
      %v6526 = vpack.c.bf16 1.0, %v6506
      %v6527 = vld [vmem:[%s14] sm:$0xf]
      %vm6528 = vcmask 596992
      %v6530 = vsel %vm6528, %v6527, 0
      %vm6532 = vcmask 1044480
      %v6533 = vsel %vm940, 4294967295, 65535
      %v6534 = vsel %vm6532, %v6533, 0
      %v6536 = vand.u32 %v6523, %v6534
      %v6539 = vand.u32 %v6524, %v6534
      %v6542 = vand.u32 %v6525, %v6534
      %v6545 = vand.u32 %v6526, %v6534
      %6547 = vmatprep.subr.bf16.mxu0 %v6508
      %6548 = vmatpush1.bf16.msra.mxu0 %v6507
      %6549 = vmatprep.subr.bf16.mxu0 %v6512
      %6550 = vmatpush1.bf16.msra.mxu0 %v6511
      %6551 = vmatprep.subr.bf16.mxu0 %v6516
      %6552 = vmatpush1.bf16.msra.mxu0 %v6515
      %6553 = vmatprep.subr.bf16.mxu0 %v6520
      %6554 = vmatpush1.bf16.msra.mxu0 %v6519
      %6555 = vmatprep.subr.bf16.mxu0 %v6539
      %6556 = vmatpush1.bf16.msra.mxu0 %v6536
      %6557 = vmatprep.subr.bf16.mxu0 0
      %6558 = vmatpush1.bf16.msra.mxu0 0
      %6559 = vmatprep.subr.bf16.mxu0 0
      %6560 = vmatpush1.bf16.msra.mxu0 0
      %6561 = vmatprep.subr.bf16.mxu0 0
      %6562 = vmatpush1.bf16.msra.mxu0 0
      %6563 = vmatprep.subr.bf16.mxu0 0
      %6564 = vmatpush1.bf16.msra.mxu0 0
      %6565 = vmatprep.subr.bf16.mxu0 0
      %6566 = vmatpush1.bf16.msra.mxu0 0
      %6567 = vmatprep.subr.bf16.mxu0 0
      %6568 = vmatpush1.bf16.msra.mxu0 0
      %6569 = vmatprep.subr.bf16.mxu0 0
      %6570 = vmatpush1.bf16.msra.mxu0 0
      %6571 = vmatprep.subr.bf16.mxu0 0
      %6572 = vmatpush1.bf16.msra.mxu0 0
      %6573 = vmatprep.subr.bf16.mxu0 0
      %6574 = vmatpush1.bf16.msra.mxu0 0
      %6575 = vmatprep.subr.bf16.mxu0 0
      %6576 = vmatpush1.bf16.msra.mxu0 0
      %6577 = vmatprep.subr.bf16.mxu0 0
      %6578 = vmatpush1.bf16.msra.mxu0 0
      %6579 = vmatprep.mubr.bf16.mxu0 0
      %6580 = vmatmul.mubr.bf16.gmra.mrb[0].mxu0 %v6530
      %v6581 = vpop.f32.mrb[0].mxu0
      %v6582 = vadd.f32 0.0, %v6581
      %v6583 = vpop.f32.mrb[0].mxu0
      %v6584 = vadd.f32 0.0, %v6583
      %v6585 = vpop.f32.mrb[0].mxu0
      %v6586 = vpop.f32.mrb[0].mxu0
      %6587 = vdwg.mxu0
      %6588 = vmatprep.subr.bf16.mxu0 %v6510
      %6589 = vmatpush1.bf16.msra.mxu0 %v6509
      %6590 = vmatprep.subr.bf16.mxu0 %v6514
      %6591 = vmatpush1.bf16.msra.mxu0 %v6513
      %6592 = vmatprep.subr.bf16.mxu0 %v6518
      %6593 = vmatpush1.bf16.msra.mxu0 %v6517
      %6594 = vmatprep.subr.bf16.mxu0 %v6522
      %6595 = vmatpush1.bf16.msra.mxu0 %v6521
      %6596 = vmatprep.subr.bf16.mxu0 %v6545
      %6597 = vmatpush1.bf16.msra.mxu0 %v6542
      %6598 = vmatprep.subr.bf16.mxu0 0
      %6599 = vmatpush1.bf16.msra.mxu0 0
      %6600 = vmatprep.subr.bf16.mxu0 0
      %6601 = vmatpush1.bf16.msra.mxu0 0
      %6602 = vmatprep.subr.bf16.mxu0 0
      %6603 = vmatpush1.bf16.msra.mxu0 0
      %6604 = vmatprep.subr.bf16.mxu0 0
      %6605 = vmatpush1.bf16.msra.mxu0 0
      %6606 = vmatprep.subr.bf16.mxu0 0
      %6607 = vmatpush1.bf16.msra.mxu0 0
      %6608 = vmatprep.subr.bf16.mxu0 0
      %6609 = vmatpush1.bf16.msra.mxu0 0
      %6610 = vmatprep.subr.bf16.mxu0 0
      %6611 = vmatpush1.bf16.msra.mxu0 0
      %6612 = vmatprep.subr.bf16.mxu0 0
      %6613 = vmatpush1.bf16.msra.mxu0 0
      %6614 = vmatprep.subr.bf16.mxu0 0
      %6615 = vmatpush1.bf16.msra.mxu0 0
      %6616 = vmatprep.subr.bf16.mxu0 0
      %6617 = vmatpush1.bf16.msra.mxu0 0
      %6618 = vmatprep.subr.bf16.mxu0 0
      %6619 = vmatpush1.bf16.msra.mxu0 0
      %6620 = vmatprep.mubr.bf16.mxu0 0
      %6621 = vmatmul.mubr.bf16.gmra.mrb[0].mxu0 %v6530
      %v6622 = vpop.f32.mrb[0].mxu0
      %v6623 = vadd.f32 0.0, %v6622
      %v6624 = vpop.f32.mrb[0].mxu0
      %v6625 = vadd.f32 0.0, %v6624
      %v6626 = vpop.f32.mrb[0].mxu0
      %v6627 = vpop.f32.mrb[0].mxu0
      %6628 = vdwg.mxu0
      %v6629 = vmax.f32 %v6582, 0.0
      %v6630 = vmax.f32 %v6584, 0.0
      %v6631 = vmax.f32 %v6623, 0.0
      %v6632 = vmax.f32 %v6625, 0.0
      %v6633 = vadd.f32 %v6629, %v496
      %v6634 = vadd.f32 %v6630, %v497
      %v6635 = vadd.f32 %v6631, %v498
      %v6636 = vadd.f32 %v6632, %v499
      %6637 = vst [vmem:[%s494] sm:$0xff] %v6633
      %6638 = vst [vmem:[%s494 + $0x8] sm:$0xff] %v6634
      %6639 = vst [vmem:[%s494 + $0x10] sm:$0xff] %v6635
      %6640 = vst [vmem:[%s494 + $0x18] sm:$0xff] %v6636
      %p6641 = scmp.lt.s32.totalorder %s26, 1
      %s6642 = scalar_select %p6641, %s26, 1
      %s6643 = smul.addr %s6642, 4
      %s6644 = smul.addr %s6643, 8
      %s6645 = scalar_lea.vmem %s15, %s6644
      // Predicated region
      $region81: #{_lambda_.1} parent=79 // pred_check
        %p6646 = pneg %p364
      $region82: #{_lambda_.1} parent=79 // pred_check_branch
        %6648 = sbr.rel (%p6646) target = $region84
      $region83: #{_lambda_.1} parent=79 // pred_region
        _
      $region84: #{_lambda_.1} parent=79 // pred_fallthru
        _
    $region80: #{_lambda_.1} parent=5 // pred_fallthru
      _
    %p6649 = scmp.le.s32.totalorder 2, %s21
    // Predicated region
    $region85: #{_lambda_.1} parent=5 // pred_check
      %p6650 = pneg %p6649
    $region86: #{_lambda_.1} parent=5 // pred_check_branch
      %6652 = sbr.rel (%p6650) target = $region88
    $region87: #{_lambda_.1} parent=5 // pred_region
      %s6653 = ssub.s32 %s21, 2
      // Predicated region
      $region89: #{_lambda_.1} parent=87 // pred_check
        %p6654 = pneg %p370
      $region90: #{_lambda_.1} parent=87 // pred_check_branch
        %6656 = sbr.rel (%p6654) target = $region92
      $region91: #{_lambda_.1} parent=87 // pred_region
        %p6657 = scmp.lt.s32.totalorder %s27, 1
        %s6658 = scalar_select %p6657, %s27, 1
        %s6659 = smul.addr %s6658, 4
        %s6660 = smul.addr %s6659, 8
        %s6661 = scalar_lea.vmem %s15, %s6660
      $region92: #{_lambda_.1} parent=87 // pred_fallthru
        _
    $region88: #{_lambda_.1} parent=5 // pred_fallthru
      _
  $region6: #{_lambda_.1} parent=0 // loop_footer
    %s25 = sadd.s32 1, %s21
  $region7: #{_lambda_.1} parent=0 // loop_footer_branch
    %20 = sbr.rel target = $region3
  $region8: #{_lambda_.1} parent=0 // loop_exit
    _

</llo_original>
